<compile_context>
chip_gen: v6e
topology: v6e:2x2x1
jax: 0.10.0
libtpu: 0.0.40
codegen_flags: <defaults>
</compile_context>

<pallas_src>
import functools

import numpy as np
import jax
import jax.numpy as jnp
from jax import lax
from jax.experimental import pallas as pl
from jax.experimental.pallas import tpu as pltpu


# ----------------------------------------------------------------------------
# Host-side construction of the per-layer operator matrices (runs once, numpy)
#
# Activation layout: X[(n*H + y), (x*C + c)]  (rows = batch,height ; lanes =
# width,channel).  For each layer we build, per height-tap k:
#   A_k : (H_out, H_in)          0/1 selection of the contributing input row
#   B_k : (W_in*C_in, W_out*C_out)  width-tap + channel mixing weights
# so that   out = sum_k A_k @ X @ B_k  (+ bias)   reproduces the layer exactly.
# ----------------------------------------------------------------------------
def _conv_ops(w, b, H_in, W_in, stride, pad):
    """Conv2d. w: (Cout, Cin, kh, kw) (PyTorch layout)."""
    Cout, Cin, kh, kw = w.shape
    H_out = (H_in + 2 * pad - kh) // stride + 1
    W_out = (W_in + 2 * pad - kw) // stride + 1
    A = np.zeros((kh, H_out, H_in), np.float32)
    B = np.zeros((kh, W_in * Cin, W_out * Cout), np.float32)
    for ky in range(kh):
        for oy in range(H_out):
            iy = stride * oy + ky - pad
            if 0 <= iy < H_in:
                A[ky, oy, iy] = 1.0
        for ox in range(W_out):
            for kx in range(kw):
                ix = stride * ox + kx - pad
                if 0 <= ix < W_in:
                    # B[ix*Cin+ci, ox*Cout+co] = w[co, ci, ky, kx]
                    B[ky, ix * Cin:(ix + 1) * Cin, ox * Cout:(ox + 1) * Cout] = w[:, :, ky, kx].T
    bias = np.tile(b.reshape(1, 1, Cout), (H_out, W_out, 1)).reshape(H_out, W_out * Cout)
    return A, B, bias.astype(np.float32)


def _convT_ops(wt, b, H_in, W_in, stride, pad):
    """ConvTranspose2d. wt: (Cin, Cout, kh, kw) (PyTorch layout)."""
    Cin, Cout, kh, kw = wt.shape
    H_out = (H_in - 1) * stride - 2 * pad + kh
    W_out = (W_in - 1) * stride - 2 * pad + kw
    A = np.zeros((kh, H_out, H_in), np.float32)
    B = np.zeros((kh, W_in * Cin, W_out * Cout), np.float32)
    for ky in range(kh):
        for iy in range(H_in):
            oy = stride * iy + ky - pad
            if 0 <= oy < H_out:
                A[ky, oy, iy] = 1.0
        for ix in range(W_in):
            for kx in range(kw):
                ox = stride * ix + kx - pad
                if 0 <= ox < W_out:
                    # B[ix*Cin+ci, ox*Cout+co] = wt[ci, co, ky, kx]
                    B[ky, ix * Cin:(ix + 1) * Cin, ox * Cout:(ox + 1) * Cout] = wt[:, :, ky, kx]
    bias = np.tile(b.reshape(1, 1, Cout), (H_out, W_out, 1)).reshape(H_out, W_out * Cout)
    return A, B, bias.astype(np.float32)


def _pool_ops(H_in, W_in, C, pool, stride):
    """MaxPool2d: out = max over (dy,dx) of A_dy @ X @ B_dx."""
    H_out = (H_in - pool) // stride + 1
    W_out = (W_in - pool) // stride + 1
    A_dy, B_dx = [], []
    for dy in range(pool):
        Ai = np.zeros((H_out, H_in), np.float32)
        for ph in range(H_out):
            Ai[ph, stride * ph + dy] = 1.0
        A_dy.append(Ai)
    for dx in range(pool):
        Bi = np.zeros((W_in * C, W_out * C), np.float32)
        for pw in range(W_out):
            iw = stride * pw + dx
            Bi[iw * C:(iw + 1) * C, pw * C:(pw + 1) * C] = np.eye(C, dtype=np.float32)
        B_dx.append(Bi)
    A = np.stack([A_dy[dy] for dy in range(pool) for dx in range(pool)])
    B = np.stack([B_dx[dx] for dy in range(pool) for dx in range(pool)])
    return A, B


def _linear_enc_ops(We, be, C, H, W):
    """Linear on the NCHW-flattened (C,H,W) feature map -> latent (1 row/sample)."""
    latent = We.shape[0]
    A = np.zeros((H, 1, H), np.float32)
    B = np.zeros((H, W * C, latent), np.float32)
    for qh in range(H):
        A[qh, 0, qh] = 1.0
        for qw in range(W):
            for c in range(C):
                B[qh, qw * C + c, :] = We[:, c * H * W + qh * W + qw]
    bias = be.reshape(1, latent).astype(np.float32)
    return A, B, bias


def _linear_dec_ops(Wd, bd, C, H, W):
    """Linear latent -> NCHW-flattened (C,H,W) map laid out as rows=(iy), lanes=(ix*C+c)."""
    A = np.zeros((H, H, 1), np.float32)
    B = np.zeros((H, Wd.shape[1], W * C), np.float32)
    bias = np.zeros((H, W * C), np.float32)
    for iy in range(H):
        A[iy, iy, 0] = 1.0
        for ix in range(W):
            for c in range(C):
                f = c * H * W + iy * W + ix
                B[iy, :, ix * C + c] = Wd[f, :]
                bias[iy, ix * C + c] = bd[f]
    return A, B, bias


def build_plan(params, batch_tile):
    """Precompute (static layer metadata, flat tuple of device constants)."""
    p = {k: np.asarray(v, dtype=np.float32) for k, v in params.items()}

    layers = []
    # encoder_head: Conv(1->32,k3,s3,p1)+ReLU, MaxPool(2,2), Conv(32->64,k3,s2,p1)+ReLU, MaxPool(2,1)
    layers.append(_conv_ops(p["conv1_w"], p["conv1_b"], 28, 28, 3, 1) + ("sum", "relu"))   # -> 10x10x32
    layers.append(_pool_ops(10, 10, 32, 2, 2) + (None, "max", "none"))                     # -> 5x5x32
    layers.append(_conv_ops(p["conv2_w"], p["conv2_b"], 5, 5, 2, 1) + ("sum", "relu"))     # -> 3x3x64
    layers.append(_pool_ops(3, 3, 64, 2, 1) + (None, "max", "none"))                       # -> 2x2x64
    # encoder_tail / decoder_head (NCHW flatten order folded into the operators)
    layers.append(_linear_enc_ops(p["enc_w"], p["enc_b"], 64, 2, 2) + ("sum", "none"))     # -> (n,16)
    layers.append(_linear_dec_ops(p["dec_w"], p["dec_b"], 64, 2, 2) + ("sum", "relu"))     # -> 2x2x64
    # decoder_tail
    layers.append(_convT_ops(p["dt1_w"], p["dt1_b"], 2, 2, 2, 0) + ("sum", "relu"))        # -> 5x5x64
    layers.append(_convT_ops(p["dt2_w"], p["dt2_b"], 5, 5, 3, 1) + ("sum", "relu"))        # -> 15x15x32
    layers.append(_convT_ops(p["dt3_w"], p["dt3_b"], 15, 15, 2, 1) + ("sum", "sigmoid"))   # -> 28x28x1

    eye_bt = np.eye(batch_tile, dtype=np.float32)
    meta, consts = [], []
    for A, B, bias, combine, act in layers:
        K = A.shape[0]
        # Block-diagonal over the samples of one batch tile (rows are (n, y)).
        A_full = np.stack([np.kron(eye_bt, A[k]) for k in range(K)])
        consts.append(jnp.asarray(A_full, dtype=jnp.bfloat16))   # exact 0/1 in bf16
        consts.append(jnp.asarray(B, dtype=jnp.bfloat16))
        has_bias = bias is not None
        if has_bias:
            consts.append(jnp.asarray(np.tile(bias, (batch_tile, 1)), dtype=jnp.float32))
        meta.append(dict(K=K, has_bias=has_bias, combine=combine, act=act))
    return tuple(meta), tuple(consts)


# ----------------------------------------------------------------------------
# The single fused Pallas kernel: walks the layer plan entirely inside VMEM.
# ----------------------------------------------------------------------------
def _fused_autoencoder_kernel(*refs, meta):
    x_ref, *prm, o_ref = refs
    x = x_ref[...]                                   # (BT*28, 28) f32
    i = 0
    for lyr in meta:
        A_ref, B_ref = prm[i], prm[i + 1]
        i += 2
        b_ref = None
        if lyr["has_bias"]:
            b_ref = prm[i]
            i += 1
        xb = x.astype(jnp.bfloat16)                  # bf16 MXU inputs, f32 accumulation
        acc = None
        for k in range(lyr["K"]):
            t = jnp.dot(A_ref[k], xb, preferred_element_type=jnp.float32)
            t = jnp.dot(t.astype(jnp.bfloat16), B_ref[k],
                        preferred_element_type=jnp.float32)
            if acc is None:
                acc = t
            elif lyr["combine"] == "max":            # fused max-pool (VPU)
                acc = jnp.maximum(acc, t)
            else:
                acc = acc + t
        if b_ref is not None:
            acc = acc + b_ref[...]
        if lyr["act"] == "relu":
            acc = jnp.maximum(acc, 0.0)
        elif lyr["act"] == "sigmoid":
            # exp + approx reciprocal stay on the EUP slot; clip keeps [0,1].
            acc = jnp.clip(pl.reciprocal(1.0 + jnp.exp(-acc), approx=True), 0.0, 1.0)
        x = acc
    o_ref[...] = x.astype(o_ref.dtype)


def autoencoder_forward(x_nchw, consts, *, meta, batch_tile, img=28):
    N = x_nchw.shape[0]
    assert N % batch_tile == 0, "batch must be divisible by batch_tile"
    ntiles = N // batch_tile
    block_rows = batch_tile * img

    # NCHW (N,1,28,28) -> rows (n,y), lanes x   (pure reshape, no data shuffle)
    x2d = x_nchw.astype(jnp.float32).reshape(N * img, img)

    in_specs = [pl.BlockSpec((block_rows, img), lambda i: (i, 0))]
    for c in consts:  # grid-invariant constant operators, resident in VMEM
        in_specs.append(pl.BlockSpec(c.shape, (lambda i, nd=c.ndim: (0,) * nd)))

    out2d = pl.pallas_call(
        functools.partial(_fused_autoencoder_kernel, meta=meta),
        out_shape=jax.ShapeDtypeStruct((N * img, img), jnp.float32),
        grid=(ntiles,),
        in_specs=in_specs,
        out_specs=pl.BlockSpec((block_rows, img), lambda i: (i, 0)),
        compiler_params=pltpu.CompilerParams(
            dimension_semantics=("parallel",),          # batch tiles are independent
            vmem_limit_bytes=32 * 1024 * 1024,
        ),
    )(x2d, *consts)

    return out2d.reshape(N, 1, img, img)


# ----------------------------------------------------------------------------
# Pure-JAX reference (for numerical validation of the fused kernel)
# ----------------------------------------------------------------------------
def reference_forward(x, p):
    prec = lax.Precision.HIGHEST

    def conv(x, w, b, s, pad):
        y = lax.conv_general_dilated(x, w, (s, s), [(pad, pad), (pad, pad)],
                                     dimension_numbers=("NCHW", "OIHW", "NCHW"),
                                     precision=prec)
        return y + b[None, :, None, None]

    def convT(x, wt, b, s, pad):
        w = jnp.transpose(wt[:, :, ::-1, ::-1], (1, 0, 2, 3))
        q = wt.shape[2] - 1 - pad
        y = lax.conv_general_dilated(x, w, (1, 1), [(q, q), (q, q)],
                                     lhs_dilation=(s, s),
                                     dimension_numbers=("NCHW", "OIHW", "NCHW"),
                                     precision=prec)
        return y + b[None, :, None, None]

    def maxpool(x, k, s):
        return lax.reduce_window(x, -jnp.inf, lax.max,
                                 (1, 1, k, k), (1, 1, s, s), "VALID")

    h = jax.nn.relu(conv(x, p["conv1_w"], p["conv1_b"], 3, 1))
    h = maxpool(h, 2, 2)
    h = jax.nn.relu(conv(h, p["conv2_w"], p["conv2_b"], 2, 1))
    h = maxpool(h, 2, 1)
    N = x.shape[0]
    flat = h.reshape(N, -1)
    z = flat @ p["enc_w"].T + p["enc_b"]
    hd = jax.nn.relu(z @ p["dec_w"].T + p["dec_b"]).reshape(N, 64, 2, 2)
    hd = jax.nn.relu(convT(hd, p["dt1_w"], p["dt1_b"], 2, 0))
    hd = jax.nn.relu(convT(hd, p["dt2_w"], p["dt2_b"], 3, 1))
    return jax.nn.sigmoid(convT(hd, p["dt3_w"], p["dt3_b"], 2, 1))


def init_params(key):
    ks = jax.random.split(key, 14)
    n = lambda k, s: 0.1 * jax.random.normal(k, s, dtype=jnp.float32)
    flat_dim = 64 * 2 * 2      # decoder_shape[1]*[2]*[3] for a 28x28 input
    latent = 16
    return {
        "conv1_w": n(ks[0], (32, 1, 3, 3)),   "conv1_b": n(ks[1], (32,)),
        "conv2_w": n(ks[2], (64, 32, 3, 3)),  "conv2_b": n(ks[3], (64,)),
        "enc_w":   n(ks[4], (latent, flat_dim)), "enc_b": n(ks[5], (latent,)),
        "dec_w":   n(ks[6], (flat_dim, latent)), "dec_b": n(ks[7], (flat_dim,)),
        "dt1_w":   n(ks[8], (64, 64, 3, 3)),  "dt1_b": n(ks[9], (64,)),
        "dt2_w":   n(ks[10], (64, 32, 5, 5)), "dt2_b": n(ks[11], (32,)),
        "dt3_w":   n(ks[12], (32, 1, 2, 2)),  "dt3_b": n(ks[13], (1,)),
    }


if __name__ == "__main__":
    key = jax.random.PRNGKey(0)
    k_x, k_p = jax.random.split(key)
    x = jax.random.normal(k_x, (2, 1, 28, 28), dtype=jnp.float32)   # NCHW like PyTorch
    params = init_params(k_p)

    batch_tile = 2                      # == batch here -> grid=(1,); scales for larger N
    meta, consts = build_plan(params, batch_tile)

    fwd = jax.jit(functools.partial(autoencoder_forward, meta=meta, batch_tile=batch_tile))
    out = jax.block_until_ready(fwd(x, consts))

    assert out.shape == (2, 1, 28, 28), out.shape
    assert out.dtype == jnp.float32
    assert bool(jnp.all(jnp.isfinite(out)))
    assert bool(jnp.all((out >= 0.0) & (out <= 1.0)))               # sigmoid range

    ref = jax.block_until_ready(jax.jit(reference_forward)(x, params))
    max_err = float(jnp.max(jnp.abs(out - ref)))
    assert max_err < 5e-2, f"max abs error vs reference: {max_err}"

    print("KERNEL_OK")
</pallas_src>

<mosaic_0001>
module attributes {stable_mosaic.version = 11 : i64} {
  func.func @_fused_autoencoder_kernel(%arg0: i32, %arg1: memref<56x28xf32, #tpu.memory_space<vmem>>, %arg2: memref<3x20x56xbf16, #tpu.memory_space<vmem>>, %arg3: memref<3x28x320xbf16, #tpu.memory_space<vmem>>, %arg4: memref<20x320xf32, #tpu.memory_space<vmem>>, %arg5: memref<4x10x20xbf16, #tpu.memory_space<vmem>>, %arg6: memref<4x320x160xbf16, #tpu.memory_space<vmem>>, %arg7: memref<3x6x10xbf16, #tpu.memory_space<vmem>>, %arg8: memref<3x160x192xbf16, #tpu.memory_space<vmem>>, %arg9: memref<6x192xf32, #tpu.memory_space<vmem>>, %arg10: memref<4x4x6xbf16, #tpu.memory_space<vmem>>, %arg11: memref<4x192x128xbf16, #tpu.memory_space<vmem>>, %arg12: memref<2x2x4xbf16, #tpu.memory_space<vmem>>, %arg13: memref<2x128x16xbf16, #tpu.memory_space<vmem>>, %arg14: memref<2x16xf32, #tpu.memory_space<vmem>>, %arg15: memref<2x4x2xbf16, #tpu.memory_space<vmem>>, %arg16: memref<2x16x128xbf16, #tpu.memory_space<vmem>>, %arg17: memref<4x128xf32, #tpu.memory_space<vmem>>, %arg18: memref<3x10x4xbf16, #tpu.memory_space<vmem>>, %arg19: memref<3x128x320xbf16, #tpu.memory_space<vmem>>, %arg20: memref<10x320xf32, #tpu.memory_space<vmem>>, %arg21: memref<5x30x10xbf16, #tpu.memory_space<vmem>>, %arg22: memref<5x320x480xbf16, #tpu.memory_space<vmem>>, %arg23: memref<30x480xf32, #tpu.memory_space<vmem>>, %arg24: memref<2x56x30xbf16, #tpu.memory_space<vmem>>, %arg25: memref<2x480x28xbf16, #tpu.memory_space<vmem>>, %arg26: memref<56x28xf32, #tpu.memory_space<vmem>>, %arg27: memref<56x28xf32, #tpu.memory_space<vmem>>) attributes {dimension_semantics = [#tpu.dimension_semantics<parallel>], iteration_bounds = array<i64: 1>, scalar_prefetch = 0 : i64, scratch_operands = 0 : i64, tpu.core_type = #tpu.core_type<tc>, window_params = [{transform_indices = @transform_0, window_bounds = array<i64: 56, 28>}, {pipeline_mode = #tpu.pipeline_mode<synchronous>, transform_indices = @transform_1, window_bounds = array<i64: 3, 20, 56>}, {pipeline_mode = #tpu.pipeline_mode<synchronous>, transform_indices = @transform_2, window_bounds = array<i64: 3, 28, 320>}, {pipeline_mode = #tpu.pipeline_mode<synchronous>, transform_indices = @transform_3, window_bounds = array<i64: 20, 320>}, {pipeline_mode = #tpu.pipeline_mode<synchronous>, transform_indices = @transform_4, window_bounds = array<i64: 4, 10, 20>}, {pipeline_mode = #tpu.pipeline_mode<synchronous>, transform_indices = @transform_5, window_bounds = array<i64: 4, 320, 160>}, {pipeline_mode = #tpu.pipeline_mode<synchronous>, transform_indices = @transform_6, window_bounds = array<i64: 3, 6, 10>}, {pipeline_mode = #tpu.pipeline_mode<synchronous>, transform_indices = @transform_7, window_bounds = array<i64: 3, 160, 192>}, {pipeline_mode = #tpu.pipeline_mode<synchronous>, transform_indices = @transform_8, window_bounds = array<i64: 6, 192>}, {pipeline_mode = #tpu.pipeline_mode<synchronous>, transform_indices = @transform_9, window_bounds = array<i64: 4, 4, 6>}, {pipeline_mode = #tpu.pipeline_mode<synchronous>, transform_indices = @transform_10, window_bounds = array<i64: 4, 192, 128>}, {pipeline_mode = #tpu.pipeline_mode<synchronous>, transform_indices = @transform_11, window_bounds = array<i64: 2, 2, 4>}, {pipeline_mode = #tpu.pipeline_mode<synchronous>, transform_indices = @transform_12, window_bounds = array<i64: 2, 128, 16>}, {pipeline_mode = #tpu.pipeline_mode<synchronous>, transform_indices = @transform_13, window_bounds = array<i64: 2, 16>}, {pipeline_mode = #tpu.pipeline_mode<synchronous>, transform_indices = @transform_14, window_bounds = array<i64: 2, 4, 2>}, {pipeline_mode = #tpu.pipeline_mode<synchronous>, transform_indices = @transform_15, window_bounds = array<i64: 2, 16, 128>}, {pipeline_mode = #tpu.pipeline_mode<synchronous>, transform_indices = @transform_16, window_bounds = array<i64: 4, 128>}, {pipeline_mode = #tpu.pipeline_mode<synchronous>, transform_indices = @transform_17, window_bounds = array<i64: 3, 10, 4>}, {pipeline_mode = #tpu.pipeline_mode<synchronous>, transform_indices = @transform_18, window_bounds = array<i64: 3, 128, 320>}, {pipeline_mode = #tpu.pipeline_mode<synchronous>, transform_indices = @transform_19, window_bounds = array<i64: 10, 320>}, {pipeline_mode = #tpu.pipeline_mode<synchronous>, transform_indices = @transform_20, window_bounds = array<i64: 5, 30, 10>}, {pipeline_mode = #tpu.pipeline_mode<synchronous>, transform_indices = @transform_21, window_bounds = array<i64: 5, 320, 480>}, {pipeline_mode = #tpu.pipeline_mode<synchronous>, transform_indices = @transform_22, window_bounds = array<i64: 30, 480>}, {pipeline_mode = #tpu.pipeline_mode<synchronous>, transform_indices = @transform_23, window_bounds = array<i64: 2, 56, 30>}, {pipeline_mode = #tpu.pipeline_mode<synchronous>, transform_indices = @transform_24, window_bounds = array<i64: 2, 480, 28>}, {pipeline_mode = #tpu.pipeline_mode<synchronous>, transform_indices = @transform_25, window_bounds = array<i64: 56, 28>}, {transform_indices = @transform_26, window_bounds = array<i64: 56, 28>}]} {
    %c0 = arith.constant 0 : index
    %c0_0 = arith.constant 0 : index
    %0 = vector.load %arg1[%c0, %c0_0] : memref<56x28xf32, #tpu.memory_space<vmem>>, vector<56x28xf32>
    %1 = arith.truncf %0 : vector<56x28xf32> to vector<56x28xbf16>
    %c0_1 = arith.constant 0 : index
    %c0_2 = arith.constant 0 : index
    %c0_3 = arith.constant 0 : index
    %2 = vector.load %arg2[%c0_1, %c0_2, %c0_3] : memref<3x20x56xbf16, #tpu.memory_space<vmem>>, vector<1x20x56xbf16>
    %3 = vector.shape_cast %2 : vector<1x20x56xbf16> to vector<20x56xbf16>
    %cst = arith.constant dense<0.000000e+00> : vector<20x28xf32>
    %4 = tpu.matmul %3, %1, %cst {dimension_numbers = #tpu.dot_dimension_numbers<[1], [0], [0], [1], [0, 0, 1, 1], [], []>} : vector<20x56xbf16>, vector<56x28xbf16>, vector<20x28xf32> -> vector<20x28xf32>
    %5 = arith.truncf %4 : vector<20x28xf32> to vector<20x28xbf16>
    %c0_4 = arith.constant 0 : index
    %c0_5 = arith.constant 0 : index
    %c0_6 = arith.constant 0 : index
    %6 = vector.load %arg3[%c0_4, %c0_5, %c0_6] : memref<3x28x320xbf16, #tpu.memory_space<vmem>>, vector<1x28x320xbf16>
    %7 = vector.shape_cast %6 : vector<1x28x320xbf16> to vector<28x320xbf16>
    %cst_7 = arith.constant dense<0.000000e+00> : vector<20x320xf32>
    %8 = tpu.matmul %5, %7, %cst_7 {dimension_numbers = #tpu.dot_dimension_numbers<[1], [0], [0], [1], [0, 0, 1, 1], [], []>} : vector<20x28xbf16>, vector<28x320xbf16>, vector<20x320xf32> -> vector<20x320xf32>
    %c1 = arith.constant 1 : index
    %c0_8 = arith.constant 0 : index
    %c0_9 = arith.constant 0 : index
    %9 = vector.load %arg2[%c1, %c0_8, %c0_9] : memref<3x20x56xbf16, #tpu.memory_space<vmem>>, vector<1x20x56xbf16>
    %10 = vector.shape_cast %9 : vector<1x20x56xbf16> to vector<20x56xbf16>
    %cst_10 = arith.constant dense<0.000000e+00> : vector<20x28xf32>
    %11 = tpu.matmul %10, %1, %cst_10 {dimension_numbers = #tpu.dot_dimension_numbers<[1], [0], [0], [1], [0, 0, 1, 1], [], []>} : vector<20x56xbf16>, vector<56x28xbf16>, vector<20x28xf32> -> vector<20x28xf32>
    %12 = arith.truncf %11 : vector<20x28xf32> to vector<20x28xbf16>
    %c1_11 = arith.constant 1 : index
    %c0_12 = arith.constant 0 : index
    %c0_13 = arith.constant 0 : index
    %13 = vector.load %arg3[%c1_11, %c0_12, %c0_13] : memref<3x28x320xbf16, #tpu.memory_space<vmem>>, vector<1x28x320xbf16>
    %14 = vector.shape_cast %13 : vector<1x28x320xbf16> to vector<28x320xbf16>
    %cst_14 = arith.constant dense<0.000000e+00> : vector<20x320xf32>
    %15 = tpu.matmul %12, %14, %cst_14 {dimension_numbers = #tpu.dot_dimension_numbers<[1], [0], [0], [1], [0, 0, 1, 1], [], []>} : vector<20x28xbf16>, vector<28x320xbf16>, vector<20x320xf32> -> vector<20x320xf32>
    %16 = arith.addf %8, %15 : vector<20x320xf32>
    %c2 = arith.constant 2 : index
    %c0_15 = arith.constant 0 : index
    %c0_16 = arith.constant 0 : index
    %17 = vector.load %arg2[%c2, %c0_15, %c0_16] : memref<3x20x56xbf16, #tpu.memory_space<vmem>>, vector<1x20x56xbf16>
    %18 = vector.shape_cast %17 : vector<1x20x56xbf16> to vector<20x56xbf16>
    %cst_17 = arith.constant dense<0.000000e+00> : vector<20x28xf32>
    %19 = tpu.matmul %18, %1, %cst_17 {dimension_numbers = #tpu.dot_dimension_numbers<[1], [0], [0], [1], [0, 0, 1, 1], [], []>} : vector<20x56xbf16>, vector<56x28xbf16>, vector<20x28xf32> -> vector<20x28xf32>
    %20 = arith.truncf %19 : vector<20x28xf32> to vector<20x28xbf16>
    %c2_18 = arith.constant 2 : index
    %c0_19 = arith.constant 0 : index
    %c0_20 = arith.constant 0 : index
    %21 = vector.load %arg3[%c2_18, %c0_19, %c0_20] : memref<3x28x320xbf16, #tpu.memory_space<vmem>>, vector<1x28x320xbf16>
    %22 = vector.shape_cast %21 : vector<1x28x320xbf16> to vector<28x320xbf16>
    %cst_21 = arith.constant dense<0.000000e+00> : vector<20x320xf32>
    %23 = tpu.matmul %20, %22, %cst_21 {dimension_numbers = #tpu.dot_dimension_numbers<[1], [0], [0], [1], [0, 0, 1, 1], [], []>} : vector<20x28xbf16>, vector<28x320xbf16>, vector<20x320xf32> -> vector<20x320xf32>
    %24 = arith.addf %16, %23 : vector<20x320xf32>
    %c0_22 = arith.constant 0 : index
    %c0_23 = arith.constant 0 : index
    %25 = vector.load %arg4[%c0_22, %c0_23] : memref<20x320xf32, #tpu.memory_space<vmem>>, vector<20x320xf32>
    %26 = arith.addf %24, %25 : vector<20x320xf32>
    %cst_24 = arith.constant 0.000000e+00 : f32
    %27 = vector.broadcast %cst_24 : f32 to vector<20x320xf32>
    %28 = arith.maximumf %26, %27 : vector<20x320xf32>
    %29 = arith.truncf %28 : vector<20x320xf32> to vector<20x320xbf16>
    %c0_25 = arith.constant 0 : index
    %c0_26 = arith.constant 0 : index
    %c0_27 = arith.constant 0 : index
    %30 = vector.load %arg5[%c0_25, %c0_26, %c0_27] : memref<4x10x20xbf16, #tpu.memory_space<vmem>>, vector<1x10x20xbf16>
    %31 = vector.shape_cast %30 : vector<1x10x20xbf16> to vector<10x20xbf16>
    %cst_28 = arith.constant dense<0.000000e+00> : vector<10x320xf32>
    %32 = tpu.matmul %31, %29, %cst_28 {dimension_numbers = #tpu.dot_dimension_numbers<[1], [0], [0], [1], [0, 0, 1, 1], [], []>} : vector<10x20xbf16>, vector<20x320xbf16>, vector<10x320xf32> -> vector<10x320xf32>
    %33 = arith.truncf %32 : vector<10x320xf32> to vector<10x320xbf16>
    %c0_29 = arith.constant 0 : index
    %c0_30 = arith.constant 0 : index
    %c0_31 = arith.constant 0 : index
    %34 = vector.load %arg6[%c0_29, %c0_30, %c0_31] : memref<4x320x160xbf16, #tpu.memory_space<vmem>>, vector<1x320x160xbf16>
    %35 = vector.shape_cast %34 : vector<1x320x160xbf16> to vector<320x160xbf16>
    %cst_32 = arith.constant dense<0.000000e+00> : vector<10x160xf32>
    %36 = tpu.matmul %33, %35, %cst_32 {dimension_numbers = #tpu.dot_dimension_numbers<[1], [0], [0], [1], [0, 0, 1, 1], [], []>} : vector<10x320xbf16>, vector<320x160xbf16>, vector<10x160xf32> -> vector<10x160xf32>
    %c1_33 = arith.constant 1 : index
    %c0_34 = arith.constant 0 : index
    %c0_35 = arith.constant 0 : index
    %37 = vector.load %arg5[%c1_33, %c0_34, %c0_35] : memref<4x10x20xbf16, #tpu.memory_space<vmem>>, vector<1x10x20xbf16>
    %38 = vector.shape_cast %37 : vector<1x10x20xbf16> to vector<10x20xbf16>
    %cst_36 = arith.constant dense<0.000000e+00> : vector<10x320xf32>
    %39 = tpu.matmul %38, %29, %cst_36 {dimension_numbers = #tpu.dot_dimension_numbers<[1], [0], [0], [1], [0, 0, 1, 1], [], []>} : vector<10x20xbf16>, vector<20x320xbf16>, vector<10x320xf32> -> vector<10x320xf32>
    %40 = arith.truncf %39 : vector<10x320xf32> to vector<10x320xbf16>
    %c1_37 = arith.constant 1 : index
    %c0_38 = arith.constant 0 : index
    %c0_39 = arith.constant 0 : index
    %41 = vector.load %arg6[%c1_37, %c0_38, %c0_39] : memref<4x320x160xbf16, #tpu.memory_space<vmem>>, vector<1x320x160xbf16>
    %42 = vector.shape_cast %41 : vector<1x320x160xbf16> to vector<320x160xbf16>
    %cst_40 = arith.constant dense<0.000000e+00> : vector<10x160xf32>
    %43 = tpu.matmul %40, %42, %cst_40 {dimension_numbers = #tpu.dot_dimension_numbers<[1], [0], [0], [1], [0, 0, 1, 1], [], []>} : vector<10x320xbf16>, vector<320x160xbf16>, vector<10x160xf32> -> vector<10x160xf32>
    %44 = arith.maximumf %36, %43 : vector<10x160xf32>
    %c2_41 = arith.constant 2 : index
    %c0_42 = arith.constant 0 : index
    %c0_43 = arith.constant 0 : index
    %45 = vector.load %arg5[%c2_41, %c0_42, %c0_43] : memref<4x10x20xbf16, #tpu.memory_space<vmem>>, vector<1x10x20xbf16>
    %46 = vector.shape_cast %45 : vector<1x10x20xbf16> to vector<10x20xbf16>
    %cst_44 = arith.constant dense<0.000000e+00> : vector<10x320xf32>
    %47 = tpu.matmul %46, %29, %cst_44 {dimension_numbers = #tpu.dot_dimension_numbers<[1], [0], [0], [1], [0, 0, 1, 1], [], []>} : vector<10x20xbf16>, vector<20x320xbf16>, vector<10x320xf32> -> vector<10x320xf32>
    %48 = arith.truncf %47 : vector<10x320xf32> to vector<10x320xbf16>
    %c2_45 = arith.constant 2 : index
    %c0_46 = arith.constant 0 : index
    %c0_47 = arith.constant 0 : index
    %49 = vector.load %arg6[%c2_45, %c0_46, %c0_47] : memref<4x320x160xbf16, #tpu.memory_space<vmem>>, vector<1x320x160xbf16>
    %50 = vector.shape_cast %49 : vector<1x320x160xbf16> to vector<320x160xbf16>
    %cst_48 = arith.constant dense<0.000000e+00> : vector<10x160xf32>
    %51 = tpu.matmul %48, %50, %cst_48 {dimension_numbers = #tpu.dot_dimension_numbers<[1], [0], [0], [1], [0, 0, 1, 1], [], []>} : vector<10x320xbf16>, vector<320x160xbf16>, vector<10x160xf32> -> vector<10x160xf32>
    %52 = arith.maximumf %44, %51 : vector<10x160xf32>
    %c3 = arith.constant 3 : index
    %c0_49 = arith.constant 0 : index
    %c0_50 = arith.constant 0 : index
    %53 = vector.load %arg5[%c3, %c0_49, %c0_50] : memref<4x10x20xbf16, #tpu.memory_space<vmem>>, vector<1x10x20xbf16>
    %54 = vector.shape_cast %53 : vector<1x10x20xbf16> to vector<10x20xbf16>
    %cst_51 = arith.constant dense<0.000000e+00> : vector<10x320xf32>
    %55 = tpu.matmul %54, %29, %cst_51 {dimension_numbers = #tpu.dot_dimension_numbers<[1], [0], [0], [1], [0, 0, 1, 1], [], []>} : vector<10x20xbf16>, vector<20x320xbf16>, vector<10x320xf32> -> vector<10x320xf32>
    %56 = arith.truncf %55 : vector<10x320xf32> to vector<10x320xbf16>
    %c3_52 = arith.constant 3 : index
    %c0_53 = arith.constant 0 : index
    %c0_54 = arith.constant 0 : index
    %57 = vector.load %arg6[%c3_52, %c0_53, %c0_54] : memref<4x320x160xbf16, #tpu.memory_space<vmem>>, vector<1x320x160xbf16>
    %58 = vector.shape_cast %57 : vector<1x320x160xbf16> to vector<320x160xbf16>
    %cst_55 = arith.constant dense<0.000000e+00> : vector<10x160xf32>
    %59 = tpu.matmul %56, %58, %cst_55 {dimension_numbers = #tpu.dot_dimension_numbers<[1], [0], [0], [1], [0, 0, 1, 1], [], []>} : vector<10x320xbf16>, vector<320x160xbf16>, vector<10x160xf32> -> vector<10x160xf32>
    %60 = arith.maximumf %52, %59 : vector<10x160xf32>
    %61 = arith.truncf %60 : vector<10x160xf32> to vector<10x160xbf16>
    %c0_56 = arith.constant 0 : index
    %c0_57 = arith.constant 0 : index
    %c0_58 = arith.constant 0 : index
    %62 = vector.load %arg7[%c0_56, %c0_57, %c0_58] : memref<3x6x10xbf16, #tpu.memory_space<vmem>>, vector<1x6x10xbf16>
    %63 = vector.shape_cast %62 : vector<1x6x10xbf16> to vector<6x10xbf16>
    %cst_59 = arith.constant dense<0.000000e+00> : vector<6x160xf32>
    %64 = tpu.matmul %63, %61, %cst_59 {dimension_numbers = #tpu.dot_dimension_numbers<[1], [0], [0], [1], [0, 0, 1, 1], [], []>} : vector<6x10xbf16>, vector<10x160xbf16>, vector<6x160xf32> -> vector<6x160xf32>
    %65 = arith.truncf %64 : vector<6x160xf32> to vector<6x160xbf16>
    %c0_60 = arith.constant 0 : index
    %c0_61 = arith.constant 0 : index
    %c0_62 = arith.constant 0 : index
    %66 = vector.load %arg8[%c0_60, %c0_61, %c0_62] : memref<3x160x192xbf16, #tpu.memory_space<vmem>>, vector<1x160x192xbf16>
    %67 = vector.shape_cast %66 : vector<1x160x192xbf16> to vector<160x192xbf16>
    %cst_63 = arith.constant dense<0.000000e+00> : vector<6x192xf32>
    %68 = tpu.matmul %65, %67, %cst_63 {dimension_numbers = #tpu.dot_dimension_numbers<[1], [0], [0], [1], [0, 0, 1, 1], [], []>} : vector<6x160xbf16>, vector<160x192xbf16>, vector<6x192xf32> -> vector<6x192xf32>
    %c1_64 = arith.constant 1 : index
    %c0_65 = arith.constant 0 : index
    %c0_66 = arith.constant 0 : index
    %69 = vector.load %arg7[%c1_64, %c0_65, %c0_66] : memref<3x6x10xbf16, #tpu.memory_space<vmem>>, vector<1x6x10xbf16>
    %70 = vector.shape_cast %69 : vector<1x6x10xbf16> to vector<6x10xbf16>
    %cst_67 = arith.constant dense<0.000000e+00> : vector<6x160xf32>
    %71 = tpu.matmul %70, %61, %cst_67 {dimension_numbers = #tpu.dot_dimension_numbers<[1], [0], [0], [1], [0, 0, 1, 1], [], []>} : vector<6x10xbf16>, vector<10x160xbf16>, vector<6x160xf32> -> vector<6x160xf32>
    %72 = arith.truncf %71 : vector<6x160xf32> to vector<6x160xbf16>
    %c1_68 = arith.constant 1 : index
    %c0_69 = arith.constant 0 : index
    %c0_70 = arith.constant 0 : index
    %73 = vector.load %arg8[%c1_68, %c0_69, %c0_70] : memref<3x160x192xbf16, #tpu.memory_space<vmem>>, vector<1x160x192xbf16>
    %74 = vector.shape_cast %73 : vector<1x160x192xbf16> to vector<160x192xbf16>
    %cst_71 = arith.constant dense<0.000000e+00> : vector<6x192xf32>
    %75 = tpu.matmul %72, %74, %cst_71 {dimension_numbers = #tpu.dot_dimension_numbers<[1], [0], [0], [1], [0, 0, 1, 1], [], []>} : vector<6x160xbf16>, vector<160x192xbf16>, vector<6x192xf32> -> vector<6x192xf32>
    %76 = arith.addf %68, %75 : vector<6x192xf32>
    %c2_72 = arith.constant 2 : index
    %c0_73 = arith.constant 0 : index
    %c0_74 = arith.constant 0 : index
    %77 = vector.load %arg7[%c2_72, %c0_73, %c0_74] : memref<3x6x10xbf16, #tpu.memory_space<vmem>>, vector<1x6x10xbf16>
    %78 = vector.shape_cast %77 : vector<1x6x10xbf16> to vector<6x10xbf16>
    %cst_75 = arith.constant dense<0.000000e+00> : vector<6x160xf32>
    %79 = tpu.matmul %78, %61, %cst_75 {dimension_numbers = #tpu.dot_dimension_numbers<[1], [0], [0], [1], [0, 0, 1, 1], [], []>} : vector<6x10xbf16>, vector<10x160xbf16>, vector<6x160xf32> -> vector<6x160xf32>
    %80 = arith.truncf %79 : vector<6x160xf32> to vector<6x160xbf16>
    %c2_76 = arith.constant 2 : index
    %c0_77 = arith.constant 0 : index
    %c0_78 = arith.constant 0 : index
    %81 = vector.load %arg8[%c2_76, %c0_77, %c0_78] : memref<3x160x192xbf16, #tpu.memory_space<vmem>>, vector<1x160x192xbf16>
    %82 = vector.shape_cast %81 : vector<1x160x192xbf16> to vector<160x192xbf16>
    %cst_79 = arith.constant dense<0.000000e+00> : vector<6x192xf32>
    %83 = tpu.matmul %80, %82, %cst_79 {dimension_numbers = #tpu.dot_dimension_numbers<[1], [0], [0], [1], [0, 0, 1, 1], [], []>} : vector<6x160xbf16>, vector<160x192xbf16>, vector<6x192xf32> -> vector<6x192xf32>
    %84 = arith.addf %76, %83 : vector<6x192xf32>
    %c0_80 = arith.constant 0 : index
    %c0_81 = arith.constant 0 : index
    %85 = vector.load %arg9[%c0_80, %c0_81] : memref<6x192xf32, #tpu.memory_space<vmem>>, vector<6x192xf32>
    %86 = arith.addf %84, %85 : vector<6x192xf32>
    %cst_82 = arith.constant 0.000000e+00 : f32
    %87 = vector.broadcast %cst_82 : f32 to vector<6x192xf32>
    %88 = arith.maximumf %86, %87 : vector<6x192xf32>
    %89 = arith.truncf %88 : vector<6x192xf32> to vector<6x192xbf16>
    %c0_83 = arith.constant 0 : index
    %c0_84 = arith.constant 0 : index
    %c0_85 = arith.constant 0 : index
    %90 = vector.load %arg10[%c0_83, %c0_84, %c0_85] : memref<4x4x6xbf16, #tpu.memory_space<vmem>>, vector<1x4x6xbf16>
    %91 = vector.shape_cast %90 : vector<1x4x6xbf16> to vector<4x6xbf16>
    %cst_86 = arith.constant dense<0.000000e+00> : vector<4x192xf32>
    %92 = tpu.matmul %91, %89, %cst_86 {dimension_numbers = #tpu.dot_dimension_numbers<[1], [0], [0], [1], [0, 0, 1, 1], [], []>} : vector<4x6xbf16>, vector<6x192xbf16>, vector<4x192xf32> -> vector<4x192xf32>
    %93 = arith.truncf %92 : vector<4x192xf32> to vector<4x192xbf16>
    %c0_87 = arith.constant 0 : index
    %c0_88 = arith.constant 0 : index
    %c0_89 = arith.constant 0 : index
    %94 = vector.load %arg11[%c0_87, %c0_88, %c0_89] : memref<4x192x128xbf16, #tpu.memory_space<vmem>>, vector<1x192x128xbf16>
    %95 = vector.shape_cast %94 : vector<1x192x128xbf16> to vector<192x128xbf16>
    %cst_90 = arith.constant dense<0.000000e+00> : vector<4x128xf32>
    %96 = tpu.matmul %93, %95, %cst_90 {dimension_numbers = #tpu.dot_dimension_numbers<[1], [0], [0], [1], [0, 0, 1, 1], [], []>} : vector<4x192xbf16>, vector<192x128xbf16>, vector<4x128xf32> -> vector<4x128xf32>
    %c1_91 = arith.constant 1 : index
    %c0_92 = arith.constant 0 : index
    %c0_93 = arith.constant 0 : index
    %97 = vector.load %arg10[%c1_91, %c0_92, %c0_93] : memref<4x4x6xbf16, #tpu.memory_space<vmem>>, vector<1x4x6xbf16>
    %98 = vector.shape_cast %97 : vector<1x4x6xbf16> to vector<4x6xbf16>
    %cst_94 = arith.constant dense<0.000000e+00> : vector<4x192xf32>
    %99 = tpu.matmul %98, %89, %cst_94 {dimension_numbers = #tpu.dot_dimension_numbers<[1], [0], [0], [1], [0, 0, 1, 1], [], []>} : vector<4x6xbf16>, vector<6x192xbf16>, vector<4x192xf32> -> vector<4x192xf32>
    %100 = arith.truncf %99 : vector<4x192xf32> to vector<4x192xbf16>
    %c1_95 = arith.constant 1 : index
    %c0_96 = arith.constant 0 : index
    %c0_97 = arith.constant 0 : index
    %101 = vector.load %arg11[%c1_95, %c0_96, %c0_97] : memref<4x192x128xbf16, #tpu.memory_space<vmem>>, vector<1x192x128xbf16>
    %102 = vector.shape_cast %101 : vector<1x192x128xbf16> to vector<192x128xbf16>
    %cst_98 = arith.constant dense<0.000000e+00> : vector<4x128xf32>
    %103 = tpu.matmul %100, %102, %cst_98 {dimension_numbers = #tpu.dot_dimension_numbers<[1], [0], [0], [1], [0, 0, 1, 1], [], []>} : vector<4x192xbf16>, vector<192x128xbf16>, vector<4x128xf32> -> vector<4x128xf32>
    %104 = arith.maximumf %96, %103 : vector<4x128xf32>
    %c2_99 = arith.constant 2 : index
    %c0_100 = arith.constant 0 : index
    %c0_101 = arith.constant 0 : index
    %105 = vector.load %arg10[%c2_99, %c0_100, %c0_101] : memref<4x4x6xbf16, #tpu.memory_space<vmem>>, vector<1x4x6xbf16>
    %106 = vector.shape_cast %105 : vector<1x4x6xbf16> to vector<4x6xbf16>
    %cst_102 = arith.constant dense<0.000000e+00> : vector<4x192xf32>
    %107 = tpu.matmul %106, %89, %cst_102 {dimension_numbers = #tpu.dot_dimension_numbers<[1], [0], [0], [1], [0, 0, 1, 1], [], []>} : vector<4x6xbf16>, vector<6x192xbf16>, vector<4x192xf32> -> vector<4x192xf32>
    %108 = arith.truncf %107 : vector<4x192xf32> to vector<4x192xbf16>
    %c2_103 = arith.constant 2 : index
    %c0_104 = arith.constant 0 : index
    %c0_105 = arith.constant 0 : index
    %109 = vector.load %arg11[%c2_103, %c0_104, %c0_105] : memref<4x192x128xbf16, #tpu.memory_space<vmem>>, vector<1x192x128xbf16>
    %110 = vector.shape_cast %109 : vector<1x192x128xbf16> to vector<192x128xbf16>
    %cst_106 = arith.constant dense<0.000000e+00> : vector<4x128xf32>
    %111 = tpu.matmul %108, %110, %cst_106 {dimension_numbers = #tpu.dot_dimension_numbers<[1], [0], [0], [1], [0, 0, 1, 1], [], []>} : vector<4x192xbf16>, vector<192x128xbf16>, vector<4x128xf32> -> vector<4x128xf32>
    %112 = arith.maximumf %104, %111 : vector<4x128xf32>
    %c3_107 = arith.constant 3 : index
    %c0_108 = arith.constant 0 : index
    %c0_109 = arith.constant 0 : index
    %113 = vector.load %arg10[%c3_107, %c0_108, %c0_109] : memref<4x4x6xbf16, #tpu.memory_space<vmem>>, vector<1x4x6xbf16>
    %114 = vector.shape_cast %113 : vector<1x4x6xbf16> to vector<4x6xbf16>
    %cst_110 = arith.constant dense<0.000000e+00> : vector<4x192xf32>
    %115 = tpu.matmul %114, %89, %cst_110 {dimension_numbers = #tpu.dot_dimension_numbers<[1], [0], [0], [1], [0, 0, 1, 1], [], []>} : vector<4x6xbf16>, vector<6x192xbf16>, vector<4x192xf32> -> vector<4x192xf32>
    %116 = arith.truncf %115 : vector<4x192xf32> to vector<4x192xbf16>
    %c3_111 = arith.constant 3 : index
    %c0_112 = arith.constant 0 : index
    %c0_113 = arith.constant 0 : index
    %117 = vector.load %arg11[%c3_111, %c0_112, %c0_113] : memref<4x192x128xbf16, #tpu.memory_space<vmem>>, vector<1x192x128xbf16>
    %118 = vector.shape_cast %117 : vector<1x192x128xbf16> to vector<192x128xbf16>
    %cst_114 = arith.constant dense<0.000000e+00> : vector<4x128xf32>
    %119 = tpu.matmul %116, %118, %cst_114 {dimension_numbers = #tpu.dot_dimension_numbers<[1], [0], [0], [1], [0, 0, 1, 1], [], []>} : vector<4x192xbf16>, vector<192x128xbf16>, vector<4x128xf32> -> vector<4x128xf32>
    %120 = arith.maximumf %112, %119 : vector<4x128xf32>
    %121 = arith.truncf %120 : vector<4x128xf32> to vector<4x128xbf16>
    %c0_115 = arith.constant 0 : index
    %c0_116 = arith.constant 0 : index
    %c0_117 = arith.constant 0 : index
    %122 = vector.load %arg12[%c0_115, %c0_116, %c0_117] : memref<2x2x4xbf16, #tpu.memory_space<vmem>>, vector<1x2x4xbf16>
    %123 = vector.shape_cast %122 : vector<1x2x4xbf16> to vector<2x4xbf16>
    %cst_118 = arith.constant dense<0.000000e+00> : vector<2x128xf32>
    %124 = tpu.matmul %123, %121, %cst_118 {dimension_numbers = #tpu.dot_dimension_numbers<[1], [0], [0], [1], [0, 0, 1, 1], [], []>} : vector<2x4xbf16>, vector<4x128xbf16>, vector<2x128xf32> -> vector<2x128xf32>
    %125 = arith.truncf %124 : vector<2x128xf32> to vector<2x128xbf16>
    %c0_119 = arith.constant 0 : index
    %c0_120 = arith.constant 0 : index
    %c0_121 = arith.constant 0 : index
    %126 = vector.load %arg13[%c0_119, %c0_120, %c0_121] : memref<2x128x16xbf16, #tpu.memory_space<vmem>>, vector<1x128x16xbf16>
    %127 = vector.shape_cast %126 : vector<1x128x16xbf16> to vector<128x16xbf16>
    %cst_122 = arith.constant dense<0.000000e+00> : vector<2x16xf32>
    %128 = tpu.matmul %125, %127, %cst_122 {dimension_numbers = #tpu.dot_dimension_numbers<[1], [0], [0], [1], [0, 0, 1, 1], [], []>} : vector<2x128xbf16>, vector<128x16xbf16>, vector<2x16xf32> -> vector<2x16xf32>
    %c1_123 = arith.constant 1 : index
    %c0_124 = arith.constant 0 : index
    %c0_125 = arith.constant 0 : index
    %129 = vector.load %arg12[%c1_123, %c0_124, %c0_125] : memref<2x2x4xbf16, #tpu.memory_space<vmem>>, vector<1x2x4xbf16>
    %130 = vector.shape_cast %129 : vector<1x2x4xbf16> to vector<2x4xbf16>
    %cst_126 = arith.constant dense<0.000000e+00> : vector<2x128xf32>
    %131 = tpu.matmul %130, %121, %cst_126 {dimension_numbers = #tpu.dot_dimension_numbers<[1], [0], [0], [1], [0, 0, 1, 1], [], []>} : vector<2x4xbf16>, vector<4x128xbf16>, vector<2x128xf32> -> vector<2x128xf32>
    %132 = arith.truncf %131 : vector<2x128xf32> to vector<2x128xbf16>
    %c1_127 = arith.constant 1 : index
    %c0_128 = arith.constant 0 : index
    %c0_129 = arith.constant 0 : index
    %133 = vector.load %arg13[%c1_127, %c0_128, %c0_129] : memref<2x128x16xbf16, #tpu.memory_space<vmem>>, vector<1x128x16xbf16>
    %134 = vector.shape_cast %133 : vector<1x128x16xbf16> to vector<128x16xbf16>
    %cst_130 = arith.constant dense<0.000000e+00> : vector<2x16xf32>
    %135 = tpu.matmul %132, %134, %cst_130 {dimension_numbers = #tpu.dot_dimension_numbers<[1], [0], [0], [1], [0, 0, 1, 1], [], []>} : vector<2x128xbf16>, vector<128x16xbf16>, vector<2x16xf32> -> vector<2x16xf32>
    %136 = arith.addf %128, %135 : vector<2x16xf32>
    %c0_131 = arith.constant 0 : index
    %c0_132 = arith.constant 0 : index
    %137 = vector.load %arg14[%c0_131, %c0_132] : memref<2x16xf32, #tpu.memory_space<vmem>>, vector<2x16xf32>
    %138 = arith.addf %136, %137 : vector<2x16xf32>
    %139 = arith.truncf %138 : vector<2x16xf32> to vector<2x16xbf16>
    %c0_133 = arith.constant 0 : index
    %c0_134 = arith.constant 0 : index
    %c0_135 = arith.constant 0 : index
    %140 = vector.load %arg15[%c0_133, %c0_134, %c0_135] : memref<2x4x2xbf16, #tpu.memory_space<vmem>>, vector<1x4x2xbf16>
    %141 = vector.shape_cast %140 : vector<1x4x2xbf16> to vector<4x2xbf16>
    %cst_136 = arith.constant dense<0.000000e+00> : vector<4x16xf32>
    %142 = tpu.matmul %141, %139, %cst_136 {dimension_numbers = #tpu.dot_dimension_numbers<[1], [0], [0], [1], [0, 0, 1, 1], [], []>} : vector<4x2xbf16>, vector<2x16xbf16>, vector<4x16xf32> -> vector<4x16xf32>
    %143 = arith.truncf %142 : vector<4x16xf32> to vector<4x16xbf16>
    %c0_137 = arith.constant 0 : index
    %c0_138 = arith.constant 0 : index
    %c0_139 = arith.constant 0 : index
    %144 = vector.load %arg16[%c0_137, %c0_138, %c0_139] : memref<2x16x128xbf16, #tpu.memory_space<vmem>>, vector<1x16x128xbf16>
    %145 = vector.shape_cast %144 : vector<1x16x128xbf16> to vector<16x128xbf16>
    %cst_140 = arith.constant dense<0.000000e+00> : vector<4x128xf32>
    %146 = tpu.matmul %143, %145, %cst_140 {dimension_numbers = #tpu.dot_dimension_numbers<[1], [0], [0], [1], [0, 0, 1, 1], [], []>} : vector<4x16xbf16>, vector<16x128xbf16>, vector<4x128xf32> -> vector<4x128xf32>
    %c1_141 = arith.constant 1 : index
    %c0_142 = arith.constant 0 : index
    %c0_143 = arith.constant 0 : index
    %147 = vector.load %arg15[%c1_141, %c0_142, %c0_143] : memref<2x4x2xbf16, #tpu.memory_space<vmem>>, vector<1x4x2xbf16>
    %148 = vector.shape_cast %147 : vector<1x4x2xbf16> to vector<4x2xbf16>
    %cst_144 = arith.constant dense<0.000000e+00> : vector<4x16xf32>
    %149 = tpu.matmul %148, %139, %cst_144 {dimension_numbers = #tpu.dot_dimension_numbers<[1], [0], [0], [1], [0, 0, 1, 1], [], []>} : vector<4x2xbf16>, vector<2x16xbf16>, vector<4x16xf32> -> vector<4x16xf32>
    %150 = arith.truncf %149 : vector<4x16xf32> to vector<4x16xbf16>
    %c1_145 = arith.constant 1 : index
    %c0_146 = arith.constant 0 : index
    %c0_147 = arith.constant 0 : index
    %151 = vector.load %arg16[%c1_145, %c0_146, %c0_147] : memref<2x16x128xbf16, #tpu.memory_space<vmem>>, vector<1x16x128xbf16>
    %152 = vector.shape_cast %151 : vector<1x16x128xbf16> to vector<16x128xbf16>
    %cst_148 = arith.constant dense<0.000000e+00> : vector<4x128xf32>
    %153 = tpu.matmul %150, %152, %cst_148 {dimension_numbers = #tpu.dot_dimension_numbers<[1], [0], [0], [1], [0, 0, 1, 1], [], []>} : vector<4x16xbf16>, vector<16x128xbf16>, vector<4x128xf32> -> vector<4x128xf32>
    %154 = arith.addf %146, %153 : vector<4x128xf32>
    %c0_149 = arith.constant 0 : index
    %c0_150 = arith.constant 0 : index
    %155 = vector.load %arg17[%c0_149, %c0_150] : memref<4x128xf32, #tpu.memory_space<vmem>>, vector<4x128xf32>
    %156 = arith.addf %154, %155 : vector<4x128xf32>
    %cst_151 = arith.constant 0.000000e+00 : f32
    %157 = vector.broadcast %cst_151 : f32 to vector<4x128xf32>
    %158 = arith.maximumf %156, %157 : vector<4x128xf32>
    %159 = arith.truncf %158 : vector<4x128xf32> to vector<4x128xbf16>
    %c0_152 = arith.constant 0 : index
    %c0_153 = arith.constant 0 : index
    %c0_154 = arith.constant 0 : index
    %160 = vector.load %arg18[%c0_152, %c0_153, %c0_154] : memref<3x10x4xbf16, #tpu.memory_space<vmem>>, vector<1x10x4xbf16>
    %161 = vector.shape_cast %160 : vector<1x10x4xbf16> to vector<10x4xbf16>
    %cst_155 = arith.constant dense<0.000000e+00> : vector<10x128xf32>
    %162 = tpu.matmul %161, %159, %cst_155 {dimension_numbers = #tpu.dot_dimension_numbers<[1], [0], [0], [1], [0, 0, 1, 1], [], []>} : vector<10x4xbf16>, vector<4x128xbf16>, vector<10x128xf32> -> vector<10x128xf32>
    %163 = arith.truncf %162 : vector<10x128xf32> to vector<10x128xbf16>
    %c0_156 = arith.constant 0 : index
    %c0_157 = arith.constant 0 : index
    %c0_158 = arith.constant 0 : index
    %164 = vector.load %arg19[%c0_156, %c0_157, %c0_158] : memref<3x128x320xbf16, #tpu.memory_space<vmem>>, vector<1x128x320xbf16>
    %165 = vector.shape_cast %164 : vector<1x128x320xbf16> to vector<128x320xbf16>
    %cst_159 = arith.constant dense<0.000000e+00> : vector<10x320xf32>
    %166 = tpu.matmul %163, %165, %cst_159 {dimension_numbers = #tpu.dot_dimension_numbers<[1], [0], [0], [1], [0, 0, 1, 1], [], []>} : vector<10x128xbf16>, vector<128x320xbf16>, vector<10x320xf32> -> vector<10x320xf32>
    %c1_160 = arith.constant 1 : index
    %c0_161 = arith.constant 0 : index
    %c0_162 = arith.constant 0 : index
    %167 = vector.load %arg18[%c1_160, %c0_161, %c0_162] : memref<3x10x4xbf16, #tpu.memory_space<vmem>>, vector<1x10x4xbf16>
    %168 = vector.shape_cast %167 : vector<1x10x4xbf16> to vector<10x4xbf16>
    %cst_163 = arith.constant dense<0.000000e+00> : vector<10x128xf32>
    %169 = tpu.matmul %168, %159, %cst_163 {dimension_numbers = #tpu.dot_dimension_numbers<[1], [0], [0], [1], [0, 0, 1, 1], [], []>} : vector<10x4xbf16>, vector<4x128xbf16>, vector<10x128xf32> -> vector<10x128xf32>
    %170 = arith.truncf %169 : vector<10x128xf32> to vector<10x128xbf16>
    %c1_164 = arith.constant 1 : index
    %c0_165 = arith.constant 0 : index
    %c0_166 = arith.constant 0 : index
    %171 = vector.load %arg19[%c1_164, %c0_165, %c0_166] : memref<3x128x320xbf16, #tpu.memory_space<vmem>>, vector<1x128x320xbf16>
    %172 = vector.shape_cast %171 : vector<1x128x320xbf16> to vector<128x320xbf16>
    %cst_167 = arith.constant dense<0.000000e+00> : vector<10x320xf32>
    %173 = tpu.matmul %170, %172, %cst_167 {dimension_numbers = #tpu.dot_dimension_numbers<[1], [0], [0], [1], [0, 0, 1, 1], [], []>} : vector<10x128xbf16>, vector<128x320xbf16>, vector<10x320xf32> -> vector<10x320xf32>
    %174 = arith.addf %166, %173 : vector<10x320xf32>
    %c2_168 = arith.constant 2 : index
    %c0_169 = arith.constant 0 : index
    %c0_170 = arith.constant 0 : index
    %175 = vector.load %arg18[%c2_168, %c0_169, %c0_170] : memref<3x10x4xbf16, #tpu.memory_space<vmem>>, vector<1x10x4xbf16>
    %176 = vector.shape_cast %175 : vector<1x10x4xbf16> to vector<10x4xbf16>
    %cst_171 = arith.constant dense<0.000000e+00> : vector<10x128xf32>
    %177 = tpu.matmul %176, %159, %cst_171 {dimension_numbers = #tpu.dot_dimension_numbers<[1], [0], [0], [1], [0, 0, 1, 1], [], []>} : vector<10x4xbf16>, vector<4x128xbf16>, vector<10x128xf32> -> vector<10x128xf32>
    %178 = arith.truncf %177 : vector<10x128xf32> to vector<10x128xbf16>
    %c2_172 = arith.constant 2 : index
    %c0_173 = arith.constant 0 : index
    %c0_174 = arith.constant 0 : index
    %179 = vector.load %arg19[%c2_172, %c0_173, %c0_174] : memref<3x128x320xbf16, #tpu.memory_space<vmem>>, vector<1x128x320xbf16>
    %180 = vector.shape_cast %179 : vector<1x128x320xbf16> to vector<128x320xbf16>
    %cst_175 = arith.constant dense<0.000000e+00> : vector<10x320xf32>
    %181 = tpu.matmul %178, %180, %cst_175 {dimension_numbers = #tpu.dot_dimension_numbers<[1], [0], [0], [1], [0, 0, 1, 1], [], []>} : vector<10x128xbf16>, vector<128x320xbf16>, vector<10x320xf32> -> vector<10x320xf32>
    %182 = arith.addf %174, %181 : vector<10x320xf32>
    %c0_176 = arith.constant 0 : index
    %c0_177 = arith.constant 0 : index
    %183 = vector.load %arg20[%c0_176, %c0_177] : memref<10x320xf32, #tpu.memory_space<vmem>>, vector<10x320xf32>
    %184 = arith.addf %182, %183 : vector<10x320xf32>
    %cst_178 = arith.constant 0.000000e+00 : f32
    %185 = vector.broadcast %cst_178 : f32 to vector<10x320xf32>
    %186 = arith.maximumf %184, %185 : vector<10x320xf32>
    %187 = arith.truncf %186 : vector<10x320xf32> to vector<10x320xbf16>
    %c0_179 = arith.constant 0 : index
    %c0_180 = arith.constant 0 : index
    %c0_181 = arith.constant 0 : index
    %188 = vector.load %arg21[%c0_179, %c0_180, %c0_181] : memref<5x30x10xbf16, #tpu.memory_space<vmem>>, vector<1x30x10xbf16>
    %189 = vector.shape_cast %188 : vector<1x30x10xbf16> to vector<30x10xbf16>
    %cst_182 = arith.constant dense<0.000000e+00> : vector<30x320xf32>
    %190 = tpu.matmul %189, %187, %cst_182 {dimension_numbers = #tpu.dot_dimension_numbers<[1], [0], [0], [1], [0, 0, 1, 1], [], []>} : vector<30x10xbf16>, vector<10x320xbf16>, vector<30x320xf32> -> vector<30x320xf32>
    %191 = arith.truncf %190 : vector<30x320xf32> to vector<30x320xbf16>
    %c0_183 = arith.constant 0 : index
    %c0_184 = arith.constant 0 : index
    %c0_185 = arith.constant 0 : index
    %192 = vector.load %arg22[%c0_183, %c0_184, %c0_185] : memref<5x320x480xbf16, #tpu.memory_space<vmem>>, vector<1x320x480xbf16>
    %193 = vector.shape_cast %192 : vector<1x320x480xbf16> to vector<320x480xbf16>
    %cst_186 = arith.constant dense<0.000000e+00> : vector<30x480xf32>
    %194 = tpu.matmul %191, %193, %cst_186 {dimension_numbers = #tpu.dot_dimension_numbers<[1], [0], [0], [1], [0, 0, 1, 1], [], []>} : vector<30x320xbf16>, vector<320x480xbf16>, vector<30x480xf32> -> vector<30x480xf32>
    %c1_187 = arith.constant 1 : index
    %c0_188 = arith.constant 0 : index
    %c0_189 = arith.constant 0 : index
    %195 = vector.load %arg21[%c1_187, %c0_188, %c0_189] : memref<5x30x10xbf16, #tpu.memory_space<vmem>>, vector<1x30x10xbf16>
    %196 = vector.shape_cast %195 : vector<1x30x10xbf16> to vector<30x10xbf16>
    %cst_190 = arith.constant dense<0.000000e+00> : vector<30x320xf32>
    %197 = tpu.matmul %196, %187, %cst_190 {dimension_numbers = #tpu.dot_dimension_numbers<[1], [0], [0], [1], [0, 0, 1, 1], [], []>} : vector<30x10xbf16>, vector<10x320xbf16>, vector<30x320xf32> -> vector<30x320xf32>
    %198 = arith.truncf %197 : vector<30x320xf32> to vector<30x320xbf16>
    %c1_191 = arith.constant 1 : index
    %c0_192 = arith.constant 0 : index
    %c0_193 = arith.constant 0 : index
    %199 = vector.load %arg22[%c1_191, %c0_192, %c0_193] : memref<5x320x480xbf16, #tpu.memory_space<vmem>>, vector<1x320x480xbf16>
    %200 = vector.shape_cast %199 : vector<1x320x480xbf16> to vector<320x480xbf16>
    %cst_194 = arith.constant dense<0.000000e+00> : vector<30x480xf32>
    %201 = tpu.matmul %198, %200, %cst_194 {dimension_numbers = #tpu.dot_dimension_numbers<[1], [0], [0], [1], [0, 0, 1, 1], [], []>} : vector<30x320xbf16>, vector<320x480xbf16>, vector<30x480xf32> -> vector<30x480xf32>
    %202 = arith.addf %194, %201 : vector<30x480xf32>
    %c2_195 = arith.constant 2 : index
    %c0_196 = arith.constant 0 : index
    %c0_197 = arith.constant 0 : index
    %203 = vector.load %arg21[%c2_195, %c0_196, %c0_197] : memref<5x30x10xbf16, #tpu.memory_space<vmem>>, vector<1x30x10xbf16>
    %204 = vector.shape_cast %203 : vector<1x30x10xbf16> to vector<30x10xbf16>
    %cst_198 = arith.constant dense<0.000000e+00> : vector<30x320xf32>
    %205 = tpu.matmul %204, %187, %cst_198 {dimension_numbers = #tpu.dot_dimension_numbers<[1], [0], [0], [1], [0, 0, 1, 1], [], []>} : vector<30x10xbf16>, vector<10x320xbf16>, vector<30x320xf32> -> vector<30x320xf32>
    %206 = arith.truncf %205 : vector<30x320xf32> to vector<30x320xbf16>
    %c2_199 = arith.constant 2 : index
    %c0_200 = arith.constant 0 : index
    %c0_201 = arith.constant 0 : index
    %207 = vector.load %arg22[%c2_199, %c0_200, %c0_201] : memref<5x320x480xbf16, #tpu.memory_space<vmem>>, vector<1x320x480xbf16>
    %208 = vector.shape_cast %207 : vector<1x320x480xbf16> to vector<320x480xbf16>
    %cst_202 = arith.constant dense<0.000000e+00> : vector<30x480xf32>
    %209 = tpu.matmul %206, %208, %cst_202 {dimension_numbers = #tpu.dot_dimension_numbers<[1], [0], [0], [1], [0, 0, 1, 1], [], []>} : vector<30x320xbf16>, vector<320x480xbf16>, vector<30x480xf32> -> vector<30x480xf32>
    %210 = arith.addf %202, %209 : vector<30x480xf32>
    %c3_203 = arith.constant 3 : index
    %c0_204 = arith.constant 0 : index
    %c0_205 = arith.constant 0 : index
    %211 = vector.load %arg21[%c3_203, %c0_204, %c0_205] : memref<5x30x10xbf16, #tpu.memory_space<vmem>>, vector<1x30x10xbf16>
    %212 = vector.shape_cast %211 : vector<1x30x10xbf16> to vector<30x10xbf16>
    %cst_206 = arith.constant dense<0.000000e+00> : vector<30x320xf32>
    %213 = tpu.matmul %212, %187, %cst_206 {dimension_numbers = #tpu.dot_dimension_numbers<[1], [0], [0], [1], [0, 0, 1, 1], [], []>} : vector<30x10xbf16>, vector<10x320xbf16>, vector<30x320xf32> -> vector<30x320xf32>
    %214 = arith.truncf %213 : vector<30x320xf32> to vector<30x320xbf16>
    %c3_207 = arith.constant 3 : index
    %c0_208 = arith.constant 0 : index
    %c0_209 = arith.constant 0 : index
    %215 = vector.load %arg22[%c3_207, %c0_208, %c0_209] : memref<5x320x480xbf16, #tpu.memory_space<vmem>>, vector<1x320x480xbf16>
    %216 = vector.shape_cast %215 : vector<1x320x480xbf16> to vector<320x480xbf16>
    %cst_210 = arith.constant dense<0.000000e+00> : vector<30x480xf32>
    %217 = tpu.matmul %214, %216, %cst_210 {dimension_numbers = #tpu.dot_dimension_numbers<[1], [0], [0], [1], [0, 0, 1, 1], [], []>} : vector<30x320xbf16>, vector<320x480xbf16>, vector<30x480xf32> -> vector<30x480xf32>
    %218 = arith.addf %210, %217 : vector<30x480xf32>
    %c4 = arith.constant 4 : index
    %c0_211 = arith.constant 0 : index
    %c0_212 = arith.constant 0 : index
    %219 = vector.load %arg21[%c4, %c0_211, %c0_212] : memref<5x30x10xbf16, #tpu.memory_space<vmem>>, vector<1x30x10xbf16>
    %220 = vector.shape_cast %219 : vector<1x30x10xbf16> to vector<30x10xbf16>
    %cst_213 = arith.constant dense<0.000000e+00> : vector<30x320xf32>
    %221 = tpu.matmul %220, %187, %cst_213 {dimension_numbers = #tpu.dot_dimension_numbers<[1], [0], [0], [1], [0, 0, 1, 1], [], []>} : vector<30x10xbf16>, vector<10x320xbf16>, vector<30x320xf32> -> vector<30x320xf32>
    %222 = arith.truncf %221 : vector<30x320xf32> to vector<30x320xbf16>
    %c4_214 = arith.constant 4 : index
    %c0_215 = arith.constant 0 : index
    %c0_216 = arith.constant 0 : index
    %223 = vector.load %arg22[%c4_214, %c0_215, %c0_216] : memref<5x320x480xbf16, #tpu.memory_space<vmem>>, vector<1x320x480xbf16>
    %224 = vector.shape_cast %223 : vector<1x320x480xbf16> to vector<320x480xbf16>
    %cst_217 = arith.constant dense<0.000000e+00> : vector<30x480xf32>
    %225 = tpu.matmul %222, %224, %cst_217 {dimension_numbers = #tpu.dot_dimension_numbers<[1], [0], [0], [1], [0, 0, 1, 1], [], []>} : vector<30x320xbf16>, vector<320x480xbf16>, vector<30x480xf32> -> vector<30x480xf32>
    %226 = arith.addf %218, %225 : vector<30x480xf32>
    %c0_218 = arith.constant 0 : index
    %c0_219 = arith.constant 0 : index
    %227 = vector.load %arg23[%c0_218, %c0_219] : memref<30x480xf32, #tpu.memory_space<vmem>>, vector<30x480xf32>
    %228 = arith.addf %226, %227 : vector<30x480xf32>
    %cst_220 = arith.constant 0.000000e+00 : f32
    %229 = vector.broadcast %cst_220 : f32 to vector<30x480xf32>
    %230 = arith.maximumf %228, %229 : vector<30x480xf32>
    %231 = arith.truncf %230 : vector<30x480xf32> to vector<30x480xbf16>
    %c0_221 = arith.constant 0 : index
    %c0_222 = arith.constant 0 : index
    %c0_223 = arith.constant 0 : index
    %232 = vector.load %arg24[%c0_221, %c0_222, %c0_223] : memref<2x56x30xbf16, #tpu.memory_space<vmem>>, vector<1x56x30xbf16>
    %233 = vector.shape_cast %232 : vector<1x56x30xbf16> to vector<56x30xbf16>
    %cst_224 = arith.constant dense<0.000000e+00> : vector<56x480xf32>
    %234 = tpu.matmul %233, %231, %cst_224 {dimension_numbers = #tpu.dot_dimension_numbers<[1], [0], [0], [1], [0, 0, 1, 1], [], []>} : vector<56x30xbf16>, vector<30x480xbf16>, vector<56x480xf32> -> vector<56x480xf32>
    %235 = arith.truncf %234 : vector<56x480xf32> to vector<56x480xbf16>
    %c0_225 = arith.constant 0 : index
    %c0_226 = arith.constant 0 : index
    %c0_227 = arith.constant 0 : index
    %236 = vector.load %arg25[%c0_225, %c0_226, %c0_227] : memref<2x480x28xbf16, #tpu.memory_space<vmem>>, vector<1x480x28xbf16>
    %237 = vector.shape_cast %236 : vector<1x480x28xbf16> to vector<480x28xbf16>
    %cst_228 = arith.constant dense<0.000000e+00> : vector<56x28xf32>
    %238 = tpu.matmul %235, %237, %cst_228 {dimension_numbers = #tpu.dot_dimension_numbers<[1], [0], [0], [1], [0, 0, 1, 1], [], []>} : vector<56x480xbf16>, vector<480x28xbf16>, vector<56x28xf32> -> vector<56x28xf32>
    %c1_229 = arith.constant 1 : index
    %c0_230 = arith.constant 0 : index
    %c0_231 = arith.constant 0 : index
    %239 = vector.load %arg24[%c1_229, %c0_230, %c0_231] : memref<2x56x30xbf16, #tpu.memory_space<vmem>>, vector<1x56x30xbf16>
    %240 = vector.shape_cast %239 : vector<1x56x30xbf16> to vector<56x30xbf16>
    %cst_232 = arith.constant dense<0.000000e+00> : vector<56x480xf32>
    %241 = tpu.matmul %240, %231, %cst_232 {dimension_numbers = #tpu.dot_dimension_numbers<[1], [0], [0], [1], [0, 0, 1, 1], [], []>} : vector<56x30xbf16>, vector<30x480xbf16>, vector<56x480xf32> -> vector<56x480xf32>
    %242 = arith.truncf %241 : vector<56x480xf32> to vector<56x480xbf16>
    %c1_233 = arith.constant 1 : index
    %c0_234 = arith.constant 0 : index
    %c0_235 = arith.constant 0 : index
    %243 = vector.load %arg25[%c1_233, %c0_234, %c0_235] : memref<2x480x28xbf16, #tpu.memory_space<vmem>>, vector<1x480x28xbf16>
    %244 = vector.shape_cast %243 : vector<1x480x28xbf16> to vector<480x28xbf16>
    %cst_236 = arith.constant dense<0.000000e+00> : vector<56x28xf32>
    %245 = tpu.matmul %242, %244, %cst_236 {dimension_numbers = #tpu.dot_dimension_numbers<[1], [0], [0], [1], [0, 0, 1, 1], [], []>} : vector<56x480xbf16>, vector<480x28xbf16>, vector<56x28xf32> -> vector<56x28xf32>
    %246 = arith.addf %238, %245 : vector<56x28xf32>
    %c0_237 = arith.constant 0 : index
    %c0_238 = arith.constant 0 : index
    %247 = vector.load %arg26[%c0_237, %c0_238] : memref<56x28xf32, #tpu.memory_space<vmem>>, vector<56x28xf32>
    %248 = arith.addf %246, %247 : vector<56x28xf32>
    %cst_239 = arith.constant 0.000000e+00 : f32
    %249 = vector.broadcast %cst_239 : f32 to vector<56x28xf32>
    %250 = arith.subf %249, %248 : vector<56x28xf32>
    %251 = math.exp %250 : vector<56x28xf32>
    %cst_240 = arith.constant 1.000000e+00 : f32
    %252 = vector.broadcast %cst_240 : f32 to vector<56x28xf32>
    %253 = arith.addf %252, %251 : vector<56x28xf32>
    %254 = tpu.reciprocal %253 {approx = true} : vector<56x28xf32> -> vector<56x28xf32>
    %cst_241 = arith.constant 0.000000e+00 : f32
    %cst_242 = arith.constant 1.000000e+00 : f32
    %255 = vector.broadcast %cst_241 : f32 to vector<56x28xf32>
    %256 = arith.maximumf %255, %254 : vector<56x28xf32>
    %257 = vector.broadcast %cst_242 : f32 to vector<56x28xf32>
    %258 = arith.minimumf %257, %256 : vector<56x28xf32>
    %c0_243 = arith.constant 0 : index
    %c0_244 = arith.constant 0 : index
    %259 = vector.load %arg27[%c0_243, %c0_244] : memref<56x28xf32, #tpu.memory_space<vmem>>, vector<56x28xf32>
    tpu.vector_store %arg27[%c0_243, %c0_244], %258 {strides = array<i32>} : memref<56x28xf32, #tpu.memory_space<vmem>>, vector<56x28xf32>,
    return
  }
  func.func @transform_0(%arg0: i32) -> (i32, i32) {
    %c0_i32 = arith.constant 0 : i32
    %c0_i32_0 = arith.constant 0 : i32
    return %arg0, %c0_i32 : i32, i32
  }
  func.func @transform_1(%arg0: i32) -> (i32, i32, i32) {
    %c0_i32 = arith.constant 0 : i32
    %c0_i32_0 = arith.constant 0 : i32
    %c0_i32_1 = arith.constant 0 : i32
    %c0_i32_2 = arith.constant 0 : i32
    return %c0_i32, %c0_i32_0, %c0_i32_1 : i32, i32, i32
  }
  func.func @transform_2(%arg0: i32) -> (i32, i32, i32) {
    %c0_i32 = arith.constant 0 : i32
    %c0_i32_0 = arith.constant 0 : i32
    %c0_i32_1 = arith.constant 0 : i32
    %c0_i32_2 = arith.constant 0 : i32
    return %c0_i32, %c0_i32_0, %c0_i32_1 : i32, i32, i32
  }
  func.func @transform_3(%arg0: i32) -> (i32, i32) {
    %c0_i32 = arith.constant 0 : i32
    %c0_i32_0 = arith.constant 0 : i32
    %c0_i32_1 = arith.constant 0 : i32
    return %c0_i32, %c0_i32_0 : i32, i32
  }
  func.func @transform_4(%arg0: i32) -> (i32, i32, i32) {
    %c0_i32 = arith.constant 0 : i32
    %c0_i32_0 = arith.constant 0 : i32
    %c0_i32_1 = arith.constant 0 : i32
    %c0_i32_2 = arith.constant 0 : i32
    return %c0_i32, %c0_i32_0, %c0_i32_1 : i32, i32, i32
  }
  func.func @transform_5(%arg0: i32) -> (i32, i32, i32) {
    %c0_i32 = arith.constant 0 : i32
    %c0_i32_0 = arith.constant 0 : i32
    %c0_i32_1 = arith.constant 0 : i32
    %c0_i32_2 = arith.constant 0 : i32
    return %c0_i32, %c0_i32_0, %c0_i32_1 : i32, i32, i32
  }
  func.func @transform_6(%arg0: i32) -> (i32, i32, i32) {
    %c0_i32 = arith.constant 0 : i32
    %c0_i32_0 = arith.constant 0 : i32
    %c0_i32_1 = arith.constant 0 : i32
    %c0_i32_2 = arith.constant 0 : i32
    return %c0_i32, %c0_i32_0, %c0_i32_1 : i32, i32, i32
  }
  func.func @transform_7(%arg0: i32) -> (i32, i32, i32) {
    %c0_i32 = arith.constant 0 : i32
    %c0_i32_0 = arith.constant 0 : i32
    %c0_i32_1 = arith.constant 0 : i32
    %c0_i32_2 = arith.constant 0 : i32
    return %c0_i32, %c0_i32_0, %c0_i32_1 : i32, i32, i32
  }
  func.func @transform_8(%arg0: i32) -> (i32, i32) {
    %c0_i32 = arith.constant 0 : i32
    %c0_i32_0 = arith.constant 0 : i32
    %c0_i32_1 = arith.constant 0 : i32
    return %c0_i32, %c0_i32_0 : i32, i32
  }
  func.func @transform_9(%arg0: i32) -> (i32, i32, i32) {
    %c0_i32 = arith.constant 0 : i32
    %c0_i32_0 = arith.constant 0 : i32
    %c0_i32_1 = arith.constant 0 : i32
    %c0_i32_2 = arith.constant 0 : i32
    return %c0_i32, %c0_i32_0, %c0_i32_1 : i32, i32, i32
  }
  func.func @transform_10(%arg0: i32) -> (i32, i32, i32) {
    %c0_i32 = arith.constant 0 : i32
    %c0_i32_0 = arith.constant 0 : i32
    %c0_i32_1 = arith.constant 0 : i32
    %c0_i32_2 = arith.constant 0 : i32
    return %c0_i32, %c0_i32_0, %c0_i32_1 : i32, i32, i32
  }
  func.func @transform_11(%arg0: i32) -> (i32, i32, i32) {
    %c0_i32 = arith.constant 0 : i32
    %c0_i32_0 = arith.constant 0 : i32
    %c0_i32_1 = arith.constant 0 : i32
    %c0_i32_2 = arith.constant 0 : i32
    return %c0_i32, %c0_i32_0, %c0_i32_1 : i32, i32, i32
  }
  func.func @transform_12(%arg0: i32) -> (i32, i32, i32) {
    %c0_i32 = arith.constant 0 : i32
    %c0_i32_0 = arith.constant 0 : i32
    %c0_i32_1 = arith.constant 0 : i32
    %c0_i32_2 = arith.constant 0 : i32
    return %c0_i32, %c0_i32_0, %c0_i32_1 : i32, i32, i32
  }
  func.func @transform_13(%arg0: i32) -> (i32, i32) {
    %c0_i32 = arith.constant 0 : i32
    %c0_i32_0 = arith.constant 0 : i32
    %c0_i32_1 = arith.constant 0 : i32
    return %c0_i32, %c0_i32_0 : i32, i32
  }
  func.func @transform_14(%arg0: i32) -> (i32, i32, i32) {
    %c0_i32 = arith.constant 0 : i32
    %c0_i32_0 = arith.constant 0 : i32
    %c0_i32_1 = arith.constant 0 : i32
    %c0_i32_2 = arith.constant 0 : i32
    return %c0_i32, %c0_i32_0, %c0_i32_1 : i32, i32, i32
  }
  func.func @transform_15(%arg0: i32) -> (i32, i32, i32) {
    %c0_i32 = arith.constant 0 : i32
    %c0_i32_0 = arith.constant 0 : i32
    %c0_i32_1 = arith.constant 0 : i32
    %c0_i32_2 = arith.constant 0 : i32
    return %c0_i32, %c0_i32_0, %c0_i32_1 : i32, i32, i32
  }
  func.func @transform_16(%arg0: i32) -> (i32, i32) {
    %c0_i32 = arith.constant 0 : i32
    %c0_i32_0 = arith.constant 0 : i32
    %c0_i32_1 = arith.constant 0 : i32
    return %c0_i32, %c0_i32_0 : i32, i32
  }
  func.func @transform_17(%arg0: i32) -> (i32, i32, i32) {
    %c0_i32 = arith.constant 0 : i32
    %c0_i32_0 = arith.constant 0 : i32
    %c0_i32_1 = arith.constant 0 : i32
    %c0_i32_2 = arith.constant 0 : i32
    return %c0_i32, %c0_i32_0, %c0_i32_1 : i32, i32, i32
  }
  func.func @transform_18(%arg0: i32) -> (i32, i32, i32) {
    %c0_i32 = arith.constant 0 : i32
    %c0_i32_0 = arith.constant 0 : i32
    %c0_i32_1 = arith.constant 0 : i32
    %c0_i32_2 = arith.constant 0 : i32
    return %c0_i32, %c0_i32_0, %c0_i32_1 : i32, i32, i32
  }
  func.func @transform_19(%arg0: i32) -> (i32, i32) {
    %c0_i32 = arith.constant 0 : i32
    %c0_i32_0 = arith.constant 0 : i32
    %c0_i32_1 = arith.constant 0 : i32
    return %c0_i32, %c0_i32_0 : i32, i32
  }
  func.func @transform_20(%arg0: i32) -> (i32, i32, i32) {
    %c0_i32 = arith.constant 0 : i32
    %c0_i32_0 = arith.constant 0 : i32
    %c0_i32_1 = arith.constant 0 : i32
    %c0_i32_2 = arith.constant 0 : i32
    return %c0_i32, %c0_i32_0, %c0_i32_1 : i32, i32, i32
  }
  func.func @transform_21(%arg0: i32) -> (i32, i32, i32) {
    %c0_i32 = arith.constant 0 : i32
    %c0_i32_0 = arith.constant 0 : i32
    %c0_i32_1 = arith.constant 0 : i32
    %c0_i32_2 = arith.constant 0 : i32
    return %c0_i32, %c0_i32_0, %c0_i32_1 : i32, i32, i32
  }
  func.func @transform_22(%arg0: i32) -> (i32, i32) {
    %c0_i32 = arith.constant 0 : i32
    %c0_i32_0 = arith.constant 0 : i32
    %c0_i32_1 = arith.constant 0 : i32
    return %c0_i32, %c0_i32_0 : i32, i32
  }
  func.func @transform_23(%arg0: i32) -> (i32, i32, i32) {
    %c0_i32 = arith.constant 0 : i32
    %c0_i32_0 = arith.constant 0 : i32
    %c0_i32_1 = arith.constant 0 : i32
    %c0_i32_2 = arith.constant 0 : i32
    return %c0_i32, %c0_i32_0, %c0_i32_1 : i32, i32, i32
  }
  func.func @transform_24(%arg0: i32) -> (i32, i32, i32) {
    %c0_i32 = arith.constant 0 : i32
    %c0_i32_0 = arith.constant 0 : i32
    %c0_i32_1 = arith.constant 0 : i32
    %c0_i32_2 = arith.constant 0 : i32
    return %c0_i32, %c0_i32_0, %c0_i32_1 : i32, i32, i32
  }
  func.func @transform_25(%arg0: i32) -> (i32, i32) {
    %c0_i32 = arith.constant 0 : i32
    %c0_i32_0 = arith.constant 0 : i32
    %c0_i32_1 = arith.constant 0 : i32
    return %c0_i32, %c0_i32_0 : i32, i32
  }
  func.func @transform_26(%arg0: i32) -> (i32, i32) {
    %c0_i32 = arith.constant 0 : i32
    %c0_i32_0 = arith.constant 0 : i32
    return %arg0, %c0_i32 : i32, i32
  }
}

</mosaic_0001>

<llo_original>
// kernel: autoencoder_forward.1
$region0: #{autoencoder_forward.1}
  #allocation0 [shape = 'u32[]', space=smem, size = 0x4, offset = 0x4, fixed_abs, tag = 'smem constant byte address 0x4 - core index']
  #allocation1 [shape = 'u32[144,128]{1,0:T(1,128)}', space=vmem, size = 0x12000, scoped, tag = 'internal scratch']
  %s0 = inlined_call_operand.hbm [shape: f32[56,28], index: 0, kind: input, shape index: {}]
  %s1 = inlined_call_operand.hbm [shape: bf16[3,20,56], index: 1, kind: input, shape index: {}]
  %s2 = inlined_call_operand.vmem [shape: bf16[3,28,320], index: 2, kind: input, shape index: {}]
  %s3 = inlined_call_operand.vmem [shape: f32[20,320], index: 3, kind: input, shape index: {}]
  %s4 = inlined_call_operand.vmem [shape: bf16[4,10,20], index: 4, kind: input, shape index: {}]
  %s5 = inlined_call_operand.vmem [shape: bf16[4,320,160], index: 5, kind: input, shape index: {}]
  %s6 = inlined_call_operand.hbm [shape: bf16[3,6,10], index: 6, kind: input, shape index: {}]
  %s7 = inlined_call_operand.vmem [shape: bf16[3,160,192], index: 7, kind: input, shape index: {}]
  %s8 = inlined_call_operand.hbm [shape: f32[6,192], index: 8, kind: input, shape index: {}]
  %s9 = inlined_call_operand.hbm [shape: bf16[4,4,6], index: 9, kind: input, shape index: {}]
  %s10 = inlined_call_operand.vmem [shape: bf16[4,192,128], index: 10, kind: input, shape index: {}]
  %s11 = inlined_call_operand.hbm [shape: bf16[2,2,4], index: 11, kind: input, shape index: {}]
  %s12 = inlined_call_operand.vmem [shape: bf16[2,128,16], index: 12, kind: input, shape index: {}]
  %s13 = inlined_call_operand.hbm [shape: f32[2,16], index: 13, kind: input, shape index: {}]
  %s14 = inlined_call_operand.vmem [shape: bf16[2,4,2], index: 14, kind: input, shape index: {}]
  %s15 = inlined_call_operand.hbm [shape: bf16[2,16,128], index: 15, kind: input, shape index: {}]
  %s16 = inlined_call_operand.hbm [shape: f32[4,128], index: 16, kind: input, shape index: {}]
  %s17 = inlined_call_operand.vmem [shape: bf16[3,10,4], index: 17, kind: input, shape index: {}]
  %s18 = inlined_call_operand.vmem [shape: bf16[3,128,320], index: 18, kind: input, shape index: {}]
  %s19 = inlined_call_operand.vmem [shape: f32[10,320], index: 19, kind: input, shape index: {}]
  %s20 = inlined_call_operand.vmem [shape: bf16[5,30,10], index: 20, kind: input, shape index: {}]
  %s21 = inlined_call_operand.vmem [shape: bf16[5,320,480], index: 21, kind: input, shape index: {}]
  %s22 = inlined_call_operand.vmem [shape: f32[30,480], index: 22, kind: input, shape index: {}]
  %s23 = inlined_call_operand.vmem [shape: bf16[2,56,30], index: 23, kind: input, shape index: {}]
  %s24 = inlined_call_operand.vmem [shape: bf16[2,480,28], index: 24, kind: input, shape index: {}]
  %s25 = inlined_call_operand.vmem [shape: f32[56,28], index: 25, kind: input, shape index: {}]
  %s26 = inlined_call_operand.hbm [shape: f32[56,28], index: 26, kind: output, shape index: {}]
  %s27 = sld [smem:[#allocation0]]
  $region150: #{autoencoder_forward.1} parent=0
    _
  %s29 = ssub.s32 1, %s27
  %s30 = scalar_select 0, %s29, %s27
  $region1: #{autoencoder_forward.1} parent=0
    #allocation2 [shape = 'u8[28672]{0}', space=vmem, size = 0x7000, scoped, tag = 'input window, operand 0, single buffered']
    #allocation3 [shape = 's32[1]{0}', space=sflag, size = 0x4, scoped, tag = 'scoped memory for autoencoder_forward.1']
    #allocation4 [shape = 's32[1]{0}', space=sflag, size = 0x4, scoped, tag = 'scoped memory for autoencoder_forward.1']
    #allocation5 [shape = 'u8[18432]{0}', space=vmem, size = 0x4800, scoped, tag = 'input window, operand 1, single buffered']
    #allocation6 [shape = 's32[1]{0}', space=sflag, size = 0x4, scoped, tag = 'scoped memory for autoencoder_forward.1']
    #allocation7 [shape = 'u8[6144]{0}', space=vmem, size = 0x1800, scoped, tag = 'input window, operand 6, single buffered']
    #allocation8 [shape = 'u8[8192]{0}', space=vmem, size = 0x2000, scoped, tag = 'input window, operand 8, single buffered']
    #allocation9 [shape = 's32[1]{0}', space=sflag, size = 0x4, scoped, tag = 'scoped memory for autoencoder_forward.1']
    #allocation10 [shape = 'u8[4096]{0}', space=vmem, size = 0x1000, scoped, tag = 'input window, operand 9, single buffered']
    #allocation11 [shape = 'u8[1024]{0}', space=vmem, size = 0x400, scoped, tag = 'input window, operand 11, single buffered']
    #allocation12 [shape = 's32[1]{0}', space=sflag, size = 0x4, scoped, tag = 'scoped memory for autoencoder_forward.1']
    #allocation13 [shape = 'u8[1024]{0}', space=vmem, size = 0x400, scoped, tag = 'input window, operand 13, single buffered']
    #allocation14 [shape = 'u8[8192]{0}', space=vmem, size = 0x2000, scoped, tag = 'input window, operand 15, single buffered']
    #allocation15 [shape = 's32[1]{0}', space=sflag, size = 0x4, scoped, tag = 'scoped memory for autoencoder_forward.1']
    #allocation16 [shape = 'u8[2048]{0}', space=vmem, size = 0x800, scoped, tag = 'input window, operand 16, single buffered']
    #allocation17 [shape = 'u8[28672]{0}', space=vmem, size = 0x7000, scoped, tag = 'output window, operand 0, single buffered']
    %31 = vsyncpa [#allocation3], 0
    %32 = vsyncpa [#allocation6], 0
    %33 = vsyncpa [#allocation9], 0
    %34 = vsyncpa [#allocation12], 0
    %35 = vsyncpa [#allocation15], 0
    %36 = vsyncpa [#allocation4], 0
    // Predicated region
    $region2: #{autoencoder_forward.1} parent=1 // pred_check
      _
    $region3: #{autoencoder_forward.1} parent=1 // pred_check_branch
      %38 = sbr.rel (0) target = $region5
    $region4: #{autoencoder_forward.1} parent=1 // pred_region
      %s40 = ssub.s32 896, 896
      %41 = vsyncadd [#allocation3], %s40
      %s42 = sshll.u32 [#allocation2], 4
      %s43 = int_to_ptr.vmem [resolvable:$true] %s42
      %48 = dma.hbm_to_vmem [thread:$0]  %s0, 896, %s43, [#allocation3], 128, 128, 8
    $region5: #{autoencoder_forward.1} parent=1 // pred_fallthru
      _
    // Predicated region
    $region6: #{autoencoder_forward.1} parent=1 // pred_check
      _
    $region7: #{autoencoder_forward.1} parent=1 // pred_check_branch
      %50 = sbr.rel (0) target = $region9
    $region8: #{autoencoder_forward.1} parent=1 // pred_region
      %s52 = ssub.s32 576, 576
      %53 = vsyncadd [#allocation6], %s52
      %s54 = sshll.u32 [#allocation5], 4
      %s55 = int_to_ptr.vmem [resolvable:$true] %s54
      %60 = dma.hbm_to_vmem [thread:$0]  %s1, 576, %s55, [#allocation6], 64, 64, 4
    $region9: #{autoencoder_forward.1} parent=1 // pred_fallthru
      _
    // Predicated region
    $region10: #{autoencoder_forward.1} parent=1 // pred_check
      _
    $region11: #{autoencoder_forward.1} parent=1 // pred_check_branch
      %62 = sbr.rel (0) target = $region13
    $region12: #{autoencoder_forward.1} parent=1 // pred_region
      _
    $region13: #{autoencoder_forward.1} parent=1 // pred_fallthru
      _
    // Predicated region
    $region14: #{autoencoder_forward.1} parent=1 // pred_check
      _
    $region15: #{autoencoder_forward.1} parent=1 // pred_check_branch
      %64 = sbr.rel (0) target = $region17
    $region16: #{autoencoder_forward.1} parent=1 // pred_region
      _
    $region17: #{autoencoder_forward.1} parent=1 // pred_fallthru
      _
    // Predicated region
    $region18: #{autoencoder_forward.1} parent=1 // pred_check
      _
    $region19: #{autoencoder_forward.1} parent=1 // pred_check_branch
      %66 = sbr.rel (0) target = $region21
    $region20: #{autoencoder_forward.1} parent=1 // pred_region
      _
    $region21: #{autoencoder_forward.1} parent=1 // pred_fallthru
      _
    // Predicated region
    $region22: #{autoencoder_forward.1} parent=1 // pred_check
      _
    $region23: #{autoencoder_forward.1} parent=1 // pred_check_branch
      %68 = sbr.rel (0) target = $region25
    $region24: #{autoencoder_forward.1} parent=1 // pred_region
      _
    $region25: #{autoencoder_forward.1} parent=1 // pred_fallthru
      _
    // Predicated region
    $region26: #{autoencoder_forward.1} parent=1 // pred_check
      _
    $region27: #{autoencoder_forward.1} parent=1 // pred_check_branch
      %70 = sbr.rel (0) target = $region29
    $region28: #{autoencoder_forward.1} parent=1 // pred_region
      %s72 = ssub.s32 192, 192
      %73 = vsyncadd [#allocation6], %s72
      %s74 = sshll.u32 [#allocation7], 4
      %s75 = int_to_ptr.vmem [resolvable:$true] %s74
      %80 = dma.hbm_to_vmem [thread:$0]  %s6, 192, %s75, [#allocation6], 64, 64, 4
    $region29: #{autoencoder_forward.1} parent=1 // pred_fallthru
      _
    // Predicated region
    $region30: #{autoencoder_forward.1} parent=1 // pred_check
      _
    $region31: #{autoencoder_forward.1} parent=1 // pred_check_branch
      %82 = sbr.rel (0) target = $region33
    $region32: #{autoencoder_forward.1} parent=1 // pred_region
      _
    $region33: #{autoencoder_forward.1} parent=1 // pred_fallthru
      _
    // Predicated region
    $region34: #{autoencoder_forward.1} parent=1 // pred_check
      _
    $region35: #{autoencoder_forward.1} parent=1 // pred_check_branch
      %84 = sbr.rel (0) target = $region37
    $region36: #{autoencoder_forward.1} parent=1 // pred_region
      %s86 = ssub.s32 256, 256
      %87 = vsyncadd [#allocation9], %s86
      %s89 = sshll.u32 [#allocation8], 4
      %s90 = int_to_ptr.vmem [resolvable:$true] %s89
      %92 = dma.hbm_to_vmem [thread:$0]  %s8, 256, %s90, [#allocation9]
    $region37: #{autoencoder_forward.1} parent=1 // pred_fallthru
      _
    // Predicated region
    $region38: #{autoencoder_forward.1} parent=1 // pred_check
      _
    $region39: #{autoencoder_forward.1} parent=1 // pred_check_branch
      %94 = sbr.rel (0) target = $region41
    $region40: #{autoencoder_forward.1} parent=1 // pred_region
      %s96 = ssub.s32 128, 128
      %97 = vsyncadd [#allocation9], %s96
      %s98 = sshll.u32 [#allocation10], 4
      %s99 = int_to_ptr.vmem [resolvable:$true] %s98
      %104 = dma.hbm_to_vmem [thread:$0]  %s9, 128, %s99, [#allocation9], 32, 32, 2
    $region41: #{autoencoder_forward.1} parent=1 // pred_fallthru
      _
    // Predicated region
    $region42: #{autoencoder_forward.1} parent=1 // pred_check
      _
    $region43: #{autoencoder_forward.1} parent=1 // pred_check_branch
      %106 = sbr.rel (0) target = $region45
    $region44: #{autoencoder_forward.1} parent=1 // pred_region
      _
    $region45: #{autoencoder_forward.1} parent=1 // pred_fallthru
      _
    // Predicated region
    $region46: #{autoencoder_forward.1} parent=1 // pred_check
      _
    $region47: #{autoencoder_forward.1} parent=1 // pred_check_branch
      %108 = sbr.rel (0) target = $region49
    $region48: #{autoencoder_forward.1} parent=1 // pred_region
      %s110 = ssub.s32 32, 32
      %111 = vsyncadd [#allocation12], %s110
      %s112 = sshll.u32 [#allocation11], 4
      %s113 = int_to_ptr.vmem [resolvable:$true] %s112
      %118 = dma.hbm_to_vmem [thread:$0]  %s11, 32, %s113, [#allocation12], 16, 16, 1
    $region49: #{autoencoder_forward.1} parent=1 // pred_fallthru
      _
    // Predicated region
    $region50: #{autoencoder_forward.1} parent=1 // pred_check
      _
    $region51: #{autoencoder_forward.1} parent=1 // pred_check_branch
      %120 = sbr.rel (0) target = $region53
    $region52: #{autoencoder_forward.1} parent=1 // pred_region
      _
    $region53: #{autoencoder_forward.1} parent=1 // pred_fallthru
      _
    // Predicated region
    $region54: #{autoencoder_forward.1} parent=1 // pred_check
      _
    $region55: #{autoencoder_forward.1} parent=1 // pred_check_branch
      %122 = sbr.rel (0) target = $region57
    $region56: #{autoencoder_forward.1} parent=1 // pred_region
      %s124 = ssub.s32 32, 32
      %125 = vsyncadd [#allocation12], %s124
      %s127 = sshll.u32 [#allocation13], 4
      %s128 = int_to_ptr.vmem [resolvable:$true] %s127
      %130 = dma.hbm_to_vmem [thread:$0]  %s13, 32, %s128, [#allocation12]
    $region57: #{autoencoder_forward.1} parent=1 // pred_fallthru
      _
    // Predicated region
    $region58: #{autoencoder_forward.1} parent=1 // pred_check
      _
    $region59: #{autoencoder_forward.1} parent=1 // pred_check_branch
      %132 = sbr.rel (0) target = $region61
    $region60: #{autoencoder_forward.1} parent=1 // pred_region
      _
    $region61: #{autoencoder_forward.1} parent=1 // pred_fallthru
      _
    // Predicated region
    $region62: #{autoencoder_forward.1} parent=1 // pred_check
      _
    $region63: #{autoencoder_forward.1} parent=1 // pred_check_branch
      %134 = sbr.rel (0) target = $region65
    $region64: #{autoencoder_forward.1} parent=1 // pred_region
      %s136 = ssub.s32 256, 256
      %137 = vsyncadd [#allocation15], %s136
      %s138 = sshll.u32 [#allocation14], 4
      %s139 = int_to_ptr.vmem [resolvable:$true] %s138
      %144 = dma.hbm_to_vmem [thread:$0]  %s15, 256, %s139, [#allocation15], 64, 64, 4
    $region65: #{autoencoder_forward.1} parent=1 // pred_fallthru
      _
    // Predicated region
    $region66: #{autoencoder_forward.1} parent=1 // pred_check
      _
    $region67: #{autoencoder_forward.1} parent=1 // pred_check_branch
      %146 = sbr.rel (0) target = $region69
    $region68: #{autoencoder_forward.1} parent=1 // pred_region
      %s148 = ssub.s32 64, 64
      %149 = vsyncadd [#allocation15], %s148
      %s151 = sshll.u32 [#allocation16], 4
      %s152 = int_to_ptr.vmem [resolvable:$true] %s151
      %154 = dma.hbm_to_vmem [thread:$0]  %s16, 64, %s152, [#allocation15]
    $region69: #{autoencoder_forward.1} parent=1 // pred_fallthru
      _
    // Predicated region
    $region70: #{autoencoder_forward.1} parent=1 // pred_check
      _
    $region71: #{autoencoder_forward.1} parent=1 // pred_check_branch
      %156 = sbr.rel (0) target = $region73
    $region72: #{autoencoder_forward.1} parent=1 // pred_region
      _
    $region73: #{autoencoder_forward.1} parent=1 // pred_fallthru
      _
    // Predicated region
    $region74: #{autoencoder_forward.1} parent=1 // pred_check
      _
    $region75: #{autoencoder_forward.1} parent=1 // pred_check_branch
      %158 = sbr.rel (0) target = $region77
    $region76: #{autoencoder_forward.1} parent=1 // pred_region
      _
    $region77: #{autoencoder_forward.1} parent=1 // pred_fallthru
      _
    // Predicated region
    $region78: #{autoencoder_forward.1} parent=1 // pred_check
      _
    $region79: #{autoencoder_forward.1} parent=1 // pred_check_branch
      %160 = sbr.rel (0) target = $region81
    $region80: #{autoencoder_forward.1} parent=1 // pred_region
      _
    $region81: #{autoencoder_forward.1} parent=1 // pred_fallthru
      _
    // Predicated region
    $region82: #{autoencoder_forward.1} parent=1 // pred_check
      _
    $region83: #{autoencoder_forward.1} parent=1 // pred_check_branch
      %162 = sbr.rel (0) target = $region85
    $region84: #{autoencoder_forward.1} parent=1 // pred_region
      _
    $region85: #{autoencoder_forward.1} parent=1 // pred_fallthru
      _
    // Predicated region
    $region86: #{autoencoder_forward.1} parent=1 // pred_check
      _
    $region87: #{autoencoder_forward.1} parent=1 // pred_check_branch
      %164 = sbr.rel (0) target = $region89
    $region88: #{autoencoder_forward.1} parent=1 // pred_region
      _
    $region89: #{autoencoder_forward.1} parent=1 // pred_fallthru
      _
    // Predicated region
    $region90: #{autoencoder_forward.1} parent=1 // pred_check
      _
    $region91: #{autoencoder_forward.1} parent=1 // pred_check_branch
      %166 = sbr.rel (0) target = $region93
    $region92: #{autoencoder_forward.1} parent=1 // pred_region
      _
    $region93: #{autoencoder_forward.1} parent=1 // pred_fallthru
      _
    // Predicated region
    $region94: #{autoencoder_forward.1} parent=1 // pred_check
      _
    $region95: #{autoencoder_forward.1} parent=1 // pred_check_branch
      %168 = sbr.rel (0) target = $region97
    $region96: #{autoencoder_forward.1} parent=1 // pred_region
      _
    $region97: #{autoencoder_forward.1} parent=1 // pred_fallthru
      _
    // Predicated region
    $region98: #{autoencoder_forward.1} parent=1 // pred_check
      _
    $region99: #{autoencoder_forward.1} parent=1 // pred_check_branch
      %170 = sbr.rel (0) target = $region101
    $region100: #{autoencoder_forward.1} parent=1 // pred_region
      _
    $region101: #{autoencoder_forward.1} parent=1 // pred_fallthru
      _
    // Predicated region
    $region102: #{autoencoder_forward.1} parent=1 // pred_check
      _
    $region103: #{autoencoder_forward.1} parent=1 // pred_check_branch
      %172 = sbr.rel (0) target = $region105
    $region104: #{autoencoder_forward.1} parent=1 // pred_region
      _
    $region105: #{autoencoder_forward.1} parent=1 // pred_fallthru
      _
    // Predicated region
    $region106: #{autoencoder_forward.1} parent=1 // pred_check
      _
    $region107: #{autoencoder_forward.1} parent=1 // pred_check_branch
      %174 = sbr.rel (0) target = $region109
    $region108: #{autoencoder_forward.1} parent=1 // pred_region
      %175 = dma.done [#allocation3], 896
    $region109: #{autoencoder_forward.1} parent=1 // pred_fallthru
      _
    // Predicated region
    $region110: #{autoencoder_forward.1} parent=1 // pred_check
      _
    $region111: #{autoencoder_forward.1} parent=1 // pred_check_branch
      %177 = sbr.rel (0) target = $region113
    $region112: #{autoencoder_forward.1} parent=1 // pred_region
      %178 = dma.done [#allocation6], 576
    $region113: #{autoencoder_forward.1} parent=1 // pred_fallthru
      _
    // Predicated region
    $region114: #{autoencoder_forward.1} parent=1 // pred_check
      _
    $region115: #{autoencoder_forward.1} parent=1 // pred_check_branch
      %180 = sbr.rel (0) target = $region117
    $region116: #{autoencoder_forward.1} parent=1 // pred_region
      %181 = dma.done [#allocation6], 192
    $region117: #{autoencoder_forward.1} parent=1 // pred_fallthru
      _
    // Predicated region
    $region118: #{autoencoder_forward.1} parent=1 // pred_check
      _
    $region119: #{autoencoder_forward.1} parent=1 // pred_check_branch
      %183 = sbr.rel (0) target = $region121
    $region120: #{autoencoder_forward.1} parent=1 // pred_region
      %184 = dma.done [#allocation9], 256
    $region121: #{autoencoder_forward.1} parent=1 // pred_fallthru
      _
    // Predicated region
    $region122: #{autoencoder_forward.1} parent=1 // pred_check
      _
    $region123: #{autoencoder_forward.1} parent=1 // pred_check_branch
      %186 = sbr.rel (0) target = $region125
    $region124: #{autoencoder_forward.1} parent=1 // pred_region
      %187 = dma.done [#allocation9], 128
    $region125: #{autoencoder_forward.1} parent=1 // pred_fallthru
      _
    // Predicated region
    $region126: #{autoencoder_forward.1} parent=1 // pred_check
      _
    $region127: #{autoencoder_forward.1} parent=1 // pred_check_branch
      %189 = sbr.rel (0) target = $region129
    $region128: #{autoencoder_forward.1} parent=1 // pred_region
      %190 = dma.done [#allocation12], 32
    $region129: #{autoencoder_forward.1} parent=1 // pred_fallthru
      _
    // Predicated region
    $region130: #{autoencoder_forward.1} parent=1 // pred_check
      _
    $region131: #{autoencoder_forward.1} parent=1 // pred_check_branch
      %192 = sbr.rel (0) target = $region133
    $region132: #{autoencoder_forward.1} parent=1 // pred_region
      %193 = dma.done [#allocation12], 32
    $region133: #{autoencoder_forward.1} parent=1 // pred_fallthru
      _
    // Predicated region
    $region134: #{autoencoder_forward.1} parent=1 // pred_check
      _
    $region135: #{autoencoder_forward.1} parent=1 // pred_check_branch
      %195 = sbr.rel (0) target = $region137
    $region136: #{autoencoder_forward.1} parent=1 // pred_region
      %196 = dma.done [#allocation15], 256
    $region137: #{autoencoder_forward.1} parent=1 // pred_fallthru
      _
    // Predicated region
    $region138: #{autoencoder_forward.1} parent=1 // pred_check
      _
    $region139: #{autoencoder_forward.1} parent=1 // pred_check_branch
      %198 = sbr.rel (0) target = $region141
    $region140: #{autoencoder_forward.1} parent=1 // pred_region
      %199 = dma.done [#allocation15], 64
    $region141: #{autoencoder_forward.1} parent=1 // pred_fallthru
      _
    %v201 = vld [vmem:[#allocation2] sm:$0xff]
    %v202 = vld [vmem:[#allocation2 + $0x8] sm:$0xff]
    %v203 = vld [vmem:[#allocation2 + $0x10] sm:$0xff]
    %v204 = vld [vmem:[#allocation2 + $0x18] sm:$0xff]
    %v205 = vld [vmem:[#allocation2 + $0x20] sm:$0xff]
    %v206 = vld [vmem:[#allocation2 + $0x28] sm:$0xff]
    %v207 = vld [vmem:[#allocation2 + $0x30] sm:$0xff]
    %v208 = vpack.c.bf16 %v202, %v201
    %v209 = vpack.c.bf16 %v204, %v203
    %v210 = vpack.c.bf16 %v206, %v205
    %v211 = vpack.c.bf16 %v207, %v207
    %v212 = vld [vmem:[#allocation5] sm:$0xf]
    %v213 = vld [vmem:[#allocation5 + $0x4] sm:$0xf]
    %v214 = vld [vmem:[#allocation5 + $0x8] sm:$0x3]
    %v218 = vunpack.c.l.b16 %v212
    %v219 = vunpack.c.l.b16 %v213
    %v220 = vunpack.c.l.b16 %v214
    %v221 = vpack.c.b16 %v219, %v218
    %v222 = vpack.c.b16 %v220, %v220
    %vm223 = vcmask 457728
    %v225 = vsel %vm223, %v221, 0
    %v228 = vsel %vm223, %v222, 0
    %vm230 = vcmask 1043456
    %v232 = vsel %vm230, %v211, 0
    %234 = vmatprep.subr.bf16.mxu0 0
    %235 = vmatpush1.bf16.msra.mxu0 0
    %236 = vmatprep.subr.bf16.mxu0 0
    %237 = vmatpush1.bf16.msra.mxu0 0
    %238 = vmatprep.subr.bf16.mxu0 0
    %239 = vmatpush1.bf16.msra.mxu0 0
    %240 = vmatprep.subr.bf16.mxu0 0
    %241 = vmatpush1.bf16.msra.mxu0 0
    %242 = vmatprep.subr.bf16.mxu0 0
    %243 = vmatpush1.bf16.msra.mxu0 %v232
    %244 = vmatprep.subr.bf16.mxu0 0
    %245 = vmatpush1.bf16.msra.mxu0 %v210
    %246 = vmatprep.subr.bf16.mxu0 0
    %247 = vmatpush1.bf16.msra.mxu0 %v209
    %248 = vmatprep.subr.bf16.mxu0 0
    %249 = vmatpush1.bf16.msra.mxu0 %v208
    %250 = vmatprep.subr.bf16.mxu0 0
    %251 = vmatpush2.bf16.msra.mxu0 0
    %252 = vmatprep.subr.bf16.mxu0 0
    %253 = vmatpush2.bf16.msra.mxu0 0
    %254 = vmatprep.subr.bf16.mxu0 0
    %255 = vmatpush2.bf16.msra.mxu0 0
    %256 = vmatprep.subr.bf16.mxu0 0
    %257 = vmatpush2.bf16.msra.mxu0 0
    %258 = vmatprep.subr.bf16.mxu0 0
    %259 = vmatpush2.bf16.msra.mxu0 0
    %260 = vmatprep.subr.bf16.mxu0 0
    %261 = vmatpush2.bf16.msra.mxu0 0
    %262 = vmatprep.subr.bf16.mxu0 0
    %263 = vmatpush2.bf16.msra.mxu0 0
    %264 = vmatprep.subr.bf16.mxu0 0
    %265 = vmatpush2.bf16.msra.mxu0 0
    %266 = vmatprep.mubr.bf16.mxu0 0
    %267 = vmatmul.mubr.bf16.gmra.mxu0 %v225
    %v268 = vpop.f32.mrf.mxu0
    %v269 = vadd.f32 0.0, %v268
    %v270 = vpop.f32.mrf.mxu0
    %v271 = vpop.f32.mrf.mxu0
    %v272 = vadd.f32 0.0, %v271
    %v273 = vpop.f32.mrf.mxu0
    %274 = vmatprep.mubr.bf16.mxu0 0
    %275 = vmatmul.mubr.bf16.gmra.mxu0 %v228
    %v276 = vpop.f32.mrf.mxu0
    %v277 = vadd.f32 0.0, %v276
    %v278 = vpop.f32.mrf.mxu0
    %v279 = vpop.f32.mrf.mxu0
    %v280 = vpop.f32.mrf.mxu0
    %281 = vdwg.mxu0
    %v282 = vpack.c.bf16 %v272, %v269
    %v283 = vpack.c.bf16 %v277, %v277
    %v284 = vld [vmem:[%s2] sm:$0xff]
    %v285 = vld [vmem:[%s2 + $0x8] sm:$0xf]
    %v286 = vld [vmem:[%s2 + $0xc] sm:$0xff]
    %v287 = vld [vmem:[%s2 + $0x14] sm:$0xf]
    %v288 = vld [vmem:[%s2 + $0x18] sm:$0xff]
    %v289 = vld [vmem:[%s2 + $0x20] sm:$0xf]
    %v290 = vld [vmem:[%s2 + $0x24] sm:$0x33]
    %v291 = vld [vmem:[%s2 + $0x2c] sm:$0x3]
    %s292 = scalar_lea.vmem [#allocation5], 12
    %v293 = vld [vmem:[%s292] sm:$0xf]
    %v294 = vld [vmem:[%s292 + $0x4] sm:$0xf]
    %v295 = vld [vmem:[%s292 + $0x8] sm:$0x3]
    %v299 = vunpack.c.l.b16 %v293
    %v300 = vunpack.c.l.b16 %v294
    %v301 = vunpack.c.l.b16 %v295
    %v302 = vpack.c.b16 %v300, %v299
    %v303 = vpack.c.b16 %v301, %v301
    %v305 = vsel %vm223, %v302, 0
    %v308 = vsel %vm223, %v303, 0
    %310 = vmatprep.subr.bf16.mxu0 0
    %311 = vmatpush1.bf16.msra.mxu0 0
    %312 = vmatprep.subr.bf16.mxu0 0
    %313 = vmatpush1.bf16.msra.mxu0 0
    %314 = vmatprep.subr.bf16.mxu0 0
    %315 = vmatpush1.bf16.msra.mxu0 0
    %316 = vmatprep.subr.bf16.mxu0 0
    %317 = vmatpush1.bf16.msra.mxu0 0
    %318 = vmatprep.subr.bf16.mxu0 0
    %319 = vmatpush1.bf16.msra.mxu0 %v232
    %320 = vmatprep.subr.bf16.mxu0 0
    %321 = vmatpush1.bf16.msra.mxu0 %v210
    %322 = vmatprep.subr.bf16.mxu0 0
    %323 = vmatpush1.bf16.msra.mxu0 %v209
    %324 = vmatprep.subr.bf16.mxu0 0
    %325 = vmatpush1.bf16.msra.mxu0 %v208
    %326 = vmatprep.subr.bf16.mxu0 0
    %327 = vmatpush2.bf16.msra.mxu0 0
    %328 = vmatprep.subr.bf16.mxu0 0
    %329 = vmatpush2.bf16.msra.mxu0 0
    %330 = vmatprep.subr.bf16.mxu0 0
    %331 = vmatpush2.bf16.msra.mxu0 0
    %332 = vmatprep.subr.bf16.mxu0 0
    %333 = vmatpush2.bf16.msra.mxu0 0
    %334 = vmatprep.subr.bf16.mxu0 0
    %335 = vmatpush2.bf16.msra.mxu0 0
    %336 = vmatprep.subr.bf16.mxu0 0
    %337 = vmatpush2.bf16.msra.mxu0 0
    %338 = vmatprep.subr.bf16.mxu0 0
    %339 = vmatpush2.bf16.msra.mxu0 0
    %340 = vmatprep.subr.bf16.mxu0 0
    %341 = vmatpush2.bf16.msra.mxu0 0
    %342 = vmatprep.mubr.bf16.mxu0 0
    %343 = vmatmul.mubr.bf16.gmra.mxu0 %v305
    %v344 = vpop.f32.mrf.mxu0
    %v345 = vadd.f32 0.0, %v344
    %v346 = vpop.f32.mrf.mxu0
    %v347 = vpop.f32.mrf.mxu0
    %v348 = vadd.f32 0.0, %v347
    %v349 = vpop.f32.mrf.mxu0
    %350 = vmatprep.mubr.bf16.mxu0 0
    %351 = vmatmul.mubr.bf16.gmra.mxu0 %v308
    %v352 = vpop.f32.mrf.mxu0
    %v353 = vadd.f32 0.0, %v352
    %v354 = vpop.f32.mrf.mxu0
    %v355 = vpop.f32.mrf.mxu0
    %v356 = vpop.f32.mrf.mxu0
    %357 = vdwg.mxu0
    %v358 = vpack.c.bf16 %v348, %v345
    %v359 = vpack.c.bf16 %v353, %v353
    %s360 = scalar_lea.vmem %s2, 48
    %v361 = vld [vmem:[%s360] sm:$0xff]
    %v362 = vld [vmem:[%s360 + $0x8] sm:$0xf]
    %v363 = vld [vmem:[%s360 + $0xc] sm:$0xff]
    %v364 = vld [vmem:[%s360 + $0x14] sm:$0xf]
    %v365 = vld [vmem:[%s360 + $0x18] sm:$0xff]
    %v366 = vld [vmem:[%s360 + $0x20] sm:$0xf]
    %v367 = vld [vmem:[%s360 + $0x24] sm:$0x33]
    %v368 = vld [vmem:[%s360 + $0x2c] sm:$0x3]
    %v377 = vunpack.c.l.b16 %v361
    %v378 = vunpack.c.h.b16 %v361
    %v379 = vunpack.c.l.b16 %v362
    %v380 = vunpack.c.l.b16 %v363
    %v381 = vunpack.c.h.b16 %v363
    %v382 = vunpack.c.l.b16 %v364
    %v383 = vunpack.c.l.b16 %v365
    %v384 = vunpack.c.h.b16 %v365
    %v385 = vunpack.c.l.b16 %v366
    %v386 = vunpack.c.l.b16 %v367
    %v387 = vunpack.c.h.b16 %v367
    %v388 = vunpack.c.l.b16 %v368
    %v389 = vpack.c.b16 %v380, %v377
    %v390 = vpack.c.b16 %v381, %v378
    %v391 = vpack.c.b16 %v382, %v379
    %v392 = vpack.c.b16 %v386, %v383
    %v393 = vpack.c.b16 %v387, %v384
    %v394 = vpack.c.b16 %v388, %v385
    %vm398 = vcmask 228352
    %v400 = vsel %vm398, %v358, 0
    %v403 = vsel %vm398, %v359, 0
    %vm405 = vcmask 1045504
    %v407 = vsel %vm405, %v392, 0
    %v410 = vsel %vm405, %v393, 0
    %v413 = vsel %vm405, %v394, 0
    %415 = vmatprep.subr.bf16.mxu0 0
    %416 = vmatpush1.bf16.msra.mxu0 0
    %417 = vmatprep.subr.bf16.mxu0 0
    %418 = vmatpush1.bf16.msra.mxu0 0
    %419 = vmatprep.subr.bf16.mxu0 0
    %420 = vmatpush1.bf16.msra.mxu0 0
    %421 = vmatprep.subr.bf16.mxu0 0
    %422 = vmatpush1.bf16.msra.mxu0 0
    %423 = vmatprep.subr.bf16.mxu0 0
    %424 = vmatpush1.bf16.msra.mxu0 0
    %425 = vmatprep.subr.bf16.mxu0 0
    %426 = vmatpush1.bf16.msra.mxu0 0
    %427 = vmatprep.subr.bf16.mxu0 %v410
    %428 = vmatpush1.bf16.msra.mxu0 %v407
    %429 = vmatprep.subr.bf16.mxu0 %v390
    %430 = vmatpush1.bf16.msra.mxu0 %v389
    %431 = vmatprep.subr.bf16.mxu0 0
    %432 = vmatpush2.bf16.msra.mxu0 0
    %433 = vmatprep.subr.bf16.mxu0 0
    %434 = vmatpush2.bf16.msra.mxu0 0
    %435 = vmatprep.subr.bf16.mxu0 0
    %436 = vmatpush2.bf16.msra.mxu0 0
    %437 = vmatprep.subr.bf16.mxu0 0
    %438 = vmatpush2.bf16.msra.mxu0 0
    %439 = vmatprep.subr.bf16.mxu0 0
    %440 = vmatpush2.bf16.msra.mxu0 0
    %441 = vmatprep.subr.bf16.mxu0 0
    %442 = vmatpush2.bf16.msra.mxu0 0
    %443 = vmatprep.subr.bf16.mxu0 0
    %444 = vmatpush2.bf16.msra.mxu0 0
    %445 = vmatprep.subr.bf16.mxu0 0
    %446 = vmatpush2.bf16.msra.mxu0 0
    %447 = vmatprep.mubr.bf16.mxu0 0
    %448 = vmatmul.mubr.bf16.gmra.mxu0 %v400
    %v449 = vpop.f32.mrf.mxu0
    %v450 = vadd.f32 0.0, %v449
    %v451 = vpop.f32.mrf.mxu0
    %v452 = vadd.f32 0.0, %v451
    %v453 = vpop.f32.mrf.mxu0
    %v454 = vadd.f32 0.0, %v453
    %v455 = vpop.f32.mrf.mxu0
    %v456 = vadd.f32 0.0, %v455
    %457 = vmatprep.mubr.bf16.mxu0 0
    %458 = vmatmul.mubr.bf16.gmra.mxu0 %v403
    %v459 = vpop.f32.mrf.mxu0
    %v460 = vadd.f32 0.0, %v459
    %v461 = vpop.f32.mrf.mxu0
    %v462 = vadd.f32 0.0, %v461
    %v463 = vpop.f32.mrf.mxu0
    %v464 = vpop.f32.mrf.mxu0
    %465 = vdwg.mxu0
    %466 = vmatprep.subr.bf16.mxu0 0
    %467 = vmatpush1.bf16.msra.mxu0 0
    %468 = vmatprep.subr.bf16.mxu0 0
    %469 = vmatpush1.bf16.msra.mxu0 0
    %470 = vmatprep.subr.bf16.mxu0 0
    %471 = vmatpush1.bf16.msra.mxu0 0
    %472 = vmatprep.subr.bf16.mxu0 0
    %473 = vmatpush1.bf16.msra.mxu0 0
    %474 = vmatprep.subr.bf16.mxu0 0
    %475 = vmatpush1.bf16.msra.mxu0 0
    %476 = vmatprep.subr.bf16.mxu0 0
    %477 = vmatpush1.bf16.msra.mxu0 0
    %478 = vmatprep.subr.bf16.mxu0 0
    %479 = vmatpush1.bf16.msra.mxu0 %v413
    %480 = vmatprep.subr.bf16.mxu0 0
    %481 = vmatpush1.bf16.msra.mxu0 %v391
    %482 = vmatprep.subr.bf16.mxu0 0
    %483 = vmatpush2.bf16.msra.mxu0 0
    %484 = vmatprep.subr.bf16.mxu0 0
    %485 = vmatpush2.bf16.msra.mxu0 0
    %486 = vmatprep.subr.bf16.mxu0 0
    %487 = vmatpush2.bf16.msra.mxu0 0
    %488 = vmatprep.subr.bf16.mxu0 0
    %489 = vmatpush2.bf16.msra.mxu0 0
    %490 = vmatprep.subr.bf16.mxu0 0
    %491 = vmatpush2.bf16.msra.mxu0 0
    %492 = vmatprep.subr.bf16.mxu0 0
    %493 = vmatpush2.bf16.msra.mxu0 0
    %494 = vmatprep.subr.bf16.mxu0 0
    %495 = vmatpush2.bf16.msra.mxu0 0
    %496 = vmatprep.subr.bf16.mxu0 0
    %497 = vmatpush2.bf16.msra.mxu0 0
    %498 = vmatprep.mubr.bf16.mxu0 0
    %499 = vmatmul.mubr.bf16.gmra.mxu0 %v400
    %v500 = vpop.f32.mrf.mxu0
    %v501 = vadd.f32 0.0, %v500
    %v502 = vpop.f32.mrf.mxu0
    %v503 = vpop.f32.mrf.mxu0
    %v504 = vadd.f32 0.0, %v503
    %v505 = vpop.f32.mrf.mxu0
    %506 = vmatprep.mubr.bf16.mxu0 0
    %507 = vmatmul.mubr.bf16.gmra.mxu0 %v403
    %v508 = vpop.f32.mrf.mxu0
    %v509 = vadd.f32 0.0, %v508
    %v510 = vpop.f32.mrf.mxu0
    %v511 = vpop.f32.mrf.mxu0
    %v512 = vpop.f32.mrf.mxu0
    %513 = vdwg.mxu0
    %v522 = vunpack.c.l.b16 %v284
    %v523 = vunpack.c.h.b16 %v284
    %v524 = vunpack.c.l.b16 %v285
    %v525 = vunpack.c.l.b16 %v286
    %v526 = vunpack.c.h.b16 %v286
    %v527 = vunpack.c.l.b16 %v287
    %v528 = vunpack.c.l.b16 %v288
    %v529 = vunpack.c.h.b16 %v288
    %v530 = vunpack.c.l.b16 %v289
    %v531 = vunpack.c.l.b16 %v290
    %v532 = vunpack.c.h.b16 %v290
    %v533 = vunpack.c.l.b16 %v291
    %v534 = vpack.c.b16 %v525, %v522
    %v535 = vpack.c.b16 %v526, %v523
    %v536 = vpack.c.b16 %v527, %v524
    %v537 = vpack.c.b16 %v531, %v528
    %v538 = vpack.c.b16 %v532, %v529
    %v539 = vpack.c.b16 %v533, %v530
    %v544 = vsel %vm398, %v282, 0
    %v547 = vsel %vm398, %v283, 0
    %v550 = vsel %vm405, %v537, 0
    %v553 = vsel %vm405, %v538, 0
    %v556 = vsel %vm405, %v539, 0
    %558 = vmatprep.subr.bf16.mxu0 0
    %559 = vmatpush1.bf16.msra.mxu0 0
    %560 = vmatprep.subr.bf16.mxu0 0
    %561 = vmatpush1.bf16.msra.mxu0 0
    %562 = vmatprep.subr.bf16.mxu0 0
    %563 = vmatpush1.bf16.msra.mxu0 0
    %564 = vmatprep.subr.bf16.mxu0 0
    %565 = vmatpush1.bf16.msra.mxu0 0
    %566 = vmatprep.subr.bf16.mxu0 0
    %567 = vmatpush1.bf16.msra.mxu0 0
    %568 = vmatprep.subr.bf16.mxu0 0
    %569 = vmatpush1.bf16.msra.mxu0 0
    %570 = vmatprep.subr.bf16.mxu0 %v553
    %571 = vmatpush1.bf16.msra.mxu0 %v550
    %572 = vmatprep.subr.bf16.mxu0 %v535
    %573 = vmatpush1.bf16.msra.mxu0 %v534
    %574 = vmatprep.subr.bf16.mxu0 0
    %575 = vmatpush2.bf16.msra.mxu0 0
    %576 = vmatprep.subr.bf16.mxu0 0
    %577 = vmatpush2.bf16.msra.mxu0 0
    %578 = vmatprep.subr.bf16.mxu0 0
    %579 = vmatpush2.bf16.msra.mxu0 0
    %580 = vmatprep.subr.bf16.mxu0 0
    %581 = vmatpush2.bf16.msra.mxu0 0
    %582 = vmatprep.subr.bf16.mxu0 0
    %583 = vmatpush2.bf16.msra.mxu0 0
    %584 = vmatprep.subr.bf16.mxu0 0
    %585 = vmatpush2.bf16.msra.mxu0 0
    %586 = vmatprep.subr.bf16.mxu0 0
    %587 = vmatpush2.bf16.msra.mxu0 0
    %588 = vmatprep.subr.bf16.mxu0 0
    %589 = vmatpush2.bf16.msra.mxu0 0
    %590 = vmatprep.mubr.bf16.mxu0 0
    %591 = vmatmul.mubr.bf16.gmra.mxu0 %v544
    %v592 = vpop.f32.mrf.mxu0
    %v593 = vadd.f32 %v450, %v592
    %v594 = vpop.f32.mrf.mxu0
    %v595 = vadd.f32 %v452, %v594
    %v596 = vpop.f32.mrf.mxu0
    %v597 = vadd.f32 %v454, %v596
    %v598 = vpop.f32.mrf.mxu0
    %v599 = vadd.f32 %v456, %v598
    %600 = vmatprep.mubr.bf16.mxu0 0
    %601 = vmatmul.mubr.bf16.gmra.mxu0 %v547
    %v602 = vpop.f32.mrf.mxu0
    %v603 = vadd.f32 %v460, %v602
    %v604 = vpop.f32.mrf.mxu0
    %v605 = vadd.f32 %v462, %v604
    %v606 = vpop.f32.mrf.mxu0
    %v607 = vpop.f32.mrf.mxu0
    %608 = vdwg.mxu0
    %609 = vmatprep.subr.bf16.mxu0 0
    %610 = vmatpush1.bf16.msra.mxu0 0
    %611 = vmatprep.subr.bf16.mxu0 0
    %612 = vmatpush1.bf16.msra.mxu0 0
    %613 = vmatprep.subr.bf16.mxu0 0
    %614 = vmatpush1.bf16.msra.mxu0 0
    %615 = vmatprep.subr.bf16.mxu0 0
    %616 = vmatpush1.bf16.msra.mxu0 0
    %617 = vmatprep.subr.bf16.mxu0 0
    %618 = vmatpush1.bf16.msra.mxu0 0
    %619 = vmatprep.subr.bf16.mxu0 0
    %620 = vmatpush1.bf16.msra.mxu0 0
    %621 = vmatprep.subr.bf16.mxu0 0
    %622 = vmatpush1.bf16.msra.mxu0 %v556
    %623 = vmatprep.subr.bf16.mxu0 0
    %624 = vmatpush1.bf16.msra.mxu0 %v536
    %625 = vmatprep.subr.bf16.mxu0 0
    %626 = vmatpush2.bf16.msra.mxu0 0
    %627 = vmatprep.subr.bf16.mxu0 0
    %628 = vmatpush2.bf16.msra.mxu0 0
    %629 = vmatprep.subr.bf16.mxu0 0
    %630 = vmatpush2.bf16.msra.mxu0 0
    %631 = vmatprep.subr.bf16.mxu0 0
    %632 = vmatpush2.bf16.msra.mxu0 0
    %633 = vmatprep.subr.bf16.mxu0 0
    %634 = vmatpush2.bf16.msra.mxu0 0
    %635 = vmatprep.subr.bf16.mxu0 0
    %636 = vmatpush2.bf16.msra.mxu0 0
    %637 = vmatprep.subr.bf16.mxu0 0
    %638 = vmatpush2.bf16.msra.mxu0 0
    %639 = vmatprep.subr.bf16.mxu0 0
    %640 = vmatpush2.bf16.msra.mxu0 0
    %641 = vmatprep.mubr.bf16.mxu0 0
    %642 = vmatmul.mubr.bf16.gmra.mxu0 %v544
    %v643 = vpop.f32.mrf.mxu0
    %v644 = vadd.f32 %v501, %v643
    %v645 = vpop.f32.mrf.mxu0
    %v646 = vpop.f32.mrf.mxu0
    %v647 = vadd.f32 %v504, %v646
    %v648 = vpop.f32.mrf.mxu0
    %649 = vmatprep.mubr.bf16.mxu0 0
    %650 = vmatmul.mubr.bf16.gmra.mxu0 %v547
    %v651 = vpop.f32.mrf.mxu0
    %v652 = vadd.f32 %v509, %v651
    %v653 = vpop.f32.mrf.mxu0
    %v654 = vpop.f32.mrf.mxu0
    %v655 = vpop.f32.mrf.mxu0
    %656 = vdwg.mxu0
    %s657 = scalar_lea.vmem [#allocation5], 24
    %v658 = vld [vmem:[%s657] sm:$0xf]
    %v659 = vld [vmem:[%s657 + $0x4] sm:$0xf]
    %v660 = vld [vmem:[%s657 + $0x8] sm:$0x3]
    %v664 = vunpack.c.l.b16 %v658
    %v665 = vunpack.c.l.b16 %v659
    %v666 = vunpack.c.l.b16 %v660
    %v667 = vpack.c.b16 %v665, %v664
    %v668 = vpack.c.b16 %v666, %v666
    %v670 = vsel %vm223, %v667, 0
    %v673 = vsel %vm223, %v668, 0
    %675 = vmatprep.subr.bf16.mxu0 0
    %676 = vmatpush1.bf16.msra.mxu0 0
    %677 = vmatprep.subr.bf16.mxu0 0
    %678 = vmatpush1.bf16.msra.mxu0 0
    %679 = vmatprep.subr.bf16.mxu0 0
    %680 = vmatpush1.bf16.msra.mxu0 0
    %681 = vmatprep.subr.bf16.mxu0 0
    %682 = vmatpush1.bf16.msra.mxu0 0
    %683 = vmatprep.subr.bf16.mxu0 0
    %684 = vmatpush1.bf16.msra.mxu0 %v232
    %685 = vmatprep.subr.bf16.mxu0 0
    %686 = vmatpush1.bf16.msra.mxu0 %v210
    %687 = vmatprep.subr.bf16.mxu0 0
    %688 = vmatpush1.bf16.msra.mxu0 %v209
    %689 = vmatprep.subr.bf16.mxu0 0
    %690 = vmatpush1.bf16.msra.mxu0 %v208
    %691 = vmatprep.subr.bf16.mxu0 0
    %692 = vmatpush2.bf16.msra.mxu0 0
    %693 = vmatprep.subr.bf16.mxu0 0
    %694 = vmatpush2.bf16.msra.mxu0 0
    %695 = vmatprep.subr.bf16.mxu0 0
    %696 = vmatpush2.bf16.msra.mxu0 0
    %697 = vmatprep.subr.bf16.mxu0 0
    %698 = vmatpush2.bf16.msra.mxu0 0
    %699 = vmatprep.subr.bf16.mxu0 0
    %700 = vmatpush2.bf16.msra.mxu0 0
    %701 = vmatprep.subr.bf16.mxu0 0
    %702 = vmatpush2.bf16.msra.mxu0 0
    %703 = vmatprep.subr.bf16.mxu0 0
    %704 = vmatpush2.bf16.msra.mxu0 0
    %705 = vmatprep.subr.bf16.mxu0 0
    %706 = vmatpush2.bf16.msra.mxu0 0
    %707 = vmatprep.mubr.bf16.mxu0 0
    %708 = vmatmul.mubr.bf16.gmra.mxu0 %v670
    %v709 = vpop.f32.mrf.mxu0
    %v710 = vadd.f32 0.0, %v709
    %v711 = vpop.f32.mrf.mxu0
    %v712 = vpop.f32.mrf.mxu0
    %v713 = vadd.f32 0.0, %v712
    %v714 = vpop.f32.mrf.mxu0
    %715 = vmatprep.mubr.bf16.mxu0 0
    %716 = vmatmul.mubr.bf16.gmra.mxu0 %v673
    %v717 = vpop.f32.mrf.mxu0
    %v718 = vadd.f32 0.0, %v717
    %v719 = vpop.f32.mrf.mxu0
    %v720 = vpop.f32.mrf.mxu0
    %v721 = vpop.f32.mrf.mxu0
    %722 = vdwg.mxu0
    %v723 = vpack.c.bf16 %v713, %v710
    %v724 = vpack.c.bf16 %v718, %v718
    %s725 = scalar_lea.vmem %s2, 96
    %v726 = vld [vmem:[%s725] sm:$0xff]
    %v727 = vld [vmem:[%s725 + $0x8] sm:$0xf]
    %v728 = vld [vmem:[%s725 + $0xc] sm:$0xff]
    %v729 = vld [vmem:[%s725 + $0x14] sm:$0xf]
    %v730 = vld [vmem:[%s725 + $0x18] sm:$0xff]
    %v731 = vld [vmem:[%s725 + $0x20] sm:$0xf]
    %v732 = vld [vmem:[%s725 + $0x24] sm:$0x33]
    %v733 = vld [vmem:[%s725 + $0x2c] sm:$0x3]
    %v742 = vunpack.c.l.b16 %v726
    %v743 = vunpack.c.h.b16 %v726
    %v744 = vunpack.c.l.b16 %v727
    %v745 = vunpack.c.l.b16 %v728
    %v746 = vunpack.c.h.b16 %v728
    %v747 = vunpack.c.l.b16 %v729
    %v748 = vunpack.c.l.b16 %v730
    %v749 = vunpack.c.h.b16 %v730
    %v750 = vunpack.c.l.b16 %v731
    %v751 = vunpack.c.l.b16 %v732
    %v752 = vunpack.c.h.b16 %v732
    %v753 = vunpack.c.l.b16 %v733
    %v754 = vpack.c.b16 %v745, %v742
    %v755 = vpack.c.b16 %v746, %v743
    %v756 = vpack.c.b16 %v747, %v744
    %v757 = vpack.c.b16 %v751, %v748
    %v758 = vpack.c.b16 %v752, %v749
    %v759 = vpack.c.b16 %v753, %v750
    %v764 = vsel %vm398, %v723, 0
    %v767 = vsel %vm398, %v724, 0
    %v770 = vsel %vm405, %v757, 0
    %v773 = vsel %vm405, %v758, 0
    %v776 = vsel %vm405, %v759, 0
    %778 = vmatprep.subr.bf16.mxu0 0
    %779 = vmatpush1.bf16.msra.mxu0 0
    %780 = vmatprep.subr.bf16.mxu0 0
    %781 = vmatpush1.bf16.msra.mxu0 0
    %782 = vmatprep.subr.bf16.mxu0 0
    %783 = vmatpush1.bf16.msra.mxu0 0
    %784 = vmatprep.subr.bf16.mxu0 0
    %785 = vmatpush1.bf16.msra.mxu0 0
    %786 = vmatprep.subr.bf16.mxu0 0
    %787 = vmatpush1.bf16.msra.mxu0 0
    %788 = vmatprep.subr.bf16.mxu0 0
    %789 = vmatpush1.bf16.msra.mxu0 0
    %790 = vmatprep.subr.bf16.mxu0 %v773
    %791 = vmatpush1.bf16.msra.mxu0 %v770
    %792 = vmatprep.subr.bf16.mxu0 %v755
    %793 = vmatpush1.bf16.msra.mxu0 %v754
    %794 = vmatprep.subr.bf16.mxu0 0
    %795 = vmatpush2.bf16.msra.mxu0 0
    %796 = vmatprep.subr.bf16.mxu0 0
    %797 = vmatpush2.bf16.msra.mxu0 0
    %798 = vmatprep.subr.bf16.mxu0 0
    %799 = vmatpush2.bf16.msra.mxu0 0
    %800 = vmatprep.subr.bf16.mxu0 0
    %801 = vmatpush2.bf16.msra.mxu0 0
    %802 = vmatprep.subr.bf16.mxu0 0
    %803 = vmatpush2.bf16.msra.mxu0 0
    %804 = vmatprep.subr.bf16.mxu0 0
    %805 = vmatpush2.bf16.msra.mxu0 0
    %806 = vmatprep.subr.bf16.mxu0 0
    %807 = vmatpush2.bf16.msra.mxu0 0
    %808 = vmatprep.subr.bf16.mxu0 0
    %809 = vmatpush2.bf16.msra.mxu0 0
    %810 = vmatprep.mubr.bf16.mxu0 0
    %811 = vmatmul.mubr.bf16.gmra.mxu0 %v764
    %v812 = vpop.f32.mrf.mxu0
    %v813 = vadd.f32 0.0, %v812
    %v814 = vpop.f32.mrf.mxu0
    %v815 = vadd.f32 0.0, %v814
    %v816 = vpop.f32.mrf.mxu0
    %v817 = vadd.f32 0.0, %v816
    %v818 = vpop.f32.mrf.mxu0
    %v819 = vadd.f32 0.0, %v818
    %820 = vmatprep.mubr.bf16.mxu0 0
    %821 = vmatmul.mubr.bf16.gmra.mxu0 %v767
    %v822 = vpop.f32.mrf.mxu0
    %v823 = vadd.f32 0.0, %v822
    %v824 = vpop.f32.mrf.mxu0
    %v825 = vadd.f32 0.0, %v824
    %v826 = vpop.f32.mrf.mxu0
    %v827 = vpop.f32.mrf.mxu0
    %828 = vdwg.mxu0
    %829 = vmatprep.subr.bf16.mxu0 0
    %830 = vmatpush1.bf16.msra.mxu0 0
    %831 = vmatprep.subr.bf16.mxu0 0
    %832 = vmatpush1.bf16.msra.mxu0 0
    %833 = vmatprep.subr.bf16.mxu0 0
    %834 = vmatpush1.bf16.msra.mxu0 0
    %835 = vmatprep.subr.bf16.mxu0 0
    %836 = vmatpush1.bf16.msra.mxu0 0
    %837 = vmatprep.subr.bf16.mxu0 0
    %838 = vmatpush1.bf16.msra.mxu0 0
    %839 = vmatprep.subr.bf16.mxu0 0
    %840 = vmatpush1.bf16.msra.mxu0 0
    %841 = vmatprep.subr.bf16.mxu0 0
    %842 = vmatpush1.bf16.msra.mxu0 %v776
    %843 = vmatprep.subr.bf16.mxu0 0
    %844 = vmatpush1.bf16.msra.mxu0 %v756
    %845 = vmatprep.subr.bf16.mxu0 0
    %846 = vmatpush2.bf16.msra.mxu0 0
    %847 = vmatprep.subr.bf16.mxu0 0
    %848 = vmatpush2.bf16.msra.mxu0 0
    %849 = vmatprep.subr.bf16.mxu0 0
    %850 = vmatpush2.bf16.msra.mxu0 0
    %851 = vmatprep.subr.bf16.mxu0 0
    %852 = vmatpush2.bf16.msra.mxu0 0
    %853 = vmatprep.subr.bf16.mxu0 0
    %854 = vmatpush2.bf16.msra.mxu0 0
    %855 = vmatprep.subr.bf16.mxu0 0
    %856 = vmatpush2.bf16.msra.mxu0 0
    %857 = vmatprep.subr.bf16.mxu0 0
    %858 = vmatpush2.bf16.msra.mxu0 0
    %859 = vmatprep.subr.bf16.mxu0 0
    %860 = vmatpush2.bf16.msra.mxu0 0
    %861 = vmatprep.mubr.bf16.mxu0 0
    %862 = vmatmul.mubr.bf16.gmra.mxu0 %v764
    %v863 = vpop.f32.mrf.mxu0
    %v864 = vadd.f32 0.0, %v863
    %v865 = vpop.f32.mrf.mxu0
    %v866 = vpop.f32.mrf.mxu0
    %v867 = vadd.f32 0.0, %v866
    %v868 = vpop.f32.mrf.mxu0
    %869 = vmatprep.mubr.bf16.mxu0 0
    %870 = vmatmul.mubr.bf16.gmra.mxu0 %v767
    %v871 = vpop.f32.mrf.mxu0
    %v872 = vadd.f32 0.0, %v871
    %v873 = vpop.f32.mrf.mxu0
    %v874 = vpop.f32.mrf.mxu0
    %v875 = vpop.f32.mrf.mxu0
    %876 = vdwg.mxu0
    %v877 = vadd.f32 %v593, %v813
    %v878 = vadd.f32 %v595, %v815
    %v879 = vadd.f32 %v644, %v864
    %v880 = vadd.f32 %v597, %v817
    %v881 = vadd.f32 %v599, %v819
    %v882 = vadd.f32 %v647, %v867
    %v883 = vadd.f32 %v603, %v823
    %v884 = vadd.f32 %v605, %v825
    %v885 = vadd.f32 %v652, %v872
    %v886 = vld [vmem:[%s3] sm:$0xff]
    %v887 = vld [vmem:[%s3 + $0x8] sm:$0xff]
    %v888 = vld [vmem:[%s3 + $0x10] sm:$0xff]
    %v889 = vld [vmem:[%s3 + $0x18] sm:$0xff]
    %v890 = vld [vmem:[%s3 + $0x20] sm:$0xff]
    %v891 = vld [vmem:[%s3 + $0x28] sm:$0xff]
    %v892 = vld [vmem:[%s3 + $0x30] sm:$0xf]
    %v893 = vld [vmem:[%s3 + $0x38] sm:$0xf]
    %v894 = vld [vmem:[%s3 + $0x40] sm:$0xf]
    %v895 = vadd.f32 %v877, %v886
    %v896 = vadd.f32 %v878, %v887
    %v897 = vadd.f32 %v879, %v888
    %v898 = vadd.f32 %v880, %v889
    %v899 = vadd.f32 %v881, %v890
    %v900 = vadd.f32 %v882, %v891
    %v901 = vadd.f32 %v883, %v892
    %v902 = vadd.f32 %v884, %v893
    %v903 = vadd.f32 %v885, %v894
    %v904 = vmax.f32 %v895, 0.0
    %v905 = vmax.f32 %v896, 0.0
    %v906 = vmax.f32 %v897, 0.0
    %v907 = vmax.f32 %v898, 0.0
    %v908 = vmax.f32 %v899, 0.0
    %v909 = vmax.f32 %v900, 0.0
    %v910 = vmax.f32 %v901, 0.0
    %v911 = vmax.f32 %v902, 0.0
    %v912 = vmax.f32 %v903, 0.0
    %v913 = vpack.c.bf16 %v907, %v904
    %v914 = vpack.c.bf16 %v908, %v905
    %v915 = vpack.c.bf16 %v909, %v906
    %v916 = vpack.c.bf16 %v910, %v910
    %v917 = vpack.c.bf16 %v911, %v911
    %v918 = vpack.c.bf16 %v912, %v912
    %v919 = vld [vmem:[%s4] sm:$0xf]
    %v920 = vld [vmem:[%s4 + $0x4] sm:$0x1]
    %v923 = vunpack.c.l.b16 %v919
    %v924 = vunpack.c.l.b16 %v920
    %v925 = vpack.c.b16 %v924, %v923
    %vm926 = vcmask 162816
    %v928 = vsel %vm926, %v925, 0
    %vm930 = vcmask 1041408
    %v932 = vsel %vm930, %v916, 0
    %v935 = vsel %vm930, %v917, 0
    %v938 = vsel %vm930, %v918, 0
    %940 = vmatprep.subr.bf16.mxu0 0
    %941 = vmatpush1.bf16.msra.mxu0 0
    %942 = vmatprep.subr.bf16.mxu0 0
    %943 = vmatpush1.bf16.msra.mxu0 0
    %944 = vmatprep.subr.bf16.mxu0 0
    %945 = vmatpush1.bf16.msra.mxu0 0
    %946 = vmatprep.subr.bf16.mxu0 0
    %947 = vmatpush1.bf16.msra.mxu0 0
    %948 = vmatprep.subr.bf16.mxu0 0
    %949 = vmatpush1.bf16.msra.mxu0 0
    %950 = vmatprep.subr.bf16.mxu0 0
    %951 = vmatpush1.bf16.msra.mxu0 0
    %952 = vmatprep.subr.bf16.mxu0 %v935
    %953 = vmatpush1.bf16.msra.mxu0 %v932
    %954 = vmatprep.subr.bf16.mxu0 %v914
    %955 = vmatpush1.bf16.msra.mxu0 %v913
    %956 = vmatprep.subr.bf16.mxu0 0
    %957 = vmatpush2.bf16.msra.mxu0 0
    %958 = vmatprep.subr.bf16.mxu0 0
    %959 = vmatpush2.bf16.msra.mxu0 0
    %960 = vmatprep.subr.bf16.mxu0 0
    %961 = vmatpush2.bf16.msra.mxu0 0
    %962 = vmatprep.subr.bf16.mxu0 0
    %963 = vmatpush2.bf16.msra.mxu0 0
    %964 = vmatprep.subr.bf16.mxu0 0
    %965 = vmatpush2.bf16.msra.mxu0 0
    %966 = vmatprep.subr.bf16.mxu0 0
    %967 = vmatpush2.bf16.msra.mxu0 0
    %968 = vmatprep.subr.bf16.mxu0 0
    %969 = vmatpush2.bf16.msra.mxu0 0
    %970 = vmatprep.subr.bf16.mxu0 0
    %971 = vmatpush2.bf16.msra.mxu0 0
    %972 = vmatprep.mubr.bf16.mxu0 0
    %973 = vmatmul.mubr.bf16.gmra.mxu0 %v928
    %v974 = vpop.f32.mrf.mxu0
    %v975 = vadd.f32 0.0, %v974
    %v976 = vpop.f32.mrf.mxu0
    %v977 = vadd.f32 0.0, %v976
    %v978 = vpop.f32.mrf.mxu0
    %v979 = vadd.f32 0.0, %v978
    %v980 = vpop.f32.mrf.mxu0
    %v981 = vadd.f32 0.0, %v980
    %982 = vdwg.mxu0
    %983 = vmatprep.subr.bf16.mxu0 0
    %984 = vmatpush1.bf16.msra.mxu0 0
    %985 = vmatprep.subr.bf16.mxu0 0
    %986 = vmatpush1.bf16.msra.mxu0 0
    %987 = vmatprep.subr.bf16.mxu0 0
    %988 = vmatpush1.bf16.msra.mxu0 0
    %989 = vmatprep.subr.bf16.mxu0 0
    %990 = vmatpush1.bf16.msra.mxu0 0
    %991 = vmatprep.subr.bf16.mxu0 0
    %992 = vmatpush1.bf16.msra.mxu0 0
    %993 = vmatprep.subr.bf16.mxu0 0
    %994 = vmatpush1.bf16.msra.mxu0 0
    %995 = vmatprep.subr.bf16.mxu0 0
    %996 = vmatpush1.bf16.msra.mxu0 %v938
    %997 = vmatprep.subr.bf16.mxu0 0
    %998 = vmatpush1.bf16.msra.mxu0 %v915
    %999 = vmatprep.subr.bf16.mxu0 0
    %1000 = vmatpush2.bf16.msra.mxu0 0
    %1001 = vmatprep.subr.bf16.mxu0 0
    %1002 = vmatpush2.bf16.msra.mxu0 0
    %1003 = vmatprep.subr.bf16.mxu0 0
    %1004 = vmatpush2.bf16.msra.mxu0 0
    %1005 = vmatprep.subr.bf16.mxu0 0
    %1006 = vmatpush2.bf16.msra.mxu0 0
    %1007 = vmatprep.subr.bf16.mxu0 0
    %1008 = vmatpush2.bf16.msra.mxu0 0
    %1009 = vmatprep.subr.bf16.mxu0 0
    %1010 = vmatpush2.bf16.msra.mxu0 0
    %1011 = vmatprep.subr.bf16.mxu0 0
    %1012 = vmatpush2.bf16.msra.mxu0 0
    %1013 = vmatprep.subr.bf16.mxu0 0
    %1014 = vmatpush2.bf16.msra.mxu0 0
    %1015 = vmatprep.mubr.bf16.mxu0 0
    %1016 = vmatmul.mubr.bf16.gmra.mxu0 %v928
    %v1017 = vpop.f32.mrf.mxu0
    %v1018 = vadd.f32 0.0, %v1017
    %v1019 = vpop.f32.mrf.mxu0
    %v1020 = vpop.f32.mrf.mxu0
    %v1021 = vadd.f32 0.0, %v1020
    %v1022 = vpop.f32.mrf.mxu0
    %1023 = vdwg.mxu0
    %v1024 = vpack.c.bf16 %v979, %v975
    %v1025 = vpack.c.bf16 %v981, %v977
    %v1026 = vpack.c.bf16 %v1021, %v1018
    %v1027 = vld [vmem:[%s5] sm:$0xff]
    %v1028 = vld [vmem:[%s5 + $0x8] sm:$0xff]
    %v1029 = vld [vmem:[%s5 + $0x10] sm:$0xff]
    %v1030 = vld [vmem:[%s5 + $0x18] sm:$0xff]
    %v1031 = vld [vmem:[%s5 + $0x20] sm:$0xff]
    %v1032 = vld [vmem:[%s5 + $0x28] sm:$0xff]
    %v1033 = vld [vmem:[%s5 + $0x30] sm:$0xff]
    %v1034 = vld [vmem:[%s5 + $0x38] sm:$0xff]
    %v1035 = vld [vmem:[%s5 + $0x40] sm:$0xff]
    %v1036 = vld [vmem:[%s5 + $0x48] sm:$0xff]
    %v1037 = vld [vmem:[%s5 + $0x50] sm:$0xff]
    %v1038 = vld [vmem:[%s5 + $0x58] sm:$0xff]
    %v1039 = vld [vmem:[%s5 + $0x60] sm:$0xff]
    %v1040 = vld [vmem:[%s5 + $0x68] sm:$0xff]
    %v1041 = vld [vmem:[%s5 + $0x70] sm:$0xff]
    %v1042 = vld [vmem:[%s5 + $0x78] sm:$0xff]
    %v1043 = vld [vmem:[%s5 + $0x80] sm:$0xff]
    %v1044 = vld [vmem:[%s5 + $0x88] sm:$0xff]
    %v1045 = vld [vmem:[%s5 + $0x90] sm:$0xff]
    %v1046 = vld [vmem:[%s5 + $0x98] sm:$0xff]
    %v1047 = vld [vmem:[%s5 + $0xa0] sm:$0xff]
    %v1048 = vld [vmem:[%s5 + $0xa8] sm:$0xff]
    %v1049 = vld [vmem:[%s5 + $0xb0] sm:$0xff]
    %v1050 = vld [vmem:[%s5 + $0xb8] sm:$0xff]
    %v1051 = vld [vmem:[%s5 + $0xc0] sm:$0xff]
    %v1052 = vld [vmem:[%s5 + $0xc8] sm:$0xff]
    %v1053 = vld [vmem:[%s5 + $0xd0] sm:$0xff]
    %v1054 = vld [vmem:[%s5 + $0xd8] sm:$0xff]
    %v1055 = vld [vmem:[%s5 + $0xe0] sm:$0xff]
    %v1056 = vld [vmem:[%s5 + $0xe8] sm:$0xff]
    %v1057 = vld [vmem:[%s5 + $0xf0] sm:$0xff]
    %v1058 = vld [vmem:[%s5 + $0xf8] sm:$0xff]
    %v1059 = vld [vmem:[%s5 + $0x100] sm:$0xff]
    %v1060 = vld [vmem:[%s5 + $0x108] sm:$0xff]
    %v1061 = vld [vmem:[%s5 + $0x110] sm:$0xff]
    %v1062 = vld [vmem:[%s5 + $0x118] sm:$0xff]
    %v1063 = vld [vmem:[%s5 + $0x120] sm:$0xff]
    %v1064 = vld [vmem:[%s5 + $0x128] sm:$0xff]
    %v1065 = vld [vmem:[%s5 + $0x130] sm:$0xff]
    %v1066 = vld [vmem:[%s5 + $0x138] sm:$0xff]
    %v1107 = vunpack.c.l.b16 %v1027
    %v1108 = vunpack.c.h.b16 %v1027
    %v1109 = vunpack.c.l.b16 %v1028
    %v1110 = vunpack.c.h.b16 %v1028
    %v1111 = vunpack.c.l.b16 %v1029
    %v1112 = vunpack.c.h.b16 %v1029
    %v1113 = vunpack.c.l.b16 %v1030
    %v1114 = vunpack.c.h.b16 %v1030
    %v1115 = vunpack.c.l.b16 %v1031
    %v1116 = vunpack.c.h.b16 %v1031
    %v1117 = vunpack.c.l.b16 %v1032
    %v1118 = vunpack.c.h.b16 %v1032
    %v1119 = vunpack.c.l.b16 %v1033
    %v1120 = vunpack.c.h.b16 %v1033
    %v1121 = vunpack.c.l.b16 %v1034
    %v1122 = vunpack.c.h.b16 %v1034
    %v1123 = vunpack.c.l.b16 %v1035
    %v1124 = vunpack.c.h.b16 %v1035
    %v1125 = vunpack.c.l.b16 %v1036
    %v1126 = vunpack.c.h.b16 %v1036
    %v1127 = vunpack.c.l.b16 %v1037
    %v1128 = vunpack.c.h.b16 %v1037
    %v1129 = vunpack.c.l.b16 %v1038
    %v1130 = vunpack.c.h.b16 %v1038
    %v1131 = vunpack.c.l.b16 %v1039
    %v1132 = vunpack.c.h.b16 %v1039
    %v1133 = vunpack.c.l.b16 %v1040
    %v1134 = vunpack.c.h.b16 %v1040
    %v1135 = vunpack.c.l.b16 %v1041
    %v1136 = vunpack.c.h.b16 %v1041
    %v1137 = vunpack.c.l.b16 %v1042
    %v1138 = vunpack.c.h.b16 %v1042
    %v1139 = vunpack.c.l.b16 %v1043
    %v1140 = vunpack.c.h.b16 %v1043
    %v1141 = vunpack.c.l.b16 %v1044
    %v1142 = vunpack.c.h.b16 %v1044
    %v1143 = vunpack.c.l.b16 %v1045
    %v1144 = vunpack.c.h.b16 %v1045
    %v1145 = vunpack.c.l.b16 %v1046
    %v1146 = vunpack.c.h.b16 %v1046
    %v1147 = vunpack.c.l.b16 %v1047
    %v1148 = vunpack.c.h.b16 %v1047
    %v1149 = vunpack.c.l.b16 %v1048
    %v1150 = vunpack.c.h.b16 %v1048
    %v1151 = vunpack.c.l.b16 %v1049
    %v1152 = vunpack.c.h.b16 %v1049
    %v1153 = vunpack.c.l.b16 %v1050
    %v1154 = vunpack.c.h.b16 %v1050
    %v1155 = vunpack.c.l.b16 %v1051
    %v1156 = vunpack.c.h.b16 %v1051
    %v1157 = vunpack.c.l.b16 %v1052
    %v1158 = vunpack.c.h.b16 %v1052
    %v1159 = vunpack.c.l.b16 %v1053
    %v1160 = vunpack.c.h.b16 %v1053
    %v1161 = vunpack.c.l.b16 %v1054
    %v1162 = vunpack.c.h.b16 %v1054
    %v1163 = vunpack.c.l.b16 %v1055
    %v1164 = vunpack.c.h.b16 %v1055
    %v1165 = vunpack.c.l.b16 %v1056
    %v1166 = vunpack.c.h.b16 %v1056
    %v1167 = vunpack.c.l.b16 %v1057
    %v1168 = vunpack.c.h.b16 %v1057
    %v1169 = vunpack.c.l.b16 %v1058
    %v1170 = vunpack.c.h.b16 %v1058
    %v1171 = vunpack.c.l.b16 %v1059
    %v1172 = vunpack.c.h.b16 %v1059
    %v1173 = vunpack.c.l.b16 %v1060
    %v1174 = vunpack.c.h.b16 %v1060
    %v1175 = vunpack.c.l.b16 %v1061
    %v1176 = vunpack.c.h.b16 %v1061
    %v1177 = vunpack.c.l.b16 %v1062
    %v1178 = vunpack.c.h.b16 %v1062
    %v1179 = vunpack.c.l.b16 %v1063
    %v1180 = vunpack.c.h.b16 %v1063
    %v1181 = vunpack.c.l.b16 %v1064
    %v1182 = vunpack.c.h.b16 %v1064
    %v1183 = vunpack.c.l.b16 %v1065
    %v1184 = vunpack.c.h.b16 %v1065
    %v1185 = vunpack.c.l.b16 %v1066
    %v1186 = vunpack.c.h.b16 %v1066
    %v1187 = vpack.c.b16 %v1109, %v1107
    %v1188 = vpack.c.b16 %v1110, %v1108
    %v1189 = vpack.c.b16 %v1113, %v1111
    %v1190 = vpack.c.b16 %v1114, %v1112
    %v1191 = vpack.c.b16 %v1117, %v1115
    %v1192 = vpack.c.b16 %v1118, %v1116
    %v1193 = vpack.c.b16 %v1121, %v1119
    %v1194 = vpack.c.b16 %v1122, %v1120
    %v1195 = vpack.c.b16 %v1125, %v1123
    %v1196 = vpack.c.b16 %v1126, %v1124
    %v1197 = vpack.c.b16 %v1129, %v1127
    %v1198 = vpack.c.b16 %v1130, %v1128
    %v1199 = vpack.c.b16 %v1133, %v1131
    %v1200 = vpack.c.b16 %v1134, %v1132
    %v1201 = vpack.c.b16 %v1137, %v1135
    %v1202 = vpack.c.b16 %v1138, %v1136
    %v1203 = vpack.c.b16 %v1141, %v1139
    %v1204 = vpack.c.b16 %v1142, %v1140
    %v1205 = vpack.c.b16 %v1145, %v1143
    %v1206 = vpack.c.b16 %v1146, %v1144
    %v1207 = vpack.c.b16 %v1149, %v1147
    %v1208 = vpack.c.b16 %v1150, %v1148
    %v1209 = vpack.c.b16 %v1153, %v1151
    %v1210 = vpack.c.b16 %v1154, %v1152
    %v1211 = vpack.c.b16 %v1157, %v1155
    %v1212 = vpack.c.b16 %v1158, %v1156
    %v1213 = vpack.c.b16 %v1161, %v1159
    %v1214 = vpack.c.b16 %v1162, %v1160
    %v1215 = vpack.c.b16 %v1165, %v1163
    %v1216 = vpack.c.b16 %v1166, %v1164
    %v1217 = vpack.c.b16 %v1169, %v1167
    %v1218 = vpack.c.b16 %v1170, %v1168
    %v1219 = vpack.c.b16 %v1173, %v1171
    %v1220 = vpack.c.b16 %v1174, %v1172
    %v1221 = vpack.c.b16 %v1177, %v1175
    %v1222 = vpack.c.b16 %v1178, %v1176
    %v1223 = vpack.c.b16 %v1181, %v1179
    %v1224 = vpack.c.b16 %v1182, %v1180
    %v1225 = vpack.c.b16 %v1185, %v1183
    %v1226 = vpack.c.b16 %v1186, %v1184
    %vm1267 = vcmask 523264
    %v1269 = vsel %vm1267, %v1026, 0
    %1271 = vmatprep.subr.bf16.mxu0 %v1202
    %1272 = vmatpush1.bf16.msra.mxu0 %v1201
    %1273 = vmatprep.subr.bf16.mxu0 %v1200
    %1274 = vmatpush1.bf16.msra.mxu0 %v1199
    %1275 = vmatprep.subr.bf16.mxu0 %v1198
    %1276 = vmatpush1.bf16.msra.mxu0 %v1197
    %1277 = vmatprep.subr.bf16.mxu0 %v1196
    %1278 = vmatpush1.bf16.msra.mxu0 %v1195
    %1279 = vmatprep.subr.bf16.mxu0 %v1194
    %1280 = vmatpush1.bf16.msra.mxu0 %v1193
    %1281 = vmatprep.subr.bf16.mxu0 %v1192
    %1282 = vmatpush1.bf16.msra.mxu0 %v1191
    %1283 = vmatprep.subr.bf16.mxu0 %v1190
    %1284 = vmatpush1.bf16.msra.mxu0 %v1189
    %1285 = vmatprep.subr.bf16.mxu0 %v1188
    %1286 = vmatpush1.bf16.msra.mxu0 %v1187
    %1287 = vmatprep.subr.bf16.mxu0 %v1218
    %1288 = vmatpush2.bf16.msra.mxu0 %v1217
    %1289 = vmatprep.subr.bf16.mxu0 %v1216
    %1290 = vmatpush2.bf16.msra.mxu0 %v1215
    %1291 = vmatprep.subr.bf16.mxu0 %v1214
    %1292 = vmatpush2.bf16.msra.mxu0 %v1213
    %1293 = vmatprep.subr.bf16.mxu0 %v1212
    %1294 = vmatpush2.bf16.msra.mxu0 %v1211
    %1295 = vmatprep.subr.bf16.mxu0 %v1210
    %1296 = vmatpush2.bf16.msra.mxu0 %v1209
    %1297 = vmatprep.subr.bf16.mxu0 %v1208
    %1298 = vmatpush2.bf16.msra.mxu0 %v1207
    %1299 = vmatprep.subr.bf16.mxu0 %v1206
    %1300 = vmatpush2.bf16.msra.mxu0 %v1205
    %1301 = vmatprep.subr.bf16.mxu0 %v1204
    %1302 = vmatpush2.bf16.msra.mxu0 %v1203
    %1303 = vmatprep.mubr.bf16.mxu0 %v1025
    %1304 = vmatmul.mubr.bf16.gmra.mxu0 %v1024
    %v1305 = vpop.f32.mrf.mxu0
    %v1306 = vadd.f32 0.0, %v1305
    %v1307 = vpop.f32.mrf.mxu0
    %v1308 = vadd.f32 0.0, %v1307
    %v1309 = vpop.f32.mrf.mxu0
    %v1310 = vadd.f32 0.0, %v1309
    %v1311 = vpop.f32.mrf.mxu0
    %v1312 = vadd.f32 0.0, %v1311
    %1313 = vdwg.mxu0
    %1314 = vmatprep.subr.bf16.mxu0 0
    %1315 = vmatpush1.bf16.msra.mxu0 0
    %1316 = vmatprep.subr.bf16.mxu0 0
    %1317 = vmatpush1.bf16.msra.mxu0 0
    %1318 = vmatprep.subr.bf16.mxu0 0
    %1319 = vmatpush1.bf16.msra.mxu0 0
    %1320 = vmatprep.subr.bf16.mxu0 0
    %1321 = vmatpush1.bf16.msra.mxu0 0
    %1322 = vmatprep.subr.bf16.mxu0 %v1226
    %1323 = vmatpush1.bf16.msra.mxu0 %v1225
    %1324 = vmatprep.subr.bf16.mxu0 %v1224
    %1325 = vmatpush1.bf16.msra.mxu0 %v1223
    %1326 = vmatprep.subr.bf16.mxu0 %v1222
    %1327 = vmatpush1.bf16.msra.mxu0 %v1221
    %1328 = vmatprep.subr.bf16.mxu0 %v1220
    %1329 = vmatpush1.bf16.msra.mxu0 %v1219
    %1330 = vmatprep.subr.bf16.mxu0 0
    %1331 = vmatpush2.bf16.msra.mxu0 0
    %1332 = vmatprep.subr.bf16.mxu0 0
    %1333 = vmatpush2.bf16.msra.mxu0 0
    %1334 = vmatprep.subr.bf16.mxu0 0
    %1335 = vmatpush2.bf16.msra.mxu0 0
    %1336 = vmatprep.subr.bf16.mxu0 0
    %1337 = vmatpush2.bf16.msra.mxu0 0
    %1338 = vmatprep.subr.bf16.mxu0 0
    %1339 = vmatpush2.bf16.msra.mxu0 0
    %1340 = vmatprep.subr.bf16.mxu0 0
    %1341 = vmatpush2.bf16.msra.mxu0 0
    %1342 = vmatprep.subr.bf16.mxu0 0
    %1343 = vmatpush2.bf16.msra.mxu0 0
    %1344 = vmatprep.subr.bf16.mxu0 0
    %1345 = vmatpush2.bf16.msra.mxu0 0
    %1346 = vmatprep.mubr.bf16.mxu0 0
    %1347 = vmatmul.mubr.bf16.gmra.mxu0 %v1269
    %v1348 = vpop.f32.mrf.mxu0
    %v1349 = vadd.f32 %v1306, %v1348
    %v1350 = vpop.f32.mrf.mxu0
    %v1351 = vadd.f32 %v1308, %v1350
    %v1352 = vpop.f32.mrf.mxu0
    %v1353 = vadd.f32 %v1310, %v1352
    %v1354 = vpop.f32.mrf.mxu0
    %v1355 = vadd.f32 %v1312, %v1354
    %1356 = vdwg.mxu0
    %s1357 = scalar_lea.vmem %s4, 8
    %v1358 = vld [vmem:[%s1357] sm:$0xf]
    %v1359 = vld [vmem:[%s1357 + $0x4] sm:$0x1]
    %v1362 = vunpack.c.l.b16 %v1358
    %v1363 = vunpack.c.l.b16 %v1359
    %v1364 = vpack.c.b16 %v1363, %v1362
    %v1366 = vsel %vm926, %v1364, 0
    %1368 = vmatprep.subr.bf16.mxu0 0
    %1369 = vmatpush1.bf16.msra.mxu0 0
    %1370 = vmatprep.subr.bf16.mxu0 0
    %1371 = vmatpush1.bf16.msra.mxu0 0
    %1372 = vmatprep.subr.bf16.mxu0 0
    %1373 = vmatpush1.bf16.msra.mxu0 0
    %1374 = vmatprep.subr.bf16.mxu0 0
    %1375 = vmatpush1.bf16.msra.mxu0 0
    %1376 = vmatprep.subr.bf16.mxu0 0
    %1377 = vmatpush1.bf16.msra.mxu0 0
    %1378 = vmatprep.subr.bf16.mxu0 0
    %1379 = vmatpush1.bf16.msra.mxu0 0
    %1380 = vmatprep.subr.bf16.mxu0 %v935
    %1381 = vmatpush1.bf16.msra.mxu0 %v932
    %1382 = vmatprep.subr.bf16.mxu0 %v914
    %1383 = vmatpush1.bf16.msra.mxu0 %v913
    %1384 = vmatprep.subr.bf16.mxu0 0
    %1385 = vmatpush2.bf16.msra.mxu0 0
    %1386 = vmatprep.subr.bf16.mxu0 0
    %1387 = vmatpush2.bf16.msra.mxu0 0
    %1388 = vmatprep.subr.bf16.mxu0 0
    %1389 = vmatpush2.bf16.msra.mxu0 0
    %1390 = vmatprep.subr.bf16.mxu0 0
    %1391 = vmatpush2.bf16.msra.mxu0 0
    %1392 = vmatprep.subr.bf16.mxu0 0
    %1393 = vmatpush2.bf16.msra.mxu0 0
    %1394 = vmatprep.subr.bf16.mxu0 0
    %1395 = vmatpush2.bf16.msra.mxu0 0
    %1396 = vmatprep.subr.bf16.mxu0 0
    %1397 = vmatpush2.bf16.msra.mxu0 0
    %1398 = vmatprep.subr.bf16.mxu0 0
    %1399 = vmatpush2.bf16.msra.mxu0 0
    %1400 = vmatprep.mubr.bf16.mxu0 0
    %1401 = vmatmul.mubr.bf16.gmra.mxu0 %v1366
    %v1402 = vpop.f32.mrf.mxu0
    %v1403 = vadd.f32 0.0, %v1402
    %v1404 = vpop.f32.mrf.mxu0
    %v1405 = vadd.f32 0.0, %v1404
    %v1406 = vpop.f32.mrf.mxu0
    %v1407 = vadd.f32 0.0, %v1406
    %v1408 = vpop.f32.mrf.mxu0
    %v1409 = vadd.f32 0.0, %v1408
    %1410 = vdwg.mxu0
    %1411 = vmatprep.subr.bf16.mxu0 0
    %1412 = vmatpush1.bf16.msra.mxu0 0
    %1413 = vmatprep.subr.bf16.mxu0 0
    %1414 = vmatpush1.bf16.msra.mxu0 0
    %1415 = vmatprep.subr.bf16.mxu0 0
    %1416 = vmatpush1.bf16.msra.mxu0 0
    %1417 = vmatprep.subr.bf16.mxu0 0
    %1418 = vmatpush1.bf16.msra.mxu0 0
    %1419 = vmatprep.subr.bf16.mxu0 0
    %1420 = vmatpush1.bf16.msra.mxu0 0
    %1421 = vmatprep.subr.bf16.mxu0 0
    %1422 = vmatpush1.bf16.msra.mxu0 0
    %1423 = vmatprep.subr.bf16.mxu0 0
    %1424 = vmatpush1.bf16.msra.mxu0 %v938
    %1425 = vmatprep.subr.bf16.mxu0 0
    %1426 = vmatpush1.bf16.msra.mxu0 %v915
    %1427 = vmatprep.subr.bf16.mxu0 0
    %1428 = vmatpush2.bf16.msra.mxu0 0
    %1429 = vmatprep.subr.bf16.mxu0 0
    %1430 = vmatpush2.bf16.msra.mxu0 0
    %1431 = vmatprep.subr.bf16.mxu0 0
    %1432 = vmatpush2.bf16.msra.mxu0 0
    %1433 = vmatprep.subr.bf16.mxu0 0
    %1434 = vmatpush2.bf16.msra.mxu0 0
    %1435 = vmatprep.subr.bf16.mxu0 0
    %1436 = vmatpush2.bf16.msra.mxu0 0
    %1437 = vmatprep.subr.bf16.mxu0 0
    %1438 = vmatpush2.bf16.msra.mxu0 0
    %1439 = vmatprep.subr.bf16.mxu0 0
    %1440 = vmatpush2.bf16.msra.mxu0 0
    %1441 = vmatprep.subr.bf16.mxu0 0
    %1442 = vmatpush2.bf16.msra.mxu0 0
    %1443 = vmatprep.mubr.bf16.mxu0 0
    %1444 = vmatmul.mubr.bf16.gmra.mxu0 %v1366
    %v1445 = vpop.f32.mrf.mxu0
    %v1446 = vadd.f32 0.0, %v1445
    %v1447 = vpop.f32.mrf.mxu0
    %v1448 = vpop.f32.mrf.mxu0
    %v1449 = vadd.f32 0.0, %v1448
    %v1450 = vpop.f32.mrf.mxu0
    %1451 = vdwg.mxu0
    %v1452 = vpack.c.bf16 %v1407, %v1403
    %v1453 = vpack.c.bf16 %v1409, %v1405
    %v1454 = vpack.c.bf16 %v1449, %v1446
    %s1455 = scalar_lea.vmem %s5, 320
    %v1456 = vld [vmem:[%s1455] sm:$0xff]
    %v1457 = vld [vmem:[%s1455 + $0x8] sm:$0xff]
    %v1458 = vld [vmem:[%s1455 + $0x10] sm:$0xff]
    %v1459 = vld [vmem:[%s1455 + $0x18] sm:$0xff]
    %v1460 = vld [vmem:[%s1455 + $0x20] sm:$0xff]
    %v1461 = vld [vmem:[%s1455 + $0x28] sm:$0xff]
    %v1462 = vld [vmem:[%s1455 + $0x30] sm:$0xff]
    %v1463 = vld [vmem:[%s1455 + $0x38] sm:$0xff]
    %v1464 = vld [vmem:[%s1455 + $0x40] sm:$0xff]
    %v1465 = vld [vmem:[%s1455 + $0x48] sm:$0xff]
    %v1466 = vld [vmem:[%s1455 + $0x50] sm:$0xff]
    %v1467 = vld [vmem:[%s1455 + $0x58] sm:$0xff]
    %v1468 = vld [vmem:[%s1455 + $0x60] sm:$0xff]
    %v1469 = vld [vmem:[%s1455 + $0x68] sm:$0xff]
    %v1470 = vld [vmem:[%s1455 + $0x70] sm:$0xff]
    %v1471 = vld [vmem:[%s1455 + $0x78] sm:$0xff]
    %v1472 = vld [vmem:[%s1455 + $0x80] sm:$0xff]
    %v1473 = vld [vmem:[%s1455 + $0x88] sm:$0xff]
    %v1474 = vld [vmem:[%s1455 + $0x90] sm:$0xff]
    %v1475 = vld [vmem:[%s1455 + $0x98] sm:$0xff]
    %v1476 = vld [vmem:[%s1455 + $0xa0] sm:$0xff]
    %v1477 = vld [vmem:[%s1455 + $0xa8] sm:$0xff]
    %v1478 = vld [vmem:[%s1455 + $0xb0] sm:$0xff]
    %v1479 = vld [vmem:[%s1455 + $0xb8] sm:$0xff]
    %v1480 = vld [vmem:[%s1455 + $0xc0] sm:$0xff]
    %v1481 = vld [vmem:[%s1455 + $0xc8] sm:$0xff]
    %v1482 = vld [vmem:[%s1455 + $0xd0] sm:$0xff]
    %v1483 = vld [vmem:[%s1455 + $0xd8] sm:$0xff]
    %v1484 = vld [vmem:[%s1455 + $0xe0] sm:$0xff]
    %v1485 = vld [vmem:[%s1455 + $0xe8] sm:$0xff]
    %v1486 = vld [vmem:[%s1455 + $0xf0] sm:$0xff]
    %v1487 = vld [vmem:[%s1455 + $0xf8] sm:$0xff]
    %v1488 = vld [vmem:[%s1455 + $0x100] sm:$0xff]
    %v1489 = vld [vmem:[%s1455 + $0x108] sm:$0xff]
    %v1490 = vld [vmem:[%s1455 + $0x110] sm:$0xff]
    %v1491 = vld [vmem:[%s1455 + $0x118] sm:$0xff]
    %v1492 = vld [vmem:[%s1455 + $0x120] sm:$0xff]
    %v1493 = vld [vmem:[%s1455 + $0x128] sm:$0xff]
    %v1494 = vld [vmem:[%s1455 + $0x130] sm:$0xff]
    %v1495 = vld [vmem:[%s1455 + $0x138] sm:$0xff]
    %v1536 = vunpack.c.l.b16 %v1456
    %v1537 = vunpack.c.h.b16 %v1456
    %v1538 = vunpack.c.l.b16 %v1457
    %v1539 = vunpack.c.h.b16 %v1457
    %v1540 = vunpack.c.l.b16 %v1458
    %v1541 = vunpack.c.h.b16 %v1458
    %v1542 = vunpack.c.l.b16 %v1459
    %v1543 = vunpack.c.h.b16 %v1459
    %v1544 = vunpack.c.l.b16 %v1460
    %v1545 = vunpack.c.h.b16 %v1460
    %v1546 = vunpack.c.l.b16 %v1461
    %v1547 = vunpack.c.h.b16 %v1461
    %v1548 = vunpack.c.l.b16 %v1462
    %v1549 = vunpack.c.h.b16 %v1462
    %v1550 = vunpack.c.l.b16 %v1463
    %v1551 = vunpack.c.h.b16 %v1463
    %v1552 = vunpack.c.l.b16 %v1464
    %v1553 = vunpack.c.h.b16 %v1464
    %v1554 = vunpack.c.l.b16 %v1465
    %v1555 = vunpack.c.h.b16 %v1465
    %v1556 = vunpack.c.l.b16 %v1466
    %v1557 = vunpack.c.h.b16 %v1466
    %v1558 = vunpack.c.l.b16 %v1467
    %v1559 = vunpack.c.h.b16 %v1467
    %v1560 = vunpack.c.l.b16 %v1468
    %v1561 = vunpack.c.h.b16 %v1468
    %v1562 = vunpack.c.l.b16 %v1469
    %v1563 = vunpack.c.h.b16 %v1469
    %v1564 = vunpack.c.l.b16 %v1470
    %v1565 = vunpack.c.h.b16 %v1470
    %v1566 = vunpack.c.l.b16 %v1471
    %v1567 = vunpack.c.h.b16 %v1471
    %v1568 = vunpack.c.l.b16 %v1472
    %v1569 = vunpack.c.h.b16 %v1472
    %v1570 = vunpack.c.l.b16 %v1473
    %v1571 = vunpack.c.h.b16 %v1473
    %v1572 = vunpack.c.l.b16 %v1474
    %v1573 = vunpack.c.h.b16 %v1474
    %v1574 = vunpack.c.l.b16 %v1475
    %v1575 = vunpack.c.h.b16 %v1475
    %v1576 = vunpack.c.l.b16 %v1476
    %v1577 = vunpack.c.h.b16 %v1476
    %v1578 = vunpack.c.l.b16 %v1477
    %v1579 = vunpack.c.h.b16 %v1477
    %v1580 = vunpack.c.l.b16 %v1478
    %v1581 = vunpack.c.h.b16 %v1478
    %v1582 = vunpack.c.l.b16 %v1479
    %v1583 = vunpack.c.h.b16 %v1479
    %v1584 = vunpack.c.l.b16 %v1480
    %v1585 = vunpack.c.h.b16 %v1480
    %v1586 = vunpack.c.l.b16 %v1481
    %v1587 = vunpack.c.h.b16 %v1481
    %v1588 = vunpack.c.l.b16 %v1482
    %v1589 = vunpack.c.h.b16 %v1482
    %v1590 = vunpack.c.l.b16 %v1483
    %v1591 = vunpack.c.h.b16 %v1483
    %v1592 = vunpack.c.l.b16 %v1484
    %v1593 = vunpack.c.h.b16 %v1484
    %v1594 = vunpack.c.l.b16 %v1485
    %v1595 = vunpack.c.h.b16 %v1485
    %v1596 = vunpack.c.l.b16 %v1486
    %v1597 = vunpack.c.h.b16 %v1486
    %v1598 = vunpack.c.l.b16 %v1487
    %v1599 = vunpack.c.h.b16 %v1487
    %v1600 = vunpack.c.l.b16 %v1488
    %v1601 = vunpack.c.h.b16 %v1488
    %v1602 = vunpack.c.l.b16 %v1489
    %v1603 = vunpack.c.h.b16 %v1489
    %v1604 = vunpack.c.l.b16 %v1490
    %v1605 = vunpack.c.h.b16 %v1490
    %v1606 = vunpack.c.l.b16 %v1491
    %v1607 = vunpack.c.h.b16 %v1491
    %v1608 = vunpack.c.l.b16 %v1492
    %v1609 = vunpack.c.h.b16 %v1492
    %v1610 = vunpack.c.l.b16 %v1493
    %v1611 = vunpack.c.h.b16 %v1493
    %v1612 = vunpack.c.l.b16 %v1494
    %v1613 = vunpack.c.h.b16 %v1494
    %v1614 = vunpack.c.l.b16 %v1495
    %v1615 = vunpack.c.h.b16 %v1495
    %v1616 = vpack.c.b16 %v1538, %v1536
    %v1617 = vpack.c.b16 %v1539, %v1537
    %v1618 = vpack.c.b16 %v1542, %v1540
    %v1619 = vpack.c.b16 %v1543, %v1541
    %v1620 = vpack.c.b16 %v1546, %v1544
    %v1621 = vpack.c.b16 %v1547, %v1545
    %v1622 = vpack.c.b16 %v1550, %v1548
    %v1623 = vpack.c.b16 %v1551, %v1549
    %v1624 = vpack.c.b16 %v1554, %v1552
    %v1625 = vpack.c.b16 %v1555, %v1553
    %v1626 = vpack.c.b16 %v1558, %v1556
    %v1627 = vpack.c.b16 %v1559, %v1557
    %v1628 = vpack.c.b16 %v1562, %v1560
    %v1629 = vpack.c.b16 %v1563, %v1561
    %v1630 = vpack.c.b16 %v1566, %v1564
    %v1631 = vpack.c.b16 %v1567, %v1565
    %v1632 = vpack.c.b16 %v1570, %v1568
    %v1633 = vpack.c.b16 %v1571, %v1569
    %v1634 = vpack.c.b16 %v1574, %v1572
    %v1635 = vpack.c.b16 %v1575, %v1573
    %v1636 = vpack.c.b16 %v1578, %v1576
    %v1637 = vpack.c.b16 %v1579, %v1577
    %v1638 = vpack.c.b16 %v1582, %v1580
    %v1639 = vpack.c.b16 %v1583, %v1581
    %v1640 = vpack.c.b16 %v1586, %v1584
    %v1641 = vpack.c.b16 %v1587, %v1585
    %v1642 = vpack.c.b16 %v1590, %v1588
    %v1643 = vpack.c.b16 %v1591, %v1589
    %v1644 = vpack.c.b16 %v1594, %v1592
    %v1645 = vpack.c.b16 %v1595, %v1593
    %v1646 = vpack.c.b16 %v1598, %v1596
    %v1647 = vpack.c.b16 %v1599, %v1597
    %v1648 = vpack.c.b16 %v1602, %v1600
    %v1649 = vpack.c.b16 %v1603, %v1601
    %v1650 = vpack.c.b16 %v1606, %v1604
    %v1651 = vpack.c.b16 %v1607, %v1605
    %v1652 = vpack.c.b16 %v1610, %v1608
    %v1653 = vpack.c.b16 %v1611, %v1609
    %v1654 = vpack.c.b16 %v1614, %v1612
    %v1655 = vpack.c.b16 %v1615, %v1613
    %v1697 = vsel %vm1267, %v1454, 0
    %1699 = vmatprep.subr.bf16.mxu0 %v1631
    %1700 = vmatpush1.bf16.msra.mxu0 %v1630
    %1701 = vmatprep.subr.bf16.mxu0 %v1629
    %1702 = vmatpush1.bf16.msra.mxu0 %v1628
    %1703 = vmatprep.subr.bf16.mxu0 %v1627
    %1704 = vmatpush1.bf16.msra.mxu0 %v1626
    %1705 = vmatprep.subr.bf16.mxu0 %v1625
    %1706 = vmatpush1.bf16.msra.mxu0 %v1624
    %1707 = vmatprep.subr.bf16.mxu0 %v1623
    %1708 = vmatpush1.bf16.msra.mxu0 %v1622
    %1709 = vmatprep.subr.bf16.mxu0 %v1621
    %1710 = vmatpush1.bf16.msra.mxu0 %v1620
    %1711 = vmatprep.subr.bf16.mxu0 %v1619
    %1712 = vmatpush1.bf16.msra.mxu0 %v1618
    %1713 = vmatprep.subr.bf16.mxu0 %v1617
    %1714 = vmatpush1.bf16.msra.mxu0 %v1616
    %1715 = vmatprep.subr.bf16.mxu0 %v1647
    %1716 = vmatpush2.bf16.msra.mxu0 %v1646
    %1717 = vmatprep.subr.bf16.mxu0 %v1645
    %1718 = vmatpush2.bf16.msra.mxu0 %v1644
    %1719 = vmatprep.subr.bf16.mxu0 %v1643
    %1720 = vmatpush2.bf16.msra.mxu0 %v1642
    %1721 = vmatprep.subr.bf16.mxu0 %v1641
    %1722 = vmatpush2.bf16.msra.mxu0 %v1640
    %1723 = vmatprep.subr.bf16.mxu0 %v1639
    %1724 = vmatpush2.bf16.msra.mxu0 %v1638
    %1725 = vmatprep.subr.bf16.mxu0 %v1637
    %1726 = vmatpush2.bf16.msra.mxu0 %v1636
    %1727 = vmatprep.subr.bf16.mxu0 %v1635
    %1728 = vmatpush2.bf16.msra.mxu0 %v1634
    %1729 = vmatprep.subr.bf16.mxu0 %v1633
    %1730 = vmatpush2.bf16.msra.mxu0 %v1632
    %1731 = vmatprep.mubr.bf16.mxu0 %v1453
    %1732 = vmatmul.mubr.bf16.gmra.mxu0 %v1452
    %v1733 = vpop.f32.mrf.mxu0
    %v1734 = vadd.f32 0.0, %v1733
    %v1735 = vpop.f32.mrf.mxu0
    %v1736 = vadd.f32 0.0, %v1735
    %v1737 = vpop.f32.mrf.mxu0
    %v1738 = vadd.f32 0.0, %v1737
    %v1739 = vpop.f32.mrf.mxu0
    %v1740 = vadd.f32 0.0, %v1739
    %1741 = vdwg.mxu0
    %1742 = vmatprep.subr.bf16.mxu0 0
    %1743 = vmatpush1.bf16.msra.mxu0 0
    %1744 = vmatprep.subr.bf16.mxu0 0
    %1745 = vmatpush1.bf16.msra.mxu0 0
    %1746 = vmatprep.subr.bf16.mxu0 0
    %1747 = vmatpush1.bf16.msra.mxu0 0
    %1748 = vmatprep.subr.bf16.mxu0 0
    %1749 = vmatpush1.bf16.msra.mxu0 0
    %1750 = vmatprep.subr.bf16.mxu0 %v1655
    %1751 = vmatpush1.bf16.msra.mxu0 %v1654
    %1752 = vmatprep.subr.bf16.mxu0 %v1653
    %1753 = vmatpush1.bf16.msra.mxu0 %v1652
    %1754 = vmatprep.subr.bf16.mxu0 %v1651
    %1755 = vmatpush1.bf16.msra.mxu0 %v1650
    %1756 = vmatprep.subr.bf16.mxu0 %v1649
    %1757 = vmatpush1.bf16.msra.mxu0 %v1648
    %1758 = vmatprep.subr.bf16.mxu0 0
    %1759 = vmatpush2.bf16.msra.mxu0 0
    %1760 = vmatprep.subr.bf16.mxu0 0
    %1761 = vmatpush2.bf16.msra.mxu0 0
    %1762 = vmatprep.subr.bf16.mxu0 0
    %1763 = vmatpush2.bf16.msra.mxu0 0
    %1764 = vmatprep.subr.bf16.mxu0 0
    %1765 = vmatpush2.bf16.msra.mxu0 0
    %1766 = vmatprep.subr.bf16.mxu0 0
    %1767 = vmatpush2.bf16.msra.mxu0 0
    %1768 = vmatprep.subr.bf16.mxu0 0
    %1769 = vmatpush2.bf16.msra.mxu0 0
    %1770 = vmatprep.subr.bf16.mxu0 0
    %1771 = vmatpush2.bf16.msra.mxu0 0
    %1772 = vmatprep.subr.bf16.mxu0 0
    %1773 = vmatpush2.bf16.msra.mxu0 0
    %1774 = vmatprep.mubr.bf16.mxu0 0
    %1775 = vmatmul.mubr.bf16.gmra.mxu0 %v1697
    %v1776 = vpop.f32.mrf.mxu0
    %v1777 = vadd.f32 %v1734, %v1776
    %v1778 = vpop.f32.mrf.mxu0
    %v1779 = vadd.f32 %v1736, %v1778
    %v1780 = vpop.f32.mrf.mxu0
    %v1781 = vadd.f32 %v1738, %v1780
    %v1782 = vpop.f32.mrf.mxu0
    %v1783 = vadd.f32 %v1740, %v1782
    %1784 = vdwg.mxu0
    %v1785 = vmax.f32 %v1349, %v1777
    %v1786 = vmax.f32 %v1351, %v1779
    %v1787 = vmax.f32 %v1353, %v1781
    %v1788 = vmax.f32 %v1355, %v1783
    %s1789 = scalar_lea.vmem %s4, 16
    %v1790 = vld [vmem:[%s1789] sm:$0xf]
    %v1791 = vld [vmem:[%s1789 + $0x4] sm:$0x1]
    %v1794 = vunpack.c.l.b16 %v1790
    %v1795 = vunpack.c.l.b16 %v1791
    %v1796 = vpack.c.b16 %v1795, %v1794
    %v1798 = vsel %vm926, %v1796, 0
    %1800 = vmatprep.subr.bf16.mxu0 0
    %1801 = vmatpush1.bf16.msra.mxu0 0
    %1802 = vmatprep.subr.bf16.mxu0 0
    %1803 = vmatpush1.bf16.msra.mxu0 0
    %1804 = vmatprep.subr.bf16.mxu0 0
    %1805 = vmatpush1.bf16.msra.mxu0 0
    %1806 = vmatprep.subr.bf16.mxu0 0
    %1807 = vmatpush1.bf16.msra.mxu0 0
    %1808 = vmatprep.subr.bf16.mxu0 0
    %1809 = vmatpush1.bf16.msra.mxu0 0
    %1810 = vmatprep.subr.bf16.mxu0 0
    %1811 = vmatpush1.bf16.msra.mxu0 0
    %1812 = vmatprep.subr.bf16.mxu0 %v935
    %1813 = vmatpush1.bf16.msra.mxu0 %v932
    %1814 = vmatprep.subr.bf16.mxu0 %v914
    %1815 = vmatpush1.bf16.msra.mxu0 %v913
    %1816 = vmatprep.subr.bf16.mxu0 0
    %1817 = vmatpush2.bf16.msra.mxu0 0
    %1818 = vmatprep.subr.bf16.mxu0 0
    %1819 = vmatpush2.bf16.msra.mxu0 0
    %1820 = vmatprep.subr.bf16.mxu0 0
    %1821 = vmatpush2.bf16.msra.mxu0 0
    %1822 = vmatprep.subr.bf16.mxu0 0
    %1823 = vmatpush2.bf16.msra.mxu0 0
    %1824 = vmatprep.subr.bf16.mxu0 0
    %1825 = vmatpush2.bf16.msra.mxu0 0
    %1826 = vmatprep.subr.bf16.mxu0 0
    %1827 = vmatpush2.bf16.msra.mxu0 0
    %1828 = vmatprep.subr.bf16.mxu0 0
    %1829 = vmatpush2.bf16.msra.mxu0 0
    %1830 = vmatprep.subr.bf16.mxu0 0
    %1831 = vmatpush2.bf16.msra.mxu0 0
    %1832 = vmatprep.mubr.bf16.mxu0 0
    %1833 = vmatmul.mubr.bf16.gmra.mxu0 %v1798
    %v1834 = vpop.f32.mrf.mxu0
    %v1835 = vadd.f32 0.0, %v1834
    %v1836 = vpop.f32.mrf.mxu0
    %v1837 = vadd.f32 0.0, %v1836
    %v1838 = vpop.f32.mrf.mxu0
    %v1839 = vadd.f32 0.0, %v1838
    %v1840 = vpop.f32.mrf.mxu0
    %v1841 = vadd.f32 0.0, %v1840
    %1842 = vdwg.mxu0
    %1843 = vmatprep.subr.bf16.mxu0 0
    %1844 = vmatpush1.bf16.msra.mxu0 0
    %1845 = vmatprep.subr.bf16.mxu0 0
    %1846 = vmatpush1.bf16.msra.mxu0 0
    %1847 = vmatprep.subr.bf16.mxu0 0
    %1848 = vmatpush1.bf16.msra.mxu0 0
    %1849 = vmatprep.subr.bf16.mxu0 0
    %1850 = vmatpush1.bf16.msra.mxu0 0
    %1851 = vmatprep.subr.bf16.mxu0 0
    %1852 = vmatpush1.bf16.msra.mxu0 0
    %1853 = vmatprep.subr.bf16.mxu0 0
    %1854 = vmatpush1.bf16.msra.mxu0 0
    %1855 = vmatprep.subr.bf16.mxu0 0
    %1856 = vmatpush1.bf16.msra.mxu0 %v938
    %1857 = vmatprep.subr.bf16.mxu0 0
    %1858 = vmatpush1.bf16.msra.mxu0 %v915
    %1859 = vmatprep.subr.bf16.mxu0 0
    %1860 = vmatpush2.bf16.msra.mxu0 0
    %1861 = vmatprep.subr.bf16.mxu0 0
    %1862 = vmatpush2.bf16.msra.mxu0 0
    %1863 = vmatprep.subr.bf16.mxu0 0
    %1864 = vmatpush2.bf16.msra.mxu0 0
    %1865 = vmatprep.subr.bf16.mxu0 0
    %1866 = vmatpush2.bf16.msra.mxu0 0
    %1867 = vmatprep.subr.bf16.mxu0 0
    %1868 = vmatpush2.bf16.msra.mxu0 0
    %1869 = vmatprep.subr.bf16.mxu0 0
    %1870 = vmatpush2.bf16.msra.mxu0 0
    %1871 = vmatprep.subr.bf16.mxu0 0
    %1872 = vmatpush2.bf16.msra.mxu0 0
    %1873 = vmatprep.subr.bf16.mxu0 0
    %1874 = vmatpush2.bf16.msra.mxu0 0
    %1875 = vmatprep.mubr.bf16.mxu0 0
    %1876 = vmatmul.mubr.bf16.gmra.mxu0 %v1798
    %v1877 = vpop.f32.mrf.mxu0
    %v1878 = vadd.f32 0.0, %v1877
    %v1879 = vpop.f32.mrf.mxu0
    %v1880 = vpop.f32.mrf.mxu0
    %v1881 = vadd.f32 0.0, %v1880
    %v1882 = vpop.f32.mrf.mxu0
    %1883 = vdwg.mxu0
    %v1884 = vpack.c.bf16 %v1839, %v1835
    %v1885 = vpack.c.bf16 %v1841, %v1837
    %v1886 = vpack.c.bf16 %v1881, %v1878
    %s1887 = scalar_lea.vmem %s5, 640
    %v1888 = vld [vmem:[%s1887] sm:$0xff]
    %v1889 = vld [vmem:[%s1887 + $0x8] sm:$0xff]
    %v1890 = vld [vmem:[%s1887 + $0x10] sm:$0xff]
    %v1891 = vld [vmem:[%s1887 + $0x18] sm:$0xff]
    %v1892 = vld [vmem:[%s1887 + $0x20] sm:$0xff]
    %v1893 = vld [vmem:[%s1887 + $0x28] sm:$0xff]
    %v1894 = vld [vmem:[%s1887 + $0x30] sm:$0xff]
    %v1895 = vld [vmem:[%s1887 + $0x38] sm:$0xff]
    %v1896 = vld [vmem:[%s1887 + $0x40] sm:$0xff]
    %v1897 = vld [vmem:[%s1887 + $0x48] sm:$0xff]
    %v1898 = vld [vmem:[%s1887 + $0x50] sm:$0xff]
    %v1899 = vld [vmem:[%s1887 + $0x58] sm:$0xff]
    %v1900 = vld [vmem:[%s1887 + $0x60] sm:$0xff]
    %v1901 = vld [vmem:[%s1887 + $0x68] sm:$0xff]
    %v1902 = vld [vmem:[%s1887 + $0x70] sm:$0xff]
    %v1903 = vld [vmem:[%s1887 + $0x78] sm:$0xff]
    %v1904 = vld [vmem:[%s1887 + $0x80] sm:$0xff]
    %v1905 = vld [vmem:[%s1887 + $0x88] sm:$0xff]
    %v1906 = vld [vmem:[%s1887 + $0x90] sm:$0xff]
    %v1907 = vld [vmem:[%s1887 + $0x98] sm:$0xff]
    %v1908 = vld [vmem:[%s1887 + $0xa0] sm:$0xff]
    %v1909 = vld [vmem:[%s1887 + $0xa8] sm:$0xff]
    %v1910 = vld [vmem:[%s1887 + $0xb0] sm:$0xff]
    %v1911 = vld [vmem:[%s1887 + $0xb8] sm:$0xff]
    %v1912 = vld [vmem:[%s1887 + $0xc0] sm:$0xff]
    %v1913 = vld [vmem:[%s1887 + $0xc8] sm:$0xff]
    %v1914 = vld [vmem:[%s1887 + $0xd0] sm:$0xff]
    %v1915 = vld [vmem:[%s1887 + $0xd8] sm:$0xff]
    %v1916 = vld [vmem:[%s1887 + $0xe0] sm:$0xff]
    %v1917 = vld [vmem:[%s1887 + $0xe8] sm:$0xff]
    %v1918 = vld [vmem:[%s1887 + $0xf0] sm:$0xff]
    %v1919 = vld [vmem:[%s1887 + $0xf8] sm:$0xff]
    %v1920 = vld [vmem:[%s1887 + $0x100] sm:$0xff]
    %v1921 = vld [vmem:[%s1887 + $0x108] sm:$0xff]
    %v1922 = vld [vmem:[%s1887 + $0x110] sm:$0xff]
    %v1923 = vld [vmem:[%s1887 + $0x118] sm:$0xff]
    %v1924 = vld [vmem:[%s1887 + $0x120] sm:$0xff]
    %v1925 = vld [vmem:[%s1887 + $0x128] sm:$0xff]
    %v1926 = vld [vmem:[%s1887 + $0x130] sm:$0xff]
    %v1927 = vld [vmem:[%s1887 + $0x138] sm:$0xff]
    %v1968 = vunpack.c.l.b16 %v1888
    %v1969 = vunpack.c.h.b16 %v1888
    %v1970 = vunpack.c.l.b16 %v1889
    %v1971 = vunpack.c.h.b16 %v1889
    %v1972 = vunpack.c.l.b16 %v1890
    %v1973 = vunpack.c.h.b16 %v1890
    %v1974 = vunpack.c.l.b16 %v1891
    %v1975 = vunpack.c.h.b16 %v1891
    %v1976 = vunpack.c.l.b16 %v1892
    %v1977 = vunpack.c.h.b16 %v1892
    %v1978 = vunpack.c.l.b16 %v1893
    %v1979 = vunpack.c.h.b16 %v1893
    %v1980 = vunpack.c.l.b16 %v1894
    %v1981 = vunpack.c.h.b16 %v1894
    %v1982 = vunpack.c.l.b16 %v1895
    %v1983 = vunpack.c.h.b16 %v1895
    %v1984 = vunpack.c.l.b16 %v1896
    %v1985 = vunpack.c.h.b16 %v1896
    %v1986 = vunpack.c.l.b16 %v1897
    %v1987 = vunpack.c.h.b16 %v1897
    %v1988 = vunpack.c.l.b16 %v1898
    %v1989 = vunpack.c.h.b16 %v1898
    %v1990 = vunpack.c.l.b16 %v1899
    %v1991 = vunpack.c.h.b16 %v1899
    %v1992 = vunpack.c.l.b16 %v1900
    %v1993 = vunpack.c.h.b16 %v1900
    %v1994 = vunpack.c.l.b16 %v1901
    %v1995 = vunpack.c.h.b16 %v1901
    %v1996 = vunpack.c.l.b16 %v1902
    %v1997 = vunpack.c.h.b16 %v1902
    %v1998 = vunpack.c.l.b16 %v1903
    %v1999 = vunpack.c.h.b16 %v1903
    %v2000 = vunpack.c.l.b16 %v1904
    %v2001 = vunpack.c.h.b16 %v1904
    %v2002 = vunpack.c.l.b16 %v1905
    %v2003 = vunpack.c.h.b16 %v1905
    %v2004 = vunpack.c.l.b16 %v1906
    %v2005 = vunpack.c.h.b16 %v1906
    %v2006 = vunpack.c.l.b16 %v1907
    %v2007 = vunpack.c.h.b16 %v1907
    %v2008 = vunpack.c.l.b16 %v1908
    %v2009 = vunpack.c.h.b16 %v1908
    %v2010 = vunpack.c.l.b16 %v1909
    %v2011 = vunpack.c.h.b16 %v1909
    %v2012 = vunpack.c.l.b16 %v1910
    %v2013 = vunpack.c.h.b16 %v1910
    %v2014 = vunpack.c.l.b16 %v1911
    %v2015 = vunpack.c.h.b16 %v1911
    %v2016 = vunpack.c.l.b16 %v1912
    %v2017 = vunpack.c.h.b16 %v1912
    %v2018 = vunpack.c.l.b16 %v1913
    %v2019 = vunpack.c.h.b16 %v1913
    %v2020 = vunpack.c.l.b16 %v1914
    %v2021 = vunpack.c.h.b16 %v1914
    %v2022 = vunpack.c.l.b16 %v1915
    %v2023 = vunpack.c.h.b16 %v1915
    %v2024 = vunpack.c.l.b16 %v1916
    %v2025 = vunpack.c.h.b16 %v1916
    %v2026 = vunpack.c.l.b16 %v1917
    %v2027 = vunpack.c.h.b16 %v1917
    %v2028 = vunpack.c.l.b16 %v1918
    %v2029 = vunpack.c.h.b16 %v1918
    %v2030 = vunpack.c.l.b16 %v1919
    %v2031 = vunpack.c.h.b16 %v1919
    %v2032 = vunpack.c.l.b16 %v1920
    %v2033 = vunpack.c.h.b16 %v1920
    %v2034 = vunpack.c.l.b16 %v1921
    %v2035 = vunpack.c.h.b16 %v1921
    %v2036 = vunpack.c.l.b16 %v1922
    %v2037 = vunpack.c.h.b16 %v1922
    %v2038 = vunpack.c.l.b16 %v1923
    %v2039 = vunpack.c.h.b16 %v1923
    %v2040 = vunpack.c.l.b16 %v1924
    %v2041 = vunpack.c.h.b16 %v1924
    %v2042 = vunpack.c.l.b16 %v1925
    %v2043 = vunpack.c.h.b16 %v1925
    %v2044 = vunpack.c.l.b16 %v1926
    %v2045 = vunpack.c.h.b16 %v1926
    %v2046 = vunpack.c.l.b16 %v1927
    %v2047 = vunpack.c.h.b16 %v1927
    %v2048 = vpack.c.b16 %v1970, %v1968
    %v2049 = vpack.c.b16 %v1971, %v1969
    %v2050 = vpack.c.b16 %v1974, %v1972
    %v2051 = vpack.c.b16 %v1975, %v1973
    %v2052 = vpack.c.b16 %v1978, %v1976
    %v2053 = vpack.c.b16 %v1979, %v1977
    %v2054 = vpack.c.b16 %v1982, %v1980
    %v2055 = vpack.c.b16 %v1983, %v1981
    %v2056 = vpack.c.b16 %v1986, %v1984
    %v2057 = vpack.c.b16 %v1987, %v1985
    %v2058 = vpack.c.b16 %v1990, %v1988
    %v2059 = vpack.c.b16 %v1991, %v1989
    %v2060 = vpack.c.b16 %v1994, %v1992
    %v2061 = vpack.c.b16 %v1995, %v1993
    %v2062 = vpack.c.b16 %v1998, %v1996
    %v2063 = vpack.c.b16 %v1999, %v1997
    %v2064 = vpack.c.b16 %v2002, %v2000
    %v2065 = vpack.c.b16 %v2003, %v2001
    %v2066 = vpack.c.b16 %v2006, %v2004
    %v2067 = vpack.c.b16 %v2007, %v2005
    %v2068 = vpack.c.b16 %v2010, %v2008
    %v2069 = vpack.c.b16 %v2011, %v2009
    %v2070 = vpack.c.b16 %v2014, %v2012
    %v2071 = vpack.c.b16 %v2015, %v2013
    %v2072 = vpack.c.b16 %v2018, %v2016
    %v2073 = vpack.c.b16 %v2019, %v2017
    %v2074 = vpack.c.b16 %v2022, %v2020
    %v2075 = vpack.c.b16 %v2023, %v2021
    %v2076 = vpack.c.b16 %v2026, %v2024
    %v2077 = vpack.c.b16 %v2027, %v2025
    %v2078 = vpack.c.b16 %v2030, %v2028
    %v2079 = vpack.c.b16 %v2031, %v2029
    %v2080 = vpack.c.b16 %v2034, %v2032
    %v2081 = vpack.c.b16 %v2035, %v2033
    %v2082 = vpack.c.b16 %v2038, %v2036
    %v2083 = vpack.c.b16 %v2039, %v2037
    %v2084 = vpack.c.b16 %v2042, %v2040
    %v2085 = vpack.c.b16 %v2043, %v2041
    %v2086 = vpack.c.b16 %v2046, %v2044
    %v2087 = vpack.c.b16 %v2047, %v2045
    %v2129 = vsel %vm1267, %v1886, 0
    %2131 = vmatprep.subr.bf16.mxu0 %v2063
    %2132 = vmatpush1.bf16.msra.mxu0 %v2062
    %2133 = vmatprep.subr.bf16.mxu0 %v2061
    %2134 = vmatpush1.bf16.msra.mxu0 %v2060
    %2135 = vmatprep.subr.bf16.mxu0 %v2059
    %2136 = vmatpush1.bf16.msra.mxu0 %v2058
    %2137 = vmatprep.subr.bf16.mxu0 %v2057
    %2138 = vmatpush1.bf16.msra.mxu0 %v2056
    %2139 = vmatprep.subr.bf16.mxu0 %v2055
    %2140 = vmatpush1.bf16.msra.mxu0 %v2054
    %2141 = vmatprep.subr.bf16.mxu0 %v2053
    %2142 = vmatpush1.bf16.msra.mxu0 %v2052
    %2143 = vmatprep.subr.bf16.mxu0 %v2051
    %2144 = vmatpush1.bf16.msra.mxu0 %v2050
    %2145 = vmatprep.subr.bf16.mxu0 %v2049
    %2146 = vmatpush1.bf16.msra.mxu0 %v2048
    %2147 = vmatprep.subr.bf16.mxu0 %v2079
    %2148 = vmatpush2.bf16.msra.mxu0 %v2078
    %2149 = vmatprep.subr.bf16.mxu0 %v2077
    %2150 = vmatpush2.bf16.msra.mxu0 %v2076
    %2151 = vmatprep.subr.bf16.mxu0 %v2075
    %2152 = vmatpush2.bf16.msra.mxu0 %v2074
    %2153 = vmatprep.subr.bf16.mxu0 %v2073
    %2154 = vmatpush2.bf16.msra.mxu0 %v2072
    %2155 = vmatprep.subr.bf16.mxu0 %v2071
    %2156 = vmatpush2.bf16.msra.mxu0 %v2070
    %2157 = vmatprep.subr.bf16.mxu0 %v2069
    %2158 = vmatpush2.bf16.msra.mxu0 %v2068
    %2159 = vmatprep.subr.bf16.mxu0 %v2067
    %2160 = vmatpush2.bf16.msra.mxu0 %v2066
    %2161 = vmatprep.subr.bf16.mxu0 %v2065
    %2162 = vmatpush2.bf16.msra.mxu0 %v2064
    %2163 = vmatprep.mubr.bf16.mxu0 %v1885
    %2164 = vmatmul.mubr.bf16.gmra.mxu0 %v1884
    %v2165 = vpop.f32.mrf.mxu0
    %v2166 = vadd.f32 0.0, %v2165
    %v2167 = vpop.f32.mrf.mxu0
    %v2168 = vadd.f32 0.0, %v2167
    %v2169 = vpop.f32.mrf.mxu0
    %v2170 = vadd.f32 0.0, %v2169
    %v2171 = vpop.f32.mrf.mxu0
    %v2172 = vadd.f32 0.0, %v2171
    %2173 = vdwg.mxu0
    %2174 = vmatprep.subr.bf16.mxu0 0
    %2175 = vmatpush1.bf16.msra.mxu0 0
    %2176 = vmatprep.subr.bf16.mxu0 0
    %2177 = vmatpush1.bf16.msra.mxu0 0
    %2178 = vmatprep.subr.bf16.mxu0 0
    %2179 = vmatpush1.bf16.msra.mxu0 0
    %2180 = vmatprep.subr.bf16.mxu0 0
    %2181 = vmatpush1.bf16.msra.mxu0 0
    %2182 = vmatprep.subr.bf16.mxu0 %v2087
    %2183 = vmatpush1.bf16.msra.mxu0 %v2086
    %2184 = vmatprep.subr.bf16.mxu0 %v2085
    %2185 = vmatpush1.bf16.msra.mxu0 %v2084
    %2186 = vmatprep.subr.bf16.mxu0 %v2083
    %2187 = vmatpush1.bf16.msra.mxu0 %v2082
    %2188 = vmatprep.subr.bf16.mxu0 %v2081
    %2189 = vmatpush1.bf16.msra.mxu0 %v2080
    %2190 = vmatprep.subr.bf16.mxu0 0
    %2191 = vmatpush2.bf16.msra.mxu0 0
    %2192 = vmatprep.subr.bf16.mxu0 0
    %2193 = vmatpush2.bf16.msra.mxu0 0
    %2194 = vmatprep.subr.bf16.mxu0 0
    %2195 = vmatpush2.bf16.msra.mxu0 0
    %2196 = vmatprep.subr.bf16.mxu0 0
    %2197 = vmatpush2.bf16.msra.mxu0 0
    %2198 = vmatprep.subr.bf16.mxu0 0
    %2199 = vmatpush2.bf16.msra.mxu0 0
    %2200 = vmatprep.subr.bf16.mxu0 0
    %2201 = vmatpush2.bf16.msra.mxu0 0
    %2202 = vmatprep.subr.bf16.mxu0 0
    %2203 = vmatpush2.bf16.msra.mxu0 0
    %2204 = vmatprep.subr.bf16.mxu0 0
    %2205 = vmatpush2.bf16.msra.mxu0 0
    %2206 = vmatprep.mubr.bf16.mxu0 0
    %2207 = vmatmul.mubr.bf16.gmra.mxu0 %v2129
    %v2208 = vpop.f32.mrf.mxu0
    %v2209 = vadd.f32 %v2166, %v2208
    %v2210 = vpop.f32.mrf.mxu0
    %v2211 = vadd.f32 %v2168, %v2210
    %v2212 = vpop.f32.mrf.mxu0
    %v2213 = vadd.f32 %v2170, %v2212
    %v2214 = vpop.f32.mrf.mxu0
    %v2215 = vadd.f32 %v2172, %v2214
    %2216 = vdwg.mxu0
    %v2217 = vmax.f32 %v1785, %v2209
    %v2218 = vmax.f32 %v1786, %v2211
    %v2219 = vmax.f32 %v1787, %v2213
    %v2220 = vmax.f32 %v1788, %v2215
    %s2221 = scalar_lea.vmem %s4, 24
    %v2222 = vld [vmem:[%s2221] sm:$0xf]
    %v2223 = vld [vmem:[%s2221 + $0x4] sm:$0x1]
    %v2226 = vunpack.c.l.b16 %v2222
    %v2227 = vunpack.c.l.b16 %v2223
    %v2228 = vpack.c.b16 %v2227, %v2226
    %v2230 = vsel %vm926, %v2228, 0
    %2232 = vmatprep.subr.bf16.mxu0 0
    %2233 = vmatpush1.bf16.msra.mxu0 0
    %2234 = vmatprep.subr.bf16.mxu0 0
    %2235 = vmatpush1.bf16.msra.mxu0 0
    %2236 = vmatprep.subr.bf16.mxu0 0
    %2237 = vmatpush1.bf16.msra.mxu0 0
    %2238 = vmatprep.subr.bf16.mxu0 0
    %2239 = vmatpush1.bf16.msra.mxu0 0
    %2240 = vmatprep.subr.bf16.mxu0 0
    %2241 = vmatpush1.bf16.msra.mxu0 0
    %2242 = vmatprep.subr.bf16.mxu0 0
    %2243 = vmatpush1.bf16.msra.mxu0 0
    %2244 = vmatprep.subr.bf16.mxu0 %v935
    %2245 = vmatpush1.bf16.msra.mxu0 %v932
    %2246 = vmatprep.subr.bf16.mxu0 %v914
    %2247 = vmatpush1.bf16.msra.mxu0 %v913
    %2248 = vmatprep.subr.bf16.mxu0 0
    %2249 = vmatpush2.bf16.msra.mxu0 0
    %2250 = vmatprep.subr.bf16.mxu0 0
    %2251 = vmatpush2.bf16.msra.mxu0 0
    %2252 = vmatprep.subr.bf16.mxu0 0
    %2253 = vmatpush2.bf16.msra.mxu0 0
    %2254 = vmatprep.subr.bf16.mxu0 0
    %2255 = vmatpush2.bf16.msra.mxu0 0
    %2256 = vmatprep.subr.bf16.mxu0 0
    %2257 = vmatpush2.bf16.msra.mxu0 0
    %2258 = vmatprep.subr.bf16.mxu0 0
    %2259 = vmatpush2.bf16.msra.mxu0 0
    %2260 = vmatprep.subr.bf16.mxu0 0
    %2261 = vmatpush2.bf16.msra.mxu0 0
    %2262 = vmatprep.subr.bf16.mxu0 0
    %2263 = vmatpush2.bf16.msra.mxu0 0
    %2264 = vmatprep.mubr.bf16.mxu0 0
    %2265 = vmatmul.mubr.bf16.gmra.mxu0 %v2230
    %v2266 = vpop.f32.mrf.mxu0
    %v2267 = vadd.f32 0.0, %v2266
    %v2268 = vpop.f32.mrf.mxu0
    %v2269 = vadd.f32 0.0, %v2268
    %v2270 = vpop.f32.mrf.mxu0
    %v2271 = vadd.f32 0.0, %v2270
    %v2272 = vpop.f32.mrf.mxu0
    %v2273 = vadd.f32 0.0, %v2272
    %2274 = vdwg.mxu0
    %2275 = vmatprep.subr.bf16.mxu0 0
    %2276 = vmatpush1.bf16.msra.mxu0 0
    %2277 = vmatprep.subr.bf16.mxu0 0
    %2278 = vmatpush1.bf16.msra.mxu0 0
    %2279 = vmatprep.subr.bf16.mxu0 0
    %2280 = vmatpush1.bf16.msra.mxu0 0
    %2281 = vmatprep.subr.bf16.mxu0 0
    %2282 = vmatpush1.bf16.msra.mxu0 0
    %2283 = vmatprep.subr.bf16.mxu0 0
    %2284 = vmatpush1.bf16.msra.mxu0 0
    %2285 = vmatprep.subr.bf16.mxu0 0
    %2286 = vmatpush1.bf16.msra.mxu0 0
    %2287 = vmatprep.subr.bf16.mxu0 0
    %2288 = vmatpush1.bf16.msra.mxu0 %v938
    %2289 = vmatprep.subr.bf16.mxu0 0
    %2290 = vmatpush1.bf16.msra.mxu0 %v915
    %2291 = vmatprep.subr.bf16.mxu0 0
    %2292 = vmatpush2.bf16.msra.mxu0 0
    %2293 = vmatprep.subr.bf16.mxu0 0
    %2294 = vmatpush2.bf16.msra.mxu0 0
    %2295 = vmatprep.subr.bf16.mxu0 0
    %2296 = vmatpush2.bf16.msra.mxu0 0
    %2297 = vmatprep.subr.bf16.mxu0 0
    %2298 = vmatpush2.bf16.msra.mxu0 0
    %2299 = vmatprep.subr.bf16.mxu0 0
    %2300 = vmatpush2.bf16.msra.mxu0 0
    %2301 = vmatprep.subr.bf16.mxu0 0
    %2302 = vmatpush2.bf16.msra.mxu0 0
    %2303 = vmatprep.subr.bf16.mxu0 0
    %2304 = vmatpush2.bf16.msra.mxu0 0
    %2305 = vmatprep.subr.bf16.mxu0 0
    %2306 = vmatpush2.bf16.msra.mxu0 0
    %2307 = vmatprep.mubr.bf16.mxu0 0
    %2308 = vmatmul.mubr.bf16.gmra.mxu0 %v2230
    %v2309 = vpop.f32.mrf.mxu0
    %v2310 = vadd.f32 0.0, %v2309
    %v2311 = vpop.f32.mrf.mxu0
    %v2312 = vpop.f32.mrf.mxu0
    %v2313 = vadd.f32 0.0, %v2312
    %v2314 = vpop.f32.mrf.mxu0
    %2315 = vdwg.mxu0
    %v2316 = vpack.c.bf16 %v2271, %v2267
    %v2317 = vpack.c.bf16 %v2273, %v2269
    %v2318 = vpack.c.bf16 %v2313, %v2310
    %s2319 = scalar_lea.vmem %s5, 960
    %v2320 = vld [vmem:[%s2319] sm:$0xff]
    %v2321 = vld [vmem:[%s2319 + $0x8] sm:$0xff]
    %v2322 = vld [vmem:[%s2319 + $0x10] sm:$0xff]
    %v2323 = vld [vmem:[%s2319 + $0x18] sm:$0xff]
    %v2324 = vld [vmem:[%s2319 + $0x20] sm:$0xff]
    %v2325 = vld [vmem:[%s2319 + $0x28] sm:$0xff]
    %v2326 = vld [vmem:[%s2319 + $0x30] sm:$0xff]
    %v2327 = vld [vmem:[%s2319 + $0x38] sm:$0xff]
    %v2328 = vld [vmem:[%s2319 + $0x40] sm:$0xff]
    %v2329 = vld [vmem:[%s2319 + $0x48] sm:$0xff]
    %v2330 = vld [vmem:[%s2319 + $0x50] sm:$0xff]
    %v2331 = vld [vmem:[%s2319 + $0x58] sm:$0xff]
    %v2332 = vld [vmem:[%s2319 + $0x60] sm:$0xff]
    %v2333 = vld [vmem:[%s2319 + $0x68] sm:$0xff]
    %v2334 = vld [vmem:[%s2319 + $0x70] sm:$0xff]
    %v2335 = vld [vmem:[%s2319 + $0x78] sm:$0xff]
    %v2336 = vld [vmem:[%s2319 + $0x80] sm:$0xff]
    %v2337 = vld [vmem:[%s2319 + $0x88] sm:$0xff]
    %v2338 = vld [vmem:[%s2319 + $0x90] sm:$0xff]
    %v2339 = vld [vmem:[%s2319 + $0x98] sm:$0xff]
    %v2340 = vld [vmem:[%s2319 + $0xa0] sm:$0xff]
    %v2341 = vld [vmem:[%s2319 + $0xa8] sm:$0xff]
    %v2342 = vld [vmem:[%s2319 + $0xb0] sm:$0xff]
    %v2343 = vld [vmem:[%s2319 + $0xb8] sm:$0xff]
    %v2344 = vld [vmem:[%s2319 + $0xc0] sm:$0xff]
    %v2345 = vld [vmem:[%s2319 + $0xc8] sm:$0xff]
    %v2346 = vld [vmem:[%s2319 + $0xd0] sm:$0xff]
    %v2347 = vld [vmem:[%s2319 + $0xd8] sm:$0xff]
    %v2348 = vld [vmem:[%s2319 + $0xe0] sm:$0xff]
    %v2349 = vld [vmem:[%s2319 + $0xe8] sm:$0xff]
    %v2350 = vld [vmem:[%s2319 + $0xf0] sm:$0xff]
    %v2351 = vld [vmem:[%s2319 + $0xf8] sm:$0xff]
    %v2352 = vld [vmem:[%s2319 + $0x100] sm:$0xff]
    %v2353 = vld [vmem:[%s2319 + $0x108] sm:$0xff]
    %v2354 = vld [vmem:[%s2319 + $0x110] sm:$0xff]
    %v2355 = vld [vmem:[%s2319 + $0x118] sm:$0xff]
    %v2356 = vld [vmem:[%s2319 + $0x120] sm:$0xff]
    %v2357 = vld [vmem:[%s2319 + $0x128] sm:$0xff]
    %v2358 = vld [vmem:[%s2319 + $0x130] sm:$0xff]
    %v2359 = vld [vmem:[%s2319 + $0x138] sm:$0xff]
    %v2400 = vunpack.c.l.b16 %v2320
    %v2401 = vunpack.c.h.b16 %v2320
    %v2402 = vunpack.c.l.b16 %v2321
    %v2403 = vunpack.c.h.b16 %v2321
    %v2404 = vunpack.c.l.b16 %v2322
    %v2405 = vunpack.c.h.b16 %v2322
    %v2406 = vunpack.c.l.b16 %v2323
    %v2407 = vunpack.c.h.b16 %v2323
    %v2408 = vunpack.c.l.b16 %v2324
    %v2409 = vunpack.c.h.b16 %v2324
    %v2410 = vunpack.c.l.b16 %v2325
    %v2411 = vunpack.c.h.b16 %v2325
    %v2412 = vunpack.c.l.b16 %v2326
    %v2413 = vunpack.c.h.b16 %v2326
    %v2414 = vunpack.c.l.b16 %v2327
    %v2415 = vunpack.c.h.b16 %v2327
    %v2416 = vunpack.c.l.b16 %v2328
    %v2417 = vunpack.c.h.b16 %v2328
    %v2418 = vunpack.c.l.b16 %v2329
    %v2419 = vunpack.c.h.b16 %v2329
    %v2420 = vunpack.c.l.b16 %v2330
    %v2421 = vunpack.c.h.b16 %v2330
    %v2422 = vunpack.c.l.b16 %v2331
    %v2423 = vunpack.c.h.b16 %v2331
    %v2424 = vunpack.c.l.b16 %v2332
    %v2425 = vunpack.c.h.b16 %v2332
    %v2426 = vunpack.c.l.b16 %v2333
    %v2427 = vunpack.c.h.b16 %v2333
    %v2428 = vunpack.c.l.b16 %v2334
    %v2429 = vunpack.c.h.b16 %v2334
    %v2430 = vunpack.c.l.b16 %v2335
    %v2431 = vunpack.c.h.b16 %v2335
    %v2432 = vunpack.c.l.b16 %v2336
    %v2433 = vunpack.c.h.b16 %v2336
    %v2434 = vunpack.c.l.b16 %v2337
    %v2435 = vunpack.c.h.b16 %v2337
    %v2436 = vunpack.c.l.b16 %v2338
    %v2437 = vunpack.c.h.b16 %v2338
    %v2438 = vunpack.c.l.b16 %v2339
    %v2439 = vunpack.c.h.b16 %v2339
    %v2440 = vunpack.c.l.b16 %v2340
    %v2441 = vunpack.c.h.b16 %v2340
    %v2442 = vunpack.c.l.b16 %v2341
    %v2443 = vunpack.c.h.b16 %v2341
    %v2444 = vunpack.c.l.b16 %v2342
    %v2445 = vunpack.c.h.b16 %v2342
    %v2446 = vunpack.c.l.b16 %v2343
    %v2447 = vunpack.c.h.b16 %v2343
    %v2448 = vunpack.c.l.b16 %v2344
    %v2449 = vunpack.c.h.b16 %v2344
    %v2450 = vunpack.c.l.b16 %v2345
    %v2451 = vunpack.c.h.b16 %v2345
    %v2452 = vunpack.c.l.b16 %v2346
    %v2453 = vunpack.c.h.b16 %v2346
    %v2454 = vunpack.c.l.b16 %v2347
    %v2455 = vunpack.c.h.b16 %v2347
    %v2456 = vunpack.c.l.b16 %v2348
    %v2457 = vunpack.c.h.b16 %v2348
    %v2458 = vunpack.c.l.b16 %v2349
    %v2459 = vunpack.c.h.b16 %v2349
    %v2460 = vunpack.c.l.b16 %v2350
    %v2461 = vunpack.c.h.b16 %v2350
    %v2462 = vunpack.c.l.b16 %v2351
    %v2463 = vunpack.c.h.b16 %v2351
    %v2464 = vunpack.c.l.b16 %v2352
    %v2465 = vunpack.c.h.b16 %v2352
    %v2466 = vunpack.c.l.b16 %v2353
    %v2467 = vunpack.c.h.b16 %v2353
    %v2468 = vunpack.c.l.b16 %v2354
    %v2469 = vunpack.c.h.b16 %v2354
    %v2470 = vunpack.c.l.b16 %v2355
    %v2471 = vunpack.c.h.b16 %v2355
    %v2472 = vunpack.c.l.b16 %v2356
    %v2473 = vunpack.c.h.b16 %v2356
    %v2474 = vunpack.c.l.b16 %v2357
    %v2475 = vunpack.c.h.b16 %v2357
    %v2476 = vunpack.c.l.b16 %v2358
    %v2477 = vunpack.c.h.b16 %v2358
    %v2478 = vunpack.c.l.b16 %v2359
    %v2479 = vunpack.c.h.b16 %v2359
    %v2480 = vpack.c.b16 %v2402, %v2400
    %v2481 = vpack.c.b16 %v2403, %v2401
    %v2482 = vpack.c.b16 %v2406, %v2404
    %v2483 = vpack.c.b16 %v2407, %v2405
    %v2484 = vpack.c.b16 %v2410, %v2408
    %v2485 = vpack.c.b16 %v2411, %v2409
    %v2486 = vpack.c.b16 %v2414, %v2412
    %v2487 = vpack.c.b16 %v2415, %v2413
    %v2488 = vpack.c.b16 %v2418, %v2416
    %v2489 = vpack.c.b16 %v2419, %v2417
    %v2490 = vpack.c.b16 %v2422, %v2420
    %v2491 = vpack.c.b16 %v2423, %v2421
    %v2492 = vpack.c.b16 %v2426, %v2424
    %v2493 = vpack.c.b16 %v2427, %v2425
    %v2494 = vpack.c.b16 %v2430, %v2428
    %v2495 = vpack.c.b16 %v2431, %v2429
    %v2496 = vpack.c.b16 %v2434, %v2432
    %v2497 = vpack.c.b16 %v2435, %v2433
    %v2498 = vpack.c.b16 %v2438, %v2436
    %v2499 = vpack.c.b16 %v2439, %v2437
    %v2500 = vpack.c.b16 %v2442, %v2440
    %v2501 = vpack.c.b16 %v2443, %v2441
    %v2502 = vpack.c.b16 %v2446, %v2444
    %v2503 = vpack.c.b16 %v2447, %v2445
    %v2504 = vpack.c.b16 %v2450, %v2448
    %v2505 = vpack.c.b16 %v2451, %v2449
    %v2506 = vpack.c.b16 %v2454, %v2452
    %v2507 = vpack.c.b16 %v2455, %v2453
    %v2508 = vpack.c.b16 %v2458, %v2456
    %v2509 = vpack.c.b16 %v2459, %v2457
    %v2510 = vpack.c.b16 %v2462, %v2460
    %v2511 = vpack.c.b16 %v2463, %v2461
    %v2512 = vpack.c.b16 %v2466, %v2464
    %v2513 = vpack.c.b16 %v2467, %v2465
    %v2514 = vpack.c.b16 %v2470, %v2468
    %v2515 = vpack.c.b16 %v2471, %v2469
    %v2516 = vpack.c.b16 %v2474, %v2472
    %v2517 = vpack.c.b16 %v2475, %v2473
    %v2518 = vpack.c.b16 %v2478, %v2476
    %v2519 = vpack.c.b16 %v2479, %v2477
    %v2561 = vsel %vm1267, %v2318, 0
    %2563 = vmatprep.subr.bf16.mxu0 %v2495
    %2564 = vmatpush1.bf16.msra.mxu0 %v2494
    %2565 = vmatprep.subr.bf16.mxu0 %v2493
    %2566 = vmatpush1.bf16.msra.mxu0 %v2492
    %2567 = vmatprep.subr.bf16.mxu0 %v2491
    %2568 = vmatpush1.bf16.msra.mxu0 %v2490
    %2569 = vmatprep.subr.bf16.mxu0 %v2489
    %2570 = vmatpush1.bf16.msra.mxu0 %v2488
    %2571 = vmatprep.subr.bf16.mxu0 %v2487
    %2572 = vmatpush1.bf16.msra.mxu0 %v2486
    %2573 = vmatprep.subr.bf16.mxu0 %v2485
    %2574 = vmatpush1.bf16.msra.mxu0 %v2484
    %2575 = vmatprep.subr.bf16.mxu0 %v2483
    %2576 = vmatpush1.bf16.msra.mxu0 %v2482
    %2577 = vmatprep.subr.bf16.mxu0 %v2481
    %2578 = vmatpush1.bf16.msra.mxu0 %v2480
    %2579 = vmatprep.subr.bf16.mxu0 %v2511
    %2580 = vmatpush2.bf16.msra.mxu0 %v2510
    %2581 = vmatprep.subr.bf16.mxu0 %v2509
    %2582 = vmatpush2.bf16.msra.mxu0 %v2508
    %2583 = vmatprep.subr.bf16.mxu0 %v2507
    %2584 = vmatpush2.bf16.msra.mxu0 %v2506
    %2585 = vmatprep.subr.bf16.mxu0 %v2505
    %2586 = vmatpush2.bf16.msra.mxu0 %v2504
    %2587 = vmatprep.subr.bf16.mxu0 %v2503
    %2588 = vmatpush2.bf16.msra.mxu0 %v2502
    %2589 = vmatprep.subr.bf16.mxu0 %v2501
    %2590 = vmatpush2.bf16.msra.mxu0 %v2500
    %2591 = vmatprep.subr.bf16.mxu0 %v2499
    %2592 = vmatpush2.bf16.msra.mxu0 %v2498
    %2593 = vmatprep.subr.bf16.mxu0 %v2497
    %2594 = vmatpush2.bf16.msra.mxu0 %v2496
    %2595 = vmatprep.mubr.bf16.mxu0 %v2317
    %2596 = vmatmul.mubr.bf16.gmra.mxu0 %v2316
    %v2597 = vpop.f32.mrf.mxu0
    %v2598 = vadd.f32 0.0, %v2597
    %v2599 = vpop.f32.mrf.mxu0
    %v2600 = vadd.f32 0.0, %v2599
    %v2601 = vpop.f32.mrf.mxu0
    %v2602 = vadd.f32 0.0, %v2601
    %v2603 = vpop.f32.mrf.mxu0
    %v2604 = vadd.f32 0.0, %v2603
    %2605 = vdwg.mxu0
    %2606 = vmatprep.subr.bf16.mxu0 0
    %2607 = vmatpush1.bf16.msra.mxu0 0
    %2608 = vmatprep.subr.bf16.mxu0 0
    %2609 = vmatpush1.bf16.msra.mxu0 0
    %2610 = vmatprep.subr.bf16.mxu0 0
    %2611 = vmatpush1.bf16.msra.mxu0 0
    %2612 = vmatprep.subr.bf16.mxu0 0
    %2613 = vmatpush1.bf16.msra.mxu0 0
    %2614 = vmatprep.subr.bf16.mxu0 %v2519
    %2615 = vmatpush1.bf16.msra.mxu0 %v2518
    %2616 = vmatprep.subr.bf16.mxu0 %v2517
    %2617 = vmatpush1.bf16.msra.mxu0 %v2516
    %2618 = vmatprep.subr.bf16.mxu0 %v2515
    %2619 = vmatpush1.bf16.msra.mxu0 %v2514
    %2620 = vmatprep.subr.bf16.mxu0 %v2513
    %2621 = vmatpush1.bf16.msra.mxu0 %v2512
    %2622 = vmatprep.subr.bf16.mxu0 0
    %2623 = vmatpush2.bf16.msra.mxu0 0
    %2624 = vmatprep.subr.bf16.mxu0 0
    %2625 = vmatpush2.bf16.msra.mxu0 0
    %2626 = vmatprep.subr.bf16.mxu0 0
    %2627 = vmatpush2.bf16.msra.mxu0 0
    %2628 = vmatprep.subr.bf16.mxu0 0
    %2629 = vmatpush2.bf16.msra.mxu0 0
    %2630 = vmatprep.subr.bf16.mxu0 0
    %2631 = vmatpush2.bf16.msra.mxu0 0
    %2632 = vmatprep.subr.bf16.mxu0 0
    %2633 = vmatpush2.bf16.msra.mxu0 0
    %2634 = vmatprep.subr.bf16.mxu0 0
    %2635 = vmatpush2.bf16.msra.mxu0 0
    %2636 = vmatprep.subr.bf16.mxu0 0
    %2637 = vmatpush2.bf16.msra.mxu0 0
    %2638 = vmatprep.mubr.bf16.mxu0 0
    %2639 = vmatmul.mubr.bf16.gmra.mxu0 %v2561
    %v2640 = vpop.f32.mrf.mxu0
    %v2641 = vadd.f32 %v2598, %v2640
    %v2642 = vpop.f32.mrf.mxu0
    %v2643 = vadd.f32 %v2600, %v2642
    %v2644 = vpop.f32.mrf.mxu0
    %v2645 = vadd.f32 %v2602, %v2644
    %v2646 = vpop.f32.mrf.mxu0
    %v2647 = vadd.f32 %v2604, %v2646
    %2648 = vdwg.mxu0
    %v2649 = vmax.f32 %v2217, %v2641
    %v2650 = vmax.f32 %v2218, %v2643
    %v2651 = vmax.f32 %v2219, %v2645
    %v2652 = vmax.f32 %v2220, %v2647
    %v2653 = vpack.c.bf16 %v2651, %v2649
    %v2654 = vpack.c.bf16 %v2652, %v2650
    %v2655 = vld [vmem:[#allocation7] sm:$0x7]
    %vm2656 = vcmask 80896
    %v2658 = vsel %vm2656, %v2655, 0
    %vm2660 = vcmask 1044480
    %v2662 = vsel %vm2660, %v2653, 0
    %v2665 = vsel %vm2660, %v2654, 0
    %2667 = vmatprep.subr.bf16.mxu0 0
    %2668 = vmatpush1.bf16.msra.mxu0 0
    %2669 = vmatprep.subr.bf16.mxu0 0
    %2670 = vmatpush1.bf16.msra.mxu0 0
    %2671 = vmatprep.subr.bf16.mxu0 0
    %2672 = vmatpush1.bf16.msra.mxu0 0
    %2673 = vmatprep.subr.bf16.mxu0 0
    %2674 = vmatpush1.bf16.msra.mxu0 0
    %2675 = vmatprep.subr.bf16.mxu0 0
    %2676 = vmatpush1.bf16.msra.mxu0 0
    %2677 = vmatprep.subr.bf16.mxu0 0
    %2678 = vmatpush1.bf16.msra.mxu0 0
    %2679 = vmatprep.subr.bf16.mxu0 0
    %2680 = vmatpush1.bf16.msra.mxu0 0
    %2681 = vmatprep.subr.bf16.mxu0 %v2665
    %2682 = vmatpush1.bf16.msra.mxu0 %v2662
    %2683 = vmatprep.subr.bf16.mxu0 0
    %2684 = vmatpush2.bf16.msra.mxu0 0
    %2685 = vmatprep.subr.bf16.mxu0 0
    %2686 = vmatpush2.bf16.msra.mxu0 0
    %2687 = vmatprep.subr.bf16.mxu0 0
    %2688 = vmatpush2.bf16.msra.mxu0 0
    %2689 = vmatprep.subr.bf16.mxu0 0
    %2690 = vmatpush2.bf16.msra.mxu0 0
    %2691 = vmatprep.subr.bf16.mxu0 0
    %2692 = vmatpush2.bf16.msra.mxu0 0
    %2693 = vmatprep.subr.bf16.mxu0 0
    %2694 = vmatpush2.bf16.msra.mxu0 0
    %2695 = vmatprep.subr.bf16.mxu0 0
    %2696 = vmatpush2.bf16.msra.mxu0 0
    %2697 = vmatprep.subr.bf16.mxu0 0
    %2698 = vmatpush2.bf16.msra.mxu0 0
    %2699 = vmatprep.mubr.bf16.mxu0 0
    %2700 = vmatmul.mubr.bf16.gmra.mxu0 %v2658
    %v2701 = vpop.f32.mrf.mxu0
    %v2702 = vadd.f32 0.0, %v2701
    %v2703 = vpop.f32.mrf.mxu0
    %v2704 = vadd.f32 0.0, %v2703
    %v2705 = vpop.f32.mrf.mxu0
    %v2706 = vpop.f32.mrf.mxu0
    %2707 = vdwg.mxu0
    %v2708 = vpack.c.bf16 %v2702, %v2702
    %v2709 = vpack.c.bf16 %v2704, %v2704
    %v2710 = vld [vmem:[%s7] sm:$0xff]
    %v2711 = vld [vmem:[%s7 + $0x8] sm:$0xff]
    %v2712 = vld [vmem:[%s7 + $0x10] sm:$0xff]
    %v2713 = vld [vmem:[%s7 + $0x18] sm:$0xff]
    %v2714 = vld [vmem:[%s7 + $0x20] sm:$0xff]
    %v2715 = vld [vmem:[%s7 + $0x28] sm:$0xff]
    %v2716 = vld [vmem:[%s7 + $0x30] sm:$0xff]
    %v2717 = vld [vmem:[%s7 + $0x38] sm:$0xff]
    %v2718 = vld [vmem:[%s7 + $0x40] sm:$0xff]
    %v2719 = vld [vmem:[%s7 + $0x48] sm:$0xff]
    %v2720 = vld [vmem:[%s7 + $0x50] sm:$0xff]
    %v2721 = vld [vmem:[%s7 + $0x58] sm:$0xff]
    %v2722 = vld [vmem:[%s7 + $0x60] sm:$0xff]
    %v2723 = vld [vmem:[%s7 + $0x68] sm:$0xff]
    %v2724 = vld [vmem:[%s7 + $0x70] sm:$0xff]
    %v2725 = vld [vmem:[%s7 + $0x78] sm:$0xff]
    %v2726 = vld [vmem:[%s7 + $0x80] sm:$0xff]
    %v2727 = vld [vmem:[%s7 + $0x88] sm:$0xff]
    %v2728 = vld [vmem:[%s7 + $0x90] sm:$0xff]
    %v2729 = vld [vmem:[%s7 + $0x98] sm:$0xff]
    %s2730 = scalar_lea.vmem [#allocation7], 4
    %v2731 = vld [vmem:[%s2730] sm:$0x7]
    %v2733 = vsel %vm2656, %v2731, 0
    %2735 = vmatprep.subr.bf16.mxu0 0
    %2736 = vmatpush1.bf16.msra.mxu0 0
    %2737 = vmatprep.subr.bf16.mxu0 0
    %2738 = vmatpush1.bf16.msra.mxu0 0
    %2739 = vmatprep.subr.bf16.mxu0 0
    %2740 = vmatpush1.bf16.msra.mxu0 0
    %2741 = vmatprep.subr.bf16.mxu0 0
    %2742 = vmatpush1.bf16.msra.mxu0 0
    %2743 = vmatprep.subr.bf16.mxu0 0
    %2744 = vmatpush1.bf16.msra.mxu0 0
    %2745 = vmatprep.subr.bf16.mxu0 0
    %2746 = vmatpush1.bf16.msra.mxu0 0
    %2747 = vmatprep.subr.bf16.mxu0 0
    %2748 = vmatpush1.bf16.msra.mxu0 0
    %2749 = vmatprep.subr.bf16.mxu0 %v2665
    %2750 = vmatpush1.bf16.msra.mxu0 %v2662
    %2751 = vmatprep.subr.bf16.mxu0 0
    %2752 = vmatpush2.bf16.msra.mxu0 0
    %2753 = vmatprep.subr.bf16.mxu0 0
    %2754 = vmatpush2.bf16.msra.mxu0 0
    %2755 = vmatprep.subr.bf16.mxu0 0
    %2756 = vmatpush2.bf16.msra.mxu0 0
    %2757 = vmatprep.subr.bf16.mxu0 0
    %2758 = vmatpush2.bf16.msra.mxu0 0
    %2759 = vmatprep.subr.bf16.mxu0 0
    %2760 = vmatpush2.bf16.msra.mxu0 0
    %2761 = vmatprep.subr.bf16.mxu0 0
    %2762 = vmatpush2.bf16.msra.mxu0 0
    %2763 = vmatprep.subr.bf16.mxu0 0
    %2764 = vmatpush2.bf16.msra.mxu0 0
    %2765 = vmatprep.subr.bf16.mxu0 0
    %2766 = vmatpush2.bf16.msra.mxu0 0
    %2767 = vmatprep.mubr.bf16.mxu0 0
    %2768 = vmatmul.mubr.bf16.gmra.mxu0 %v2733
    %v2769 = vpop.f32.mrf.mxu0
    %v2770 = vadd.f32 0.0, %v2769
    %v2771 = vpop.f32.mrf.mxu0
    %v2772 = vadd.f32 0.0, %v2771
    %v2773 = vpop.f32.mrf.mxu0
    %v2774 = vpop.f32.mrf.mxu0
    %2775 = vdwg.mxu0
    %v2776 = vpack.c.bf16 %v2770, %v2770
    %v2777 = vpack.c.bf16 %v2772, %v2772
    %s2778 = scalar_lea.vmem %s7, 160
    %v2779 = vld [vmem:[%s2778] sm:$0xff]
    %v2780 = vld [vmem:[%s2778 + $0x8] sm:$0xff]
    %v2781 = vld [vmem:[%s2778 + $0x10] sm:$0xff]
    %v2782 = vld [vmem:[%s2778 + $0x18] sm:$0xff]
    %v2783 = vld [vmem:[%s2778 + $0x20] sm:$0xff]
    %v2784 = vld [vmem:[%s2778 + $0x28] sm:$0xff]
    %v2785 = vld [vmem:[%s2778 + $0x30] sm:$0xff]
    %v2786 = vld [vmem:[%s2778 + $0x38] sm:$0xff]
    %v2787 = vld [vmem:[%s2778 + $0x40] sm:$0xff]
    %v2788 = vld [vmem:[%s2778 + $0x48] sm:$0xff]
    %v2789 = vld [vmem:[%s2778 + $0x50] sm:$0xff]
    %v2790 = vld [vmem:[%s2778 + $0x58] sm:$0xff]
    %v2791 = vld [vmem:[%s2778 + $0x60] sm:$0xff]
    %v2792 = vld [vmem:[%s2778 + $0x68] sm:$0xff]
    %v2793 = vld [vmem:[%s2778 + $0x70] sm:$0xff]
    %v2794 = vld [vmem:[%s2778 + $0x78] sm:$0xff]
    %v2795 = vld [vmem:[%s2778 + $0x80] sm:$0xff]
    %v2796 = vld [vmem:[%s2778 + $0x88] sm:$0xff]
    %v2797 = vld [vmem:[%s2778 + $0x90] sm:$0xff]
    %v2798 = vld [vmem:[%s2778 + $0x98] sm:$0xff]
    %v2819 = vunpack.c.l.b16 %v2779
    %v2820 = vunpack.c.h.b16 %v2779
    %v2821 = vunpack.c.l.b16 %v2780
    %v2822 = vunpack.c.h.b16 %v2780
    %v2823 = vunpack.c.l.b16 %v2781
    %v2824 = vunpack.c.h.b16 %v2781
    %v2825 = vunpack.c.l.b16 %v2782
    %v2826 = vunpack.c.h.b16 %v2782
    %v2827 = vunpack.c.l.b16 %v2783
    %v2828 = vunpack.c.h.b16 %v2783
    %v2829 = vunpack.c.l.b16 %v2784
    %v2830 = vunpack.c.h.b16 %v2784
    %v2831 = vunpack.c.l.b16 %v2785
    %v2832 = vunpack.c.h.b16 %v2785
    %v2833 = vunpack.c.l.b16 %v2786
    %v2834 = vunpack.c.h.b16 %v2786
    %v2835 = vunpack.c.l.b16 %v2787
    %v2836 = vunpack.c.h.b16 %v2787
    %v2837 = vunpack.c.l.b16 %v2788
    %v2838 = vunpack.c.h.b16 %v2788
    %v2839 = vunpack.c.l.b16 %v2789
    %v2840 = vunpack.c.h.b16 %v2789
    %v2841 = vunpack.c.l.b16 %v2790
    %v2842 = vunpack.c.h.b16 %v2790
    %v2843 = vunpack.c.l.b16 %v2791
    %v2844 = vunpack.c.h.b16 %v2791
    %v2845 = vunpack.c.l.b16 %v2792
    %v2846 = vunpack.c.h.b16 %v2792
    %v2847 = vunpack.c.l.b16 %v2793
    %v2848 = vunpack.c.h.b16 %v2793
    %v2849 = vunpack.c.l.b16 %v2794
    %v2850 = vunpack.c.h.b16 %v2794
    %v2851 = vunpack.c.l.b16 %v2795
    %v2852 = vunpack.c.h.b16 %v2795
    %v2853 = vunpack.c.l.b16 %v2796
    %v2854 = vunpack.c.h.b16 %v2796
    %v2855 = vunpack.c.l.b16 %v2797
    %v2856 = vunpack.c.h.b16 %v2797
    %v2857 = vunpack.c.l.b16 %v2798
    %v2858 = vunpack.c.h.b16 %v2798
    %v2859 = vpack.c.b16 %v2821, %v2819
    %v2860 = vpack.c.b16 %v2822, %v2820
    %v2861 = vpack.c.b16 %v2825, %v2823
    %v2862 = vpack.c.b16 %v2826, %v2824
    %v2863 = vpack.c.b16 %v2829, %v2827
    %v2864 = vpack.c.b16 %v2830, %v2828
    %v2865 = vpack.c.b16 %v2833, %v2831
    %v2866 = vpack.c.b16 %v2834, %v2832
    %v2867 = vpack.c.b16 %v2837, %v2835
    %v2868 = vpack.c.b16 %v2838, %v2836
    %v2869 = vpack.c.b16 %v2841, %v2839
    %v2870 = vpack.c.b16 %v2842, %v2840
    %v2871 = vpack.c.b16 %v2845, %v2843
    %v2872 = vpack.c.b16 %v2846, %v2844
    %v2873 = vpack.c.b16 %v2849, %v2847
    %v2874 = vpack.c.b16 %v2850, %v2848
    %v2875 = vpack.c.b16 %v2853, %v2851
    %v2876 = vpack.c.b16 %v2854, %v2852
    %v2877 = vpack.c.b16 %v2857, %v2855
    %v2878 = vpack.c.b16 %v2858, %v2856
    %vm2899 = vcmask 261120
    %v2901 = vsel %vm2899, %v2777, 0
    %2903 = vmatprep.subr.bf16.mxu0 %v2874
    %2904 = vmatpush1.bf16.msra.mxu0 %v2873
    %2905 = vmatprep.subr.bf16.mxu0 %v2872
    %2906 = vmatpush1.bf16.msra.mxu0 %v2871
    %2907 = vmatprep.subr.bf16.mxu0 %v2870
    %2908 = vmatpush1.bf16.msra.mxu0 %v2869
    %2909 = vmatprep.subr.bf16.mxu0 %v2868
    %2910 = vmatpush1.bf16.msra.mxu0 %v2867
    %2911 = vmatprep.subr.bf16.mxu0 %v2866
    %2912 = vmatpush1.bf16.msra.mxu0 %v2865
    %2913 = vmatprep.subr.bf16.mxu0 %v2864
    %2914 = vmatpush1.bf16.msra.mxu0 %v2863
    %2915 = vmatprep.subr.bf16.mxu0 %v2862
    %2916 = vmatpush1.bf16.msra.mxu0 %v2861
    %2917 = vmatprep.subr.bf16.mxu0 %v2860
    %2918 = vmatpush1.bf16.msra.mxu0 %v2859
    %2919 = vmatprep.subr.bf16.mxu0 0
    %2920 = vmatpush2.bf16.msra.mxu0 0
    %2921 = vmatprep.subr.bf16.mxu0 0
    %2922 = vmatpush2.bf16.msra.mxu0 0
    %2923 = vmatprep.subr.bf16.mxu0 0
    %2924 = vmatpush2.bf16.msra.mxu0 0
    %2925 = vmatprep.subr.bf16.mxu0 0
    %2926 = vmatpush2.bf16.msra.mxu0 0
    %2927 = vmatprep.subr.bf16.mxu0 0
    %2928 = vmatpush2.bf16.msra.mxu0 0
    %2929 = vmatprep.subr.bf16.mxu0 0
    %2930 = vmatpush2.bf16.msra.mxu0 0
    %2931 = vmatprep.subr.bf16.mxu0 %v2878
    %2932 = vmatpush2.bf16.msra.mxu0 %v2877
    %2933 = vmatprep.subr.bf16.mxu0 %v2876
    %2934 = vmatpush2.bf16.msra.mxu0 %v2875
    %2935 = vmatprep.mubr.bf16.mxu0 %v2901
    %2936 = vmatmul.mubr.bf16.gmra.mxu0 %v2776
    %v2937 = vpop.f32.mrf.mxu0
    %v2938 = vadd.f32 0.0, %v2937
    %v2939 = vpop.f32.mrf.mxu0
    %v2940 = vadd.f32 0.0, %v2939
    %v2941 = vpop.f32.mrf.mxu0
    %v2942 = vpop.f32.mrf.mxu0
    %2943 = vdwg.mxu0
    %v2964 = vunpack.c.l.b16 %v2710
    %v2965 = vunpack.c.h.b16 %v2710
    %v2966 = vunpack.c.l.b16 %v2711
    %v2967 = vunpack.c.h.b16 %v2711
    %v2968 = vunpack.c.l.b16 %v2712
    %v2969 = vunpack.c.h.b16 %v2712
    %v2970 = vunpack.c.l.b16 %v2713
    %v2971 = vunpack.c.h.b16 %v2713
    %v2972 = vunpack.c.l.b16 %v2714
    %v2973 = vunpack.c.h.b16 %v2714
    %v2974 = vunpack.c.l.b16 %v2715
    %v2975 = vunpack.c.h.b16 %v2715
    %v2976 = vunpack.c.l.b16 %v2716
    %v2977 = vunpack.c.h.b16 %v2716
    %v2978 = vunpack.c.l.b16 %v2717
    %v2979 = vunpack.c.h.b16 %v2717
    %v2980 = vunpack.c.l.b16 %v2718
    %v2981 = vunpack.c.h.b16 %v2718
    %v2982 = vunpack.c.l.b16 %v2719
    %v2983 = vunpack.c.h.b16 %v2719
    %v2984 = vunpack.c.l.b16 %v2720
    %v2985 = vunpack.c.h.b16 %v2720
    %v2986 = vunpack.c.l.b16 %v2721
    %v2987 = vunpack.c.h.b16 %v2721
    %v2988 = vunpack.c.l.b16 %v2722
    %v2989 = vunpack.c.h.b16 %v2722
    %v2990 = vunpack.c.l.b16 %v2723
    %v2991 = vunpack.c.h.b16 %v2723
    %v2992 = vunpack.c.l.b16 %v2724
    %v2993 = vunpack.c.h.b16 %v2724
    %v2994 = vunpack.c.l.b16 %v2725
    %v2995 = vunpack.c.h.b16 %v2725
    %v2996 = vunpack.c.l.b16 %v2726
    %v2997 = vunpack.c.h.b16 %v2726
    %v2998 = vunpack.c.l.b16 %v2727
    %v2999 = vunpack.c.h.b16 %v2727
    %v3000 = vunpack.c.l.b16 %v2728
    %v3001 = vunpack.c.h.b16 %v2728
    %v3002 = vunpack.c.l.b16 %v2729
    %v3003 = vunpack.c.h.b16 %v2729
    %v3004 = vpack.c.b16 %v2966, %v2964
    %v3005 = vpack.c.b16 %v2967, %v2965
    %v3006 = vpack.c.b16 %v2970, %v2968
    %v3007 = vpack.c.b16 %v2971, %v2969
    %v3008 = vpack.c.b16 %v2974, %v2972
    %v3009 = vpack.c.b16 %v2975, %v2973
    %v3010 = vpack.c.b16 %v2978, %v2976
    %v3011 = vpack.c.b16 %v2979, %v2977
    %v3012 = vpack.c.b16 %v2982, %v2980
    %v3013 = vpack.c.b16 %v2983, %v2981
    %v3014 = vpack.c.b16 %v2986, %v2984
    %v3015 = vpack.c.b16 %v2987, %v2985
    %v3016 = vpack.c.b16 %v2990, %v2988
    %v3017 = vpack.c.b16 %v2991, %v2989
    %v3018 = vpack.c.b16 %v2994, %v2992
    %v3019 = vpack.c.b16 %v2995, %v2993
    %v3020 = vpack.c.b16 %v2998, %v2996
    %v3021 = vpack.c.b16 %v2999, %v2997
    %v3022 = vpack.c.b16 %v3002, %v3000
    %v3023 = vpack.c.b16 %v3003, %v3001
    %v3045 = vsel %vm2899, %v2709, 0
    %3047 = vmatprep.subr.bf16.mxu0 %v3019
    %3048 = vmatpush1.bf16.msra.mxu0 %v3018
    %3049 = vmatprep.subr.bf16.mxu0 %v3017
    %3050 = vmatpush1.bf16.msra.mxu0 %v3016
    %3051 = vmatprep.subr.bf16.mxu0 %v3015
    %3052 = vmatpush1.bf16.msra.mxu0 %v3014
    %3053 = vmatprep.subr.bf16.mxu0 %v3013
    %3054 = vmatpush1.bf16.msra.mxu0 %v3012
    %3055 = vmatprep.subr.bf16.mxu0 %v3011
    %3056 = vmatpush1.bf16.msra.mxu0 %v3010
    %3057 = vmatprep.subr.bf16.mxu0 %v3009
    %3058 = vmatpush1.bf16.msra.mxu0 %v3008
    %3059 = vmatprep.subr.bf16.mxu0 %v3007
    %3060 = vmatpush1.bf16.msra.mxu0 %v3006
    %3061 = vmatprep.subr.bf16.mxu0 %v3005
    %3062 = vmatpush1.bf16.msra.mxu0 %v3004
    %3063 = vmatprep.subr.bf16.mxu0 0
    %3064 = vmatpush2.bf16.msra.mxu0 0
    %3065 = vmatprep.subr.bf16.mxu0 0
    %3066 = vmatpush2.bf16.msra.mxu0 0
    %3067 = vmatprep.subr.bf16.mxu0 0
    %3068 = vmatpush2.bf16.msra.mxu0 0
    %3069 = vmatprep.subr.bf16.mxu0 0
    %3070 = vmatpush2.bf16.msra.mxu0 0
    %3071 = vmatprep.subr.bf16.mxu0 0
    %3072 = vmatpush2.bf16.msra.mxu0 0
    %3073 = vmatprep.subr.bf16.mxu0 0
    %3074 = vmatpush2.bf16.msra.mxu0 0
    %3075 = vmatprep.subr.bf16.mxu0 %v3023
    %3076 = vmatpush2.bf16.msra.mxu0 %v3022
    %3077 = vmatprep.subr.bf16.mxu0 %v3021
    %3078 = vmatpush2.bf16.msra.mxu0 %v3020
    %3079 = vmatprep.mubr.bf16.mxu0 %v3045
    %3080 = vmatmul.mubr.bf16.gmra.mxu0 %v2708
    %v3081 = vpop.f32.mrf.mxu0
    %v3082 = vadd.f32 %v2938, %v3081
    %v3083 = vpop.f32.mrf.mxu0
    %v3084 = vadd.f32 %v2940, %v3083
    %v3085 = vpop.f32.mrf.mxu0
    %v3086 = vpop.f32.mrf.mxu0
    %3087 = vdwg.mxu0
    %s3088 = scalar_lea.vmem [#allocation7], 8
    %v3089 = vld [vmem:[%s3088] sm:$0x7]
    %v3091 = vsel %vm2656, %v3089, 0
    %3093 = vmatprep.subr.bf16.mxu0 0
    %3094 = vmatpush1.bf16.msra.mxu0 0
    %3095 = vmatprep.subr.bf16.mxu0 0
    %3096 = vmatpush1.bf16.msra.mxu0 0
    %3097 = vmatprep.subr.bf16.mxu0 0
    %3098 = vmatpush1.bf16.msra.mxu0 0
    %3099 = vmatprep.subr.bf16.mxu0 0
    %3100 = vmatpush1.bf16.msra.mxu0 0
    %3101 = vmatprep.subr.bf16.mxu0 0
    %3102 = vmatpush1.bf16.msra.mxu0 0
    %3103 = vmatprep.subr.bf16.mxu0 0
    %3104 = vmatpush1.bf16.msra.mxu0 0
    %3105 = vmatprep.subr.bf16.mxu0 0
    %3106 = vmatpush1.bf16.msra.mxu0 0
    %3107 = vmatprep.subr.bf16.mxu0 %v2665
    %3108 = vmatpush1.bf16.msra.mxu0 %v2662
    %3109 = vmatprep.subr.bf16.mxu0 0
    %3110 = vmatpush2.bf16.msra.mxu0 0
    %3111 = vmatprep.subr.bf16.mxu0 0
    %3112 = vmatpush2.bf16.msra.mxu0 0
    %3113 = vmatprep.subr.bf16.mxu0 0
    %3114 = vmatpush2.bf16.msra.mxu0 0
    %3115 = vmatprep.subr.bf16.mxu0 0
    %3116 = vmatpush2.bf16.msra.mxu0 0
    %3117 = vmatprep.subr.bf16.mxu0 0
    %3118 = vmatpush2.bf16.msra.mxu0 0
    %3119 = vmatprep.subr.bf16.mxu0 0
    %3120 = vmatpush2.bf16.msra.mxu0 0
    %3121 = vmatprep.subr.bf16.mxu0 0
    %3122 = vmatpush2.bf16.msra.mxu0 0
    %3123 = vmatprep.subr.bf16.mxu0 0
    %3124 = vmatpush2.bf16.msra.mxu0 0
    %3125 = vmatprep.mubr.bf16.mxu0 0
    %3126 = vmatmul.mubr.bf16.gmra.mxu0 %v3091
    %v3127 = vpop.f32.mrf.mxu0
    %v3128 = vadd.f32 0.0, %v3127
    %v3129 = vpop.f32.mrf.mxu0
    %v3130 = vadd.f32 0.0, %v3129
    %v3131 = vpop.f32.mrf.mxu0
    %v3132 = vpop.f32.mrf.mxu0
    %3133 = vdwg.mxu0
    %v3134 = vpack.c.bf16 %v3128, %v3128
    %v3135 = vpack.c.bf16 %v3130, %v3130
    %s3136 = scalar_lea.vmem %s7, 320
    %v3137 = vld [vmem:[%s3136] sm:$0xff]
    %v3138 = vld [vmem:[%s3136 + $0x8] sm:$0xff]
    %v3139 = vld [vmem:[%s3136 + $0x10] sm:$0xff]
    %v3140 = vld [vmem:[%s3136 + $0x18] sm:$0xff]
    %v3141 = vld [vmem:[%s3136 + $0x20] sm:$0xff]
    %v3142 = vld [vmem:[%s3136 + $0x28] sm:$0xff]
    %v3143 = vld [vmem:[%s3136 + $0x30] sm:$0xff]
    %v3144 = vld [vmem:[%s3136 + $0x38] sm:$0xff]
    %v3145 = vld [vmem:[%s3136 + $0x40] sm:$0xff]
    %v3146 = vld [vmem:[%s3136 + $0x48] sm:$0xff]
    %v3147 = vld [vmem:[%s3136 + $0x50] sm:$0xff]
    %v3148 = vld [vmem:[%s3136 + $0x58] sm:$0xff]
    %v3149 = vld [vmem:[%s3136 + $0x60] sm:$0xff]
    %v3150 = vld [vmem:[%s3136 + $0x68] sm:$0xff]
    %v3151 = vld [vmem:[%s3136 + $0x70] sm:$0xff]
    %v3152 = vld [vmem:[%s3136 + $0x78] sm:$0xff]
    %v3153 = vld [vmem:[%s3136 + $0x80] sm:$0xff]
    %v3154 = vld [vmem:[%s3136 + $0x88] sm:$0xff]
    %v3155 = vld [vmem:[%s3136 + $0x90] sm:$0xff]
    %v3156 = vld [vmem:[%s3136 + $0x98] sm:$0xff]
    %v3177 = vunpack.c.l.b16 %v3137
    %v3178 = vunpack.c.h.b16 %v3137
    %v3179 = vunpack.c.l.b16 %v3138
    %v3180 = vunpack.c.h.b16 %v3138
    %v3181 = vunpack.c.l.b16 %v3139
    %v3182 = vunpack.c.h.b16 %v3139
    %v3183 = vunpack.c.l.b16 %v3140
    %v3184 = vunpack.c.h.b16 %v3140
    %v3185 = vunpack.c.l.b16 %v3141
    %v3186 = vunpack.c.h.b16 %v3141
    %v3187 = vunpack.c.l.b16 %v3142
    %v3188 = vunpack.c.h.b16 %v3142
    %v3189 = vunpack.c.l.b16 %v3143
    %v3190 = vunpack.c.h.b16 %v3143
    %v3191 = vunpack.c.l.b16 %v3144
    %v3192 = vunpack.c.h.b16 %v3144
    %v3193 = vunpack.c.l.b16 %v3145
    %v3194 = vunpack.c.h.b16 %v3145
    %v3195 = vunpack.c.l.b16 %v3146
    %v3196 = vunpack.c.h.b16 %v3146
    %v3197 = vunpack.c.l.b16 %v3147
    %v3198 = vunpack.c.h.b16 %v3147
    %v3199 = vunpack.c.l.b16 %v3148
    %v3200 = vunpack.c.h.b16 %v3148
    %v3201 = vunpack.c.l.b16 %v3149
    %v3202 = vunpack.c.h.b16 %v3149
    %v3203 = vunpack.c.l.b16 %v3150
    %v3204 = vunpack.c.h.b16 %v3150
    %v3205 = vunpack.c.l.b16 %v3151
    %v3206 = vunpack.c.h.b16 %v3151
    %v3207 = vunpack.c.l.b16 %v3152
    %v3208 = vunpack.c.h.b16 %v3152
    %v3209 = vunpack.c.l.b16 %v3153
    %v3210 = vunpack.c.h.b16 %v3153
    %v3211 = vunpack.c.l.b16 %v3154
    %v3212 = vunpack.c.h.b16 %v3154
    %v3213 = vunpack.c.l.b16 %v3155
    %v3214 = vunpack.c.h.b16 %v3155
    %v3215 = vunpack.c.l.b16 %v3156
    %v3216 = vunpack.c.h.b16 %v3156
    %v3217 = vpack.c.b16 %v3179, %v3177
    %v3218 = vpack.c.b16 %v3180, %v3178
    %v3219 = vpack.c.b16 %v3183, %v3181
    %v3220 = vpack.c.b16 %v3184, %v3182
    %v3221 = vpack.c.b16 %v3187, %v3185
    %v3222 = vpack.c.b16 %v3188, %v3186
    %v3223 = vpack.c.b16 %v3191, %v3189
    %v3224 = vpack.c.b16 %v3192, %v3190
    %v3225 = vpack.c.b16 %v3195, %v3193
    %v3226 = vpack.c.b16 %v3196, %v3194
    %v3227 = vpack.c.b16 %v3199, %v3197
    %v3228 = vpack.c.b16 %v3200, %v3198
    %v3229 = vpack.c.b16 %v3203, %v3201
    %v3230 = vpack.c.b16 %v3204, %v3202
    %v3231 = vpack.c.b16 %v3207, %v3205
    %v3232 = vpack.c.b16 %v3208, %v3206
    %v3233 = vpack.c.b16 %v3211, %v3209
    %v3234 = vpack.c.b16 %v3212, %v3210
    %v3235 = vpack.c.b16 %v3215, %v3213
    %v3236 = vpack.c.b16 %v3216, %v3214
    %v3258 = vsel %vm2899, %v3135, 0
    %3260 = vmatprep.subr.bf16.mxu0 %v3232
    %3261 = vmatpush1.bf16.msra.mxu0 %v3231
    %3262 = vmatprep.subr.bf16.mxu0 %v3230
    %3263 = vmatpush1.bf16.msra.mxu0 %v3229
    %3264 = vmatprep.subr.bf16.mxu0 %v3228
    %3265 = vmatpush1.bf16.msra.mxu0 %v3227
    %3266 = vmatprep.subr.bf16.mxu0 %v3226
    %3267 = vmatpush1.bf16.msra.mxu0 %v3225
    %3268 = vmatprep.subr.bf16.mxu0 %v3224
    %3269 = vmatpush1.bf16.msra.mxu0 %v3223
    %3270 = vmatprep.subr.bf16.mxu0 %v3222
    %3271 = vmatpush1.bf16.msra.mxu0 %v3221
    %3272 = vmatprep.subr.bf16.mxu0 %v3220
    %3273 = vmatpush1.bf16.msra.mxu0 %v3219
    %3274 = vmatprep.subr.bf16.mxu0 %v3218
    %3275 = vmatpush1.bf16.msra.mxu0 %v3217
    %3276 = vmatprep.subr.bf16.mxu0 0
    %3277 = vmatpush2.bf16.msra.mxu0 0
    %3278 = vmatprep.subr.bf16.mxu0 0
    %3279 = vmatpush2.bf16.msra.mxu0 0
    %3280 = vmatprep.subr.bf16.mxu0 0
    %3281 = vmatpush2.bf16.msra.mxu0 0
    %3282 = vmatprep.subr.bf16.mxu0 0
    %3283 = vmatpush2.bf16.msra.mxu0 0
    %3284 = vmatprep.subr.bf16.mxu0 0
    %3285 = vmatpush2.bf16.msra.mxu0 0
    %3286 = vmatprep.subr.bf16.mxu0 0
    %3287 = vmatpush2.bf16.msra.mxu0 0
    %3288 = vmatprep.subr.bf16.mxu0 %v3236
    %3289 = vmatpush2.bf16.msra.mxu0 %v3235
    %3290 = vmatprep.subr.bf16.mxu0 %v3234
    %3291 = vmatpush2.bf16.msra.mxu0 %v3233
    %3292 = vmatprep.mubr.bf16.mxu0 %v3258
    %3293 = vmatmul.mubr.bf16.gmra.mxu0 %v3134
    %v3294 = vpop.f32.mrf.mxu0
    %v3295 = vadd.f32 0.0, %v3294
    %v3296 = vpop.f32.mrf.mxu0
    %v3297 = vadd.f32 0.0, %v3296
    %v3298 = vpop.f32.mrf.mxu0
    %v3299 = vpop.f32.mrf.mxu0
    %3300 = vdwg.mxu0
    %v3301 = vadd.f32 %v3082, %v3295
    %v3302 = vadd.f32 %v3084, %v3297
    %v3303 = vld [vmem:[#allocation8] sm:$0x3f]
    %v3304 = vld [vmem:[#allocation8 + $0x8] sm:$0x3f]
    %v3305 = vadd.f32 %v3301, %v3303
    %v3306 = vadd.f32 %v3302, %v3304
    %v3307 = vmax.f32 %v3305, 0.0
    %v3308 = vmax.f32 %v3306, 0.0
    %v3309 = vpack.c.bf16 %v3307, %v3307
    %v3310 = vpack.c.bf16 %v3308, %v3308
    %v3311 = vld [vmem:[#allocation10] sm:$0x3]
    %vm3312 = vcmask 48128
    %v3314 = vsel %vm3312, %v3311, 0
    %vm3316 = vcmask 1042432
    %v3318 = vsel %vm3316, %v3309, 0
    %v3321 = vsel %vm3316, %v3310, 0
    %3323 = vmatprep.subr.bf16.mxu0 0
    %3324 = vmatpush1.bf16.msra.mxu0 0
    %3325 = vmatprep.subr.bf16.mxu0 0
    %3326 = vmatpush1.bf16.msra.mxu0 0
    %3327 = vmatprep.subr.bf16.mxu0 0
    %3328 = vmatpush1.bf16.msra.mxu0 0
    %3329 = vmatprep.subr.bf16.mxu0 0
    %3330 = vmatpush1.bf16.msra.mxu0 0
    %3331 = vmatprep.subr.bf16.mxu0 0
    %3332 = vmatpush1.bf16.msra.mxu0 0
    %3333 = vmatprep.subr.bf16.mxu0 0
    %3334 = vmatpush1.bf16.msra.mxu0 0
    %3335 = vmatprep.subr.bf16.mxu0 0
    %3336 = vmatpush1.bf16.msra.mxu0 0
    %3337 = vmatprep.subr.bf16.mxu0 %v3321
    %3338 = vmatpush1.bf16.msra.mxu0 %v3318
    %3339 = vmatprep.subr.bf16.mxu0 0
    %3340 = vmatpush2.bf16.msra.mxu0 0
    %3341 = vmatprep.subr.bf16.mxu0 0
    %3342 = vmatpush2.bf16.msra.mxu0 0
    %3343 = vmatprep.subr.bf16.mxu0 0
    %3344 = vmatpush2.bf16.msra.mxu0 0
    %3345 = vmatprep.subr.bf16.mxu0 0
    %3346 = vmatpush2.bf16.msra.mxu0 0
    %3347 = vmatprep.subr.bf16.mxu0 0
    %3348 = vmatpush2.bf16.msra.mxu0 0
    %3349 = vmatprep.subr.bf16.mxu0 0
    %3350 = vmatpush2.bf16.msra.mxu0 0
    %3351 = vmatprep.subr.bf16.mxu0 0
    %3352 = vmatpush2.bf16.msra.mxu0 0
    %3353 = vmatprep.subr.bf16.mxu0 0
    %3354 = vmatpush2.bf16.msra.mxu0 0
    %3355 = vmatprep.mubr.bf16.mxu0 0
    %3356 = vmatmul.mubr.bf16.gmra.mxu0 %v3314
    %v3357 = vpop.f32.mrf.mxu0
    %v3358 = vadd.f32 0.0, %v3357
    %v3359 = vpop.f32.mrf.mxu0
    %v3360 = vadd.f32 0.0, %v3359
    %v3361 = vpop.f32.mrf.mxu0
    %v3362 = vpop.f32.mrf.mxu0
    %3363 = vdwg.mxu0
    %v3364 = vpack.c.bf16 %v3358, %v3358
    %v3365 = vpack.c.bf16 %v3360, %v3360
    %v3366 = vld [vmem:[%s10] sm:$0xf]
    %v3367 = vld [vmem:[%s10 + $0x4] sm:$0xf]
    %v3368 = vld [vmem:[%s10 + $0x8] sm:$0xf]
    %v3369 = vld [vmem:[%s10 + $0xc] sm:$0xf]
    %v3370 = vld [vmem:[%s10 + $0x10] sm:$0xf]
    %v3371 = vld [vmem:[%s10 + $0x14] sm:$0xf]
    %v3372 = vld [vmem:[%s10 + $0x18] sm:$0xf]
    %v3373 = vld [vmem:[%s10 + $0x1c] sm:$0xf]
    %v3374 = vld [vmem:[%s10 + $0x20] sm:$0xf]
    %v3375 = vld [vmem:[%s10 + $0x24] sm:$0xf]
    %v3376 = vld [vmem:[%s10 + $0x28] sm:$0xf]
    %v3377 = vld [vmem:[%s10 + $0x2c] sm:$0xf]
    %v3378 = vld [vmem:[%s10 + $0x30] sm:$0xf]
    %v3379 = vld [vmem:[%s10 + $0x34] sm:$0xf]
    %v3380 = vld [vmem:[%s10 + $0x38] sm:$0xf]
    %v3381 = vld [vmem:[%s10 + $0x3c] sm:$0xf]
    %v3382 = vld [vmem:[%s10 + $0x40] sm:$0xf]
    %v3383 = vld [vmem:[%s10 + $0x44] sm:$0xf]
    %v3384 = vld [vmem:[%s10 + $0x48] sm:$0xf]
    %v3385 = vld [vmem:[%s10 + $0x4c] sm:$0xf]
    %v3386 = vld [vmem:[%s10 + $0x50] sm:$0xf]
    %v3387 = vld [vmem:[%s10 + $0x54] sm:$0xf]
    %v3388 = vld [vmem:[%s10 + $0x58] sm:$0xf]
    %v3389 = vld [vmem:[%s10 + $0x5c] sm:$0xf]
    %v3414 = vunpack.c.l.b16 %v3366
    %v3415 = vunpack.c.l.b16 %v3367
    %v3416 = vunpack.c.l.b16 %v3368
    %v3417 = vunpack.c.l.b16 %v3369
    %v3418 = vunpack.c.l.b16 %v3370
    %v3419 = vunpack.c.l.b16 %v3371
    %v3420 = vunpack.c.l.b16 %v3372
    %v3421 = vunpack.c.l.b16 %v3373
    %v3422 = vunpack.c.l.b16 %v3374
    %v3423 = vunpack.c.l.b16 %v3375
    %v3424 = vunpack.c.l.b16 %v3376
    %v3425 = vunpack.c.l.b16 %v3377
    %v3426 = vunpack.c.l.b16 %v3378
    %v3427 = vunpack.c.l.b16 %v3379
    %v3428 = vunpack.c.l.b16 %v3380
    %v3429 = vunpack.c.l.b16 %v3381
    %v3430 = vunpack.c.l.b16 %v3382
    %v3431 = vunpack.c.l.b16 %v3383
    %v3432 = vunpack.c.l.b16 %v3384
    %v3433 = vunpack.c.l.b16 %v3385
    %v3434 = vunpack.c.l.b16 %v3386
    %v3435 = vunpack.c.l.b16 %v3387
    %v3436 = vunpack.c.l.b16 %v3388
    %v3437 = vunpack.c.l.b16 %v3389
    %v3438 = vpack.c.b16 %v3415, %v3414
    %v3439 = vpack.c.b16 %v3417, %v3416
    %v3440 = vpack.c.b16 %v3419, %v3418
    %v3441 = vpack.c.b16 %v3421, %v3420
    %v3442 = vpack.c.b16 %v3423, %v3422
    %v3443 = vpack.c.b16 %v3425, %v3424
    %v3444 = vpack.c.b16 %v3427, %v3426
    %v3445 = vpack.c.b16 %v3429, %v3428
    %v3446 = vpack.c.b16 %v3431, %v3430
    %v3447 = vpack.c.b16 %v3433, %v3432
    %v3448 = vpack.c.b16 %v3435, %v3434
    %v3449 = vpack.c.b16 %v3437, %v3436
    %v3463 = vsel %vm1267, %v3365, 0
    %3465 = vmatprep.subr.bf16.mxu0 0
    %3466 = vmatpush1.bf16.msra.mxu0 %v3445
    %3467 = vmatprep.subr.bf16.mxu0 0
    %3468 = vmatpush1.bf16.msra.mxu0 %v3444
    %3469 = vmatprep.subr.bf16.mxu0 0
    %3470 = vmatpush1.bf16.msra.mxu0 %v3443
    %3471 = vmatprep.subr.bf16.mxu0 0
    %3472 = vmatpush1.bf16.msra.mxu0 %v3442
    %3473 = vmatprep.subr.bf16.mxu0 0
    %3474 = vmatpush1.bf16.msra.mxu0 %v3441
    %3475 = vmatprep.subr.bf16.mxu0 0
    %3476 = vmatpush1.bf16.msra.mxu0 %v3440
    %3477 = vmatprep.subr.bf16.mxu0 0
    %3478 = vmatpush1.bf16.msra.mxu0 %v3439
    %3479 = vmatprep.subr.bf16.mxu0 0
    %3480 = vmatpush1.bf16.msra.mxu0 %v3438
    %3481 = vmatprep.subr.bf16.mxu0 0
    %3482 = vmatpush2.bf16.msra.mxu0 0
    %3483 = vmatprep.subr.bf16.mxu0 0
    %3484 = vmatpush2.bf16.msra.mxu0 0
    %3485 = vmatprep.subr.bf16.mxu0 0
    %3486 = vmatpush2.bf16.msra.mxu0 0
    %3487 = vmatprep.subr.bf16.mxu0 0
    %3488 = vmatpush2.bf16.msra.mxu0 0
    %3489 = vmatprep.subr.bf16.mxu0 0
    %3490 = vmatpush2.bf16.msra.mxu0 %v3449
    %3491 = vmatprep.subr.bf16.mxu0 0
    %3492 = vmatpush2.bf16.msra.mxu0 %v3448
    %3493 = vmatprep.subr.bf16.mxu0 0
    %3494 = vmatpush2.bf16.msra.mxu0 %v3447
    %3495 = vmatprep.subr.bf16.mxu0 0
    %3496 = vmatpush2.bf16.msra.mxu0 %v3446
    %3497 = vmatprep.mubr.bf16.mxu0 %v3463
    %3498 = vmatmul.mubr.bf16.gmra.mxu0 %v3364
    %v3499 = vpop.f32.mrf.mxu0
    %v3500 = vadd.f32 0.0, %v3499
    %v3501 = vpop.f32.mrf.mxu0
    %v3502 = vpop.f32.mrf.mxu0
    %v3503 = vpop.f32.mrf.mxu0
    %3504 = vdwg.mxu0
    %s3505 = scalar_lea.vmem [#allocation10], 2
    %v3506 = vld [vmem:[%s3505] sm:$0x3]
    %v3508 = vsel %vm3312, %v3506, 0
    %3510 = vmatprep.subr.bf16.mxu0 0
    %3511 = vmatpush1.bf16.msra.mxu0 0
    %3512 = vmatprep.subr.bf16.mxu0 0
    %3513 = vmatpush1.bf16.msra.mxu0 0
    %3514 = vmatprep.subr.bf16.mxu0 0
    %3515 = vmatpush1.bf16.msra.mxu0 0
    %3516 = vmatprep.subr.bf16.mxu0 0
    %3517 = vmatpush1.bf16.msra.mxu0 0
    %3518 = vmatprep.subr.bf16.mxu0 0
    %3519 = vmatpush1.bf16.msra.mxu0 0
    %3520 = vmatprep.subr.bf16.mxu0 0
    %3521 = vmatpush1.bf16.msra.mxu0 0
    %3522 = vmatprep.subr.bf16.mxu0 0
    %3523 = vmatpush1.bf16.msra.mxu0 0
    %3524 = vmatprep.subr.bf16.mxu0 %v3321
    %3525 = vmatpush1.bf16.msra.mxu0 %v3318
    %3526 = vmatprep.subr.bf16.mxu0 0
    %3527 = vmatpush2.bf16.msra.mxu0 0
    %3528 = vmatprep.subr.bf16.mxu0 0
    %3529 = vmatpush2.bf16.msra.mxu0 0
    %3530 = vmatprep.subr.bf16.mxu0 0
    %3531 = vmatpush2.bf16.msra.mxu0 0
    %3532 = vmatprep.subr.bf16.mxu0 0
    %3533 = vmatpush2.bf16.msra.mxu0 0
    %3534 = vmatprep.subr.bf16.mxu0 0
    %3535 = vmatpush2.bf16.msra.mxu0 0
    %3536 = vmatprep.subr.bf16.mxu0 0
    %3537 = vmatpush2.bf16.msra.mxu0 0
    %3538 = vmatprep.subr.bf16.mxu0 0
    %3539 = vmatpush2.bf16.msra.mxu0 0
    %3540 = vmatprep.subr.bf16.mxu0 0
    %3541 = vmatpush2.bf16.msra.mxu0 0
    %3542 = vmatprep.mubr.bf16.mxu0 0
    %3543 = vmatmul.mubr.bf16.gmra.mxu0 %v3508
    %v3544 = vpop.f32.mrf.mxu0
    %v3545 = vadd.f32 0.0, %v3544
    %v3546 = vpop.f32.mrf.mxu0
    %v3547 = vadd.f32 0.0, %v3546
    %v3548 = vpop.f32.mrf.mxu0
    %v3549 = vpop.f32.mrf.mxu0
    %3550 = vdwg.mxu0
    %v3551 = vpack.c.bf16 %v3545, %v3545
    %v3552 = vpack.c.bf16 %v3547, %v3547
    %s3553 = scalar_lea.vmem %s10, 96
    %v3554 = vld [vmem:[%s3553] sm:$0xf]
    %v3555 = vld [vmem:[%s3553 + $0x4] sm:$0xf]
    %v3556 = vld [vmem:[%s3553 + $0x8] sm:$0xf]
    %v3557 = vld [vmem:[%s3553 + $0xc] sm:$0xf]
    %v3558 = vld [vmem:[%s3553 + $0x10] sm:$0xf]
    %v3559 = vld [vmem:[%s3553 + $0x14] sm:$0xf]
    %v3560 = vld [vmem:[%s3553 + $0x18] sm:$0xf]
    %v3561 = vld [vmem:[%s3553 + $0x1c] sm:$0xf]
    %v3562 = vld [vmem:[%s3553 + $0x20] sm:$0xf]
    %v3563 = vld [vmem:[%s3553 + $0x24] sm:$0xf]
    %v3564 = vld [vmem:[%s3553 + $0x28] sm:$0xf]
    %v3565 = vld [vmem:[%s3553 + $0x2c] sm:$0xf]
    %v3566 = vld [vmem:[%s3553 + $0x30] sm:$0xf]
    %v3567 = vld [vmem:[%s3553 + $0x34] sm:$0xf]
    %v3568 = vld [vmem:[%s3553 + $0x38] sm:$0xf]
    %v3569 = vld [vmem:[%s3553 + $0x3c] sm:$0xf]
    %v3570 = vld [vmem:[%s3553 + $0x40] sm:$0xf]
    %v3571 = vld [vmem:[%s3553 + $0x44] sm:$0xf]
    %v3572 = vld [vmem:[%s3553 + $0x48] sm:$0xf]
    %v3573 = vld [vmem:[%s3553 + $0x4c] sm:$0xf]
    %v3574 = vld [vmem:[%s3553 + $0x50] sm:$0xf]
    %v3575 = vld [vmem:[%s3553 + $0x54] sm:$0xf]
    %v3576 = vld [vmem:[%s3553 + $0x58] sm:$0xf]
    %v3577 = vld [vmem:[%s3553 + $0x5c] sm:$0xf]
    %v3602 = vunpack.c.l.b16 %v3554
    %v3603 = vunpack.c.l.b16 %v3555
    %v3604 = vunpack.c.l.b16 %v3556
    %v3605 = vunpack.c.l.b16 %v3557
    %v3606 = vunpack.c.l.b16 %v3558
    %v3607 = vunpack.c.l.b16 %v3559
    %v3608 = vunpack.c.l.b16 %v3560
    %v3609 = vunpack.c.l.b16 %v3561
    %v3610 = vunpack.c.l.b16 %v3562
    %v3611 = vunpack.c.l.b16 %v3563
    %v3612 = vunpack.c.l.b16 %v3564
    %v3613 = vunpack.c.l.b16 %v3565
    %v3614 = vunpack.c.l.b16 %v3566
    %v3615 = vunpack.c.l.b16 %v3567
    %v3616 = vunpack.c.l.b16 %v3568
    %v3617 = vunpack.c.l.b16 %v3569
    %v3618 = vunpack.c.l.b16 %v3570
    %v3619 = vunpack.c.l.b16 %v3571
    %v3620 = vunpack.c.l.b16 %v3572
    %v3621 = vunpack.c.l.b16 %v3573
    %v3622 = vunpack.c.l.b16 %v3574
    %v3623 = vunpack.c.l.b16 %v3575
    %v3624 = vunpack.c.l.b16 %v3576
    %v3625 = vunpack.c.l.b16 %v3577
    %v3626 = vpack.c.b16 %v3603, %v3602
    %v3627 = vpack.c.b16 %v3605, %v3604
    %v3628 = vpack.c.b16 %v3607, %v3606
    %v3629 = vpack.c.b16 %v3609, %v3608
    %v3630 = vpack.c.b16 %v3611, %v3610
    %v3631 = vpack.c.b16 %v3613, %v3612
    %v3632 = vpack.c.b16 %v3615, %v3614
    %v3633 = vpack.c.b16 %v3617, %v3616
    %v3634 = vpack.c.b16 %v3619, %v3618
    %v3635 = vpack.c.b16 %v3621, %v3620
    %v3636 = vpack.c.b16 %v3623, %v3622
    %v3637 = vpack.c.b16 %v3625, %v3624
    %v3651 = vsel %vm1267, %v3552, 0
    %3653 = vmatprep.subr.bf16.mxu0 0
    %3654 = vmatpush1.bf16.msra.mxu0 %v3633
    %3655 = vmatprep.subr.bf16.mxu0 0
    %3656 = vmatpush1.bf16.msra.mxu0 %v3632
    %3657 = vmatprep.subr.bf16.mxu0 0
    %3658 = vmatpush1.bf16.msra.mxu0 %v3631
    %3659 = vmatprep.subr.bf16.mxu0 0
    %3660 = vmatpush1.bf16.msra.mxu0 %v3630
    %3661 = vmatprep.subr.bf16.mxu0 0
    %3662 = vmatpush1.bf16.msra.mxu0 %v3629
    %3663 = vmatprep.subr.bf16.mxu0 0
    %3664 = vmatpush1.bf16.msra.mxu0 %v3628
    %3665 = vmatprep.subr.bf16.mxu0 0
    %3666 = vmatpush1.bf16.msra.mxu0 %v3627
    %3667 = vmatprep.subr.bf16.mxu0 0
    %3668 = vmatpush1.bf16.msra.mxu0 %v3626
    %3669 = vmatprep.subr.bf16.mxu0 0
    %3670 = vmatpush2.bf16.msra.mxu0 0
    %3671 = vmatprep.subr.bf16.mxu0 0
    %3672 = vmatpush2.bf16.msra.mxu0 0
    %3673 = vmatprep.subr.bf16.mxu0 0
    %3674 = vmatpush2.bf16.msra.mxu0 0
    %3675 = vmatprep.subr.bf16.mxu0 0
    %3676 = vmatpush2.bf16.msra.mxu0 0
    %3677 = vmatprep.subr.bf16.mxu0 0
    %3678 = vmatpush2.bf16.msra.mxu0 %v3637
    %3679 = vmatprep.subr.bf16.mxu0 0
    %3680 = vmatpush2.bf16.msra.mxu0 %v3636
    %3681 = vmatprep.subr.bf16.mxu0 0
    %3682 = vmatpush2.bf16.msra.mxu0 %v3635
    %3683 = vmatprep.subr.bf16.mxu0 0
    %3684 = vmatpush2.bf16.msra.mxu0 %v3634
    %3685 = vmatprep.mubr.bf16.mxu0 %v3651
    %3686 = vmatmul.mubr.bf16.gmra.mxu0 %v3551
    %v3687 = vpop.f32.mrf.mxu0
    %v3688 = vadd.f32 0.0, %v3687
    %v3689 = vpop.f32.mrf.mxu0
    %v3690 = vpop.f32.mrf.mxu0
    %v3691 = vpop.f32.mrf.mxu0
    %3692 = vdwg.mxu0
    %v3693 = vmax.f32 %v3500, %v3688
    %s3694 = scalar_lea.vmem [#allocation10], 4
    %v3695 = vld [vmem:[%s3694] sm:$0x3]
    %v3697 = vsel %vm3312, %v3695, 0
    %3699 = vmatprep.subr.bf16.mxu0 0
    %3700 = vmatpush1.bf16.msra.mxu0 0
    %3701 = vmatprep.subr.bf16.mxu0 0
    %3702 = vmatpush1.bf16.msra.mxu0 0
    %3703 = vmatprep.subr.bf16.mxu0 0
    %3704 = vmatpush1.bf16.msra.mxu0 0
    %3705 = vmatprep.subr.bf16.mxu0 0
    %3706 = vmatpush1.bf16.msra.mxu0 0
    %3707 = vmatprep.subr.bf16.mxu0 0
    %3708 = vmatpush1.bf16.msra.mxu0 0
    %3709 = vmatprep.subr.bf16.mxu0 0
    %3710 = vmatpush1.bf16.msra.mxu0 0
    %3711 = vmatprep.subr.bf16.mxu0 0
    %3712 = vmatpush1.bf16.msra.mxu0 0
    %3713 = vmatprep.subr.bf16.mxu0 %v3321
    %3714 = vmatpush1.bf16.msra.mxu0 %v3318
    %3715 = vmatprep.subr.bf16.mxu0 0
    %3716 = vmatpush2.bf16.msra.mxu0 0
    %3717 = vmatprep.subr.bf16.mxu0 0
    %3718 = vmatpush2.bf16.msra.mxu0 0
    %3719 = vmatprep.subr.bf16.mxu0 0
    %3720 = vmatpush2.bf16.msra.mxu0 0
    %3721 = vmatprep.subr.bf16.mxu0 0
    %3722 = vmatpush2.bf16.msra.mxu0 0
    %3723 = vmatprep.subr.bf16.mxu0 0
    %3724 = vmatpush2.bf16.msra.mxu0 0
    %3725 = vmatprep.subr.bf16.mxu0 0
    %3726 = vmatpush2.bf16.msra.mxu0 0
    %3727 = vmatprep.subr.bf16.mxu0 0
    %3728 = vmatpush2.bf16.msra.mxu0 0
    %3729 = vmatprep.subr.bf16.mxu0 0
    %3730 = vmatpush2.bf16.msra.mxu0 0
    %3731 = vmatprep.mubr.bf16.mxu0 0
    %3732 = vmatmul.mubr.bf16.gmra.mxu0 %v3697
    %v3733 = vpop.f32.mrf.mxu0
    %v3734 = vadd.f32 0.0, %v3733
    %v3735 = vpop.f32.mrf.mxu0
    %v3736 = vadd.f32 0.0, %v3735
    %v3737 = vpop.f32.mrf.mxu0
    %v3738 = vpop.f32.mrf.mxu0
    %3739 = vdwg.mxu0
    %v3740 = vpack.c.bf16 %v3734, %v3734
    %v3741 = vpack.c.bf16 %v3736, %v3736
    %s3742 = scalar_lea.vmem %s10, 192
    %v3743 = vld [vmem:[%s3742] sm:$0xf]
    %v3744 = vld [vmem:[%s3742 + $0x4] sm:$0xf]
    %v3745 = vld [vmem:[%s3742 + $0x8] sm:$0xf]
    %v3746 = vld [vmem:[%s3742 + $0xc] sm:$0xf]
    %v3747 = vld [vmem:[%s3742 + $0x10] sm:$0xf]
    %v3748 = vld [vmem:[%s3742 + $0x14] sm:$0xf]
    %v3749 = vld [vmem:[%s3742 + $0x18] sm:$0xf]
    %v3750 = vld [vmem:[%s3742 + $0x1c] sm:$0xf]
    %v3751 = vld [vmem:[%s3742 + $0x20] sm:$0xf]
    %v3752 = vld [vmem:[%s3742 + $0x24] sm:$0xf]
    %v3753 = vld [vmem:[%s3742 + $0x28] sm:$0xf]
    %v3754 = vld [vmem:[%s3742 + $0x2c] sm:$0xf]
    %v3755 = vld [vmem:[%s3742 + $0x30] sm:$0xf]
    %v3756 = vld [vmem:[%s3742 + $0x34] sm:$0xf]
    %v3757 = vld [vmem:[%s3742 + $0x38] sm:$0xf]
    %v3758 = vld [vmem:[%s3742 + $0x3c] sm:$0xf]
    %v3759 = vld [vmem:[%s3742 + $0x40] sm:$0xf]
    %v3760 = vld [vmem:[%s3742 + $0x44] sm:$0xf]
    %v3761 = vld [vmem:[%s3742 + $0x48] sm:$0xf]
    %v3762 = vld [vmem:[%s3742 + $0x4c] sm:$0xf]
    %v3763 = vld [vmem:[%s3742 + $0x50] sm:$0xf]
    %v3764 = vld [vmem:[%s3742 + $0x54] sm:$0xf]
    %v3765 = vld [vmem:[%s3742 + $0x58] sm:$0xf]
    %v3766 = vld [vmem:[%s3742 + $0x5c] sm:$0xf]
    %v3791 = vunpack.c.l.b16 %v3743
    %v3792 = vunpack.c.l.b16 %v3744
    %v3793 = vunpack.c.l.b16 %v3745
    %v3794 = vunpack.c.l.b16 %v3746
    %v3795 = vunpack.c.l.b16 %v3747
    %v3796 = vunpack.c.l.b16 %v3748
    %v3797 = vunpack.c.l.b16 %v3749
    %v3798 = vunpack.c.l.b16 %v3750
    %v3799 = vunpack.c.l.b16 %v3751
    %v3800 = vunpack.c.l.b16 %v3752
    %v3801 = vunpack.c.l.b16 %v3753
    %v3802 = vunpack.c.l.b16 %v3754
    %v3803 = vunpack.c.l.b16 %v3755
    %v3804 = vunpack.c.l.b16 %v3756
    %v3805 = vunpack.c.l.b16 %v3757
    %v3806 = vunpack.c.l.b16 %v3758
    %v3807 = vunpack.c.l.b16 %v3759
    %v3808 = vunpack.c.l.b16 %v3760
    %v3809 = vunpack.c.l.b16 %v3761
    %v3810 = vunpack.c.l.b16 %v3762
    %v3811 = vunpack.c.l.b16 %v3763
    %v3812 = vunpack.c.l.b16 %v3764
    %v3813 = vunpack.c.l.b16 %v3765
    %v3814 = vunpack.c.l.b16 %v3766
    %v3815 = vpack.c.b16 %v3792, %v3791
    %v3816 = vpack.c.b16 %v3794, %v3793
    %v3817 = vpack.c.b16 %v3796, %v3795
    %v3818 = vpack.c.b16 %v3798, %v3797
    %v3819 = vpack.c.b16 %v3800, %v3799
    %v3820 = vpack.c.b16 %v3802, %v3801
    %v3821 = vpack.c.b16 %v3804, %v3803
    %v3822 = vpack.c.b16 %v3806, %v3805
    %v3823 = vpack.c.b16 %v3808, %v3807
    %v3824 = vpack.c.b16 %v3810, %v3809
    %v3825 = vpack.c.b16 %v3812, %v3811
    %v3826 = vpack.c.b16 %v3814, %v3813
    %v3840 = vsel %vm1267, %v3741, 0
    %3842 = vmatprep.subr.bf16.mxu0 0
    %3843 = vmatpush1.bf16.msra.mxu0 %v3822
    %3844 = vmatprep.subr.bf16.mxu0 0
    %3845 = vmatpush1.bf16.msra.mxu0 %v3821
    %3846 = vmatprep.subr.bf16.mxu0 0
    %3847 = vmatpush1.bf16.msra.mxu0 %v3820
    %3848 = vmatprep.subr.bf16.mxu0 0
    %3849 = vmatpush1.bf16.msra.mxu0 %v3819
    %3850 = vmatprep.subr.bf16.mxu0 0
    %3851 = vmatpush1.bf16.msra.mxu0 %v3818
    %3852 = vmatprep.subr.bf16.mxu0 0
    %3853 = vmatpush1.bf16.msra.mxu0 %v3817
    %3854 = vmatprep.subr.bf16.mxu0 0
    %3855 = vmatpush1.bf16.msra.mxu0 %v3816
    %3856 = vmatprep.subr.bf16.mxu0 0
    %3857 = vmatpush1.bf16.msra.mxu0 %v3815
    %3858 = vmatprep.subr.bf16.mxu0 0
    %3859 = vmatpush2.bf16.msra.mxu0 0
    %3860 = vmatprep.subr.bf16.mxu0 0
    %3861 = vmatpush2.bf16.msra.mxu0 0
    %3862 = vmatprep.subr.bf16.mxu0 0
    %3863 = vmatpush2.bf16.msra.mxu0 0
    %3864 = vmatprep.subr.bf16.mxu0 0
    %3865 = vmatpush2.bf16.msra.mxu0 0
    %3866 = vmatprep.subr.bf16.mxu0 0
    %3867 = vmatpush2.bf16.msra.mxu0 %v3826
    %3868 = vmatprep.subr.bf16.mxu0 0
    %3869 = vmatpush2.bf16.msra.mxu0 %v3825
    %3870 = vmatprep.subr.bf16.mxu0 0
    %3871 = vmatpush2.bf16.msra.mxu0 %v3824
    %3872 = vmatprep.subr.bf16.mxu0 0
    %3873 = vmatpush2.bf16.msra.mxu0 %v3823
    %3874 = vmatprep.mubr.bf16.mxu0 %v3840
    %3875 = vmatmul.mubr.bf16.gmra.mxu0 %v3740
    %v3876 = vpop.f32.mrf.mxu0
    %v3877 = vadd.f32 0.0, %v3876
    %v3878 = vpop.f32.mrf.mxu0
    %v3879 = vpop.f32.mrf.mxu0
    %v3880 = vpop.f32.mrf.mxu0
    %3881 = vdwg.mxu0
    %v3882 = vmax.f32 %v3693, %v3877
    %s3883 = scalar_lea.vmem [#allocation10], 6
    %v3884 = vld [vmem:[%s3883] sm:$0x3]
    %v3886 = vsel %vm3312, %v3884, 0
    %3888 = vmatprep.subr.bf16.mxu0 0
    %3889 = vmatpush1.bf16.msra.mxu0 0
    %3890 = vmatprep.subr.bf16.mxu0 0
    %3891 = vmatpush1.bf16.msra.mxu0 0
    %3892 = vmatprep.subr.bf16.mxu0 0
    %3893 = vmatpush1.bf16.msra.mxu0 0
    %3894 = vmatprep.subr.bf16.mxu0 0
    %3895 = vmatpush1.bf16.msra.mxu0 0
    %3896 = vmatprep.subr.bf16.mxu0 0
    %3897 = vmatpush1.bf16.msra.mxu0 0
    %3898 = vmatprep.subr.bf16.mxu0 0
    %3899 = vmatpush1.bf16.msra.mxu0 0
    %3900 = vmatprep.subr.bf16.mxu0 0
    %3901 = vmatpush1.bf16.msra.mxu0 0
    %3902 = vmatprep.subr.bf16.mxu0 %v3321
    %3903 = vmatpush1.bf16.msra.mxu0 %v3318
    %3904 = vmatprep.subr.bf16.mxu0 0
    %3905 = vmatpush2.bf16.msra.mxu0 0
    %3906 = vmatprep.subr.bf16.mxu0 0
    %3907 = vmatpush2.bf16.msra.mxu0 0
    %3908 = vmatprep.subr.bf16.mxu0 0
    %3909 = vmatpush2.bf16.msra.mxu0 0
    %3910 = vmatprep.subr.bf16.mxu0 0
    %3911 = vmatpush2.bf16.msra.mxu0 0
    %3912 = vmatprep.subr.bf16.mxu0 0
    %3913 = vmatpush2.bf16.msra.mxu0 0
    %3914 = vmatprep.subr.bf16.mxu0 0
    %3915 = vmatpush2.bf16.msra.mxu0 0
    %3916 = vmatprep.subr.bf16.mxu0 0
    %3917 = vmatpush2.bf16.msra.mxu0 0
    %3918 = vmatprep.subr.bf16.mxu0 0
    %3919 = vmatpush2.bf16.msra.mxu0 0
    %3920 = vmatprep.mubr.bf16.mxu0 0
    %3921 = vmatmul.mubr.bf16.gmra.mxu0 %v3886
    %v3922 = vpop.f32.mrf.mxu0
    %v3923 = vadd.f32 0.0, %v3922
    %v3924 = vpop.f32.mrf.mxu0
    %v3925 = vadd.f32 0.0, %v3924
    %v3926 = vpop.f32.mrf.mxu0
    %v3927 = vpop.f32.mrf.mxu0
    %3928 = vdwg.mxu0
    %v3929 = vpack.c.bf16 %v3923, %v3923
    %v3930 = vpack.c.bf16 %v3925, %v3925
    %s3931 = scalar_lea.vmem %s10, 288
    %v3932 = vld [vmem:[%s3931] sm:$0xf]
    %v3933 = vld [vmem:[%s3931 + $0x4] sm:$0xf]
    %v3934 = vld [vmem:[%s3931 + $0x8] sm:$0xf]
    %v3935 = vld [vmem:[%s3931 + $0xc] sm:$0xf]
    %v3936 = vld [vmem:[%s3931 + $0x10] sm:$0xf]
    %v3937 = vld [vmem:[%s3931 + $0x14] sm:$0xf]
    %v3938 = vld [vmem:[%s3931 + $0x18] sm:$0xf]
    %v3939 = vld [vmem:[%s3931 + $0x1c] sm:$0xf]
    %v3940 = vld [vmem:[%s3931 + $0x20] sm:$0xf]
    %v3941 = vld [vmem:[%s3931 + $0x24] sm:$0xf]
    %v3942 = vld [vmem:[%s3931 + $0x28] sm:$0xf]
    %v3943 = vld [vmem:[%s3931 + $0x2c] sm:$0xf]
    %v3944 = vld [vmem:[%s3931 + $0x30] sm:$0xf]
    %v3945 = vld [vmem:[%s3931 + $0x34] sm:$0xf]
    %v3946 = vld [vmem:[%s3931 + $0x38] sm:$0xf]
    %v3947 = vld [vmem:[%s3931 + $0x3c] sm:$0xf]
    %v3948 = vld [vmem:[%s3931 + $0x40] sm:$0xf]
    %v3949 = vld [vmem:[%s3931 + $0x44] sm:$0xf]
    %v3950 = vld [vmem:[%s3931 + $0x48] sm:$0xf]
    %v3951 = vld [vmem:[%s3931 + $0x4c] sm:$0xf]
    %v3952 = vld [vmem:[%s3931 + $0x50] sm:$0xf]
    %v3953 = vld [vmem:[%s3931 + $0x54] sm:$0xf]
    %v3954 = vld [vmem:[%s3931 + $0x58] sm:$0xf]
    %v3955 = vld [vmem:[%s3931 + $0x5c] sm:$0xf]
    %v3980 = vunpack.c.l.b16 %v3932
    %v3981 = vunpack.c.l.b16 %v3933
    %v3982 = vunpack.c.l.b16 %v3934
    %v3983 = vunpack.c.l.b16 %v3935
    %v3984 = vunpack.c.l.b16 %v3936
    %v3985 = vunpack.c.l.b16 %v3937
    %v3986 = vunpack.c.l.b16 %v3938
    %v3987 = vunpack.c.l.b16 %v3939
    %v3988 = vunpack.c.l.b16 %v3940
    %v3989 = vunpack.c.l.b16 %v3941
    %v3990 = vunpack.c.l.b16 %v3942
    %v3991 = vunpack.c.l.b16 %v3943
    %v3992 = vunpack.c.l.b16 %v3944
    %v3993 = vunpack.c.l.b16 %v3945
    %v3994 = vunpack.c.l.b16 %v3946
    %v3995 = vunpack.c.l.b16 %v3947
    %v3996 = vunpack.c.l.b16 %v3948
    %v3997 = vunpack.c.l.b16 %v3949
    %v3998 = vunpack.c.l.b16 %v3950
    %v3999 = vunpack.c.l.b16 %v3951
    %v4000 = vunpack.c.l.b16 %v3952
    %v4001 = vunpack.c.l.b16 %v3953
    %v4002 = vunpack.c.l.b16 %v3954
    %v4003 = vunpack.c.l.b16 %v3955
    %v4004 = vpack.c.b16 %v3981, %v3980
    %v4005 = vpack.c.b16 %v3983, %v3982
    %v4006 = vpack.c.b16 %v3985, %v3984
    %v4007 = vpack.c.b16 %v3987, %v3986
    %v4008 = vpack.c.b16 %v3989, %v3988
    %v4009 = vpack.c.b16 %v3991, %v3990
    %v4010 = vpack.c.b16 %v3993, %v3992
    %v4011 = vpack.c.b16 %v3995, %v3994
    %v4012 = vpack.c.b16 %v3997, %v3996
    %v4013 = vpack.c.b16 %v3999, %v3998
    %v4014 = vpack.c.b16 %v4001, %v4000
    %v4015 = vpack.c.b16 %v4003, %v4002
    %v4029 = vsel %vm1267, %v3930, 0
    %4031 = vmatprep.subr.bf16.mxu0 0
    %4032 = vmatpush1.bf16.msra.mxu0 %v4011
    %4033 = vmatprep.subr.bf16.mxu0 0
    %4034 = vmatpush1.bf16.msra.mxu0 %v4010
    %4035 = vmatprep.subr.bf16.mxu0 0
    %4036 = vmatpush1.bf16.msra.mxu0 %v4009
    %4037 = vmatprep.subr.bf16.mxu0 0
    %4038 = vmatpush1.bf16.msra.mxu0 %v4008
    %4039 = vmatprep.subr.bf16.mxu0 0
    %4040 = vmatpush1.bf16.msra.mxu0 %v4007
    %4041 = vmatprep.subr.bf16.mxu0 0
    %4042 = vmatpush1.bf16.msra.mxu0 %v4006
    %4043 = vmatprep.subr.bf16.mxu0 0
    %4044 = vmatpush1.bf16.msra.mxu0 %v4005
    %4045 = vmatprep.subr.bf16.mxu0 0
    %4046 = vmatpush1.bf16.msra.mxu0 %v4004
    %4047 = vmatprep.subr.bf16.mxu0 0
    %4048 = vmatpush2.bf16.msra.mxu0 0
    %4049 = vmatprep.subr.bf16.mxu0 0
    %4050 = vmatpush2.bf16.msra.mxu0 0
    %4051 = vmatprep.subr.bf16.mxu0 0
    %4052 = vmatpush2.bf16.msra.mxu0 0
    %4053 = vmatprep.subr.bf16.mxu0 0
    %4054 = vmatpush2.bf16.msra.mxu0 0
    %4055 = vmatprep.subr.bf16.mxu0 0
    %4056 = vmatpush2.bf16.msra.mxu0 %v4015
    %4057 = vmatprep.subr.bf16.mxu0 0
    %4058 = vmatpush2.bf16.msra.mxu0 %v4014
    %4059 = vmatprep.subr.bf16.mxu0 0
    %4060 = vmatpush2.bf16.msra.mxu0 %v4013
    %4061 = vmatprep.subr.bf16.mxu0 0
    %4062 = vmatpush2.bf16.msra.mxu0 %v4012
    %4063 = vmatprep.mubr.bf16.mxu0 %v4029
    %4064 = vmatmul.mubr.bf16.gmra.mxu0 %v3929
    %v4065 = vpop.f32.mrf.mxu0
    %v4066 = vadd.f32 0.0, %v4065
    %v4067 = vpop.f32.mrf.mxu0
    %v4068 = vpop.f32.mrf.mxu0
    %v4069 = vpop.f32.mrf.mxu0
    %4070 = vdwg.mxu0
    %v4071 = vmax.f32 %v3882, %v4066
    %v4072 = vpack.c.bf16 %v4071, %v4071
    %v4073 = vld [vmem:[#allocation11] sm:$0x1]
    %vm4074 = vcmask 31744
    %v4076 = vsel %vm4074, %v4073, 0
    %v4079 = vsel %vm930, %v4072, 0
    %4081 = vmatprep.subr.bf16.mxu0 0
    %4082 = vmatpush1.bf16.msra.mxu0 0
    %4083 = vmatprep.subr.bf16.mxu0 0
    %4084 = vmatpush1.bf16.msra.mxu0 0
    %4085 = vmatprep.subr.bf16.mxu0 0
    %4086 = vmatpush1.bf16.msra.mxu0 0
    %4087 = vmatprep.subr.bf16.mxu0 0
    %4088 = vmatpush1.bf16.msra.mxu0 0
    %4089 = vmatprep.subr.bf16.mxu0 0
    %4090 = vmatpush1.bf16.msra.mxu0 0
    %4091 = vmatprep.subr.bf16.mxu0 0
    %4092 = vmatpush1.bf16.msra.mxu0 0
    %4093 = vmatprep.subr.bf16.mxu0 0
    %4094 = vmatpush1.bf16.msra.mxu0 0
    %4095 = vmatprep.subr.bf16.mxu0 0
    %4096 = vmatpush1.bf16.msra.mxu0 %v4079
    %4097 = vmatprep.subr.bf16.mxu0 0
    %4098 = vmatpush2.bf16.msra.mxu0 0
    %4099 = vmatprep.subr.bf16.mxu0 0
    %4100 = vmatpush2.bf16.msra.mxu0 0
    %4101 = vmatprep.subr.bf16.mxu0 0
    %4102 = vmatpush2.bf16.msra.mxu0 0
    %4103 = vmatprep.subr.bf16.mxu0 0
    %4104 = vmatpush2.bf16.msra.mxu0 0
    %4105 = vmatprep.subr.bf16.mxu0 0
    %4106 = vmatpush2.bf16.msra.mxu0 0
    %4107 = vmatprep.subr.bf16.mxu0 0
    %4108 = vmatpush2.bf16.msra.mxu0 0
    %4109 = vmatprep.subr.bf16.mxu0 0
    %4110 = vmatpush2.bf16.msra.mxu0 0
    %4111 = vmatprep.subr.bf16.mxu0 0
    %4112 = vmatpush2.bf16.msra.mxu0 0
    %4113 = vmatprep.mubr.bf16.mxu0 0
    %4114 = vmatmul.mubr.bf16.gmra.mxu0 %v4076
    %v4115 = vpop.f32.mrf.mxu0
    %v4116 = vadd.f32 0.0, %v4115
    %v4117 = vpop.f32.mrf.mxu0
    %v4118 = vpop.f32.mrf.mxu0
    %v4119 = vpop.f32.mrf.mxu0
    %4120 = vdwg.mxu0
    %v4121 = vpack.c.bf16 %v4116, %v4116
    %v4122 = vld [vmem:[%s12] sm:$0xf]
    %v4123 = vld [vmem:[%s12 + $0x4] sm:$0xf]
    %v4124 = vld [vmem:[%s12 + $0x8] sm:$0xf]
    %v4125 = vld [vmem:[%s12 + $0xc] sm:$0xf]
    %v4126 = vld [vmem:[%s12 + $0x10] sm:$0xf]
    %v4127 = vld [vmem:[%s12 + $0x14] sm:$0xf]
    %v4128 = vld [vmem:[%s12 + $0x18] sm:$0xf]
    %v4129 = vld [vmem:[%s12 + $0x1c] sm:$0xf]
    %v4130 = vld [vmem:[%s12 + $0x20] sm:$0xf]
    %v4131 = vld [vmem:[%s12 + $0x24] sm:$0xf]
    %v4132 = vld [vmem:[%s12 + $0x28] sm:$0xf]
    %v4133 = vld [vmem:[%s12 + $0x2c] sm:$0xf]
    %v4134 = vld [vmem:[%s12 + $0x30] sm:$0xf]
    %v4135 = vld [vmem:[%s12 + $0x34] sm:$0xf]
    %v4136 = vld [vmem:[%s12 + $0x38] sm:$0xf]
    %v4137 = vld [vmem:[%s12 + $0x3c] sm:$0xf]
    %s4138 = scalar_lea.vmem [#allocation11], 1
    %v4139 = vld [vmem:[%s4138] sm:$0x1]
    %v4141 = vsel %vm4074, %v4139, 0
    %4143 = vmatprep.subr.bf16.mxu0 0
    %4144 = vmatpush1.bf16.msra.mxu0 0
    %4145 = vmatprep.subr.bf16.mxu0 0
    %4146 = vmatpush1.bf16.msra.mxu0 0
    %4147 = vmatprep.subr.bf16.mxu0 0
    %4148 = vmatpush1.bf16.msra.mxu0 0
    %4149 = vmatprep.subr.bf16.mxu0 0
    %4150 = vmatpush1.bf16.msra.mxu0 0
    %4151 = vmatprep.subr.bf16.mxu0 0
    %4152 = vmatpush1.bf16.msra.mxu0 0
    %4153 = vmatprep.subr.bf16.mxu0 0
    %4154 = vmatpush1.bf16.msra.mxu0 0
    %4155 = vmatprep.subr.bf16.mxu0 0
    %4156 = vmatpush1.bf16.msra.mxu0 0
    %4157 = vmatprep.subr.bf16.mxu0 0
    %4158 = vmatpush1.bf16.msra.mxu0 %v4079
    %4159 = vmatprep.subr.bf16.mxu0 0
    %4160 = vmatpush2.bf16.msra.mxu0 0
    %4161 = vmatprep.subr.bf16.mxu0 0
    %4162 = vmatpush2.bf16.msra.mxu0 0
    %4163 = vmatprep.subr.bf16.mxu0 0
    %4164 = vmatpush2.bf16.msra.mxu0 0
    %4165 = vmatprep.subr.bf16.mxu0 0
    %4166 = vmatpush2.bf16.msra.mxu0 0
    %4167 = vmatprep.subr.bf16.mxu0 0
    %4168 = vmatpush2.bf16.msra.mxu0 0
    %4169 = vmatprep.subr.bf16.mxu0 0
    %4170 = vmatpush2.bf16.msra.mxu0 0
    %4171 = vmatprep.subr.bf16.mxu0 0
    %4172 = vmatpush2.bf16.msra.mxu0 0
    %4173 = vmatprep.subr.bf16.mxu0 0
    %4174 = vmatpush2.bf16.msra.mxu0 0
    %4175 = vmatprep.mubr.bf16.mxu0 0
    %4176 = vmatmul.mubr.bf16.gmra.mxu0 %v4141
    %v4177 = vpop.f32.mrf.mxu0
    %v4178 = vadd.f32 0.0, %v4177
    %v4179 = vpop.f32.mrf.mxu0
    %v4180 = vpop.f32.mrf.mxu0
    %v4181 = vpop.f32.mrf.mxu0
    %4182 = vdwg.mxu0
    %v4183 = vpack.c.bf16 %v4178, %v4178
    %s4184 = scalar_lea.vmem %s12, 64
    %v4185 = vld [vmem:[%s4184] sm:$0xf]
    %v4186 = vld [vmem:[%s4184 + $0x4] sm:$0xf]
    %v4187 = vld [vmem:[%s4184 + $0x8] sm:$0xf]
    %v4188 = vld [vmem:[%s4184 + $0xc] sm:$0xf]
    %v4189 = vld [vmem:[%s4184 + $0x10] sm:$0xf]
    %v4190 = vld [vmem:[%s4184 + $0x14] sm:$0xf]
    %v4191 = vld [vmem:[%s4184 + $0x18] sm:$0xf]
    %v4192 = vld [vmem:[%s4184 + $0x1c] sm:$0xf]
    %v4193 = vld [vmem:[%s4184 + $0x20] sm:$0xf]
    %v4194 = vld [vmem:[%s4184 + $0x24] sm:$0xf]
    %v4195 = vld [vmem:[%s4184 + $0x28] sm:$0xf]
    %v4196 = vld [vmem:[%s4184 + $0x2c] sm:$0xf]
    %v4197 = vld [vmem:[%s4184 + $0x30] sm:$0xf]
    %v4198 = vld [vmem:[%s4184 + $0x34] sm:$0xf]
    %v4199 = vld [vmem:[%s4184 + $0x38] sm:$0xf]
    %v4200 = vld [vmem:[%s4184 + $0x3c] sm:$0xf]
    %v4217 = vunpack.c.l.b16 %v4185
    %v4218 = vunpack.c.l.b16 %v4186
    %v4219 = vunpack.c.l.b16 %v4187
    %v4220 = vunpack.c.l.b16 %v4188
    %v4221 = vunpack.c.l.b16 %v4189
    %v4222 = vunpack.c.l.b16 %v4190
    %v4223 = vunpack.c.l.b16 %v4191
    %v4224 = vunpack.c.l.b16 %v4192
    %v4225 = vunpack.c.l.b16 %v4193
    %v4226 = vunpack.c.l.b16 %v4194
    %v4227 = vunpack.c.l.b16 %v4195
    %v4228 = vunpack.c.l.b16 %v4196
    %v4229 = vunpack.c.l.b16 %v4197
    %v4230 = vunpack.c.l.b16 %v4198
    %v4231 = vunpack.c.l.b16 %v4199
    %v4232 = vunpack.c.l.b16 %v4200
    %v4233 = vpack.c.b16 %v4218, %v4217
    %v4234 = vpack.c.b16 %v4220, %v4219
    %v4235 = vpack.c.b16 %v4222, %v4221
    %v4236 = vpack.c.b16 %v4224, %v4223
    %v4237 = vpack.c.b16 %v4226, %v4225
    %v4238 = vpack.c.b16 %v4228, %v4227
    %v4239 = vpack.c.b16 %v4230, %v4229
    %v4240 = vpack.c.b16 %v4232, %v4231
    %4249 = vmatprep.subr.bf16.mxu0 0
    %4250 = vmatpush1.bf16.msra.mxu0 %v4240
    %4251 = vmatprep.subr.bf16.mxu0 0
    %4252 = vmatpush1.bf16.msra.mxu0 %v4239
    %4253 = vmatprep.subr.bf16.mxu0 0
    %4254 = vmatpush1.bf16.msra.mxu0 %v4238
    %4255 = vmatprep.subr.bf16.mxu0 0
    %4256 = vmatpush1.bf16.msra.mxu0 %v4237
    %4257 = vmatprep.subr.bf16.mxu0 0
    %4258 = vmatpush1.bf16.msra.mxu0 %v4236
    %4259 = vmatprep.subr.bf16.mxu0 0
    %4260 = vmatpush1.bf16.msra.mxu0 %v4235
    %4261 = vmatprep.subr.bf16.mxu0 0
    %4262 = vmatpush1.bf16.msra.mxu0 %v4234
    %4263 = vmatprep.subr.bf16.mxu0 0
    %4264 = vmatpush1.bf16.msra.mxu0 %v4233
    %4265 = vmatprep.subr.bf16.mxu0 0
    %4266 = vmatpush2.bf16.msra.mxu0 0
    %4267 = vmatprep.subr.bf16.mxu0 0
    %4268 = vmatpush2.bf16.msra.mxu0 0
    %4269 = vmatprep.subr.bf16.mxu0 0
    %4270 = vmatpush2.bf16.msra.mxu0 0
    %4271 = vmatprep.subr.bf16.mxu0 0
    %4272 = vmatpush2.bf16.msra.mxu0 0
    %4273 = vmatprep.subr.bf16.mxu0 0
    %4274 = vmatpush2.bf16.msra.mxu0 0
    %4275 = vmatprep.subr.bf16.mxu0 0
    %4276 = vmatpush2.bf16.msra.mxu0 0
    %4277 = vmatprep.subr.bf16.mxu0 0
    %4278 = vmatpush2.bf16.msra.mxu0 0
    %4279 = vmatprep.subr.bf16.mxu0 0
    %4280 = vmatpush2.bf16.msra.mxu0 0
    %4281 = vmatprep.mubr.bf16.mxu0 0
    %4282 = vmatmul.mubr.bf16.gmra.mxu0 %v4183
    %v4283 = vpop.f32.mrf.mxu0
    %v4284 = vadd.f32 0.0, %v4283
    %v4285 = vpop.f32.mrf.mxu0
    %v4286 = vpop.f32.mrf.mxu0
    %v4287 = vpop.f32.mrf.mxu0
    %4288 = vdwg.mxu0
    %v4305 = vunpack.c.l.b16 %v4122
    %v4306 = vunpack.c.l.b16 %v4123
    %v4307 = vunpack.c.l.b16 %v4124
    %v4308 = vunpack.c.l.b16 %v4125
    %v4309 = vunpack.c.l.b16 %v4126
    %v4310 = vunpack.c.l.b16 %v4127
    %v4311 = vunpack.c.l.b16 %v4128
    %v4312 = vunpack.c.l.b16 %v4129
    %v4313 = vunpack.c.l.b16 %v4130
    %v4314 = vunpack.c.l.b16 %v4131
    %v4315 = vunpack.c.l.b16 %v4132
    %v4316 = vunpack.c.l.b16 %v4133
    %v4317 = vunpack.c.l.b16 %v4134
    %v4318 = vunpack.c.l.b16 %v4135
    %v4319 = vunpack.c.l.b16 %v4136
    %v4320 = vunpack.c.l.b16 %v4137
    %v4321 = vpack.c.b16 %v4306, %v4305
    %v4322 = vpack.c.b16 %v4308, %v4307
    %v4323 = vpack.c.b16 %v4310, %v4309
    %v4324 = vpack.c.b16 %v4312, %v4311
    %v4325 = vpack.c.b16 %v4314, %v4313
    %v4326 = vpack.c.b16 %v4316, %v4315
    %v4327 = vpack.c.b16 %v4318, %v4317
    %v4328 = vpack.c.b16 %v4320, %v4319
    %4337 = vmatprep.subr.bf16.mxu0 0
    %4338 = vmatpush1.bf16.msra.mxu0 %v4328
    %4339 = vmatprep.subr.bf16.mxu0 0
    %4340 = vmatpush1.bf16.msra.mxu0 %v4327
    %4341 = vmatprep.subr.bf16.mxu0 0
    %4342 = vmatpush1.bf16.msra.mxu0 %v4326
    %4343 = vmatprep.subr.bf16.mxu0 0
    %4344 = vmatpush1.bf16.msra.mxu0 %v4325
    %4345 = vmatprep.subr.bf16.mxu0 0
    %4346 = vmatpush1.bf16.msra.mxu0 %v4324
    %4347 = vmatprep.subr.bf16.mxu0 0
    %4348 = vmatpush1.bf16.msra.mxu0 %v4323
    %4349 = vmatprep.subr.bf16.mxu0 0
    %4350 = vmatpush1.bf16.msra.mxu0 %v4322
    %4351 = vmatprep.subr.bf16.mxu0 0
    %4352 = vmatpush1.bf16.msra.mxu0 %v4321
    %4353 = vmatprep.subr.bf16.mxu0 0
    %4354 = vmatpush2.bf16.msra.mxu0 0
    %4355 = vmatprep.subr.bf16.mxu0 0
    %4356 = vmatpush2.bf16.msra.mxu0 0
    %4357 = vmatprep.subr.bf16.mxu0 0
    %4358 = vmatpush2.bf16.msra.mxu0 0
    %4359 = vmatprep.subr.bf16.mxu0 0
    %4360 = vmatpush2.bf16.msra.mxu0 0
    %4361 = vmatprep.subr.bf16.mxu0 0
    %4362 = vmatpush2.bf16.msra.mxu0 0
    %4363 = vmatprep.subr.bf16.mxu0 0
    %4364 = vmatpush2.bf16.msra.mxu0 0
    %4365 = vmatprep.subr.bf16.mxu0 0
    %4366 = vmatpush2.bf16.msra.mxu0 0
    %4367 = vmatprep.subr.bf16.mxu0 0
    %4368 = vmatpush2.bf16.msra.mxu0 0
    %4369 = vmatprep.mubr.bf16.mxu0 0
    %4370 = vmatmul.mubr.bf16.gmra.mxu0 %v4121
    %v4371 = vpop.f32.mrf.mxu0
    %v4372 = vadd.f32 %v4284, %v4371
    %v4373 = vpop.f32.mrf.mxu0
    %v4374 = vpop.f32.mrf.mxu0
    %v4375 = vpop.f32.mrf.mxu0
    %4376 = vdwg.mxu0
    %v4377 = vld [vmem:[#allocation13] sm:$0x3]
    %v4378 = vadd.f32 %v4372, %v4377
    %v4379 = vpack.c.bf16 %v4378, %v4378
    %v4380 = vld [vmem:[%s14] sm:$0x3]
    %vm4381 = vcmask 15360
    %v4383 = vsel %vm4381, %v4380, 0
    %vm4385 = vcmask 1040384
    %v4387 = vsel %vm4385, %v4379, 0
    %4389 = vmatprep.subr.bf16.mxu0 0
    %4390 = vmatpush1.bf16.msra.mxu0 0
    %4391 = vmatprep.subr.bf16.mxu0 0
    %4392 = vmatpush1.bf16.msra.mxu0 0
    %4393 = vmatprep.subr.bf16.mxu0 0
    %4394 = vmatpush1.bf16.msra.mxu0 0
    %4395 = vmatprep.subr.bf16.mxu0 0
    %4396 = vmatpush1.bf16.msra.mxu0 0
    %4397 = vmatprep.subr.bf16.mxu0 0
    %4398 = vmatpush1.bf16.msra.mxu0 0
    %4399 = vmatprep.subr.bf16.mxu0 0
    %4400 = vmatpush1.bf16.msra.mxu0 0
    %4401 = vmatprep.subr.bf16.mxu0 0
    %4402 = vmatpush1.bf16.msra.mxu0 0
    %4403 = vmatprep.subr.bf16.mxu0 0
    %4404 = vmatpush1.bf16.msra.mxu0 %v4387
    %4405 = vmatprep.subr.bf16.mxu0 0
    %4406 = vmatpush2.bf16.msra.mxu0 0
    %4407 = vmatprep.subr.bf16.mxu0 0
    %4408 = vmatpush2.bf16.msra.mxu0 0
    %4409 = vmatprep.subr.bf16.mxu0 0
    %4410 = vmatpush2.bf16.msra.mxu0 0
    %4411 = vmatprep.subr.bf16.mxu0 0
    %4412 = vmatpush2.bf16.msra.mxu0 0
    %4413 = vmatprep.subr.bf16.mxu0 0
    %4414 = vmatpush2.bf16.msra.mxu0 0
    %4415 = vmatprep.subr.bf16.mxu0 0
    %4416 = vmatpush2.bf16.msra.mxu0 0
    %4417 = vmatprep.subr.bf16.mxu0 0
    %4418 = vmatpush2.bf16.msra.mxu0 0
    %4419 = vmatprep.subr.bf16.mxu0 0
    %4420 = vmatpush2.bf16.msra.mxu0 0
    %4421 = vmatprep.mubr.bf16.mxu0 0
    %4422 = vmatmul.mubr.bf16.gmra.mxu0 %v4383
    %v4423 = vpop.f32.mrf.mxu0
    %v4424 = vadd.f32 0.0, %v4423
    %v4425 = vpop.f32.mrf.mxu0
    %v4426 = vpop.f32.mrf.mxu0
    %v4427 = vpop.f32.mrf.mxu0
    %4428 = vdwg.mxu0
    %v4429 = vpack.c.bf16 %v4424, %v4424
    %v4430 = vld [vmem:[#allocation14] sm:$0xf]
    %v4431 = vld [vmem:[#allocation14 + $0x4] sm:$0xf]
    %s4432 = scalar_lea.vmem %s14, 2
    %v4433 = vld [vmem:[%s4432] sm:$0x3]
    %v4435 = vsel %vm4381, %v4433, 0
    %4437 = vmatprep.subr.bf16.mxu0 0
    %4438 = vmatpush1.bf16.msra.mxu0 0
    %4439 = vmatprep.subr.bf16.mxu0 0
    %4440 = vmatpush1.bf16.msra.mxu0 0
    %4441 = vmatprep.subr.bf16.mxu0 0
    %4442 = vmatpush1.bf16.msra.mxu0 0
    %4443 = vmatprep.subr.bf16.mxu0 0
    %4444 = vmatpush1.bf16.msra.mxu0 0
    %4445 = vmatprep.subr.bf16.mxu0 0
    %4446 = vmatpush1.bf16.msra.mxu0 0
    %4447 = vmatprep.subr.bf16.mxu0 0
    %4448 = vmatpush1.bf16.msra.mxu0 0
    %4449 = vmatprep.subr.bf16.mxu0 0
    %4450 = vmatpush1.bf16.msra.mxu0 0
    %4451 = vmatprep.subr.bf16.mxu0 0
    %4452 = vmatpush1.bf16.msra.mxu0 %v4387
    %4453 = vmatprep.subr.bf16.mxu0 0
    %4454 = vmatpush2.bf16.msra.mxu0 0
    %4455 = vmatprep.subr.bf16.mxu0 0
    %4456 = vmatpush2.bf16.msra.mxu0 0
    %4457 = vmatprep.subr.bf16.mxu0 0
    %4458 = vmatpush2.bf16.msra.mxu0 0
    %4459 = vmatprep.subr.bf16.mxu0 0
    %4460 = vmatpush2.bf16.msra.mxu0 0
    %4461 = vmatprep.subr.bf16.mxu0 0
    %4462 = vmatpush2.bf16.msra.mxu0 0
    %4463 = vmatprep.subr.bf16.mxu0 0
    %4464 = vmatpush2.bf16.msra.mxu0 0
    %4465 = vmatprep.subr.bf16.mxu0 0
    %4466 = vmatpush2.bf16.msra.mxu0 0
    %4467 = vmatprep.subr.bf16.mxu0 0
    %4468 = vmatpush2.bf16.msra.mxu0 0
    %4469 = vmatprep.mubr.bf16.mxu0 0
    %4470 = vmatmul.mubr.bf16.gmra.mxu0 %v4435
    %v4471 = vpop.f32.mrf.mxu0
    %v4472 = vadd.f32 0.0, %v4471
    %v4473 = vpop.f32.mrf.mxu0
    %v4474 = vpop.f32.mrf.mxu0
    %v4475 = vpop.f32.mrf.mxu0
    %4476 = vdwg.mxu0
    %v4477 = vpack.c.bf16 %v4472, %v4472
    %s4478 = scalar_lea.vmem [#allocation14], 8
    %v4479 = vld [vmem:[%s4478] sm:$0xf]
    %v4480 = vld [vmem:[%s4478 + $0x4] sm:$0xf]
    %v4483 = vunpack.c.l.b16 %v4479
    %v4484 = vunpack.c.l.b16 %v4480
    %v4485 = vpack.c.b16 %v4484, %v4483
    %vm4487 = vcmask 130048
    %v4489 = vsel %vm4487, %v4477, 0
    %4491 = vmatprep.subr.bf16.mxu0 0
    %4492 = vmatpush1.bf16.msra.mxu0 0
    %4493 = vmatprep.subr.bf16.mxu0 0
    %4494 = vmatpush1.bf16.msra.mxu0 0
    %4495 = vmatprep.subr.bf16.mxu0 0
    %4496 = vmatpush1.bf16.msra.mxu0 0
    %4497 = vmatprep.subr.bf16.mxu0 0
    %4498 = vmatpush1.bf16.msra.mxu0 0
    %4499 = vmatprep.subr.bf16.mxu0 0
    %4500 = vmatpush1.bf16.msra.mxu0 0
    %4501 = vmatprep.subr.bf16.mxu0 0
    %4502 = vmatpush1.bf16.msra.mxu0 0
    %4503 = vmatprep.subr.bf16.mxu0 0
    %4504 = vmatpush1.bf16.msra.mxu0 0
    %4505 = vmatprep.subr.bf16.mxu0 0
    %4506 = vmatpush1.bf16.msra.mxu0 %v4485
    %4507 = vmatprep.subr.bf16.mxu0 0
    %4508 = vmatpush2.bf16.msra.mxu0 0
    %4509 = vmatprep.subr.bf16.mxu0 0
    %4510 = vmatpush2.bf16.msra.mxu0 0
    %4511 = vmatprep.subr.bf16.mxu0 0
    %4512 = vmatpush2.bf16.msra.mxu0 0
    %4513 = vmatprep.subr.bf16.mxu0 0
    %4514 = vmatpush2.bf16.msra.mxu0 0
    %4515 = vmatprep.subr.bf16.mxu0 0
    %4516 = vmatpush2.bf16.msra.mxu0 0
    %4517 = vmatprep.subr.bf16.mxu0 0
    %4518 = vmatpush2.bf16.msra.mxu0 0
    %4519 = vmatprep.subr.bf16.mxu0 0
    %4520 = vmatpush2.bf16.msra.mxu0 0
    %4521 = vmatprep.subr.bf16.mxu0 0
    %4522 = vmatpush2.bf16.msra.mxu0 0
    %4523 = vmatprep.mubr.bf16.mxu0 0
    %4524 = vmatmul.mubr.bf16.gmra.mxu0 %v4489
    %v4525 = vpop.f32.mrf.mxu0
    %v4526 = vadd.f32 0.0, %v4525
    %v4527 = vpop.f32.mrf.mxu0
    %v4528 = vpop.f32.mrf.mxu0
    %v4529 = vpop.f32.mrf.mxu0
    %4530 = vdwg.mxu0
    %v4533 = vunpack.c.l.b16 %v4430
    %v4534 = vunpack.c.l.b16 %v4431
    %v4535 = vpack.c.b16 %v4534, %v4533
    %v4538 = vsel %vm4487, %v4429, 0
    %4540 = vmatprep.subr.bf16.mxu0 0
    %4541 = vmatpush1.bf16.msra.mxu0 0
    %4542 = vmatprep.subr.bf16.mxu0 0
    %4543 = vmatpush1.bf16.msra.mxu0 0
    %4544 = vmatprep.subr.bf16.mxu0 0
    %4545 = vmatpush1.bf16.msra.mxu0 0
    %4546 = vmatprep.subr.bf16.mxu0 0
    %4547 = vmatpush1.bf16.msra.mxu0 0
    %4548 = vmatprep.subr.bf16.mxu0 0
    %4549 = vmatpush1.bf16.msra.mxu0 0
    %4550 = vmatprep.subr.bf16.mxu0 0
    %4551 = vmatpush1.bf16.msra.mxu0 0
    %4552 = vmatprep.subr.bf16.mxu0 0
    %4553 = vmatpush1.bf16.msra.mxu0 0
    %4554 = vmatprep.subr.bf16.mxu0 0
    %4555 = vmatpush1.bf16.msra.mxu0 %v4535
    %4556 = vmatprep.subr.bf16.mxu0 0
    %4557 = vmatpush2.bf16.msra.mxu0 0
    %4558 = vmatprep.subr.bf16.mxu0 0
    %4559 = vmatpush2.bf16.msra.mxu0 0
    %4560 = vmatprep.subr.bf16.mxu0 0
    %4561 = vmatpush2.bf16.msra.mxu0 0
    %4562 = vmatprep.subr.bf16.mxu0 0
    %4563 = vmatpush2.bf16.msra.mxu0 0
    %4564 = vmatprep.subr.bf16.mxu0 0
    %4565 = vmatpush2.bf16.msra.mxu0 0
    %4566 = vmatprep.subr.bf16.mxu0 0
    %4567 = vmatpush2.bf16.msra.mxu0 0
    %4568 = vmatprep.subr.bf16.mxu0 0
    %4569 = vmatpush2.bf16.msra.mxu0 0
    %4570 = vmatprep.subr.bf16.mxu0 0
    %4571 = vmatpush2.bf16.msra.mxu0 0
    %4572 = vmatprep.mubr.bf16.mxu0 0
    %4573 = vmatmul.mubr.bf16.gmra.mxu0 %v4538
    %v4574 = vpop.f32.mrf.mxu0
    %v4575 = vadd.f32 %v4526, %v4574
    %v4576 = vpop.f32.mrf.mxu0
    %v4577 = vpop.f32.mrf.mxu0
    %v4578 = vpop.f32.mrf.mxu0
    %4579 = vdwg.mxu0
    %v4580 = vld [vmem:[#allocation16] sm:$0xf]
    %v4581 = vadd.f32 %v4575, %v4580
    %v4582 = vmax.f32 %v4581, 0.0
    %v4583 = vpack.c.bf16 %v4582, %v4582
    %v4584 = vld [vmem:[%s17] sm:$0xf]
    %v4585 = vld [vmem:[%s17 + $0x4] sm:$0x1]
    %v4588 = vunpack.c.l.b16 %v4584
    %v4589 = vunpack.c.l.b16 %v4585
    %v4590 = vpack.c.b16 %v4589, %v4588
    %v4592 = vsel %vm4074, %v4590, 0
    %v4595 = vsel %vm930, %v4583, 0
    %4597 = vmatprep.subr.bf16.mxu0 0
    %4598 = vmatpush1.bf16.msra.mxu0 0
    %4599 = vmatprep.subr.bf16.mxu0 0
    %4600 = vmatpush1.bf16.msra.mxu0 0
    %4601 = vmatprep.subr.bf16.mxu0 0
    %4602 = vmatpush1.bf16.msra.mxu0 0
    %4603 = vmatprep.subr.bf16.mxu0 0
    %4604 = vmatpush1.bf16.msra.mxu0 0
    %4605 = vmatprep.subr.bf16.mxu0 0
    %4606 = vmatpush1.bf16.msra.mxu0 0
    %4607 = vmatprep.subr.bf16.mxu0 0
    %4608 = vmatpush1.bf16.msra.mxu0 0
    %4609 = vmatprep.subr.bf16.mxu0 0
    %4610 = vmatpush1.bf16.msra.mxu0 0
    %4611 = vmatprep.subr.bf16.mxu0 0
    %4612 = vmatpush1.bf16.msra.mxu0 %v4595
    %4613 = vmatprep.subr.bf16.mxu0 0
    %4614 = vmatpush2.bf16.msra.mxu0 0
    %4615 = vmatprep.subr.bf16.mxu0 0
    %4616 = vmatpush2.bf16.msra.mxu0 0
    %4617 = vmatprep.subr.bf16.mxu0 0
    %4618 = vmatpush2.bf16.msra.mxu0 0
    %4619 = vmatprep.subr.bf16.mxu0 0
    %4620 = vmatpush2.bf16.msra.mxu0 0
    %4621 = vmatprep.subr.bf16.mxu0 0
    %4622 = vmatpush2.bf16.msra.mxu0 0
    %4623 = vmatprep.subr.bf16.mxu0 0
    %4624 = vmatpush2.bf16.msra.mxu0 0
    %4625 = vmatprep.subr.bf16.mxu0 0
    %4626 = vmatpush2.bf16.msra.mxu0 0
    %4627 = vmatprep.subr.bf16.mxu0 0
    %4628 = vmatpush2.bf16.msra.mxu0 0
    %4629 = vmatprep.mubr.bf16.mxu0 0
    %4630 = vmatmul.mubr.bf16.gmra.mxu0 %v4592
    %v4631 = vpop.f32.mrf.mxu0
    %v4632 = vadd.f32 0.0, %v4631
    %v4633 = vpop.f32.mrf.mxu0
    %v4634 = vpop.f32.mrf.mxu0
    %v4635 = vadd.f32 0.0, %v4634
    %v4636 = vpop.f32.mrf.mxu0
    %4637 = vdwg.mxu0
    %v4638 = vpack.c.bf16 %v4635, %v4632
    %v4639 = vld [vmem:[%s18] sm:$0xff]
    %v4640 = vld [vmem:[%s18 + $0x8] sm:$0xf]
    %v4641 = vld [vmem:[%s18 + $0xc] sm:$0xff]
    %v4642 = vld [vmem:[%s18 + $0x14] sm:$0xf]
    %v4643 = vld [vmem:[%s18 + $0x18] sm:$0xff]
    %v4644 = vld [vmem:[%s18 + $0x20] sm:$0xf]
    %v4645 = vld [vmem:[%s18 + $0x24] sm:$0xff]
    %v4646 = vld [vmem:[%s18 + $0x2c] sm:$0xf]
    %v4647 = vld [vmem:[%s18 + $0x30] sm:$0xff]
    %v4648 = vld [vmem:[%s18 + $0x38] sm:$0xf]
    %v4649 = vld [vmem:[%s18 + $0x3c] sm:$0xff]
    %v4650 = vld [vmem:[%s18 + $0x44] sm:$0xf]
    %v4651 = vld [vmem:[%s18 + $0x48] sm:$0xff]
    %v4652 = vld [vmem:[%s18 + $0x50] sm:$0xf]
    %v4653 = vld [vmem:[%s18 + $0x54] sm:$0xff]
    %v4654 = vld [vmem:[%s18 + $0x5c] sm:$0xf]
    %v4655 = vld [vmem:[%s18 + $0x60] sm:$0xff]
    %v4656 = vld [vmem:[%s18 + $0x68] sm:$0xf]
    %v4657 = vld [vmem:[%s18 + $0x6c] sm:$0xff]
    %v4658 = vld [vmem:[%s18 + $0x74] sm:$0xf]
    %v4659 = vld [vmem:[%s18 + $0x78] sm:$0xff]
    %v4660 = vld [vmem:[%s18 + $0x80] sm:$0xf]
    %v4661 = vld [vmem:[%s18 + $0x84] sm:$0xff]
    %v4662 = vld [vmem:[%s18 + $0x8c] sm:$0xf]
    %v4663 = vld [vmem:[%s18 + $0x90] sm:$0xff]
    %v4664 = vld [vmem:[%s18 + $0x98] sm:$0xf]
    %v4665 = vld [vmem:[%s18 + $0x9c] sm:$0xff]
    %v4666 = vld [vmem:[%s18 + $0xa4] sm:$0xf]
    %v4667 = vld [vmem:[%s18 + $0xa8] sm:$0xff]
    %v4668 = vld [vmem:[%s18 + $0xb0] sm:$0xf]
    %v4669 = vld [vmem:[%s18 + $0xb4] sm:$0xff]
    %v4670 = vld [vmem:[%s18 + $0xbc] sm:$0xf]
    %s4671 = scalar_lea.vmem %s17, 8
    %v4672 = vld [vmem:[%s4671] sm:$0xf]
    %v4673 = vld [vmem:[%s4671 + $0x4] sm:$0x1]
    %v4676 = vunpack.c.l.b16 %v4672
    %v4677 = vunpack.c.l.b16 %v4673
    %v4678 = vpack.c.b16 %v4677, %v4676
    %v4680 = vsel %vm4074, %v4678, 0
    %4682 = vmatprep.subr.bf16.mxu0 0
    %4683 = vmatpush1.bf16.msra.mxu0 0
    %4684 = vmatprep.subr.bf16.mxu0 0
    %4685 = vmatpush1.bf16.msra.mxu0 0
    %4686 = vmatprep.subr.bf16.mxu0 0
    %4687 = vmatpush1.bf16.msra.mxu0 0
    %4688 = vmatprep.subr.bf16.mxu0 0
    %4689 = vmatpush1.bf16.msra.mxu0 0
    %4690 = vmatprep.subr.bf16.mxu0 0
    %4691 = vmatpush1.bf16.msra.mxu0 0
    %4692 = vmatprep.subr.bf16.mxu0 0
    %4693 = vmatpush1.bf16.msra.mxu0 0
    %4694 = vmatprep.subr.bf16.mxu0 0
    %4695 = vmatpush1.bf16.msra.mxu0 0
    %4696 = vmatprep.subr.bf16.mxu0 0
    %4697 = vmatpush1.bf16.msra.mxu0 %v4595
    %4698 = vmatprep.subr.bf16.mxu0 0
    %4699 = vmatpush2.bf16.msra.mxu0 0
    %4700 = vmatprep.subr.bf16.mxu0 0
    %4701 = vmatpush2.bf16.msra.mxu0 0
    %4702 = vmatprep.subr.bf16.mxu0 0
    %4703 = vmatpush2.bf16.msra.mxu0 0
    %4704 = vmatprep.subr.bf16.mxu0 0
    %4705 = vmatpush2.bf16.msra.mxu0 0
    %4706 = vmatprep.subr.bf16.mxu0 0
    %4707 = vmatpush2.bf16.msra.mxu0 0
    %4708 = vmatprep.subr.bf16.mxu0 0
    %4709 = vmatpush2.bf16.msra.mxu0 0
    %4710 = vmatprep.subr.bf16.mxu0 0
    %4711 = vmatpush2.bf16.msra.mxu0 0
    %4712 = vmatprep.subr.bf16.mxu0 0
    %4713 = vmatpush2.bf16.msra.mxu0 0
    %4714 = vmatprep.mubr.bf16.mxu0 0
    %4715 = vmatmul.mubr.bf16.gmra.mxu0 %v4680
    %v4716 = vpop.f32.mrf.mxu0
    %v4717 = vadd.f32 0.0, %v4716
    %v4718 = vpop.f32.mrf.mxu0
    %v4719 = vpop.f32.mrf.mxu0
    %v4720 = vadd.f32 0.0, %v4719
    %v4721 = vpop.f32.mrf.mxu0
    %4722 = vdwg.mxu0
    %v4723 = vpack.c.bf16 %v4720, %v4717
    %s4724 = scalar_lea.vmem %s18, 192
    %v4725 = vld [vmem:[%s4724] sm:$0xff]
    %v4726 = vld [vmem:[%s4724 + $0x8] sm:$0xf]
    %v4727 = vld [vmem:[%s4724 + $0xc] sm:$0xff]
    %v4728 = vld [vmem:[%s4724 + $0x14] sm:$0xf]
    %v4729 = vld [vmem:[%s4724 + $0x18] sm:$0xff]
    %v4730 = vld [vmem:[%s4724 + $0x20] sm:$0xf]
    %v4731 = vld [vmem:[%s4724 + $0x24] sm:$0xff]
    %v4732 = vld [vmem:[%s4724 + $0x2c] sm:$0xf]
    %v4733 = vld [vmem:[%s4724 + $0x30] sm:$0xff]
    %v4734 = vld [vmem:[%s4724 + $0x38] sm:$0xf]
    %v4735 = vld [vmem:[%s4724 + $0x3c] sm:$0xff]
    %v4736 = vld [vmem:[%s4724 + $0x44] sm:$0xf]
    %v4737 = vld [vmem:[%s4724 + $0x48] sm:$0xff]
    %v4738 = vld [vmem:[%s4724 + $0x50] sm:$0xf]
    %v4739 = vld [vmem:[%s4724 + $0x54] sm:$0xff]
    %v4740 = vld [vmem:[%s4724 + $0x5c] sm:$0xf]
    %v4741 = vld [vmem:[%s4724 + $0x60] sm:$0xff]
    %v4742 = vld [vmem:[%s4724 + $0x68] sm:$0xf]
    %v4743 = vld [vmem:[%s4724 + $0x6c] sm:$0xff]
    %v4744 = vld [vmem:[%s4724 + $0x74] sm:$0xf]
    %v4745 = vld [vmem:[%s4724 + $0x78] sm:$0xff]
    %v4746 = vld [vmem:[%s4724 + $0x80] sm:$0xf]
    %v4747 = vld [vmem:[%s4724 + $0x84] sm:$0xff]
    %v4748 = vld [vmem:[%s4724 + $0x8c] sm:$0xf]
    %v4749 = vld [vmem:[%s4724 + $0x90] sm:$0xff]
    %v4750 = vld [vmem:[%s4724 + $0x98] sm:$0xf]
    %v4751 = vld [vmem:[%s4724 + $0x9c] sm:$0xff]
    %v4752 = vld [vmem:[%s4724 + $0xa4] sm:$0xf]
    %v4753 = vld [vmem:[%s4724 + $0xa8] sm:$0xff]
    %v4754 = vld [vmem:[%s4724 + $0xb0] sm:$0xf]
    %v4755 = vld [vmem:[%s4724 + $0xb4] sm:$0xff]
    %v4756 = vld [vmem:[%s4724 + $0xbc] sm:$0xf]
    %v4789 = vunpack.c.l.b16 %v4725
    %v4790 = vunpack.c.h.b16 %v4725
    %v4791 = vunpack.c.l.b16 %v4726
    %v4792 = vunpack.c.l.b16 %v4727
    %v4793 = vunpack.c.h.b16 %v4727
    %v4794 = vunpack.c.l.b16 %v4728
    %v4795 = vunpack.c.l.b16 %v4729
    %v4796 = vunpack.c.h.b16 %v4729
    %v4797 = vunpack.c.l.b16 %v4730
    %v4798 = vunpack.c.l.b16 %v4731
    %v4799 = vunpack.c.h.b16 %v4731
    %v4800 = vunpack.c.l.b16 %v4732
    %v4801 = vunpack.c.l.b16 %v4733
    %v4802 = vunpack.c.h.b16 %v4733
    %v4803 = vunpack.c.l.b16 %v4734
    %v4804 = vunpack.c.l.b16 %v4735
    %v4805 = vunpack.c.h.b16 %v4735
    %v4806 = vunpack.c.l.b16 %v4736
    %v4807 = vunpack.c.l.b16 %v4737
    %v4808 = vunpack.c.h.b16 %v4737
    %v4809 = vunpack.c.l.b16 %v4738
    %v4810 = vunpack.c.l.b16 %v4739
    %v4811 = vunpack.c.h.b16 %v4739
    %v4812 = vunpack.c.l.b16 %v4740
    %v4813 = vunpack.c.l.b16 %v4741
    %v4814 = vunpack.c.h.b16 %v4741
    %v4815 = vunpack.c.l.b16 %v4742
    %v4816 = vunpack.c.l.b16 %v4743
    %v4817 = vunpack.c.h.b16 %v4743
    %v4818 = vunpack.c.l.b16 %v4744
    %v4819 = vunpack.c.l.b16 %v4745
    %v4820 = vunpack.c.h.b16 %v4745
    %v4821 = vunpack.c.l.b16 %v4746
    %v4822 = vunpack.c.l.b16 %v4747
    %v4823 = vunpack.c.h.b16 %v4747
    %v4824 = vunpack.c.l.b16 %v4748
    %v4825 = vunpack.c.l.b16 %v4749
    %v4826 = vunpack.c.h.b16 %v4749
    %v4827 = vunpack.c.l.b16 %v4750
    %v4828 = vunpack.c.l.b16 %v4751
    %v4829 = vunpack.c.h.b16 %v4751
    %v4830 = vunpack.c.l.b16 %v4752
    %v4831 = vunpack.c.l.b16 %v4753
    %v4832 = vunpack.c.h.b16 %v4753
    %v4833 = vunpack.c.l.b16 %v4754
    %v4834 = vunpack.c.l.b16 %v4755
    %v4835 = vunpack.c.h.b16 %v4755
    %v4836 = vunpack.c.l.b16 %v4756
    %v4837 = vpack.c.b16 %v4792, %v4789
    %v4838 = vpack.c.b16 %v4793, %v4790
    %v4839 = vpack.c.b16 %v4794, %v4791
    %v4840 = vpack.c.b16 %v4798, %v4795
    %v4841 = vpack.c.b16 %v4799, %v4796
    %v4842 = vpack.c.b16 %v4800, %v4797
    %v4843 = vpack.c.b16 %v4804, %v4801
    %v4844 = vpack.c.b16 %v4805, %v4802
    %v4845 = vpack.c.b16 %v4806, %v4803
    %v4846 = vpack.c.b16 %v4810, %v4807
    %v4847 = vpack.c.b16 %v4811, %v4808
    %v4848 = vpack.c.b16 %v4812, %v4809
    %v4849 = vpack.c.b16 %v4816, %v4813
    %v4850 = vpack.c.b16 %v4817, %v4814
    %v4851 = vpack.c.b16 %v4818, %v4815
    %v4852 = vpack.c.b16 %v4822, %v4819
    %v4853 = vpack.c.b16 %v4823, %v4820
    %v4854 = vpack.c.b16 %v4824, %v4821
    %v4855 = vpack.c.b16 %v4828, %v4825
    %v4856 = vpack.c.b16 %v4829, %v4826
    %v4857 = vpack.c.b16 %v4830, %v4827
    %v4858 = vpack.c.b16 %v4834, %v4831
    %v4859 = vpack.c.b16 %v4835, %v4832
    %v4860 = vpack.c.b16 %v4836, %v4833
    %4885 = vmatprep.subr.bf16.mxu0 %v4859
    %4886 = vmatpush1.bf16.msra.mxu0 %v4858
    %4887 = vmatprep.subr.bf16.mxu0 %v4856
    %4888 = vmatpush1.bf16.msra.mxu0 %v4855
    %4889 = vmatprep.subr.bf16.mxu0 %v4853
    %4890 = vmatpush1.bf16.msra.mxu0 %v4852
    %4891 = vmatprep.subr.bf16.mxu0 %v4850
    %4892 = vmatpush1.bf16.msra.mxu0 %v4849
    %4893 = vmatprep.subr.bf16.mxu0 %v4847
    %4894 = vmatpush1.bf16.msra.mxu0 %v4846
    %4895 = vmatprep.subr.bf16.mxu0 %v4844
    %4896 = vmatpush1.bf16.msra.mxu0 %v4843
    %4897 = vmatprep.subr.bf16.mxu0 %v4841
    %4898 = vmatpush1.bf16.msra.mxu0 %v4840
    %4899 = vmatprep.subr.bf16.mxu0 %v4838
    %4900 = vmatpush1.bf16.msra.mxu0 %v4837
    %4901 = vmatprep.subr.bf16.mxu0 0
    %4902 = vmatpush2.bf16.msra.mxu0 0
    %4903 = vmatprep.subr.bf16.mxu0 0
    %4904 = vmatpush2.bf16.msra.mxu0 0
    %4905 = vmatprep.subr.bf16.mxu0 0
    %4906 = vmatpush2.bf16.msra.mxu0 0
    %4907 = vmatprep.subr.bf16.mxu0 0
    %4908 = vmatpush2.bf16.msra.mxu0 0
    %4909 = vmatprep.subr.bf16.mxu0 0
    %4910 = vmatpush2.bf16.msra.mxu0 0
    %4911 = vmatprep.subr.bf16.mxu0 0
    %4912 = vmatpush2.bf16.msra.mxu0 0
    %4913 = vmatprep.subr.bf16.mxu0 0
    %4914 = vmatpush2.bf16.msra.mxu0 0
    %4915 = vmatprep.subr.bf16.mxu0 0
    %4916 = vmatpush2.bf16.msra.mxu0 0
    %4917 = vmatprep.mubr.bf16.mxu0 0
    %4918 = vmatmul.mubr.bf16.gmra.mxu0 %v4723
    %v4919 = vpop.f32.mrf.mxu0
    %v4920 = vadd.f32 0.0, %v4919
    %v4921 = vpop.f32.mrf.mxu0
    %v4922 = vadd.f32 0.0, %v4921
    %v4923 = vpop.f32.mrf.mxu0
    %v4924 = vadd.f32 0.0, %v4923
    %v4925 = vpop.f32.mrf.mxu0
    %v4926 = vadd.f32 0.0, %v4925
    %4927 = vdwg.mxu0
    %4928 = vmatprep.subr.bf16.mxu0 0
    %4929 = vmatpush1.bf16.msra.mxu0 %v4860
    %4930 = vmatprep.subr.bf16.mxu0 0
    %4931 = vmatpush1.bf16.msra.mxu0 %v4857
    %4932 = vmatprep.subr.bf16.mxu0 0
    %4933 = vmatpush1.bf16.msra.mxu0 %v4854
    %4934 = vmatprep.subr.bf16.mxu0 0
    %4935 = vmatpush1.bf16.msra.mxu0 %v4851
    %4936 = vmatprep.subr.bf16.mxu0 0
    %4937 = vmatpush1.bf16.msra.mxu0 %v4848
    %4938 = vmatprep.subr.bf16.mxu0 0
    %4939 = vmatpush1.bf16.msra.mxu0 %v4845
    %4940 = vmatprep.subr.bf16.mxu0 0
    %4941 = vmatpush1.bf16.msra.mxu0 %v4842
    %4942 = vmatprep.subr.bf16.mxu0 0
    %4943 = vmatpush1.bf16.msra.mxu0 %v4839
    %4944 = vmatprep.subr.bf16.mxu0 0
    %4945 = vmatpush2.bf16.msra.mxu0 0
    %4946 = vmatprep.subr.bf16.mxu0 0
    %4947 = vmatpush2.bf16.msra.mxu0 0
    %4948 = vmatprep.subr.bf16.mxu0 0
    %4949 = vmatpush2.bf16.msra.mxu0 0
    %4950 = vmatprep.subr.bf16.mxu0 0
    %4951 = vmatpush2.bf16.msra.mxu0 0
    %4952 = vmatprep.subr.bf16.mxu0 0
    %4953 = vmatpush2.bf16.msra.mxu0 0
    %4954 = vmatprep.subr.bf16.mxu0 0
    %4955 = vmatpush2.bf16.msra.mxu0 0
    %4956 = vmatprep.subr.bf16.mxu0 0
    %4957 = vmatpush2.bf16.msra.mxu0 0
    %4958 = vmatprep.subr.bf16.mxu0 0
    %4959 = vmatpush2.bf16.msra.mxu0 0
    %4960 = vmatprep.mubr.bf16.mxu0 0
    %4961 = vmatmul.mubr.bf16.gmra.mxu0 %v4723
    %v4962 = vpop.f32.mrf.mxu0
    %v4963 = vadd.f32 0.0, %v4962
    %v4964 = vpop.f32.mrf.mxu0
    %v4965 = vpop.f32.mrf.mxu0
    %v4966 = vadd.f32 0.0, %v4965
    %v4967 = vpop.f32.mrf.mxu0
    %4968 = vdwg.mxu0
    %v5001 = vunpack.c.l.b16 %v4639
    %v5002 = vunpack.c.h.b16 %v4639
    %v5003 = vunpack.c.l.b16 %v4640
    %v5004 = vunpack.c.l.b16 %v4641
    %v5005 = vunpack.c.h.b16 %v4641
    %v5006 = vunpack.c.l.b16 %v4642
    %v5007 = vunpack.c.l.b16 %v4643
    %v5008 = vunpack.c.h.b16 %v4643
    %v5009 = vunpack.c.l.b16 %v4644
    %v5010 = vunpack.c.l.b16 %v4645
    %v5011 = vunpack.c.h.b16 %v4645
    %v5012 = vunpack.c.l.b16 %v4646
    %v5013 = vunpack.c.l.b16 %v4647
    %v5014 = vunpack.c.h.b16 %v4647
    %v5015 = vunpack.c.l.b16 %v4648
    %v5016 = vunpack.c.l.b16 %v4649
    %v5017 = vunpack.c.h.b16 %v4649
    %v5018 = vunpack.c.l.b16 %v4650
    %v5019 = vunpack.c.l.b16 %v4651
    %v5020 = vunpack.c.h.b16 %v4651
    %v5021 = vunpack.c.l.b16 %v4652
    %v5022 = vunpack.c.l.b16 %v4653
    %v5023 = vunpack.c.h.b16 %v4653
    %v5024 = vunpack.c.l.b16 %v4654
    %v5025 = vunpack.c.l.b16 %v4655
    %v5026 = vunpack.c.h.b16 %v4655
    %v5027 = vunpack.c.l.b16 %v4656
    %v5028 = vunpack.c.l.b16 %v4657
    %v5029 = vunpack.c.h.b16 %v4657
    %v5030 = vunpack.c.l.b16 %v4658
    %v5031 = vunpack.c.l.b16 %v4659
    %v5032 = vunpack.c.h.b16 %v4659
    %v5033 = vunpack.c.l.b16 %v4660
    %v5034 = vunpack.c.l.b16 %v4661
    %v5035 = vunpack.c.h.b16 %v4661
    %v5036 = vunpack.c.l.b16 %v4662
    %v5037 = vunpack.c.l.b16 %v4663
    %v5038 = vunpack.c.h.b16 %v4663
    %v5039 = vunpack.c.l.b16 %v4664
    %v5040 = vunpack.c.l.b16 %v4665
    %v5041 = vunpack.c.h.b16 %v4665
    %v5042 = vunpack.c.l.b16 %v4666
    %v5043 = vunpack.c.l.b16 %v4667
    %v5044 = vunpack.c.h.b16 %v4667
    %v5045 = vunpack.c.l.b16 %v4668
    %v5046 = vunpack.c.l.b16 %v4669
    %v5047 = vunpack.c.h.b16 %v4669
    %v5048 = vunpack.c.l.b16 %v4670
    %v5049 = vpack.c.b16 %v5004, %v5001
    %v5050 = vpack.c.b16 %v5005, %v5002
    %v5051 = vpack.c.b16 %v5006, %v5003
    %v5052 = vpack.c.b16 %v5010, %v5007
    %v5053 = vpack.c.b16 %v5011, %v5008
    %v5054 = vpack.c.b16 %v5012, %v5009
    %v5055 = vpack.c.b16 %v5016, %v5013
    %v5056 = vpack.c.b16 %v5017, %v5014
    %v5057 = vpack.c.b16 %v5018, %v5015
    %v5058 = vpack.c.b16 %v5022, %v5019
    %v5059 = vpack.c.b16 %v5023, %v5020
    %v5060 = vpack.c.b16 %v5024, %v5021
    %v5061 = vpack.c.b16 %v5028, %v5025
    %v5062 = vpack.c.b16 %v5029, %v5026
    %v5063 = vpack.c.b16 %v5030, %v5027
    %v5064 = vpack.c.b16 %v5034, %v5031
    %v5065 = vpack.c.b16 %v5035, %v5032
    %v5066 = vpack.c.b16 %v5036, %v5033
    %v5067 = vpack.c.b16 %v5040, %v5037
    %v5068 = vpack.c.b16 %v5041, %v5038
    %v5069 = vpack.c.b16 %v5042, %v5039
    %v5070 = vpack.c.b16 %v5046, %v5043
    %v5071 = vpack.c.b16 %v5047, %v5044
    %v5072 = vpack.c.b16 %v5048, %v5045
    %5097 = vmatprep.subr.bf16.mxu0 %v5071
    %5098 = vmatpush1.bf16.msra.mxu0 %v5070
    %5099 = vmatprep.subr.bf16.mxu0 %v5068
    %5100 = vmatpush1.bf16.msra.mxu0 %v5067
    %5101 = vmatprep.subr.bf16.mxu0 %v5065
    %5102 = vmatpush1.bf16.msra.mxu0 %v5064
    %5103 = vmatprep.subr.bf16.mxu0 %v5062
    %5104 = vmatpush1.bf16.msra.mxu0 %v5061
    %5105 = vmatprep.subr.bf16.mxu0 %v5059
    %5106 = vmatpush1.bf16.msra.mxu0 %v5058
    %5107 = vmatprep.subr.bf16.mxu0 %v5056
    %5108 = vmatpush1.bf16.msra.mxu0 %v5055
    %5109 = vmatprep.subr.bf16.mxu0 %v5053
    %5110 = vmatpush1.bf16.msra.mxu0 %v5052
    %5111 = vmatprep.subr.bf16.mxu0 %v5050
    %5112 = vmatpush1.bf16.msra.mxu0 %v5049
    %5113 = vmatprep.subr.bf16.mxu0 0
    %5114 = vmatpush2.bf16.msra.mxu0 0
    %5115 = vmatprep.subr.bf16.mxu0 0
    %5116 = vmatpush2.bf16.msra.mxu0 0
    %5117 = vmatprep.subr.bf16.mxu0 0
    %5118 = vmatpush2.bf16.msra.mxu0 0
    %5119 = vmatprep.subr.bf16.mxu0 0
    %5120 = vmatpush2.bf16.msra.mxu0 0
    %5121 = vmatprep.subr.bf16.mxu0 0
    %5122 = vmatpush2.bf16.msra.mxu0 0
    %5123 = vmatprep.subr.bf16.mxu0 0
    %5124 = vmatpush2.bf16.msra.mxu0 0
    %5125 = vmatprep.subr.bf16.mxu0 0
    %5126 = vmatpush2.bf16.msra.mxu0 0
    %5127 = vmatprep.subr.bf16.mxu0 0
    %5128 = vmatpush2.bf16.msra.mxu0 0
    %5129 = vmatprep.mubr.bf16.mxu0 0
    %5130 = vmatmul.mubr.bf16.gmra.mxu0 %v4638
    %v5131 = vpop.f32.mrf.mxu0
    %v5132 = vadd.f32 %v4920, %v5131
    %v5133 = vpop.f32.mrf.mxu0
    %v5134 = vadd.f32 %v4922, %v5133
    %v5135 = vpop.f32.mrf.mxu0
    %v5136 = vadd.f32 %v4924, %v5135
    %v5137 = vpop.f32.mrf.mxu0
    %v5138 = vadd.f32 %v4926, %v5137
    %5139 = vdwg.mxu0
    %5140 = vmatprep.subr.bf16.mxu0 0
    %5141 = vmatpush1.bf16.msra.mxu0 %v5072
    %5142 = vmatprep.subr.bf16.mxu0 0
    %5143 = vmatpush1.bf16.msra.mxu0 %v5069
    %5144 = vmatprep.subr.bf16.mxu0 0
    %5145 = vmatpush1.bf16.msra.mxu0 %v5066
    %5146 = vmatprep.subr.bf16.mxu0 0
    %5147 = vmatpush1.bf16.msra.mxu0 %v5063
    %5148 = vmatprep.subr.bf16.mxu0 0
    %5149 = vmatpush1.bf16.msra.mxu0 %v5060
    %5150 = vmatprep.subr.bf16.mxu0 0
    %5151 = vmatpush1.bf16.msra.mxu0 %v5057
    %5152 = vmatprep.subr.bf16.mxu0 0
    %5153 = vmatpush1.bf16.msra.mxu0 %v5054
    %5154 = vmatprep.subr.bf16.mxu0 0
    %5155 = vmatpush1.bf16.msra.mxu0 %v5051
    %5156 = vmatprep.subr.bf16.mxu0 0
    %5157 = vmatpush2.bf16.msra.mxu0 0
    %5158 = vmatprep.subr.bf16.mxu0 0
    %5159 = vmatpush2.bf16.msra.mxu0 0
    %5160 = vmatprep.subr.bf16.mxu0 0
    %5161 = vmatpush2.bf16.msra.mxu0 0
    %5162 = vmatprep.subr.bf16.mxu0 0
    %5163 = vmatpush2.bf16.msra.mxu0 0
    %5164 = vmatprep.subr.bf16.mxu0 0
    %5165 = vmatpush2.bf16.msra.mxu0 0
    %5166 = vmatprep.subr.bf16.mxu0 0
    %5167 = vmatpush2.bf16.msra.mxu0 0
    %5168 = vmatprep.subr.bf16.mxu0 0
    %5169 = vmatpush2.bf16.msra.mxu0 0
    %5170 = vmatprep.subr.bf16.mxu0 0
    %5171 = vmatpush2.bf16.msra.mxu0 0
    %5172 = vmatprep.mubr.bf16.mxu0 0
    %5173 = vmatmul.mubr.bf16.gmra.mxu0 %v4638
    %v5174 = vpop.f32.mrf.mxu0
    %v5175 = vadd.f32 %v4963, %v5174
    %v5176 = vpop.f32.mrf.mxu0
    %v5177 = vpop.f32.mrf.mxu0
    %v5178 = vadd.f32 %v4966, %v5177
    %v5179 = vpop.f32.mrf.mxu0
    %5180 = vdwg.mxu0
    %s5181 = scalar_lea.vmem %s17, 16
    %v5182 = vld [vmem:[%s5181] sm:$0xf]
    %v5183 = vld [vmem:[%s5181 + $0x4] sm:$0x1]
    %v5186 = vunpack.c.l.b16 %v5182
    %v5187 = vunpack.c.l.b16 %v5183
    %v5188 = vpack.c.b16 %v5187, %v5186
    %v5190 = vsel %vm4074, %v5188, 0
    %5192 = vmatprep.subr.bf16.mxu0 0
    %5193 = vmatpush1.bf16.msra.mxu0 0
    %5194 = vmatprep.subr.bf16.mxu0 0
    %5195 = vmatpush1.bf16.msra.mxu0 0
    %5196 = vmatprep.subr.bf16.mxu0 0
    %5197 = vmatpush1.bf16.msra.mxu0 0
    %5198 = vmatprep.subr.bf16.mxu0 0
    %5199 = vmatpush1.bf16.msra.mxu0 0
    %5200 = vmatprep.subr.bf16.mxu0 0
    %5201 = vmatpush1.bf16.msra.mxu0 0
    %5202 = vmatprep.subr.bf16.mxu0 0
    %5203 = vmatpush1.bf16.msra.mxu0 0
    %5204 = vmatprep.subr.bf16.mxu0 0
    %5205 = vmatpush1.bf16.msra.mxu0 0
    %5206 = vmatprep.subr.bf16.mxu0 0
    %5207 = vmatpush1.bf16.msra.mxu0 %v4595
    %5208 = vmatprep.subr.bf16.mxu0 0
    %5209 = vmatpush2.bf16.msra.mxu0 0
    %5210 = vmatprep.subr.bf16.mxu0 0
    %5211 = vmatpush2.bf16.msra.mxu0 0
    %5212 = vmatprep.subr.bf16.mxu0 0
    %5213 = vmatpush2.bf16.msra.mxu0 0
    %5214 = vmatprep.subr.bf16.mxu0 0
    %5215 = vmatpush2.bf16.msra.mxu0 0
    %5216 = vmatprep.subr.bf16.mxu0 0
    %5217 = vmatpush2.bf16.msra.mxu0 0
    %5218 = vmatprep.subr.bf16.mxu0 0
    %5219 = vmatpush2.bf16.msra.mxu0 0
    %5220 = vmatprep.subr.bf16.mxu0 0
    %5221 = vmatpush2.bf16.msra.mxu0 0
    %5222 = vmatprep.subr.bf16.mxu0 0
    %5223 = vmatpush2.bf16.msra.mxu0 0
    %5224 = vmatprep.mubr.bf16.mxu0 0
    %5225 = vmatmul.mubr.bf16.gmra.mxu0 %v5190
    %v5226 = vpop.f32.mrf.mxu0
    %v5227 = vadd.f32 0.0, %v5226
    %v5228 = vpop.f32.mrf.mxu0
    %v5229 = vpop.f32.mrf.mxu0
    %v5230 = vadd.f32 0.0, %v5229
    %v5231 = vpop.f32.mrf.mxu0
    %5232 = vdwg.mxu0
    %v5233 = vpack.c.bf16 %v5230, %v5227
    %s5234 = scalar_lea.vmem %s18, 384
    %v5235 = vld [vmem:[%s5234] sm:$0xff]
    %v5236 = vld [vmem:[%s5234 + $0x8] sm:$0xf]
    %v5237 = vld [vmem:[%s5234 + $0xc] sm:$0xff]
    %v5238 = vld [vmem:[%s5234 + $0x14] sm:$0xf]
    %v5239 = vld [vmem:[%s5234 + $0x18] sm:$0xff]
    %v5240 = vld [vmem:[%s5234 + $0x20] sm:$0xf]
    %v5241 = vld [vmem:[%s5234 + $0x24] sm:$0xff]
    %v5242 = vld [vmem:[%s5234 + $0x2c] sm:$0xf]
    %v5243 = vld [vmem:[%s5234 + $0x30] sm:$0xff]
    %v5244 = vld [vmem:[%s5234 + $0x38] sm:$0xf]
    %v5245 = vld [vmem:[%s5234 + $0x3c] sm:$0xff]
    %v5246 = vld [vmem:[%s5234 + $0x44] sm:$0xf]
    %v5247 = vld [vmem:[%s5234 + $0x48] sm:$0xff]
    %v5248 = vld [vmem:[%s5234 + $0x50] sm:$0xf]
    %v5249 = vld [vmem:[%s5234 + $0x54] sm:$0xff]
    %v5250 = vld [vmem:[%s5234 + $0x5c] sm:$0xf]
    %v5251 = vld [vmem:[%s5234 + $0x60] sm:$0xff]
    %v5252 = vld [vmem:[%s5234 + $0x68] sm:$0xf]
    %v5253 = vld [vmem:[%s5234 + $0x6c] sm:$0xff]
    %v5254 = vld [vmem:[%s5234 + $0x74] sm:$0xf]
    %v5255 = vld [vmem:[%s5234 + $0x78] sm:$0xff]
    %v5256 = vld [vmem:[%s5234 + $0x80] sm:$0xf]
    %v5257 = vld [vmem:[%s5234 + $0x84] sm:$0xff]
    %v5258 = vld [vmem:[%s5234 + $0x8c] sm:$0xf]
    %v5259 = vld [vmem:[%s5234 + $0x90] sm:$0xff]
    %v5260 = vld [vmem:[%s5234 + $0x98] sm:$0xf]
    %v5261 = vld [vmem:[%s5234 + $0x9c] sm:$0xff]
    %v5262 = vld [vmem:[%s5234 + $0xa4] sm:$0xf]
    %v5263 = vld [vmem:[%s5234 + $0xa8] sm:$0xff]
    %v5264 = vld [vmem:[%s5234 + $0xb0] sm:$0xf]
    %v5265 = vld [vmem:[%s5234 + $0xb4] sm:$0xff]
    %v5266 = vld [vmem:[%s5234 + $0xbc] sm:$0xf]
    %v5299 = vunpack.c.l.b16 %v5235
    %v5300 = vunpack.c.h.b16 %v5235
    %v5301 = vunpack.c.l.b16 %v5236
    %v5302 = vunpack.c.l.b16 %v5237
    %v5303 = vunpack.c.h.b16 %v5237
    %v5304 = vunpack.c.l.b16 %v5238
    %v5305 = vunpack.c.l.b16 %v5239
    %v5306 = vunpack.c.h.b16 %v5239
    %v5307 = vunpack.c.l.b16 %v5240
    %v5308 = vunpack.c.l.b16 %v5241
    %v5309 = vunpack.c.h.b16 %v5241
    %v5310 = vunpack.c.l.b16 %v5242
    %v5311 = vunpack.c.l.b16 %v5243
    %v5312 = vunpack.c.h.b16 %v5243
    %v5313 = vunpack.c.l.b16 %v5244
    %v5314 = vunpack.c.l.b16 %v5245
    %v5315 = vunpack.c.h.b16 %v5245
    %v5316 = vunpack.c.l.b16 %v5246
    %v5317 = vunpack.c.l.b16 %v5247
    %v5318 = vunpack.c.h.b16 %v5247
    %v5319 = vunpack.c.l.b16 %v5248
    %v5320 = vunpack.c.l.b16 %v5249
    %v5321 = vunpack.c.h.b16 %v5249
    %v5322 = vunpack.c.l.b16 %v5250
    %v5323 = vunpack.c.l.b16 %v5251
    %v5324 = vunpack.c.h.b16 %v5251
    %v5325 = vunpack.c.l.b16 %v5252
    %v5326 = vunpack.c.l.b16 %v5253
    %v5327 = vunpack.c.h.b16 %v5253
    %v5328 = vunpack.c.l.b16 %v5254
    %v5329 = vunpack.c.l.b16 %v5255
    %v5330 = vunpack.c.h.b16 %v5255
    %v5331 = vunpack.c.l.b16 %v5256
    %v5332 = vunpack.c.l.b16 %v5257
    %v5333 = vunpack.c.h.b16 %v5257
    %v5334 = vunpack.c.l.b16 %v5258
    %v5335 = vunpack.c.l.b16 %v5259
    %v5336 = vunpack.c.h.b16 %v5259
    %v5337 = vunpack.c.l.b16 %v5260
    %v5338 = vunpack.c.l.b16 %v5261
    %v5339 = vunpack.c.h.b16 %v5261
    %v5340 = vunpack.c.l.b16 %v5262
    %v5341 = vunpack.c.l.b16 %v5263
    %v5342 = vunpack.c.h.b16 %v5263
    %v5343 = vunpack.c.l.b16 %v5264
    %v5344 = vunpack.c.l.b16 %v5265
    %v5345 = vunpack.c.h.b16 %v5265
    %v5346 = vunpack.c.l.b16 %v5266
    %v5347 = vpack.c.b16 %v5302, %v5299
    %v5348 = vpack.c.b16 %v5303, %v5300
    %v5349 = vpack.c.b16 %v5304, %v5301
    %v5350 = vpack.c.b16 %v5308, %v5305
    %v5351 = vpack.c.b16 %v5309, %v5306
    %v5352 = vpack.c.b16 %v5310, %v5307
    %v5353 = vpack.c.b16 %v5314, %v5311
    %v5354 = vpack.c.b16 %v5315, %v5312
    %v5355 = vpack.c.b16 %v5316, %v5313
    %v5356 = vpack.c.b16 %v5320, %v5317
    %v5357 = vpack.c.b16 %v5321, %v5318
    %v5358 = vpack.c.b16 %v5322, %v5319
    %v5359 = vpack.c.b16 %v5326, %v5323
    %v5360 = vpack.c.b16 %v5327, %v5324
    %v5361 = vpack.c.b16 %v5328, %v5325
    %v5362 = vpack.c.b16 %v5332, %v5329
    %v5363 = vpack.c.b16 %v5333, %v5330
    %v5364 = vpack.c.b16 %v5334, %v5331
    %v5365 = vpack.c.b16 %v5338, %v5335
    %v5366 = vpack.c.b16 %v5339, %v5336
    %v5367 = vpack.c.b16 %v5340, %v5337
    %v5368 = vpack.c.b16 %v5344, %v5341
    %v5369 = vpack.c.b16 %v5345, %v5342
    %v5370 = vpack.c.b16 %v5346, %v5343
    %5395 = vmatprep.subr.bf16.mxu0 %v5369
    %5396 = vmatpush1.bf16.msra.mxu0 %v5368
    %5397 = vmatprep.subr.bf16.mxu0 %v5366
    %5398 = vmatpush1.bf16.msra.mxu0 %v5365
    %5399 = vmatprep.subr.bf16.mxu0 %v5363
    %5400 = vmatpush1.bf16.msra.mxu0 %v5362
    %5401 = vmatprep.subr.bf16.mxu0 %v5360
    %5402 = vmatpush1.bf16.msra.mxu0 %v5359
    %5403 = vmatprep.subr.bf16.mxu0 %v5357
    %5404 = vmatpush1.bf16.msra.mxu0 %v5356
    %5405 = vmatprep.subr.bf16.mxu0 %v5354
    %5406 = vmatpush1.bf16.msra.mxu0 %v5353
    %5407 = vmatprep.subr.bf16.mxu0 %v5351
    %5408 = vmatpush1.bf16.msra.mxu0 %v5350
    %5409 = vmatprep.subr.bf16.mxu0 %v5348
    %5410 = vmatpush1.bf16.msra.mxu0 %v5347
    %5411 = vmatprep.subr.bf16.mxu0 0
    %5412 = vmatpush2.bf16.msra.mxu0 0
    %5413 = vmatprep.subr.bf16.mxu0 0
    %5414 = vmatpush2.bf16.msra.mxu0 0
    %5415 = vmatprep.subr.bf16.mxu0 0
    %5416 = vmatpush2.bf16.msra.mxu0 0
    %5417 = vmatprep.subr.bf16.mxu0 0
    %5418 = vmatpush2.bf16.msra.mxu0 0
    %5419 = vmatprep.subr.bf16.mxu0 0
    %5420 = vmatpush2.bf16.msra.mxu0 0
    %5421 = vmatprep.subr.bf16.mxu0 0
    %5422 = vmatpush2.bf16.msra.mxu0 0
    %5423 = vmatprep.subr.bf16.mxu0 0
    %5424 = vmatpush2.bf16.msra.mxu0 0
    %5425 = vmatprep.subr.bf16.mxu0 0
    %5426 = vmatpush2.bf16.msra.mxu0 0
    %5427 = vmatprep.mubr.bf16.mxu0 0
    %5428 = vmatmul.mubr.bf16.gmra.mxu0 %v5233
    %v5429 = vpop.f32.mrf.mxu0
    %v5430 = vadd.f32 0.0, %v5429
    %v5431 = vpop.f32.mrf.mxu0
    %v5432 = vadd.f32 0.0, %v5431
    %v5433 = vpop.f32.mrf.mxu0
    %v5434 = vadd.f32 0.0, %v5433
    %v5435 = vpop.f32.mrf.mxu0
    %v5436 = vadd.f32 0.0, %v5435
    %5437 = vdwg.mxu0
    %5438 = vmatprep.subr.bf16.mxu0 0
    %5439 = vmatpush1.bf16.msra.mxu0 %v5370
    %5440 = vmatprep.subr.bf16.mxu0 0
    %5441 = vmatpush1.bf16.msra.mxu0 %v5367
    %5442 = vmatprep.subr.bf16.mxu0 0
    %5443 = vmatpush1.bf16.msra.mxu0 %v5364
    %5444 = vmatprep.subr.bf16.mxu0 0
    %5445 = vmatpush1.bf16.msra.mxu0 %v5361
    %5446 = vmatprep.subr.bf16.mxu0 0
    %5447 = vmatpush1.bf16.msra.mxu0 %v5358
    %5448 = vmatprep.subr.bf16.mxu0 0
    %5449 = vmatpush1.bf16.msra.mxu0 %v5355
    %5450 = vmatprep.subr.bf16.mxu0 0
    %5451 = vmatpush1.bf16.msra.mxu0 %v5352
    %5452 = vmatprep.subr.bf16.mxu0 0
    %5453 = vmatpush1.bf16.msra.mxu0 %v5349
    %5454 = vmatprep.subr.bf16.mxu0 0
    %5455 = vmatpush2.bf16.msra.mxu0 0
    %5456 = vmatprep.subr.bf16.mxu0 0
    %5457 = vmatpush2.bf16.msra.mxu0 0
    %5458 = vmatprep.subr.bf16.mxu0 0
    %5459 = vmatpush2.bf16.msra.mxu0 0
    %5460 = vmatprep.subr.bf16.mxu0 0
    %5461 = vmatpush2.bf16.msra.mxu0 0
    %5462 = vmatprep.subr.bf16.mxu0 0
    %5463 = vmatpush2.bf16.msra.mxu0 0
    %5464 = vmatprep.subr.bf16.mxu0 0
    %5465 = vmatpush2.bf16.msra.mxu0 0
    %5466 = vmatprep.subr.bf16.mxu0 0
    %5467 = vmatpush2.bf16.msra.mxu0 0
    %5468 = vmatprep.subr.bf16.mxu0 0
    %5469 = vmatpush2.bf16.msra.mxu0 0
    %5470 = vmatprep.mubr.bf16.mxu0 0
    %5471 = vmatmul.mubr.bf16.gmra.mxu0 %v5233
    %v5472 = vpop.f32.mrf.mxu0
    %v5473 = vadd.f32 0.0, %v5472
    %v5474 = vpop.f32.mrf.mxu0
    %v5475 = vpop.f32.mrf.mxu0
    %v5476 = vadd.f32 0.0, %v5475
    %v5477 = vpop.f32.mrf.mxu0
    %5478 = vdwg.mxu0
    %v5479 = vadd.f32 %v5132, %v5430
    %v5480 = vadd.f32 %v5134, %v5432
    %v5481 = vadd.f32 %v5175, %v5473
    %v5482 = vadd.f32 %v5136, %v5434
    %v5483 = vadd.f32 %v5138, %v5436
    %v5484 = vadd.f32 %v5178, %v5476
    %v5485 = vld [vmem:[%s19] sm:$0xff]
    %v5486 = vld [vmem:[%s19 + $0x8] sm:$0xff]
    %v5487 = vld [vmem:[%s19 + $0x10] sm:$0xff]
    %v5488 = vld [vmem:[%s19 + $0x18] sm:$0x3]
    %v5489 = vld [vmem:[%s19 + $0x20] sm:$0x3]
    %v5490 = vld [vmem:[%s19 + $0x28] sm:$0x3]
    %v5491 = vadd.f32 %v5479, %v5485
    %v5492 = vadd.f32 %v5480, %v5486
    %v5493 = vadd.f32 %v5481, %v5487
    %v5494 = vadd.f32 %v5482, %v5488
    %v5495 = vadd.f32 %v5483, %v5489
    %v5496 = vadd.f32 %v5484, %v5490
    %v5497 = vmax.f32 %v5491, 0.0
    %v5498 = vmax.f32 %v5492, 0.0
    %v5499 = vmax.f32 %v5493, 0.0
    %v5500 = vmax.f32 %v5494, 0.0
    %v5501 = vmax.f32 %v5495, 0.0
    %v5502 = vmax.f32 %v5496, 0.0
    %v5503 = vpack.c.bf16 %v5500, %v5497
    %v5504 = vpack.c.bf16 %v5501, %v5498
    %v5505 = vpack.c.bf16 %v5502, %v5499
    %v5506 = vld [vmem:[%s20] sm:$0xf]
    %v5507 = vld [vmem:[%s20 + $0x4] sm:$0xf]
    %v5508 = vld [vmem:[%s20 + $0x8] sm:$0xf]
    %v5509 = vld [vmem:[%s20 + $0xc] sm:$0x7]
    %v5514 = vunpack.c.l.b16 %v5506
    %v5515 = vunpack.c.l.b16 %v5507
    %v5516 = vunpack.c.l.b16 %v5508
    %v5517 = vunpack.c.l.b16 %v5509
    %v5518 = vpack.c.b16 %v5515, %v5514
    %v5519 = vpack.c.b16 %v5517, %v5516
    %v5521 = vsel %vm2656, %v5518, 0
    %v5524 = vsel %vm2656, %v5519, 0
    %v5527 = vsel %vm2660, %v5503, 0
    %v5530 = vsel %vm2660, %v5504, 0
    %v5533 = vsel %vm2660, %v5505, 0
    %5535 = vmatprep.subr.bf16.mxu0 0
    %5536 = vmatpush1.bf16.msra.mxu0 0
    %5537 = vmatprep.subr.bf16.mxu0 0
    %5538 = vmatpush1.bf16.msra.mxu0 0
    %5539 = vmatprep.subr.bf16.mxu0 0
    %5540 = vmatpush1.bf16.msra.mxu0 0
    %5541 = vmatprep.subr.bf16.mxu0 0
    %5542 = vmatpush1.bf16.msra.mxu0 0
    %5543 = vmatprep.subr.bf16.mxu0 0
    %5544 = vmatpush1.bf16.msra.mxu0 0
    %5545 = vmatprep.subr.bf16.mxu0 0
    %5546 = vmatpush1.bf16.msra.mxu0 0
    %5547 = vmatprep.subr.bf16.mxu0 0
    %5548 = vmatpush1.bf16.msra.mxu0 0
    %5549 = vmatprep.subr.bf16.mxu0 %v5530
    %5550 = vmatpush1.bf16.msra.mxu0 %v5527
    %5551 = vmatprep.subr.bf16.mxu0 0
    %5552 = vmatpush2.bf16.msra.mxu0 0
    %5553 = vmatprep.subr.bf16.mxu0 0
    %5554 = vmatpush2.bf16.msra.mxu0 0
    %5555 = vmatprep.subr.bf16.mxu0 0
    %5556 = vmatpush2.bf16.msra.mxu0 0
    %5557 = vmatprep.subr.bf16.mxu0 0
    %5558 = vmatpush2.bf16.msra.mxu0 0
    %5559 = vmatprep.subr.bf16.mxu0 0
    %5560 = vmatpush2.bf16.msra.mxu0 0
    %5561 = vmatprep.subr.bf16.mxu0 0
    %5562 = vmatpush2.bf16.msra.mxu0 0
    %5563 = vmatprep.subr.bf16.mxu0 0
    %5564 = vmatpush2.bf16.msra.mxu0 0
    %5565 = vmatprep.subr.bf16.mxu0 0
    %5566 = vmatpush2.bf16.msra.mxu0 0
    %5567 = vmatprep.mubr.bf16.mxu0 0
    %5568 = vmatmul.mubr.bf16.gmra.mxu0 %v5521
    %v5569 = vpop.f32.mrf.mxu0
    %v5570 = vadd.f32 0.0, %v5569
    %v5571 = vpop.f32.mrf.mxu0
    %v5572 = vadd.f32 0.0, %v5571
    %v5573 = vpop.f32.mrf.mxu0
    %v5574 = vadd.f32 0.0, %v5573
    %v5575 = vpop.f32.mrf.mxu0
    %v5576 = vadd.f32 0.0, %v5575
    %5577 = vmatprep.mubr.bf16.mxu0 0
    %5578 = vmatmul.mubr.bf16.gmra.mxu0 %v5524
    %v5579 = vpop.f32.mrf.mxu0
    %v5580 = vadd.f32 0.0, %v5579
    %v5581 = vpop.f32.mrf.mxu0
    %v5582 = vadd.f32 0.0, %v5581
    %v5583 = vpop.f32.mrf.mxu0
    %v5584 = vadd.f32 0.0, %v5583
    %v5585 = vpop.f32.mrf.mxu0
    %v5586 = vadd.f32 0.0, %v5585
    %5587 = vdwg.mxu0
    %5588 = vmatprep.subr.bf16.mxu0 0
    %5589 = vmatpush1.bf16.msra.mxu0 0
    %5590 = vmatprep.subr.bf16.mxu0 0
    %5591 = vmatpush1.bf16.msra.mxu0 0
    %5592 = vmatprep.subr.bf16.mxu0 0
    %5593 = vmatpush1.bf16.msra.mxu0 0
    %5594 = vmatprep.subr.bf16.mxu0 0
    %5595 = vmatpush1.bf16.msra.mxu0 0
    %5596 = vmatprep.subr.bf16.mxu0 0
    %5597 = vmatpush1.bf16.msra.mxu0 0
    %5598 = vmatprep.subr.bf16.mxu0 0
    %5599 = vmatpush1.bf16.msra.mxu0 0
    %5600 = vmatprep.subr.bf16.mxu0 0
    %5601 = vmatpush1.bf16.msra.mxu0 0
    %5602 = vmatprep.subr.bf16.mxu0 0
    %5603 = vmatpush1.bf16.msra.mxu0 %v5533
    %5604 = vmatprep.subr.bf16.mxu0 0
    %5605 = vmatpush2.bf16.msra.mxu0 0
    %5606 = vmatprep.subr.bf16.mxu0 0
    %5607 = vmatpush2.bf16.msra.mxu0 0
    %5608 = vmatprep.subr.bf16.mxu0 0
    %5609 = vmatpush2.bf16.msra.mxu0 0
    %5610 = vmatprep.subr.bf16.mxu0 0
    %5611 = vmatpush2.bf16.msra.mxu0 0
    %5612 = vmatprep.subr.bf16.mxu0 0
    %5613 = vmatpush2.bf16.msra.mxu0 0
    %5614 = vmatprep.subr.bf16.mxu0 0
    %5615 = vmatpush2.bf16.msra.mxu0 0
    %5616 = vmatprep.subr.bf16.mxu0 0
    %5617 = vmatpush2.bf16.msra.mxu0 0
    %5618 = vmatprep.subr.bf16.mxu0 0
    %5619 = vmatpush2.bf16.msra.mxu0 0
    %5620 = vmatprep.mubr.bf16.mxu0 0
    %5621 = vmatmul.mubr.bf16.gmra.mxu0 %v5521
    %v5622 = vpop.f32.mrf.mxu0
    %v5623 = vadd.f32 0.0, %v5622
    %v5624 = vpop.f32.mrf.mxu0
    %v5625 = vpop.f32.mrf.mxu0
    %v5626 = vadd.f32 0.0, %v5625
    %v5627 = vpop.f32.mrf.mxu0
    %5628 = vmatprep.mubr.bf16.mxu0 0
    %5629 = vmatmul.mubr.bf16.gmra.mxu0 %v5524
    %v5630 = vpop.f32.mrf.mxu0
    %v5631 = vadd.f32 0.0, %v5630
    %v5632 = vpop.f32.mrf.mxu0
    %v5633 = vpop.f32.mrf.mxu0
    %v5634 = vadd.f32 0.0, %v5633
    %v5635 = vpop.f32.mrf.mxu0
    %5636 = vdwg.mxu0
    %v5637 = vpack.c.bf16 %v5574, %v5570
    %v5638 = vpack.c.bf16 %v5576, %v5572
    %v5639 = vpack.c.bf16 %v5626, %v5623
    %v5640 = vpack.c.bf16 %v5584, %v5580
    %v5641 = vpack.c.bf16 %v5586, %v5582
    %v5642 = vpack.c.bf16 %v5634, %v5631
    %v5643 = vld [vmem:[%s21] sm:$0xff]
    %v5644 = vld [vmem:[%s21 + $0x8] sm:$0xff]
    %v5645 = vld [vmem:[%s21 + $0x10] sm:$0xff]
    %v5646 = vld [vmem:[%s21 + $0x18] sm:$0xff]
    %v5647 = vld [vmem:[%s21 + $0x20] sm:$0xff]
    %v5648 = vld [vmem:[%s21 + $0x28] sm:$0xff]
    %v5649 = vld [vmem:[%s21 + $0x30] sm:$0xff]
    %v5650 = vld [vmem:[%s21 + $0x38] sm:$0xff]
    %v5651 = vld [vmem:[%s21 + $0x40] sm:$0xff]
    %v5652 = vld [vmem:[%s21 + $0x48] sm:$0xff]
    %v5653 = vld [vmem:[%s21 + $0x50] sm:$0xff]
    %v5654 = vld [vmem:[%s21 + $0x58] sm:$0xff]
    %v5655 = vld [vmem:[%s21 + $0x60] sm:$0xff]
    %v5656 = vld [vmem:[%s21 + $0x68] sm:$0xff]
    %v5657 = vld [vmem:[%s21 + $0x70] sm:$0xff]
    %v5658 = vld [vmem:[%s21 + $0x78] sm:$0xff]
    %v5659 = vld [vmem:[%s21 + $0x80] sm:$0xff]
    %v5660 = vld [vmem:[%s21 + $0x88] sm:$0xff]
    %v5661 = vld [vmem:[%s21 + $0x90] sm:$0xff]
    %v5662 = vld [vmem:[%s21 + $0x98] sm:$0xff]
    %v5663 = vld [vmem:[%s21 + $0xa0] sm:$0xff]
    %v5664 = vld [vmem:[%s21 + $0xa8] sm:$0xff]
    %v5665 = vld [vmem:[%s21 + $0xb0] sm:$0xff]
    %v5666 = vld [vmem:[%s21 + $0xb8] sm:$0xff]
    %v5667 = vld [vmem:[%s21 + $0xc0] sm:$0xff]
    %v5668 = vld [vmem:[%s21 + $0xc8] sm:$0xff]
    %v5669 = vld [vmem:[%s21 + $0xd0] sm:$0xff]
    %v5670 = vld [vmem:[%s21 + $0xd8] sm:$0xff]
    %v5671 = vld [vmem:[%s21 + $0xe0] sm:$0xff]
    %v5672 = vld [vmem:[%s21 + $0xe8] sm:$0xff]
    %v5673 = vld [vmem:[%s21 + $0xf0] sm:$0xff]
    %v5674 = vld [vmem:[%s21 + $0xf8] sm:$0xff]
    %v5675 = vld [vmem:[%s21 + $0x100] sm:$0xff]
    %v5676 = vld [vmem:[%s21 + $0x108] sm:$0xff]
    %v5677 = vld [vmem:[%s21 + $0x110] sm:$0xff]
    %v5678 = vld [vmem:[%s21 + $0x118] sm:$0xff]
    %v5679 = vld [vmem:[%s21 + $0x120] sm:$0xff]
    %v5680 = vld [vmem:[%s21 + $0x128] sm:$0xff]
    %v5681 = vld [vmem:[%s21 + $0x130] sm:$0xff]
    %v5682 = vld [vmem:[%s21 + $0x138] sm:$0xff]
    %v5683 = vld [vmem:[%s21 + $0x140] sm:$0xff]
    %v5684 = vld [vmem:[%s21 + $0x148] sm:$0xff]
    %v5685 = vld [vmem:[%s21 + $0x150] sm:$0xff]
    %v5686 = vld [vmem:[%s21 + $0x158] sm:$0xff]
    %v5687 = vld [vmem:[%s21 + $0x160] sm:$0xff]
    %v5688 = vld [vmem:[%s21 + $0x168] sm:$0xff]
    %v5689 = vld [vmem:[%s21 + $0x170] sm:$0xff]
    %v5690 = vld [vmem:[%s21 + $0x178] sm:$0xff]
    %v5691 = vld [vmem:[%s21 + $0x180] sm:$0xff]
    %v5692 = vld [vmem:[%s21 + $0x188] sm:$0xff]
    %v5693 = vld [vmem:[%s21 + $0x190] sm:$0xff]
    %v5694 = vld [vmem:[%s21 + $0x198] sm:$0xff]
    %v5695 = vld [vmem:[%s21 + $0x1a0] sm:$0xff]
    %v5696 = vld [vmem:[%s21 + $0x1a8] sm:$0xff]
    %v5697 = vld [vmem:[%s21 + $0x1b0] sm:$0xff]
    %v5698 = vld [vmem:[%s21 + $0x1b8] sm:$0xff]
    %v5699 = vld [vmem:[%s21 + $0x1c0] sm:$0xff]
    %v5700 = vld [vmem:[%s21 + $0x1c8] sm:$0xff]
    %v5701 = vld [vmem:[%s21 + $0x1d0] sm:$0xff]
    %v5702 = vld [vmem:[%s21 + $0x1d8] sm:$0xff]
    %v5703 = vld [vmem:[%s21 + $0x1e0] sm:$0xff]
    %v5704 = vld [vmem:[%s21 + $0x1e8] sm:$0xff]
    %v5705 = vld [vmem:[%s21 + $0x1f0] sm:$0xff]
    %v5706 = vld [vmem:[%s21 + $0x1f8] sm:$0xff]
    %v5707 = vld [vmem:[%s21 + $0x200] sm:$0xff]
    %v5708 = vld [vmem:[%s21 + $0x208] sm:$0xff]
    %v5709 = vld [vmem:[%s21 + $0x210] sm:$0xff]
    %v5710 = vld [vmem:[%s21 + $0x218] sm:$0xff]
    %v5711 = vld [vmem:[%s21 + $0x220] sm:$0xff]
    %v5712 = vld [vmem:[%s21 + $0x228] sm:$0xff]
    %v5713 = vld [vmem:[%s21 + $0x230] sm:$0xff]
    %v5714 = vld [vmem:[%s21 + $0x238] sm:$0xff]
    %v5715 = vld [vmem:[%s21 + $0x240] sm:$0xff]
    %v5716 = vld [vmem:[%s21 + $0x248] sm:$0xff]
    %v5717 = vld [vmem:[%s21 + $0x250] sm:$0xff]
    %v5718 = vld [vmem:[%s21 + $0x258] sm:$0xff]
    %v5719 = vld [vmem:[%s21 + $0x260] sm:$0xff]
    %v5720 = vld [vmem:[%s21 + $0x268] sm:$0xff]
    %v5721 = vld [vmem:[%s21 + $0x270] sm:$0xff]
    %v5722 = vld [vmem:[%s21 + $0x278] sm:$0xff]
    %s5723 = scalar_lea.vmem %s20, 16
    %v5724 = vld [vmem:[%s5723] sm:$0xf]
    %v5725 = vld [vmem:[%s5723 + $0x4] sm:$0xf]
    %v5726 = vld [vmem:[%s5723 + $0x8] sm:$0xf]
    %v5727 = vld [vmem:[%s5723 + $0xc] sm:$0x7]
    %v5732 = vunpack.c.l.b16 %v5724
    %v5733 = vunpack.c.l.b16 %v5725
    %v5734 = vunpack.c.l.b16 %v5726
    %v5735 = vunpack.c.l.b16 %v5727
    %v5736 = vpack.c.b16 %v5733, %v5732
    %v5737 = vpack.c.b16 %v5735, %v5734
    %v5739 = vsel %vm2656, %v5736, 0
    %v5742 = vsel %vm2656, %v5737, 0
    %5744 = vmatprep.subr.bf16.mxu0 0
    %5745 = vmatpush1.bf16.msra.mxu0 0
    %5746 = vmatprep.subr.bf16.mxu0 0
    %5747 = vmatpush1.bf16.msra.mxu0 0
    %5748 = vmatprep.subr.bf16.mxu0 0
    %5749 = vmatpush1.bf16.msra.mxu0 0
    %5750 = vmatprep.subr.bf16.mxu0 0
    %5751 = vmatpush1.bf16.msra.mxu0 0
    %5752 = vmatprep.subr.bf16.mxu0 0
    %5753 = vmatpush1.bf16.msra.mxu0 0
    %5754 = vmatprep.subr.bf16.mxu0 0
    %5755 = vmatpush1.bf16.msra.mxu0 0
    %5756 = vmatprep.subr.bf16.mxu0 0
    %5757 = vmatpush1.bf16.msra.mxu0 0
    %5758 = vmatprep.subr.bf16.mxu0 %v5530
    %5759 = vmatpush1.bf16.msra.mxu0 %v5527
    %5760 = vmatprep.subr.bf16.mxu0 0
    %5761 = vmatpush2.bf16.msra.mxu0 0
    %5762 = vmatprep.subr.bf16.mxu0 0
    %5763 = vmatpush2.bf16.msra.mxu0 0
    %5764 = vmatprep.subr.bf16.mxu0 0
    %5765 = vmatpush2.bf16.msra.mxu0 0
    %5766 = vmatprep.subr.bf16.mxu0 0
    %5767 = vmatpush2.bf16.msra.mxu0 0
    %5768 = vmatprep.subr.bf16.mxu0 0
    %5769 = vmatpush2.bf16.msra.mxu0 0
    %5770 = vmatprep.subr.bf16.mxu0 0
    %5771 = vmatpush2.bf16.msra.mxu0 0
    %5772 = vmatprep.subr.bf16.mxu0 0
    %5773 = vmatpush2.bf16.msra.mxu0 0
    %5774 = vmatprep.subr.bf16.mxu0 0
    %5775 = vmatpush2.bf16.msra.mxu0 0
    %5776 = vmatprep.mubr.bf16.mxu0 0
    %5777 = vmatmul.mubr.bf16.gmra.mxu0 %v5739
    %v5778 = vpop.f32.mrf.mxu0
    %v5779 = vadd.f32 0.0, %v5778
    %v5780 = vpop.f32.mrf.mxu0
    %v5781 = vadd.f32 0.0, %v5780
    %v5782 = vpop.f32.mrf.mxu0
    %v5783 = vadd.f32 0.0, %v5782
    %v5784 = vpop.f32.mrf.mxu0
    %v5785 = vadd.f32 0.0, %v5784
    %5786 = vmatprep.mubr.bf16.mxu0 0
    %5787 = vmatmul.mubr.bf16.gmra.mxu0 %v5742
    %v5788 = vpop.f32.mrf.mxu0
    %v5789 = vadd.f32 0.0, %v5788
    %v5790 = vpop.f32.mrf.mxu0
    %v5791 = vadd.f32 0.0, %v5790
    %v5792 = vpop.f32.mrf.mxu0
    %v5793 = vadd.f32 0.0, %v5792
    %v5794 = vpop.f32.mrf.mxu0
    %v5795 = vadd.f32 0.0, %v5794
    %5796 = vdwg.mxu0
    %5797 = vmatprep.subr.bf16.mxu0 0
    %5798 = vmatpush1.bf16.msra.mxu0 0
    %5799 = vmatprep.subr.bf16.mxu0 0
    %5800 = vmatpush1.bf16.msra.mxu0 0
    %5801 = vmatprep.subr.bf16.mxu0 0
    %5802 = vmatpush1.bf16.msra.mxu0 0
    %5803 = vmatprep.subr.bf16.mxu0 0
    %5804 = vmatpush1.bf16.msra.mxu0 0
    %5805 = vmatprep.subr.bf16.mxu0 0
    %5806 = vmatpush1.bf16.msra.mxu0 0
    %5807 = vmatprep.subr.bf16.mxu0 0
    %5808 = vmatpush1.bf16.msra.mxu0 0
    %5809 = vmatprep.subr.bf16.mxu0 0
    %5810 = vmatpush1.bf16.msra.mxu0 0
    %5811 = vmatprep.subr.bf16.mxu0 0
    %5812 = vmatpush1.bf16.msra.mxu0 %v5533
    %5813 = vmatprep.subr.bf16.mxu0 0
    %5814 = vmatpush2.bf16.msra.mxu0 0
    %5815 = vmatprep.subr.bf16.mxu0 0
    %5816 = vmatpush2.bf16.msra.mxu0 0
    %5817 = vmatprep.subr.bf16.mxu0 0
    %5818 = vmatpush2.bf16.msra.mxu0 0
    %5819 = vmatprep.subr.bf16.mxu0 0
    %5820 = vmatpush2.bf16.msra.mxu0 0
    %5821 = vmatprep.subr.bf16.mxu0 0
    %5822 = vmatpush2.bf16.msra.mxu0 0
    %5823 = vmatprep.subr.bf16.mxu0 0
    %5824 = vmatpush2.bf16.msra.mxu0 0
    %5825 = vmatprep.subr.bf16.mxu0 0
    %5826 = vmatpush2.bf16.msra.mxu0 0
    %5827 = vmatprep.subr.bf16.mxu0 0
    %5828 = vmatpush2.bf16.msra.mxu0 0
    %5829 = vmatprep.mubr.bf16.mxu0 0
    %5830 = vmatmul.mubr.bf16.gmra.mxu0 %v5739
    %v5831 = vpop.f32.mrf.mxu0
    %v5832 = vadd.f32 0.0, %v5831
    %v5833 = vpop.f32.mrf.mxu0
    %v5834 = vpop.f32.mrf.mxu0
    %v5835 = vadd.f32 0.0, %v5834
    %v5836 = vpop.f32.mrf.mxu0
    %5837 = vmatprep.mubr.bf16.mxu0 0
    %5838 = vmatmul.mubr.bf16.gmra.mxu0 %v5742
    %v5839 = vpop.f32.mrf.mxu0
    %v5840 = vadd.f32 0.0, %v5839
    %v5841 = vpop.f32.mrf.mxu0
    %v5842 = vpop.f32.mrf.mxu0
    %v5843 = vadd.f32 0.0, %v5842
    %v5844 = vpop.f32.mrf.mxu0
    %5845 = vdwg.mxu0
    %v5846 = vpack.c.bf16 %v5783, %v5779
    %v5847 = vpack.c.bf16 %v5785, %v5781
    %v5848 = vpack.c.bf16 %v5835, %v5832
    %v5849 = vpack.c.bf16 %v5793, %v5789
    %v5850 = vpack.c.bf16 %v5795, %v5791
    %v5851 = vpack.c.bf16 %v5843, %v5840
    %s5852 = scalar_lea.vmem %s21, 640
    %v5853 = vld [vmem:[%s5852] sm:$0xff]
    %v5854 = vld [vmem:[%s5852 + $0x8] sm:$0xff]
    %v5855 = vld [vmem:[%s5852 + $0x10] sm:$0xff]
    %v5856 = vld [vmem:[%s5852 + $0x18] sm:$0xff]
    %v5857 = vld [vmem:[%s5852 + $0x20] sm:$0xff]
    %v5858 = vld [vmem:[%s5852 + $0x28] sm:$0xff]
    %v5859 = vld [vmem:[%s5852 + $0x30] sm:$0xff]
    %v5860 = vld [vmem:[%s5852 + $0x38] sm:$0xff]
    %v5861 = vld [vmem:[%s5852 + $0x40] sm:$0xff]
    %v5862 = vld [vmem:[%s5852 + $0x48] sm:$0xff]
    %v5863 = vld [vmem:[%s5852 + $0x50] sm:$0xff]
    %v5864 = vld [vmem:[%s5852 + $0x58] sm:$0xff]
    %v5865 = vld [vmem:[%s5852 + $0x60] sm:$0xff]
    %v5866 = vld [vmem:[%s5852 + $0x68] sm:$0xff]
    %v5867 = vld [vmem:[%s5852 + $0x70] sm:$0xff]
    %v5868 = vld [vmem:[%s5852 + $0x78] sm:$0xff]
    %v5869 = vld [vmem:[%s5852 + $0x80] sm:$0xff]
    %v5870 = vld [vmem:[%s5852 + $0x88] sm:$0xff]
    %v5871 = vld [vmem:[%s5852 + $0x90] sm:$0xff]
    %v5872 = vld [vmem:[%s5852 + $0x98] sm:$0xff]
    %v5873 = vld [vmem:[%s5852 + $0xa0] sm:$0xff]
    %v5874 = vld [vmem:[%s5852 + $0xa8] sm:$0xff]
    %v5875 = vld [vmem:[%s5852 + $0xb0] sm:$0xff]
    %v5876 = vld [vmem:[%s5852 + $0xb8] sm:$0xff]
    %v5877 = vld [vmem:[%s5852 + $0xc0] sm:$0xff]
    %v5878 = vld [vmem:[%s5852 + $0xc8] sm:$0xff]
    %v5879 = vld [vmem:[%s5852 + $0xd0] sm:$0xff]
    %v5880 = vld [vmem:[%s5852 + $0xd8] sm:$0xff]
    %v5881 = vld [vmem:[%s5852 + $0xe0] sm:$0xff]
    %v5882 = vld [vmem:[%s5852 + $0xe8] sm:$0xff]
    %v5883 = vld [vmem:[%s5852 + $0xf0] sm:$0xff]
    %v5884 = vld [vmem:[%s5852 + $0xf8] sm:$0xff]
    %v5885 = vld [vmem:[%s5852 + $0x100] sm:$0xff]
    %v5886 = vld [vmem:[%s5852 + $0x108] sm:$0xff]
    %v5887 = vld [vmem:[%s5852 + $0x110] sm:$0xff]
    %v5888 = vld [vmem:[%s5852 + $0x118] sm:$0xff]
    %v5889 = vld [vmem:[%s5852 + $0x120] sm:$0xff]
    %v5890 = vld [vmem:[%s5852 + $0x128] sm:$0xff]
    %v5891 = vld [vmem:[%s5852 + $0x130] sm:$0xff]
    %v5892 = vld [vmem:[%s5852 + $0x138] sm:$0xff]
    %v5893 = vld [vmem:[%s5852 + $0x140] sm:$0xff]
    %v5894 = vld [vmem:[%s5852 + $0x148] sm:$0xff]
    %v5895 = vld [vmem:[%s5852 + $0x150] sm:$0xff]
    %v5896 = vld [vmem:[%s5852 + $0x158] sm:$0xff]
    %v5897 = vld [vmem:[%s5852 + $0x160] sm:$0xff]
    %v5898 = vld [vmem:[%s5852 + $0x168] sm:$0xff]
    %v5899 = vld [vmem:[%s5852 + $0x170] sm:$0xff]
    %v5900 = vld [vmem:[%s5852 + $0x178] sm:$0xff]
    %v5901 = vld [vmem:[%s5852 + $0x180] sm:$0xff]
    %v5902 = vld [vmem:[%s5852 + $0x188] sm:$0xff]
    %v5903 = vld [vmem:[%s5852 + $0x190] sm:$0xff]
    %v5904 = vld [vmem:[%s5852 + $0x198] sm:$0xff]
    %v5905 = vld [vmem:[%s5852 + $0x1a0] sm:$0xff]
    %v5906 = vld [vmem:[%s5852 + $0x1a8] sm:$0xff]
    %v5907 = vld [vmem:[%s5852 + $0x1b0] sm:$0xff]
    %v5908 = vld [vmem:[%s5852 + $0x1b8] sm:$0xff]
    %v5909 = vld [vmem:[%s5852 + $0x1c0] sm:$0xff]
    %v5910 = vld [vmem:[%s5852 + $0x1c8] sm:$0xff]
    %v5911 = vld [vmem:[%s5852 + $0x1d0] sm:$0xff]
    %v5912 = vld [vmem:[%s5852 + $0x1d8] sm:$0xff]
    %v5913 = vld [vmem:[%s5852 + $0x1e0] sm:$0xff]
    %v5914 = vld [vmem:[%s5852 + $0x1e8] sm:$0xff]
    %v5915 = vld [vmem:[%s5852 + $0x1f0] sm:$0xff]
    %v5916 = vld [vmem:[%s5852 + $0x1f8] sm:$0xff]
    %v5917 = vld [vmem:[%s5852 + $0x200] sm:$0xff]
    %v5918 = vld [vmem:[%s5852 + $0x208] sm:$0xff]
    %v5919 = vld [vmem:[%s5852 + $0x210] sm:$0xff]
    %v5920 = vld [vmem:[%s5852 + $0x218] sm:$0xff]
    %v5921 = vld [vmem:[%s5852 + $0x220] sm:$0xff]
    %v5922 = vld [vmem:[%s5852 + $0x228] sm:$0xff]
    %v5923 = vld [vmem:[%s5852 + $0x230] sm:$0xff]
    %v5924 = vld [vmem:[%s5852 + $0x238] sm:$0xff]
    %v5925 = vld [vmem:[%s5852 + $0x240] sm:$0xff]
    %v5926 = vld [vmem:[%s5852 + $0x248] sm:$0xff]
    %v5927 = vld [vmem:[%s5852 + $0x250] sm:$0xff]
    %v5928 = vld [vmem:[%s5852 + $0x258] sm:$0xff]
    %v5929 = vld [vmem:[%s5852 + $0x260] sm:$0xff]
    %v5930 = vld [vmem:[%s5852 + $0x268] sm:$0xff]
    %v5931 = vld [vmem:[%s5852 + $0x270] sm:$0xff]
    %v5932 = vld [vmem:[%s5852 + $0x278] sm:$0xff]
    %v6013 = vunpack.c.l.b16 %v5853
    %v6014 = vunpack.c.h.b16 %v5853
    %v6015 = vunpack.c.l.b16 %v5854
    %v6016 = vunpack.c.h.b16 %v5854
    %v6017 = vunpack.c.l.b16 %v5855
    %v6018 = vunpack.c.h.b16 %v5855
    %v6019 = vunpack.c.l.b16 %v5856
    %v6020 = vunpack.c.h.b16 %v5856
    %v6021 = vunpack.c.l.b16 %v5857
    %v6022 = vunpack.c.h.b16 %v5857
    %v6023 = vunpack.c.l.b16 %v5858
    %v6024 = vunpack.c.h.b16 %v5858
    %v6025 = vunpack.c.l.b16 %v5859
    %v6026 = vunpack.c.h.b16 %v5859
    %v6027 = vunpack.c.l.b16 %v5860
    %v6028 = vunpack.c.h.b16 %v5860
    %v6029 = vunpack.c.l.b16 %v5861
    %v6030 = vunpack.c.h.b16 %v5861
    %v6031 = vunpack.c.l.b16 %v5862
    %v6032 = vunpack.c.h.b16 %v5862
    %v6033 = vunpack.c.l.b16 %v5863
    %v6034 = vunpack.c.h.b16 %v5863
    %v6035 = vunpack.c.l.b16 %v5864
    %v6036 = vunpack.c.h.b16 %v5864
    %v6037 = vunpack.c.l.b16 %v5865
    %v6038 = vunpack.c.h.b16 %v5865
    %v6039 = vunpack.c.l.b16 %v5866
    %v6040 = vunpack.c.h.b16 %v5866
    %v6041 = vunpack.c.l.b16 %v5867
    %v6042 = vunpack.c.h.b16 %v5867
    %v6043 = vunpack.c.l.b16 %v5868
    %v6044 = vunpack.c.h.b16 %v5868
    %v6045 = vunpack.c.l.b16 %v5869
    %v6046 = vunpack.c.h.b16 %v5869
    %v6047 = vunpack.c.l.b16 %v5870
    %v6048 = vunpack.c.h.b16 %v5870
    %v6049 = vunpack.c.l.b16 %v5871
    %v6050 = vunpack.c.h.b16 %v5871
    %v6051 = vunpack.c.l.b16 %v5872
    %v6052 = vunpack.c.h.b16 %v5872
    %v6053 = vunpack.c.l.b16 %v5873
    %v6054 = vunpack.c.h.b16 %v5873
    %v6055 = vunpack.c.l.b16 %v5874
    %v6056 = vunpack.c.h.b16 %v5874
    %v6057 = vunpack.c.l.b16 %v5875
    %v6058 = vunpack.c.h.b16 %v5875
    %v6059 = vunpack.c.l.b16 %v5876
    %v6060 = vunpack.c.h.b16 %v5876
    %v6061 = vunpack.c.l.b16 %v5877
    %v6062 = vunpack.c.h.b16 %v5877
    %v6063 = vunpack.c.l.b16 %v5878
    %v6064 = vunpack.c.h.b16 %v5878
    %v6065 = vunpack.c.l.b16 %v5879
    %v6066 = vunpack.c.h.b16 %v5879
    %v6067 = vunpack.c.l.b16 %v5880
    %v6068 = vunpack.c.h.b16 %v5880
    %v6069 = vunpack.c.l.b16 %v5881
    %v6070 = vunpack.c.h.b16 %v5881
    %v6071 = vunpack.c.l.b16 %v5882
    %v6072 = vunpack.c.h.b16 %v5882
    %v6073 = vunpack.c.l.b16 %v5883
    %v6074 = vunpack.c.h.b16 %v5883
    %v6075 = vunpack.c.l.b16 %v5884
    %v6076 = vunpack.c.h.b16 %v5884
    %v6077 = vunpack.c.l.b16 %v5885
    %v6078 = vunpack.c.h.b16 %v5885
    %v6079 = vunpack.c.l.b16 %v5886
    %v6080 = vunpack.c.h.b16 %v5886
    %v6081 = vunpack.c.l.b16 %v5887
    %v6082 = vunpack.c.h.b16 %v5887
    %v6083 = vunpack.c.l.b16 %v5888
    %v6084 = vunpack.c.h.b16 %v5888
    %v6085 = vunpack.c.l.b16 %v5889
    %v6086 = vunpack.c.h.b16 %v5889
    %v6087 = vunpack.c.l.b16 %v5890
    %v6088 = vunpack.c.h.b16 %v5890
    %v6089 = vunpack.c.l.b16 %v5891
    %v6090 = vunpack.c.h.b16 %v5891
    %v6091 = vunpack.c.l.b16 %v5892
    %v6092 = vunpack.c.h.b16 %v5892
    %v6093 = vunpack.c.l.b16 %v5893
    %v6094 = vunpack.c.h.b16 %v5893
    %v6095 = vunpack.c.l.b16 %v5894
    %v6096 = vunpack.c.h.b16 %v5894
    %v6097 = vunpack.c.l.b16 %v5895
    %v6098 = vunpack.c.h.b16 %v5895
    %v6099 = vunpack.c.l.b16 %v5896
    %v6100 = vunpack.c.h.b16 %v5896
    %v6101 = vunpack.c.l.b16 %v5897
    %v6102 = vunpack.c.h.b16 %v5897
    %v6103 = vunpack.c.l.b16 %v5898
    %v6104 = vunpack.c.h.b16 %v5898
    %v6105 = vunpack.c.l.b16 %v5899
    %v6106 = vunpack.c.h.b16 %v5899
    %v6107 = vunpack.c.l.b16 %v5900
    %v6108 = vunpack.c.h.b16 %v5900
    %v6109 = vunpack.c.l.b16 %v5901
    %v6110 = vunpack.c.h.b16 %v5901
    %v6111 = vunpack.c.l.b16 %v5902
    %v6112 = vunpack.c.h.b16 %v5902
    %v6113 = vunpack.c.l.b16 %v5903
    %v6114 = vunpack.c.h.b16 %v5903
    %v6115 = vunpack.c.l.b16 %v5904
    %v6116 = vunpack.c.h.b16 %v5904
    %v6117 = vunpack.c.l.b16 %v5905
    %v6118 = vunpack.c.h.b16 %v5905
    %v6119 = vunpack.c.l.b16 %v5906
    %v6120 = vunpack.c.h.b16 %v5906
    %v6121 = vunpack.c.l.b16 %v5907
    %v6122 = vunpack.c.h.b16 %v5907
    %v6123 = vunpack.c.l.b16 %v5908
    %v6124 = vunpack.c.h.b16 %v5908
    %v6125 = vunpack.c.l.b16 %v5909
    %v6126 = vunpack.c.h.b16 %v5909
    %v6127 = vunpack.c.l.b16 %v5910
    %v6128 = vunpack.c.h.b16 %v5910
    %v6129 = vunpack.c.l.b16 %v5911
    %v6130 = vunpack.c.h.b16 %v5911
    %v6131 = vunpack.c.l.b16 %v5912
    %v6132 = vunpack.c.h.b16 %v5912
    %v6133 = vunpack.c.l.b16 %v5913
    %v6134 = vunpack.c.h.b16 %v5913
    %v6135 = vunpack.c.l.b16 %v5914
    %v6136 = vunpack.c.h.b16 %v5914
    %v6137 = vunpack.c.l.b16 %v5915
    %v6138 = vunpack.c.h.b16 %v5915
    %v6139 = vunpack.c.l.b16 %v5916
    %v6140 = vunpack.c.h.b16 %v5916
    %v6141 = vunpack.c.l.b16 %v5917
    %v6142 = vunpack.c.h.b16 %v5917
    %v6143 = vunpack.c.l.b16 %v5918
    %v6144 = vunpack.c.h.b16 %v5918
    %v6145 = vunpack.c.l.b16 %v5919
    %v6146 = vunpack.c.h.b16 %v5919
    %v6147 = vunpack.c.l.b16 %v5920
    %v6148 = vunpack.c.h.b16 %v5920
    %v6149 = vunpack.c.l.b16 %v5921
    %v6150 = vunpack.c.h.b16 %v5921
    %v6151 = vunpack.c.l.b16 %v5922
    %v6152 = vunpack.c.h.b16 %v5922
    %v6153 = vunpack.c.l.b16 %v5923
    %v6154 = vunpack.c.h.b16 %v5923
    %v6155 = vunpack.c.l.b16 %v5924
    %v6156 = vunpack.c.h.b16 %v5924
    %v6157 = vunpack.c.l.b16 %v5925
    %v6158 = vunpack.c.h.b16 %v5925
    %v6159 = vunpack.c.l.b16 %v5926
    %v6160 = vunpack.c.h.b16 %v5926
    %v6161 = vunpack.c.l.b16 %v5927
    %v6162 = vunpack.c.h.b16 %v5927
    %v6163 = vunpack.c.l.b16 %v5928
    %v6164 = vunpack.c.h.b16 %v5928
    %v6165 = vunpack.c.l.b16 %v5929
    %v6166 = vunpack.c.h.b16 %v5929
    %v6167 = vunpack.c.l.b16 %v5930
    %v6168 = vunpack.c.h.b16 %v5930
    %v6169 = vunpack.c.l.b16 %v5931
    %v6170 = vunpack.c.h.b16 %v5931
    %v6171 = vunpack.c.l.b16 %v5932
    %v6172 = vunpack.c.h.b16 %v5932
    %v6173 = vpack.c.b16 %v6017, %v6013
    %v6174 = vpack.c.b16 %v6018, %v6014
    %v6175 = vpack.c.b16 %v6019, %v6015
    %v6176 = vpack.c.b16 %v6020, %v6016
    %v6177 = vpack.c.b16 %v6025, %v6021
    %v6178 = vpack.c.b16 %v6026, %v6022
    %v6179 = vpack.c.b16 %v6027, %v6023
    %v6180 = vpack.c.b16 %v6028, %v6024
    %v6181 = vpack.c.b16 %v6033, %v6029
    %v6182 = vpack.c.b16 %v6034, %v6030
    %v6183 = vpack.c.b16 %v6035, %v6031
    %v6184 = vpack.c.b16 %v6036, %v6032
    %v6185 = vpack.c.b16 %v6041, %v6037
    %v6186 = vpack.c.b16 %v6042, %v6038
    %v6187 = vpack.c.b16 %v6043, %v6039
    %v6188 = vpack.c.b16 %v6044, %v6040
    %v6189 = vpack.c.b16 %v6049, %v6045
    %v6190 = vpack.c.b16 %v6050, %v6046
    %v6191 = vpack.c.b16 %v6051, %v6047
    %v6192 = vpack.c.b16 %v6052, %v6048
    %v6193 = vpack.c.b16 %v6057, %v6053
    %v6194 = vpack.c.b16 %v6058, %v6054
    %v6195 = vpack.c.b16 %v6059, %v6055
    %v6196 = vpack.c.b16 %v6060, %v6056
    %v6197 = vpack.c.b16 %v6065, %v6061
    %v6198 = vpack.c.b16 %v6066, %v6062
    %v6199 = vpack.c.b16 %v6067, %v6063
    %v6200 = vpack.c.b16 %v6068, %v6064
    %v6201 = vpack.c.b16 %v6073, %v6069
    %v6202 = vpack.c.b16 %v6074, %v6070
    %v6203 = vpack.c.b16 %v6075, %v6071
    %v6204 = vpack.c.b16 %v6076, %v6072
    %v6205 = vpack.c.b16 %v6081, %v6077
    %v6206 = vpack.c.b16 %v6082, %v6078
    %v6207 = vpack.c.b16 %v6083, %v6079
    %v6208 = vpack.c.b16 %v6084, %v6080
    %v6209 = vpack.c.b16 %v6089, %v6085
    %v6210 = vpack.c.b16 %v6090, %v6086
    %v6211 = vpack.c.b16 %v6091, %v6087
    %v6212 = vpack.c.b16 %v6092, %v6088
    %v6213 = vpack.c.b16 %v6097, %v6093
    %v6214 = vpack.c.b16 %v6098, %v6094
    %v6215 = vpack.c.b16 %v6099, %v6095
    %v6216 = vpack.c.b16 %v6100, %v6096
    %v6217 = vpack.c.b16 %v6105, %v6101
    %v6218 = vpack.c.b16 %v6106, %v6102
    %v6219 = vpack.c.b16 %v6107, %v6103
    %v6220 = vpack.c.b16 %v6108, %v6104
    %v6221 = vpack.c.b16 %v6113, %v6109
    %v6222 = vpack.c.b16 %v6114, %v6110
    %v6223 = vpack.c.b16 %v6115, %v6111
    %v6224 = vpack.c.b16 %v6116, %v6112
    %v6225 = vpack.c.b16 %v6121, %v6117
    %v6226 = vpack.c.b16 %v6122, %v6118
    %v6227 = vpack.c.b16 %v6123, %v6119
    %v6228 = vpack.c.b16 %v6124, %v6120
    %v6229 = vpack.c.b16 %v6129, %v6125
    %v6230 = vpack.c.b16 %v6130, %v6126
    %v6231 = vpack.c.b16 %v6131, %v6127
    %v6232 = vpack.c.b16 %v6132, %v6128
    %v6233 = vpack.c.b16 %v6137, %v6133
    %v6234 = vpack.c.b16 %v6138, %v6134
    %v6235 = vpack.c.b16 %v6139, %v6135
    %v6236 = vpack.c.b16 %v6140, %v6136
    %v6237 = vpack.c.b16 %v6145, %v6141
    %v6238 = vpack.c.b16 %v6146, %v6142
    %v6239 = vpack.c.b16 %v6147, %v6143
    %v6240 = vpack.c.b16 %v6148, %v6144
    %v6241 = vpack.c.b16 %v6153, %v6149
    %v6242 = vpack.c.b16 %v6154, %v6150
    %v6243 = vpack.c.b16 %v6155, %v6151
    %v6244 = vpack.c.b16 %v6156, %v6152
    %v6245 = vpack.c.b16 %v6161, %v6157
    %v6246 = vpack.c.b16 %v6162, %v6158
    %v6247 = vpack.c.b16 %v6163, %v6159
    %v6248 = vpack.c.b16 %v6164, %v6160
    %v6249 = vpack.c.b16 %v6169, %v6165
    %v6250 = vpack.c.b16 %v6170, %v6166
    %v6251 = vpack.c.b16 %v6171, %v6167
    %v6252 = vpack.c.b16 %v6172, %v6168
    %v6334 = vsel %vm1267, %v5848, 0
    %v6337 = vsel %vm1267, %v5851, 0
    %6339 = vmatprep.subr.bf16.mxu0 %v6202
    %6340 = vmatpush1.bf16.msra.mxu0 %v6201
    %6341 = vmatprep.subr.bf16.mxu0 %v6198
    %6342 = vmatpush1.bf16.msra.mxu0 %v6197
    %6343 = vmatprep.subr.bf16.mxu0 %v6194
    %6344 = vmatpush1.bf16.msra.mxu0 %v6193
    %6345 = vmatprep.subr.bf16.mxu0 %v6190
    %6346 = vmatpush1.bf16.msra.mxu0 %v6189
    %6347 = vmatprep.subr.bf16.mxu0 %v6186
    %6348 = vmatpush1.bf16.msra.mxu0 %v6185
    %6349 = vmatprep.subr.bf16.mxu0 %v6182
    %6350 = vmatpush1.bf16.msra.mxu0 %v6181
    %6351 = vmatprep.subr.bf16.mxu0 %v6178
    %6352 = vmatpush1.bf16.msra.mxu0 %v6177
    %6353 = vmatprep.subr.bf16.mxu0 %v6174
    %6354 = vmatpush1.bf16.msra.mxu0 %v6173
    %6355 = vmatprep.subr.bf16.mxu0 %v6234
    %6356 = vmatpush2.bf16.msra.mxu0 %v6233
    %6357 = vmatprep.subr.bf16.mxu0 %v6230
    %6358 = vmatpush2.bf16.msra.mxu0 %v6229
    %6359 = vmatprep.subr.bf16.mxu0 %v6226
    %6360 = vmatpush2.bf16.msra.mxu0 %v6225
    %6361 = vmatprep.subr.bf16.mxu0 %v6222
    %6362 = vmatpush2.bf16.msra.mxu0 %v6221
    %6363 = vmatprep.subr.bf16.mxu0 %v6218
    %6364 = vmatpush2.bf16.msra.mxu0 %v6217
    %6365 = vmatprep.subr.bf16.mxu0 %v6214
    %6366 = vmatpush2.bf16.msra.mxu0 %v6213
    %6367 = vmatprep.subr.bf16.mxu0 %v6210
    %6368 = vmatpush2.bf16.msra.mxu0 %v6209
    %6369 = vmatprep.subr.bf16.mxu0 %v6206
    %6370 = vmatpush2.bf16.msra.mxu0 %v6205
    %6371 = vmatprep.mubr.bf16.mxu0 %v5847
    %6372 = vmatmul.mubr.bf16.gmra.mxu0 %v5846
    %v6373 = vpop.f32.mrf.mxu0
    %v6374 = vadd.f32 0.0, %v6373
    %v6375 = vpop.f32.mrf.mxu0
    %v6376 = vadd.f32 0.0, %v6375
    %v6377 = vpop.f32.mrf.mxu0
    %v6378 = vadd.f32 0.0, %v6377
    %v6379 = vpop.f32.mrf.mxu0
    %v6380 = vadd.f32 0.0, %v6379
    %6381 = vmatprep.mubr.bf16.mxu0 %v5850
    %6382 = vmatmul.mubr.bf16.gmra.mxu0 %v5849
    %v6383 = vpop.f32.mrf.mxu0
    %v6384 = vadd.f32 0.0, %v6383
    %v6385 = vpop.f32.mrf.mxu0
    %v6386 = vadd.f32 0.0, %v6385
    %v6387 = vpop.f32.mrf.mxu0
    %v6388 = vadd.f32 0.0, %v6387
    %v6389 = vpop.f32.mrf.mxu0
    %v6390 = vadd.f32 0.0, %v6389
    %6391 = vdwg.mxu0
    %6392 = vmatprep.subr.bf16.mxu0 0
    %6393 = vmatpush1.bf16.msra.mxu0 0
    %6394 = vmatprep.subr.bf16.mxu0 0
    %6395 = vmatpush1.bf16.msra.mxu0 0
    %6396 = vmatprep.subr.bf16.mxu0 0
    %6397 = vmatpush1.bf16.msra.mxu0 0
    %6398 = vmatprep.subr.bf16.mxu0 0
    %6399 = vmatpush1.bf16.msra.mxu0 0
    %6400 = vmatprep.subr.bf16.mxu0 %v6250
    %6401 = vmatpush1.bf16.msra.mxu0 %v6249
    %6402 = vmatprep.subr.bf16.mxu0 %v6246
    %6403 = vmatpush1.bf16.msra.mxu0 %v6245
    %6404 = vmatprep.subr.bf16.mxu0 %v6242
    %6405 = vmatpush1.bf16.msra.mxu0 %v6241
    %6406 = vmatprep.subr.bf16.mxu0 %v6238
    %6407 = vmatpush1.bf16.msra.mxu0 %v6237
    %6408 = vmatprep.subr.bf16.mxu0 0
    %6409 = vmatpush2.bf16.msra.mxu0 0
    %6410 = vmatprep.subr.bf16.mxu0 0
    %6411 = vmatpush2.bf16.msra.mxu0 0
    %6412 = vmatprep.subr.bf16.mxu0 0
    %6413 = vmatpush2.bf16.msra.mxu0 0
    %6414 = vmatprep.subr.bf16.mxu0 0
    %6415 = vmatpush2.bf16.msra.mxu0 0
    %6416 = vmatprep.subr.bf16.mxu0 0
    %6417 = vmatpush2.bf16.msra.mxu0 0
    %6418 = vmatprep.subr.bf16.mxu0 0
    %6419 = vmatpush2.bf16.msra.mxu0 0
    %6420 = vmatprep.subr.bf16.mxu0 0
    %6421 = vmatpush2.bf16.msra.mxu0 0
    %6422 = vmatprep.subr.bf16.mxu0 0
    %6423 = vmatpush2.bf16.msra.mxu0 0
    %6424 = vmatprep.mubr.bf16.mxu0 0
    %6425 = vmatmul.mubr.bf16.gmra.mxu0 %v6334
    %v6426 = vpop.f32.mrf.mxu0
    %v6427 = vadd.f32 %v6374, %v6426
    %v6428 = vpop.f32.mrf.mxu0
    %v6429 = vadd.f32 %v6376, %v6428
    %v6430 = vpop.f32.mrf.mxu0
    %v6431 = vadd.f32 %v6378, %v6430
    %v6432 = vpop.f32.mrf.mxu0
    %v6433 = vadd.f32 %v6380, %v6432
    %6434 = vmatprep.mubr.bf16.mxu0 0
    %6435 = vmatmul.mubr.bf16.gmra.mxu0 %v6337
    %v6436 = vpop.f32.mrf.mxu0
    %v6437 = vadd.f32 %v6384, %v6436
    %v6438 = vpop.f32.mrf.mxu0
    %v6439 = vadd.f32 %v6386, %v6438
    %v6440 = vpop.f32.mrf.mxu0
    %v6441 = vadd.f32 %v6388, %v6440
    %v6442 = vpop.f32.mrf.mxu0
    %v6443 = vadd.f32 %v6390, %v6442
    %6444 = vdwg.mxu0
    %6445 = vmatprep.subr.bf16.mxu0 %v6204
    %6446 = vmatpush1.bf16.msra.mxu0 %v6203
    %6447 = vmatprep.subr.bf16.mxu0 %v6200
    %6448 = vmatpush1.bf16.msra.mxu0 %v6199
    %6449 = vmatprep.subr.bf16.mxu0 %v6196
    %6450 = vmatpush1.bf16.msra.mxu0 %v6195
    %6451 = vmatprep.subr.bf16.mxu0 %v6192
    %6452 = vmatpush1.bf16.msra.mxu0 %v6191
    %6453 = vmatprep.subr.bf16.mxu0 %v6188
    %6454 = vmatpush1.bf16.msra.mxu0 %v6187
    %6455 = vmatprep.subr.bf16.mxu0 %v6184
    %6456 = vmatpush1.bf16.msra.mxu0 %v6183
    %6457 = vmatprep.subr.bf16.mxu0 %v6180
    %6458 = vmatpush1.bf16.msra.mxu0 %v6179
    %6459 = vmatprep.subr.bf16.mxu0 %v6176
    %6460 = vmatpush1.bf16.msra.mxu0 %v6175
    %6461 = vmatprep.subr.bf16.mxu0 %v6236
    %6462 = vmatpush2.bf16.msra.mxu0 %v6235
    %6463 = vmatprep.subr.bf16.mxu0 %v6232
    %6464 = vmatpush2.bf16.msra.mxu0 %v6231
    %6465 = vmatprep.subr.bf16.mxu0 %v6228
    %6466 = vmatpush2.bf16.msra.mxu0 %v6227
    %6467 = vmatprep.subr.bf16.mxu0 %v6224
    %6468 = vmatpush2.bf16.msra.mxu0 %v6223
    %6469 = vmatprep.subr.bf16.mxu0 %v6220
    %6470 = vmatpush2.bf16.msra.mxu0 %v6219
    %6471 = vmatprep.subr.bf16.mxu0 %v6216
    %6472 = vmatpush2.bf16.msra.mxu0 %v6215
    %6473 = vmatprep.subr.bf16.mxu0 %v6212
    %6474 = vmatpush2.bf16.msra.mxu0 %v6211
    %6475 = vmatprep.subr.bf16.mxu0 %v6208
    %6476 = vmatpush2.bf16.msra.mxu0 %v6207
    %6477 = vmatprep.mubr.bf16.mxu0 %v5847
    %6478 = vmatmul.mubr.bf16.gmra.mxu0 %v5846
    %v6479 = vpop.f32.mrf.mxu0
    %v6480 = vadd.f32 0.0, %v6479
    %v6481 = vpop.f32.mrf.mxu0
    %v6482 = vadd.f32 0.0, %v6481
    %v6483 = vpop.f32.mrf.mxu0
    %v6484 = vadd.f32 0.0, %v6483
    %v6485 = vpop.f32.mrf.mxu0
    %v6486 = vadd.f32 0.0, %v6485
    %6487 = vmatprep.mubr.bf16.mxu0 %v5850
    %6488 = vmatmul.mubr.bf16.gmra.mxu0 %v5849
    %v6489 = vpop.f32.mrf.mxu0
    %v6490 = vadd.f32 0.0, %v6489
    %v6491 = vpop.f32.mrf.mxu0
    %v6492 = vadd.f32 0.0, %v6491
    %v6493 = vpop.f32.mrf.mxu0
    %v6494 = vadd.f32 0.0, %v6493
    %v6495 = vpop.f32.mrf.mxu0
    %v6496 = vadd.f32 0.0, %v6495
    %6497 = vdwg.mxu0
    %6498 = vmatprep.subr.bf16.mxu0 0
    %6499 = vmatpush1.bf16.msra.mxu0 0
    %6500 = vmatprep.subr.bf16.mxu0 0
    %6501 = vmatpush1.bf16.msra.mxu0 0
    %6502 = vmatprep.subr.bf16.mxu0 0
    %6503 = vmatpush1.bf16.msra.mxu0 0
    %6504 = vmatprep.subr.bf16.mxu0 0
    %6505 = vmatpush1.bf16.msra.mxu0 0
    %6506 = vmatprep.subr.bf16.mxu0 %v6252
    %6507 = vmatpush1.bf16.msra.mxu0 %v6251
    %6508 = vmatprep.subr.bf16.mxu0 %v6248
    %6509 = vmatpush1.bf16.msra.mxu0 %v6247
    %6510 = vmatprep.subr.bf16.mxu0 %v6244
    %6511 = vmatpush1.bf16.msra.mxu0 %v6243
    %6512 = vmatprep.subr.bf16.mxu0 %v6240
    %6513 = vmatpush1.bf16.msra.mxu0 %v6239
    %6514 = vmatprep.subr.bf16.mxu0 0
    %6515 = vmatpush2.bf16.msra.mxu0 0
    %6516 = vmatprep.subr.bf16.mxu0 0
    %6517 = vmatpush2.bf16.msra.mxu0 0
    %6518 = vmatprep.subr.bf16.mxu0 0
    %6519 = vmatpush2.bf16.msra.mxu0 0
    %6520 = vmatprep.subr.bf16.mxu0 0
    %6521 = vmatpush2.bf16.msra.mxu0 0
    %6522 = vmatprep.subr.bf16.mxu0 0
    %6523 = vmatpush2.bf16.msra.mxu0 0
    %6524 = vmatprep.subr.bf16.mxu0 0
    %6525 = vmatpush2.bf16.msra.mxu0 0
    %6526 = vmatprep.subr.bf16.mxu0 0
    %6527 = vmatpush2.bf16.msra.mxu0 0
    %6528 = vmatprep.subr.bf16.mxu0 0
    %6529 = vmatpush2.bf16.msra.mxu0 0
    %6530 = vmatprep.mubr.bf16.mxu0 0
    %6531 = vmatmul.mubr.bf16.gmra.mxu0 %v6334
    %v6532 = vpop.f32.mrf.mxu0
    %v6533 = vadd.f32 %v6480, %v6532
    %v6534 = vpop.f32.mrf.mxu0
    %v6535 = vadd.f32 %v6482, %v6534
    %v6536 = vpop.f32.mrf.mxu0
    %v6537 = vadd.f32 %v6484, %v6536
    %v6538 = vpop.f32.mrf.mxu0
    %v6539 = vadd.f32 %v6486, %v6538
    %6540 = vmatprep.mubr.bf16.mxu0 0
    %6541 = vmatmul.mubr.bf16.gmra.mxu0 %v6337
    %v6542 = vpop.f32.mrf.mxu0
    %v6543 = vadd.f32 %v6490, %v6542
    %v6544 = vpop.f32.mrf.mxu0
    %v6545 = vadd.f32 %v6492, %v6544
    %v6546 = vpop.f32.mrf.mxu0
    %v6547 = vadd.f32 %v6494, %v6546
    %v6548 = vpop.f32.mrf.mxu0
    %v6549 = vadd.f32 %v6496, %v6548
    %6550 = vdwg.mxu0
    %v6631 = vunpack.c.l.b16 %v5643
    %v6632 = vunpack.c.h.b16 %v5643
    %v6633 = vunpack.c.l.b16 %v5644
    %v6634 = vunpack.c.h.b16 %v5644
    %v6635 = vunpack.c.l.b16 %v5645
    %v6636 = vunpack.c.h.b16 %v5645
    %v6637 = vunpack.c.l.b16 %v5646
    %v6638 = vunpack.c.h.b16 %v5646
    %v6639 = vunpack.c.l.b16 %v5647
    %v6640 = vunpack.c.h.b16 %v5647
    %v6641 = vunpack.c.l.b16 %v5648
    %v6642 = vunpack.c.h.b16 %v5648
    %v6643 = vunpack.c.l.b16 %v5649
    %v6644 = vunpack.c.h.b16 %v5649
    %v6645 = vunpack.c.l.b16 %v5650
    %v6646 = vunpack.c.h.b16 %v5650
    %v6647 = vunpack.c.l.b16 %v5651
    %v6648 = vunpack.c.h.b16 %v5651
    %v6649 = vunpack.c.l.b16 %v5652
    %v6650 = vunpack.c.h.b16 %v5652
    %v6651 = vunpack.c.l.b16 %v5653
    %v6652 = vunpack.c.h.b16 %v5653
    %v6653 = vunpack.c.l.b16 %v5654
    %v6654 = vunpack.c.h.b16 %v5654
    %v6655 = vunpack.c.l.b16 %v5655
    %v6656 = vunpack.c.h.b16 %v5655
    %v6657 = vunpack.c.l.b16 %v5656
    %v6658 = vunpack.c.h.b16 %v5656
    %v6659 = vunpack.c.l.b16 %v5657
    %v6660 = vunpack.c.h.b16 %v5657
    %v6661 = vunpack.c.l.b16 %v5658
    %v6662 = vunpack.c.h.b16 %v5658
    %v6663 = vunpack.c.l.b16 %v5659
    %v6664 = vunpack.c.h.b16 %v5659
    %v6665 = vunpack.c.l.b16 %v5660
    %v6666 = vunpack.c.h.b16 %v5660
    %v6667 = vunpack.c.l.b16 %v5661
    %v6668 = vunpack.c.h.b16 %v5661
    %v6669 = vunpack.c.l.b16 %v5662
    %v6670 = vunpack.c.h.b16 %v5662
    %v6671 = vunpack.c.l.b16 %v5663
    %v6672 = vunpack.c.h.b16 %v5663
    %v6673 = vunpack.c.l.b16 %v5664
    %v6674 = vunpack.c.h.b16 %v5664
    %v6675 = vunpack.c.l.b16 %v5665
    %v6676 = vunpack.c.h.b16 %v5665
    %v6677 = vunpack.c.l.b16 %v5666
    %v6678 = vunpack.c.h.b16 %v5666
    %v6679 = vunpack.c.l.b16 %v5667
    %v6680 = vunpack.c.h.b16 %v5667
    %v6681 = vunpack.c.l.b16 %v5668
    %v6682 = vunpack.c.h.b16 %v5668
    %v6683 = vunpack.c.l.b16 %v5669
    %v6684 = vunpack.c.h.b16 %v5669
    %v6685 = vunpack.c.l.b16 %v5670
    %v6686 = vunpack.c.h.b16 %v5670
    %v6687 = vunpack.c.l.b16 %v5671
    %v6688 = vunpack.c.h.b16 %v5671
    %v6689 = vunpack.c.l.b16 %v5672
    %v6690 = vunpack.c.h.b16 %v5672
    %v6691 = vunpack.c.l.b16 %v5673
    %v6692 = vunpack.c.h.b16 %v5673
    %v6693 = vunpack.c.l.b16 %v5674
    %v6694 = vunpack.c.h.b16 %v5674
    %v6695 = vunpack.c.l.b16 %v5675
    %v6696 = vunpack.c.h.b16 %v5675
    %v6697 = vunpack.c.l.b16 %v5676
    %v6698 = vunpack.c.h.b16 %v5676
    %v6699 = vunpack.c.l.b16 %v5677
    %v6700 = vunpack.c.h.b16 %v5677
    %v6701 = vunpack.c.l.b16 %v5678
    %v6702 = vunpack.c.h.b16 %v5678
    %v6703 = vunpack.c.l.b16 %v5679
    %v6704 = vunpack.c.h.b16 %v5679
    %v6705 = vunpack.c.l.b16 %v5680
    %v6706 = vunpack.c.h.b16 %v5680
    %v6707 = vunpack.c.l.b16 %v5681
    %v6708 = vunpack.c.h.b16 %v5681
    %v6709 = vunpack.c.l.b16 %v5682
    %v6710 = vunpack.c.h.b16 %v5682
    %v6711 = vunpack.c.l.b16 %v5683
    %v6712 = vunpack.c.h.b16 %v5683
    %v6713 = vunpack.c.l.b16 %v5684
    %v6714 = vunpack.c.h.b16 %v5684
    %v6715 = vunpack.c.l.b16 %v5685
    %v6716 = vunpack.c.h.b16 %v5685
    %v6717 = vunpack.c.l.b16 %v5686
    %v6718 = vunpack.c.h.b16 %v5686
    %v6719 = vunpack.c.l.b16 %v5687
    %v6720 = vunpack.c.h.b16 %v5687
    %v6721 = vunpack.c.l.b16 %v5688
    %v6722 = vunpack.c.h.b16 %v5688
    %v6723 = vunpack.c.l.b16 %v5689
    %v6724 = vunpack.c.h.b16 %v5689
    %v6725 = vunpack.c.l.b16 %v5690
    %v6726 = vunpack.c.h.b16 %v5690
    %v6727 = vunpack.c.l.b16 %v5691
    %v6728 = vunpack.c.h.b16 %v5691
    %v6729 = vunpack.c.l.b16 %v5692
    %v6730 = vunpack.c.h.b16 %v5692
    %v6731 = vunpack.c.l.b16 %v5693
    %v6732 = vunpack.c.h.b16 %v5693
    %v6733 = vunpack.c.l.b16 %v5694
    %v6734 = vunpack.c.h.b16 %v5694
    %v6735 = vunpack.c.l.b16 %v5695
    %v6736 = vunpack.c.h.b16 %v5695
    %v6737 = vunpack.c.l.b16 %v5696
    %v6738 = vunpack.c.h.b16 %v5696
    %v6739 = vunpack.c.l.b16 %v5697
    %v6740 = vunpack.c.h.b16 %v5697
    %v6741 = vunpack.c.l.b16 %v5698
    %v6742 = vunpack.c.h.b16 %v5698
    %v6743 = vunpack.c.l.b16 %v5699
    %v6744 = vunpack.c.h.b16 %v5699
    %v6745 = vunpack.c.l.b16 %v5700
    %v6746 = vunpack.c.h.b16 %v5700
    %v6747 = vunpack.c.l.b16 %v5701
    %v6748 = vunpack.c.h.b16 %v5701
    %v6749 = vunpack.c.l.b16 %v5702
    %v6750 = vunpack.c.h.b16 %v5702
    %v6751 = vunpack.c.l.b16 %v5703
    %v6752 = vunpack.c.h.b16 %v5703
    %v6753 = vunpack.c.l.b16 %v5704
    %v6754 = vunpack.c.h.b16 %v5704
    %v6755 = vunpack.c.l.b16 %v5705
    %v6756 = vunpack.c.h.b16 %v5705
    %v6757 = vunpack.c.l.b16 %v5706
    %v6758 = vunpack.c.h.b16 %v5706
    %v6759 = vunpack.c.l.b16 %v5707
    %v6760 = vunpack.c.h.b16 %v5707
    %v6761 = vunpack.c.l.b16 %v5708
    %v6762 = vunpack.c.h.b16 %v5708
    %v6763 = vunpack.c.l.b16 %v5709
    %v6764 = vunpack.c.h.b16 %v5709
    %v6765 = vunpack.c.l.b16 %v5710
    %v6766 = vunpack.c.h.b16 %v5710
    %v6767 = vunpack.c.l.b16 %v5711
    %v6768 = vunpack.c.h.b16 %v5711
    %v6769 = vunpack.c.l.b16 %v5712
    %v6770 = vunpack.c.h.b16 %v5712
    %v6771 = vunpack.c.l.b16 %v5713
    %v6772 = vunpack.c.h.b16 %v5713
    %v6773 = vunpack.c.l.b16 %v5714
    %v6774 = vunpack.c.h.b16 %v5714
    %v6775 = vunpack.c.l.b16 %v5715
    %v6776 = vunpack.c.h.b16 %v5715
    %v6777 = vunpack.c.l.b16 %v5716
    %v6778 = vunpack.c.h.b16 %v5716
    %v6779 = vunpack.c.l.b16 %v5717
    %v6780 = vunpack.c.h.b16 %v5717
    %v6781 = vunpack.c.l.b16 %v5718
    %v6782 = vunpack.c.h.b16 %v5718
    %v6783 = vunpack.c.l.b16 %v5719
    %v6784 = vunpack.c.h.b16 %v5719
    %v6785 = vunpack.c.l.b16 %v5720
    %v6786 = vunpack.c.h.b16 %v5720
    %v6787 = vunpack.c.l.b16 %v5721
    %v6788 = vunpack.c.h.b16 %v5721
    %v6789 = vunpack.c.l.b16 %v5722
    %v6790 = vunpack.c.h.b16 %v5722
    %v6791 = vpack.c.b16 %v6635, %v6631
    %v6792 = vpack.c.b16 %v6636, %v6632
    %v6793 = vpack.c.b16 %v6637, %v6633
    %v6794 = vpack.c.b16 %v6638, %v6634
    %v6795 = vpack.c.b16 %v6643, %v6639
    %v6796 = vpack.c.b16 %v6644, %v6640
    %v6797 = vpack.c.b16 %v6645, %v6641
    %v6798 = vpack.c.b16 %v6646, %v6642
    %v6799 = vpack.c.b16 %v6651, %v6647
    %v6800 = vpack.c.b16 %v6652, %v6648
    %v6801 = vpack.c.b16 %v6653, %v6649
    %v6802 = vpack.c.b16 %v6654, %v6650
    %v6803 = vpack.c.b16 %v6659, %v6655
    %v6804 = vpack.c.b16 %v6660, %v6656
    %v6805 = vpack.c.b16 %v6661, %v6657
    %v6806 = vpack.c.b16 %v6662, %v6658
    %v6807 = vpack.c.b16 %v6667, %v6663
    %v6808 = vpack.c.b16 %v6668, %v6664
    %v6809 = vpack.c.b16 %v6669, %v6665
    %v6810 = vpack.c.b16 %v6670, %v6666
    %v6811 = vpack.c.b16 %v6675, %v6671
    %v6812 = vpack.c.b16 %v6676, %v6672
    %v6813 = vpack.c.b16 %v6677, %v6673
    %v6814 = vpack.c.b16 %v6678, %v6674
    %v6815 = vpack.c.b16 %v6683, %v6679
    %v6816 = vpack.c.b16 %v6684, %v6680
    %v6817 = vpack.c.b16 %v6685, %v6681
    %v6818 = vpack.c.b16 %v6686, %v6682
    %v6819 = vpack.c.b16 %v6691, %v6687
    %v6820 = vpack.c.b16 %v6692, %v6688
    %v6821 = vpack.c.b16 %v6693, %v6689
    %v6822 = vpack.c.b16 %v6694, %v6690
    %v6823 = vpack.c.b16 %v6699, %v6695
    %v6824 = vpack.c.b16 %v6700, %v6696
    %v6825 = vpack.c.b16 %v6701, %v6697
    %v6826 = vpack.c.b16 %v6702, %v6698
    %v6827 = vpack.c.b16 %v6707, %v6703
    %v6828 = vpack.c.b16 %v6708, %v6704
    %v6829 = vpack.c.b16 %v6709, %v6705
    %v6830 = vpack.c.b16 %v6710, %v6706
    %v6831 = vpack.c.b16 %v6715, %v6711
    %v6832 = vpack.c.b16 %v6716, %v6712
    %v6833 = vpack.c.b16 %v6717, %v6713
    %v6834 = vpack.c.b16 %v6718, %v6714
    %v6835 = vpack.c.b16 %v6723, %v6719
    %v6836 = vpack.c.b16 %v6724, %v6720
    %v6837 = vpack.c.b16 %v6725, %v6721
    %v6838 = vpack.c.b16 %v6726, %v6722
    %v6839 = vpack.c.b16 %v6731, %v6727
    %v6840 = vpack.c.b16 %v6732, %v6728
    %v6841 = vpack.c.b16 %v6733, %v6729
    %v6842 = vpack.c.b16 %v6734, %v6730
    %v6843 = vpack.c.b16 %v6739, %v6735
    %v6844 = vpack.c.b16 %v6740, %v6736
    %v6845 = vpack.c.b16 %v6741, %v6737
    %v6846 = vpack.c.b16 %v6742, %v6738
    %v6847 = vpack.c.b16 %v6747, %v6743
    %v6848 = vpack.c.b16 %v6748, %v6744
    %v6849 = vpack.c.b16 %v6749, %v6745
    %v6850 = vpack.c.b16 %v6750, %v6746
    %v6851 = vpack.c.b16 %v6755, %v6751
    %v6852 = vpack.c.b16 %v6756, %v6752
    %v6853 = vpack.c.b16 %v6757, %v6753
    %v6854 = vpack.c.b16 %v6758, %v6754
    %v6855 = vpack.c.b16 %v6763, %v6759
    %v6856 = vpack.c.b16 %v6764, %v6760
    %v6857 = vpack.c.b16 %v6765, %v6761
    %v6858 = vpack.c.b16 %v6766, %v6762
    %v6859 = vpack.c.b16 %v6771, %v6767
    %v6860 = vpack.c.b16 %v6772, %v6768
    %v6861 = vpack.c.b16 %v6773, %v6769
    %v6862 = vpack.c.b16 %v6774, %v6770
    %v6863 = vpack.c.b16 %v6779, %v6775
    %v6864 = vpack.c.b16 %v6780, %v6776
    %v6865 = vpack.c.b16 %v6781, %v6777
    %v6866 = vpack.c.b16 %v6782, %v6778
    %v6867 = vpack.c.b16 %v6787, %v6783
    %v6868 = vpack.c.b16 %v6788, %v6784
    %v6869 = vpack.c.b16 %v6789, %v6785
    %v6870 = vpack.c.b16 %v6790, %v6786
    %v6952 = vsel %vm1267, %v5639, 0
    %v6955 = vsel %vm1267, %v5642, 0
    %6957 = vmatprep.subr.bf16.mxu0 %v6820
    %6958 = vmatpush1.bf16.msra.mxu0 %v6819
    %6959 = vmatprep.subr.bf16.mxu0 %v6816
    %6960 = vmatpush1.bf16.msra.mxu0 %v6815
    %6961 = vmatprep.subr.bf16.mxu0 %v6812
    %6962 = vmatpush1.bf16.msra.mxu0 %v6811
    %6963 = vmatprep.subr.bf16.mxu0 %v6808
    %6964 = vmatpush1.bf16.msra.mxu0 %v6807
    %6965 = vmatprep.subr.bf16.mxu0 %v6804
    %6966 = vmatpush1.bf16.msra.mxu0 %v6803
    %6967 = vmatprep.subr.bf16.mxu0 %v6800
    %6968 = vmatpush1.bf16.msra.mxu0 %v6799
    %6969 = vmatprep.subr.bf16.mxu0 %v6796
    %6970 = vmatpush1.bf16.msra.mxu0 %v6795
    %6971 = vmatprep.subr.bf16.mxu0 %v6792
    %6972 = vmatpush1.bf16.msra.mxu0 %v6791
    %6973 = vmatprep.subr.bf16.mxu0 %v6852
    %6974 = vmatpush2.bf16.msra.mxu0 %v6851
    %6975 = vmatprep.subr.bf16.mxu0 %v6848
    %6976 = vmatpush2.bf16.msra.mxu0 %v6847
    %6977 = vmatprep.subr.bf16.mxu0 %v6844
    %6978 = vmatpush2.bf16.msra.mxu0 %v6843
    %6979 = vmatprep.subr.bf16.mxu0 %v6840
    %6980 = vmatpush2.bf16.msra.mxu0 %v6839
    %6981 = vmatprep.subr.bf16.mxu0 %v6836
    %6982 = vmatpush2.bf16.msra.mxu0 %v6835
    %6983 = vmatprep.subr.bf16.mxu0 %v6832
    %6984 = vmatpush2.bf16.msra.mxu0 %v6831
    %6985 = vmatprep.subr.bf16.mxu0 %v6828
    %6986 = vmatpush2.bf16.msra.mxu0 %v6827
    %6987 = vmatprep.subr.bf16.mxu0 %v6824
    %6988 = vmatpush2.bf16.msra.mxu0 %v6823
    %6989 = vmatprep.mubr.bf16.mxu0 %v5638
    %6990 = vmatmul.mubr.bf16.gmra.mxu0 %v5637
    %v6991 = vpop.f32.mrf.mxu0
    %v6992 = vadd.f32 %v6427, %v6991
    %v6993 = vpop.f32.mrf.mxu0
    %v6994 = vadd.f32 %v6429, %v6993
    %v6995 = vpop.f32.mrf.mxu0
    %v6996 = vadd.f32 %v6431, %v6995
    %v6997 = vpop.f32.mrf.mxu0
    %v6998 = vadd.f32 %v6433, %v6997
    %6999 = vmatprep.mubr.bf16.mxu0 %v5641
    %7000 = vmatmul.mubr.bf16.gmra.mxu0 %v5640
    %v7001 = vpop.f32.mrf.mxu0
    %v7002 = vadd.f32 %v6437, %v7001
    %v7003 = vpop.f32.mrf.mxu0
    %v7004 = vadd.f32 %v6439, %v7003
    %v7005 = vpop.f32.mrf.mxu0
    %v7006 = vadd.f32 %v6441, %v7005
    %v7007 = vpop.f32.mrf.mxu0
    %v7008 = vadd.f32 %v6443, %v7007
    %7009 = vdwg.mxu0
    %7010 = vmatprep.subr.bf16.mxu0 0
    %7011 = vmatpush1.bf16.msra.mxu0 0
    %7012 = vmatprep.subr.bf16.mxu0 0
    %7013 = vmatpush1.bf16.msra.mxu0 0
    %7014 = vmatprep.subr.bf16.mxu0 0
    %7015 = vmatpush1.bf16.msra.mxu0 0
    %7016 = vmatprep.subr.bf16.mxu0 0
    %7017 = vmatpush1.bf16.msra.mxu0 0
    %7018 = vmatprep.subr.bf16.mxu0 %v6868
    %7019 = vmatpush1.bf16.msra.mxu0 %v6867
    %7020 = vmatprep.subr.bf16.mxu0 %v6864
    %7021 = vmatpush1.bf16.msra.mxu0 %v6863
    %7022 = vmatprep.subr.bf16.mxu0 %v6860
    %7023 = vmatpush1.bf16.msra.mxu0 %v6859
    %7024 = vmatprep.subr.bf16.mxu0 %v6856
    %7025 = vmatpush1.bf16.msra.mxu0 %v6855
    %7026 = vmatprep.subr.bf16.mxu0 0
    %7027 = vmatpush2.bf16.msra.mxu0 0
    %7028 = vmatprep.subr.bf16.mxu0 0
    %7029 = vmatpush2.bf16.msra.mxu0 0
    %7030 = vmatprep.subr.bf16.mxu0 0
    %7031 = vmatpush2.bf16.msra.mxu0 0
    %7032 = vmatprep.subr.bf16.mxu0 0
    %7033 = vmatpush2.bf16.msra.mxu0 0
    %7034 = vmatprep.subr.bf16.mxu0 0
    %7035 = vmatpush2.bf16.msra.mxu0 0
    %7036 = vmatprep.subr.bf16.mxu0 0
    %7037 = vmatpush2.bf16.msra.mxu0 0
    %7038 = vmatprep.subr.bf16.mxu0 0
    %7039 = vmatpush2.bf16.msra.mxu0 0
    %7040 = vmatprep.subr.bf16.mxu0 0
    %7041 = vmatpush2.bf16.msra.mxu0 0
    %7042 = vmatprep.mubr.bf16.mxu0 0
    %7043 = vmatmul.mubr.bf16.gmra.mxu0 %v6952
    %v7044 = vpop.f32.mrf.mxu0
    %v7045 = vadd.f32 %v6992, %v7044
    %v7046 = vpop.f32.mrf.mxu0
    %v7047 = vadd.f32 %v6994, %v7046
    %v7048 = vpop.f32.mrf.mxu0
    %v7049 = vadd.f32 %v6996, %v7048
    %v7050 = vpop.f32.mrf.mxu0
    %v7051 = vadd.f32 %v6998, %v7050
    %7052 = vmatprep.mubr.bf16.mxu0 0
    %7053 = vmatmul.mubr.bf16.gmra.mxu0 %v6955
    %v7054 = vpop.f32.mrf.mxu0
    %v7055 = vadd.f32 %v7002, %v7054
    %v7056 = vpop.f32.mrf.mxu0
    %v7057 = vadd.f32 %v7004, %v7056
    %v7058 = vpop.f32.mrf.mxu0
    %v7059 = vadd.f32 %v7006, %v7058
    %v7060 = vpop.f32.mrf.mxu0
    %v7061 = vadd.f32 %v7008, %v7060
    %7062 = vdwg.mxu0
    %7063 = vmatprep.subr.bf16.mxu0 %v6822
    %7064 = vmatpush1.bf16.msra.mxu0 %v6821
    %7065 = vmatprep.subr.bf16.mxu0 %v6818
    %7066 = vmatpush1.bf16.msra.mxu0 %v6817
    %7067 = vmatprep.subr.bf16.mxu0 %v6814
    %7068 = vmatpush1.bf16.msra.mxu0 %v6813
    %7069 = vmatprep.subr.bf16.mxu0 %v6810
    %7070 = vmatpush1.bf16.msra.mxu0 %v6809
    %7071 = vmatprep.subr.bf16.mxu0 %v6806
    %7072 = vmatpush1.bf16.msra.mxu0 %v6805
    %7073 = vmatprep.subr.bf16.mxu0 %v6802
    %7074 = vmatpush1.bf16.msra.mxu0 %v6801
    %7075 = vmatprep.subr.bf16.mxu0 %v6798
    %7076 = vmatpush1.bf16.msra.mxu0 %v6797
    %7077 = vmatprep.subr.bf16.mxu0 %v6794
    %7078 = vmatpush1.bf16.msra.mxu0 %v6793
    %7079 = vmatprep.subr.bf16.mxu0 %v6854
    %7080 = vmatpush2.bf16.msra.mxu0 %v6853
    %7081 = vmatprep.subr.bf16.mxu0 %v6850
    %7082 = vmatpush2.bf16.msra.mxu0 %v6849
    %7083 = vmatprep.subr.bf16.mxu0 %v6846
    %7084 = vmatpush2.bf16.msra.mxu0 %v6845
    %7085 = vmatprep.subr.bf16.mxu0 %v6842
    %7086 = vmatpush2.bf16.msra.mxu0 %v6841
    %7087 = vmatprep.subr.bf16.mxu0 %v6838
    %7088 = vmatpush2.bf16.msra.mxu0 %v6837
    %7089 = vmatprep.subr.bf16.mxu0 %v6834
    %7090 = vmatpush2.bf16.msra.mxu0 %v6833
    %7091 = vmatprep.subr.bf16.mxu0 %v6830
    %7092 = vmatpush2.bf16.msra.mxu0 %v6829
    %7093 = vmatprep.subr.bf16.mxu0 %v6826
    %7094 = vmatpush2.bf16.msra.mxu0 %v6825
    %7095 = vmatprep.mubr.bf16.mxu0 %v5638
    %7096 = vmatmul.mubr.bf16.gmra.mxu0 %v5637
    %v7097 = vpop.f32.mrf.mxu0
    %v7098 = vadd.f32 %v6533, %v7097
    %v7099 = vpop.f32.mrf.mxu0
    %v7100 = vadd.f32 %v6535, %v7099
    %v7101 = vpop.f32.mrf.mxu0
    %v7102 = vadd.f32 %v6537, %v7101
    %v7103 = vpop.f32.mrf.mxu0
    %v7104 = vadd.f32 %v6539, %v7103
    %7105 = vmatprep.mubr.bf16.mxu0 %v5641
    %7106 = vmatmul.mubr.bf16.gmra.mxu0 %v5640
    %v7107 = vpop.f32.mrf.mxu0
    %v7108 = vadd.f32 %v6543, %v7107
    %v7109 = vpop.f32.mrf.mxu0
    %v7110 = vadd.f32 %v6545, %v7109
    %v7111 = vpop.f32.mrf.mxu0
    %v7112 = vadd.f32 %v6547, %v7111
    %v7113 = vpop.f32.mrf.mxu0
    %v7114 = vadd.f32 %v6549, %v7113
    %7115 = vdwg.mxu0
    %7116 = vmatprep.subr.bf16.mxu0 0
    %7117 = vmatpush1.bf16.msra.mxu0 0
    %7118 = vmatprep.subr.bf16.mxu0 0
    %7119 = vmatpush1.bf16.msra.mxu0 0
    %7120 = vmatprep.subr.bf16.mxu0 0
    %7121 = vmatpush1.bf16.msra.mxu0 0
    %7122 = vmatprep.subr.bf16.mxu0 0
    %7123 = vmatpush1.bf16.msra.mxu0 0
    %7124 = vmatprep.subr.bf16.mxu0 %v6870
    %7125 = vmatpush1.bf16.msra.mxu0 %v6869
    %7126 = vmatprep.subr.bf16.mxu0 %v6866
    %7127 = vmatpush1.bf16.msra.mxu0 %v6865
    %7128 = vmatprep.subr.bf16.mxu0 %v6862
    %7129 = vmatpush1.bf16.msra.mxu0 %v6861
    %7130 = vmatprep.subr.bf16.mxu0 %v6858
    %7131 = vmatpush1.bf16.msra.mxu0 %v6857
    %7132 = vmatprep.subr.bf16.mxu0 0
    %7133 = vmatpush2.bf16.msra.mxu0 0
    %7134 = vmatprep.subr.bf16.mxu0 0
    %7135 = vmatpush2.bf16.msra.mxu0 0
    %7136 = vmatprep.subr.bf16.mxu0 0
    %7137 = vmatpush2.bf16.msra.mxu0 0
    %7138 = vmatprep.subr.bf16.mxu0 0
    %7139 = vmatpush2.bf16.msra.mxu0 0
    %7140 = vmatprep.subr.bf16.mxu0 0
    %7141 = vmatpush2.bf16.msra.mxu0 0
    %7142 = vmatprep.subr.bf16.mxu0 0
    %7143 = vmatpush2.bf16.msra.mxu0 0
    %7144 = vmatprep.subr.bf16.mxu0 0
    %7145 = vmatpush2.bf16.msra.mxu0 0
    %7146 = vmatprep.subr.bf16.mxu0 0
    %7147 = vmatpush2.bf16.msra.mxu0 0
    %7148 = vmatprep.mubr.bf16.mxu0 0
    %7149 = vmatmul.mubr.bf16.gmra.mxu0 %v6952
    %v7150 = vpop.f32.mrf.mxu0
    %v7151 = vadd.f32 %v7098, %v7150
    %v7152 = vpop.f32.mrf.mxu0
    %v7153 = vadd.f32 %v7100, %v7152
    %v7154 = vpop.f32.mrf.mxu0
    %v7155 = vadd.f32 %v7102, %v7154
    %v7156 = vpop.f32.mrf.mxu0
    %v7157 = vadd.f32 %v7104, %v7156
    %7158 = vmatprep.mubr.bf16.mxu0 0
    %7159 = vmatmul.mubr.bf16.gmra.mxu0 %v6955
    %v7160 = vpop.f32.mrf.mxu0
    %v7161 = vadd.f32 %v7108, %v7160
    %v7162 = vpop.f32.mrf.mxu0
    %v7163 = vadd.f32 %v7110, %v7162
    %v7164 = vpop.f32.mrf.mxu0
    %v7165 = vadd.f32 %v7112, %v7164
    %v7166 = vpop.f32.mrf.mxu0
    %v7167 = vadd.f32 %v7114, %v7166
    %7168 = vdwg.mxu0
    %s7169 = scalar_lea.vmem %s20, 32
    %v7170 = vld [vmem:[%s7169] sm:$0xf]
    %v7171 = vld [vmem:[%s7169 + $0x4] sm:$0xf]
    %v7172 = vld [vmem:[%s7169 + $0x8] sm:$0xf]
    %v7173 = vld [vmem:[%s7169 + $0xc] sm:$0x7]
    %v7178 = vunpack.c.l.b16 %v7170
    %v7179 = vunpack.c.l.b16 %v7171
    %v7180 = vunpack.c.l.b16 %v7172
    %v7181 = vunpack.c.l.b16 %v7173
    %v7182 = vpack.c.b16 %v7179, %v7178
    %v7183 = vpack.c.b16 %v7181, %v7180
    %v7185 = vsel %vm2656, %v7182, 0
    %v7188 = vsel %vm2656, %v7183, 0
    %7190 = vmatprep.subr.bf16.mxu0 0
    %7191 = vmatpush1.bf16.msra.mxu0 0
    %7192 = vmatprep.subr.bf16.mxu0 0
    %7193 = vmatpush1.bf16.msra.mxu0 0
    %7194 = vmatprep.subr.bf16.mxu0 0
    %7195 = vmatpush1.bf16.msra.mxu0 0
    %7196 = vmatprep.subr.bf16.mxu0 0
    %7197 = vmatpush1.bf16.msra.mxu0 0
    %7198 = vmatprep.subr.bf16.mxu0 0
    %7199 = vmatpush1.bf16.msra.mxu0 0
    %7200 = vmatprep.subr.bf16.mxu0 0
    %7201 = vmatpush1.bf16.msra.mxu0 0
    %7202 = vmatprep.subr.bf16.mxu0 0
    %7203 = vmatpush1.bf16.msra.mxu0 0
    %7204 = vmatprep.subr.bf16.mxu0 %v5530
    %7205 = vmatpush1.bf16.msra.mxu0 %v5527
    %7206 = vmatprep.subr.bf16.mxu0 0
    %7207 = vmatpush2.bf16.msra.mxu0 0
    %7208 = vmatprep.subr.bf16.mxu0 0
    %7209 = vmatpush2.bf16.msra.mxu0 0
    %7210 = vmatprep.subr.bf16.mxu0 0
    %7211 = vmatpush2.bf16.msra.mxu0 0
    %7212 = vmatprep.subr.bf16.mxu0 0
    %7213 = vmatpush2.bf16.msra.mxu0 0
    %7214 = vmatprep.subr.bf16.mxu0 0
    %7215 = vmatpush2.bf16.msra.mxu0 0
    %7216 = vmatprep.subr.bf16.mxu0 0
    %7217 = vmatpush2.bf16.msra.mxu0 0
    %7218 = vmatprep.subr.bf16.mxu0 0
    %7219 = vmatpush2.bf16.msra.mxu0 0
    %7220 = vmatprep.subr.bf16.mxu0 0
    %7221 = vmatpush2.bf16.msra.mxu0 0
    %7222 = vmatprep.mubr.bf16.mxu0 0
    %7223 = vmatmul.mubr.bf16.gmra.mxu0 %v7185
    %v7224 = vpop.f32.mrf.mxu0
    %v7225 = vadd.f32 0.0, %v7224
    %v7226 = vpop.f32.mrf.mxu0
    %v7227 = vadd.f32 0.0, %v7226
    %v7228 = vpop.f32.mrf.mxu0
    %v7229 = vadd.f32 0.0, %v7228
    %v7230 = vpop.f32.mrf.mxu0
    %v7231 = vadd.f32 0.0, %v7230
    %7232 = vmatprep.mubr.bf16.mxu0 0
    %7233 = vmatmul.mubr.bf16.gmra.mxu0 %v7188
    %v7234 = vpop.f32.mrf.mxu0
    %v7235 = vadd.f32 0.0, %v7234
    %v7236 = vpop.f32.mrf.mxu0
    %v7237 = vadd.f32 0.0, %v7236
    %v7238 = vpop.f32.mrf.mxu0
    %v7239 = vadd.f32 0.0, %v7238
    %v7240 = vpop.f32.mrf.mxu0
    %v7241 = vadd.f32 0.0, %v7240
    %7242 = vdwg.mxu0
    %7243 = vmatprep.subr.bf16.mxu0 0
    %7244 = vmatpush1.bf16.msra.mxu0 0
    %7245 = vmatprep.subr.bf16.mxu0 0
    %7246 = vmatpush1.bf16.msra.mxu0 0
    %7247 = vmatprep.subr.bf16.mxu0 0
    %7248 = vmatpush1.bf16.msra.mxu0 0
    %7249 = vmatprep.subr.bf16.mxu0 0
    %7250 = vmatpush1.bf16.msra.mxu0 0
    %7251 = vmatprep.subr.bf16.mxu0 0
    %7252 = vmatpush1.bf16.msra.mxu0 0
    %7253 = vmatprep.subr.bf16.mxu0 0
    %7254 = vmatpush1.bf16.msra.mxu0 0
    %7255 = vmatprep.subr.bf16.mxu0 0
    %7256 = vmatpush1.bf16.msra.mxu0 0
    %7257 = vmatprep.subr.bf16.mxu0 0
    %7258 = vmatpush1.bf16.msra.mxu0 %v5533
    %7259 = vmatprep.subr.bf16.mxu0 0
    %7260 = vmatpush2.bf16.msra.mxu0 0
    %7261 = vmatprep.subr.bf16.mxu0 0
    %7262 = vmatpush2.bf16.msra.mxu0 0
    %7263 = vmatprep.subr.bf16.mxu0 0
    %7264 = vmatpush2.bf16.msra.mxu0 0
    %7265 = vmatprep.subr.bf16.mxu0 0
    %7266 = vmatpush2.bf16.msra.mxu0 0
    %7267 = vmatprep.subr.bf16.mxu0 0
    %7268 = vmatpush2.bf16.msra.mxu0 0
    %7269 = vmatprep.subr.bf16.mxu0 0
    %7270 = vmatpush2.bf16.msra.mxu0 0
    %7271 = vmatprep.subr.bf16.mxu0 0
    %7272 = vmatpush2.bf16.msra.mxu0 0
    %7273 = vmatprep.subr.bf16.mxu0 0
    %7274 = vmatpush2.bf16.msra.mxu0 0
    %7275 = vmatprep.mubr.bf16.mxu0 0
    %7276 = vmatmul.mubr.bf16.gmra.mxu0 %v7185
    %v7277 = vpop.f32.mrf.mxu0
    %v7278 = vadd.f32 0.0, %v7277
    %v7279 = vpop.f32.mrf.mxu0
    %v7280 = vpop.f32.mrf.mxu0
    %v7281 = vadd.f32 0.0, %v7280
    %v7282 = vpop.f32.mrf.mxu0
    %7283 = vmatprep.mubr.bf16.mxu0 0
    %7284 = vmatmul.mubr.bf16.gmra.mxu0 %v7188
    %v7285 = vpop.f32.mrf.mxu0
    %v7286 = vadd.f32 0.0, %v7285
    %v7287 = vpop.f32.mrf.mxu0
    %v7288 = vpop.f32.mrf.mxu0
    %v7289 = vadd.f32 0.0, %v7288
    %v7290 = vpop.f32.mrf.mxu0
    %7291 = vdwg.mxu0
    %v7292 = vpack.c.bf16 %v7229, %v7225
    %v7293 = vpack.c.bf16 %v7231, %v7227
    %v7294 = vpack.c.bf16 %v7281, %v7278
    %v7295 = vpack.c.bf16 %v7239, %v7235
    %v7296 = vpack.c.bf16 %v7241, %v7237
    %v7297 = vpack.c.bf16 %v7289, %v7286
    %s7298 = scalar_lea.vmem %s21, 1280
    %v7299 = vld [vmem:[%s7298] sm:$0xff]
    %v7300 = vld [vmem:[%s7298 + $0x8] sm:$0xff]
    %v7301 = vld [vmem:[%s7298 + $0x10] sm:$0xff]
    %v7302 = vld [vmem:[%s7298 + $0x18] sm:$0xff]
    %v7303 = vld [vmem:[%s7298 + $0x20] sm:$0xff]
    %v7304 = vld [vmem:[%s7298 + $0x28] sm:$0xff]
    %v7305 = vld [vmem:[%s7298 + $0x30] sm:$0xff]
    %v7306 = vld [vmem:[%s7298 + $0x38] sm:$0xff]
    %v7307 = vld [vmem:[%s7298 + $0x40] sm:$0xff]
    %v7308 = vld [vmem:[%s7298 + $0x48] sm:$0xff]
    %v7309 = vld [vmem:[%s7298 + $0x50] sm:$0xff]
    %v7310 = vld [vmem:[%s7298 + $0x58] sm:$0xff]
    %v7311 = vld [vmem:[%s7298 + $0x60] sm:$0xff]
    %v7312 = vld [vmem:[%s7298 + $0x68] sm:$0xff]
    %v7313 = vld [vmem:[%s7298 + $0x70] sm:$0xff]
    %v7314 = vld [vmem:[%s7298 + $0x78] sm:$0xff]
    %v7315 = vld [vmem:[%s7298 + $0x80] sm:$0xff]
    %v7316 = vld [vmem:[%s7298 + $0x88] sm:$0xff]
    %v7317 = vld [vmem:[%s7298 + $0x90] sm:$0xff]
    %v7318 = vld [vmem:[%s7298 + $0x98] sm:$0xff]
    %v7319 = vld [vmem:[%s7298 + $0xa0] sm:$0xff]
    %v7320 = vld [vmem:[%s7298 + $0xa8] sm:$0xff]
    %v7321 = vld [vmem:[%s7298 + $0xb0] sm:$0xff]
    %v7322 = vld [vmem:[%s7298 + $0xb8] sm:$0xff]
    %v7323 = vld [vmem:[%s7298 + $0xc0] sm:$0xff]
    %v7324 = vld [vmem:[%s7298 + $0xc8] sm:$0xff]
    %v7325 = vld [vmem:[%s7298 + $0xd0] sm:$0xff]
    %v7326 = vld [vmem:[%s7298 + $0xd8] sm:$0xff]
    %v7327 = vld [vmem:[%s7298 + $0xe0] sm:$0xff]
    %v7328 = vld [vmem:[%s7298 + $0xe8] sm:$0xff]
    %v7329 = vld [vmem:[%s7298 + $0xf0] sm:$0xff]
    %v7330 = vld [vmem:[%s7298 + $0xf8] sm:$0xff]
    %v7331 = vld [vmem:[%s7298 + $0x100] sm:$0xff]
    %v7332 = vld [vmem:[%s7298 + $0x108] sm:$0xff]
    %v7333 = vld [vmem:[%s7298 + $0x110] sm:$0xff]
    %v7334 = vld [vmem:[%s7298 + $0x118] sm:$0xff]
    %v7335 = vld [vmem:[%s7298 + $0x120] sm:$0xff]
    %v7336 = vld [vmem:[%s7298 + $0x128] sm:$0xff]
    %v7337 = vld [vmem:[%s7298 + $0x130] sm:$0xff]
    %v7338 = vld [vmem:[%s7298 + $0x138] sm:$0xff]
    %v7339 = vld [vmem:[%s7298 + $0x140] sm:$0xff]
    %v7340 = vld [vmem:[%s7298 + $0x148] sm:$0xff]
    %v7341 = vld [vmem:[%s7298 + $0x150] sm:$0xff]
    %v7342 = vld [vmem:[%s7298 + $0x158] sm:$0xff]
    %v7343 = vld [vmem:[%s7298 + $0x160] sm:$0xff]
    %v7344 = vld [vmem:[%s7298 + $0x168] sm:$0xff]
    %v7345 = vld [vmem:[%s7298 + $0x170] sm:$0xff]
    %v7346 = vld [vmem:[%s7298 + $0x178] sm:$0xff]
    %v7347 = vld [vmem:[%s7298 + $0x180] sm:$0xff]
    %v7348 = vld [vmem:[%s7298 + $0x188] sm:$0xff]
    %v7349 = vld [vmem:[%s7298 + $0x190] sm:$0xff]
    %v7350 = vld [vmem:[%s7298 + $0x198] sm:$0xff]
    %v7351 = vld [vmem:[%s7298 + $0x1a0] sm:$0xff]
    %v7352 = vld [vmem:[%s7298 + $0x1a8] sm:$0xff]
    %v7353 = vld [vmem:[%s7298 + $0x1b0] sm:$0xff]
    %v7354 = vld [vmem:[%s7298 + $0x1b8] sm:$0xff]
    %v7355 = vld [vmem:[%s7298 + $0x1c0] sm:$0xff]
    %v7356 = vld [vmem:[%s7298 + $0x1c8] sm:$0xff]
    %v7357 = vld [vmem:[%s7298 + $0x1d0] sm:$0xff]
    %v7358 = vld [vmem:[%s7298 + $0x1d8] sm:$0xff]
    %v7359 = vld [vmem:[%s7298 + $0x1e0] sm:$0xff]
    %v7360 = vld [vmem:[%s7298 + $0x1e8] sm:$0xff]
    %v7361 = vld [vmem:[%s7298 + $0x1f0] sm:$0xff]
    %v7362 = vld [vmem:[%s7298 + $0x1f8] sm:$0xff]
    %v7363 = vld [vmem:[%s7298 + $0x200] sm:$0xff]
    %v7364 = vld [vmem:[%s7298 + $0x208] sm:$0xff]
    %v7365 = vld [vmem:[%s7298 + $0x210] sm:$0xff]
    %v7366 = vld [vmem:[%s7298 + $0x218] sm:$0xff]
    %v7367 = vld [vmem:[%s7298 + $0x220] sm:$0xff]
    %v7368 = vld [vmem:[%s7298 + $0x228] sm:$0xff]
    %v7369 = vld [vmem:[%s7298 + $0x230] sm:$0xff]
    %v7370 = vld [vmem:[%s7298 + $0x238] sm:$0xff]
    %v7371 = vld [vmem:[%s7298 + $0x240] sm:$0xff]
    %v7372 = vld [vmem:[%s7298 + $0x248] sm:$0xff]
    %v7373 = vld [vmem:[%s7298 + $0x250] sm:$0xff]
    %v7374 = vld [vmem:[%s7298 + $0x258] sm:$0xff]
    %v7375 = vld [vmem:[%s7298 + $0x260] sm:$0xff]
    %v7376 = vld [vmem:[%s7298 + $0x268] sm:$0xff]
    %v7377 = vld [vmem:[%s7298 + $0x270] sm:$0xff]
    %v7378 = vld [vmem:[%s7298 + $0x278] sm:$0xff]
    %v7459 = vunpack.c.l.b16 %v7299
    %v7460 = vunpack.c.h.b16 %v7299
    %v7461 = vunpack.c.l.b16 %v7300
    %v7462 = vunpack.c.h.b16 %v7300
    %v7463 = vunpack.c.l.b16 %v7301
    %v7464 = vunpack.c.h.b16 %v7301
    %v7465 = vunpack.c.l.b16 %v7302
    %v7466 = vunpack.c.h.b16 %v7302
    %v7467 = vunpack.c.l.b16 %v7303
    %v7468 = vunpack.c.h.b16 %v7303
    %v7469 = vunpack.c.l.b16 %v7304
    %v7470 = vunpack.c.h.b16 %v7304
    %v7471 = vunpack.c.l.b16 %v7305
    %v7472 = vunpack.c.h.b16 %v7305
    %v7473 = vunpack.c.l.b16 %v7306
    %v7474 = vunpack.c.h.b16 %v7306
    %v7475 = vunpack.c.l.b16 %v7307
    %v7476 = vunpack.c.h.b16 %v7307
    %v7477 = vunpack.c.l.b16 %v7308
    %v7478 = vunpack.c.h.b16 %v7308
    %v7479 = vunpack.c.l.b16 %v7309
    %v7480 = vunpack.c.h.b16 %v7309
    %v7481 = vunpack.c.l.b16 %v7310
    %v7482 = vunpack.c.h.b16 %v7310
    %v7483 = vunpack.c.l.b16 %v7311
    %v7484 = vunpack.c.h.b16 %v7311
    %v7485 = vunpack.c.l.b16 %v7312
    %v7486 = vunpack.c.h.b16 %v7312
    %v7487 = vunpack.c.l.b16 %v7313
    %v7488 = vunpack.c.h.b16 %v7313
    %v7489 = vunpack.c.l.b16 %v7314
    %v7490 = vunpack.c.h.b16 %v7314
    %v7491 = vunpack.c.l.b16 %v7315
    %v7492 = vunpack.c.h.b16 %v7315
    %v7493 = vunpack.c.l.b16 %v7316
    %v7494 = vunpack.c.h.b16 %v7316
    %v7495 = vunpack.c.l.b16 %v7317
    %v7496 = vunpack.c.h.b16 %v7317
    %v7497 = vunpack.c.l.b16 %v7318
    %v7498 = vunpack.c.h.b16 %v7318
    %v7499 = vunpack.c.l.b16 %v7319
    %v7500 = vunpack.c.h.b16 %v7319
    %v7501 = vunpack.c.l.b16 %v7320
    %v7502 = vunpack.c.h.b16 %v7320
    %v7503 = vunpack.c.l.b16 %v7321
    %v7504 = vunpack.c.h.b16 %v7321
    %v7505 = vunpack.c.l.b16 %v7322
    %v7506 = vunpack.c.h.b16 %v7322
    %v7507 = vunpack.c.l.b16 %v7323
    %v7508 = vunpack.c.h.b16 %v7323
    %v7509 = vunpack.c.l.b16 %v7324
    %v7510 = vunpack.c.h.b16 %v7324
    %v7511 = vunpack.c.l.b16 %v7325
    %v7512 = vunpack.c.h.b16 %v7325
    %v7513 = vunpack.c.l.b16 %v7326
    %v7514 = vunpack.c.h.b16 %v7326
    %v7515 = vunpack.c.l.b16 %v7327
    %v7516 = vunpack.c.h.b16 %v7327
    %v7517 = vunpack.c.l.b16 %v7328
    %v7518 = vunpack.c.h.b16 %v7328
    %v7519 = vunpack.c.l.b16 %v7329
    %v7520 = vunpack.c.h.b16 %v7329
    %v7521 = vunpack.c.l.b16 %v7330
    %v7522 = vunpack.c.h.b16 %v7330
    %v7523 = vunpack.c.l.b16 %v7331
    %v7524 = vunpack.c.h.b16 %v7331
    %v7525 = vunpack.c.l.b16 %v7332
    %v7526 = vunpack.c.h.b16 %v7332
    %v7527 = vunpack.c.l.b16 %v7333
    %v7528 = vunpack.c.h.b16 %v7333
    %v7529 = vunpack.c.l.b16 %v7334
    %v7530 = vunpack.c.h.b16 %v7334
    %v7531 = vunpack.c.l.b16 %v7335
    %v7532 = vunpack.c.h.b16 %v7335
    %v7533 = vunpack.c.l.b16 %v7336
    %v7534 = vunpack.c.h.b16 %v7336
    %v7535 = vunpack.c.l.b16 %v7337
    %v7536 = vunpack.c.h.b16 %v7337
    %v7537 = vunpack.c.l.b16 %v7338
    %v7538 = vunpack.c.h.b16 %v7338
    %v7539 = vunpack.c.l.b16 %v7339
    %v7540 = vunpack.c.h.b16 %v7339
    %v7541 = vunpack.c.l.b16 %v7340
    %v7542 = vunpack.c.h.b16 %v7340
    %v7543 = vunpack.c.l.b16 %v7341
    %v7544 = vunpack.c.h.b16 %v7341
    %v7545 = vunpack.c.l.b16 %v7342
    %v7546 = vunpack.c.h.b16 %v7342
    %v7547 = vunpack.c.l.b16 %v7343
    %v7548 = vunpack.c.h.b16 %v7343
    %v7549 = vunpack.c.l.b16 %v7344
    %v7550 = vunpack.c.h.b16 %v7344
    %v7551 = vunpack.c.l.b16 %v7345
    %v7552 = vunpack.c.h.b16 %v7345
    %v7553 = vunpack.c.l.b16 %v7346
    %v7554 = vunpack.c.h.b16 %v7346
    %v7555 = vunpack.c.l.b16 %v7347
    %v7556 = vunpack.c.h.b16 %v7347
    %v7557 = vunpack.c.l.b16 %v7348
    %v7558 = vunpack.c.h.b16 %v7348
    %v7559 = vunpack.c.l.b16 %v7349
    %v7560 = vunpack.c.h.b16 %v7349
    %v7561 = vunpack.c.l.b16 %v7350
    %v7562 = vunpack.c.h.b16 %v7350
    %v7563 = vunpack.c.l.b16 %v7351
    %v7564 = vunpack.c.h.b16 %v7351
    %v7565 = vunpack.c.l.b16 %v7352
    %v7566 = vunpack.c.h.b16 %v7352
    %v7567 = vunpack.c.l.b16 %v7353
    %v7568 = vunpack.c.h.b16 %v7353
    %v7569 = vunpack.c.l.b16 %v7354
    %v7570 = vunpack.c.h.b16 %v7354
    %v7571 = vunpack.c.l.b16 %v7355
    %v7572 = vunpack.c.h.b16 %v7355
    %v7573 = vunpack.c.l.b16 %v7356
    %v7574 = vunpack.c.h.b16 %v7356
    %v7575 = vunpack.c.l.b16 %v7357
    %v7576 = vunpack.c.h.b16 %v7357
    %v7577 = vunpack.c.l.b16 %v7358
    %v7578 = vunpack.c.h.b16 %v7358
    %v7579 = vunpack.c.l.b16 %v7359
    %v7580 = vunpack.c.h.b16 %v7359
    %v7581 = vunpack.c.l.b16 %v7360
    %v7582 = vunpack.c.h.b16 %v7360
    %v7583 = vunpack.c.l.b16 %v7361
    %v7584 = vunpack.c.h.b16 %v7361
    %v7585 = vunpack.c.l.b16 %v7362
    %v7586 = vunpack.c.h.b16 %v7362
    %v7587 = vunpack.c.l.b16 %v7363
    %v7588 = vunpack.c.h.b16 %v7363
    %v7589 = vunpack.c.l.b16 %v7364
    %v7590 = vunpack.c.h.b16 %v7364
    %v7591 = vunpack.c.l.b16 %v7365
    %v7592 = vunpack.c.h.b16 %v7365
    %v7593 = vunpack.c.l.b16 %v7366
    %v7594 = vunpack.c.h.b16 %v7366
    %v7595 = vunpack.c.l.b16 %v7367
    %v7596 = vunpack.c.h.b16 %v7367
    %v7597 = vunpack.c.l.b16 %v7368
    %v7598 = vunpack.c.h.b16 %v7368
    %v7599 = vunpack.c.l.b16 %v7369
    %v7600 = vunpack.c.h.b16 %v7369
    %v7601 = vunpack.c.l.b16 %v7370
    %v7602 = vunpack.c.h.b16 %v7370
    %v7603 = vunpack.c.l.b16 %v7371
    %v7604 = vunpack.c.h.b16 %v7371
    %v7605 = vunpack.c.l.b16 %v7372
    %v7606 = vunpack.c.h.b16 %v7372
    %v7607 = vunpack.c.l.b16 %v7373
    %v7608 = vunpack.c.h.b16 %v7373
    %v7609 = vunpack.c.l.b16 %v7374
    %v7610 = vunpack.c.h.b16 %v7374
    %v7611 = vunpack.c.l.b16 %v7375
    %v7612 = vunpack.c.h.b16 %v7375
    %v7613 = vunpack.c.l.b16 %v7376
    %v7614 = vunpack.c.h.b16 %v7376
    %v7615 = vunpack.c.l.b16 %v7377
    %v7616 = vunpack.c.h.b16 %v7377
    %v7617 = vunpack.c.l.b16 %v7378
    %v7618 = vunpack.c.h.b16 %v7378
    %v7619 = vpack.c.b16 %v7463, %v7459
    %v7620 = vpack.c.b16 %v7464, %v7460
    %v7621 = vpack.c.b16 %v7465, %v7461
    %v7622 = vpack.c.b16 %v7466, %v7462
    %v7623 = vpack.c.b16 %v7471, %v7467
    %v7624 = vpack.c.b16 %v7472, %v7468
    %v7625 = vpack.c.b16 %v7473, %v7469
    %v7626 = vpack.c.b16 %v7474, %v7470
    %v7627 = vpack.c.b16 %v7479, %v7475
    %v7628 = vpack.c.b16 %v7480, %v7476
    %v7629 = vpack.c.b16 %v7481, %v7477
    %v7630 = vpack.c.b16 %v7482, %v7478
    %v7631 = vpack.c.b16 %v7487, %v7483
    %v7632 = vpack.c.b16 %v7488, %v7484
    %v7633 = vpack.c.b16 %v7489, %v7485
    %v7634 = vpack.c.b16 %v7490, %v7486
    %v7635 = vpack.c.b16 %v7495, %v7491
    %v7636 = vpack.c.b16 %v7496, %v7492
    %v7637 = vpack.c.b16 %v7497, %v7493
    %v7638 = vpack.c.b16 %v7498, %v7494
    %v7639 = vpack.c.b16 %v7503, %v7499
    %v7640 = vpack.c.b16 %v7504, %v7500
    %v7641 = vpack.c.b16 %v7505, %v7501
    %v7642 = vpack.c.b16 %v7506, %v7502
    %v7643 = vpack.c.b16 %v7511, %v7507
    %v7644 = vpack.c.b16 %v7512, %v7508
    %v7645 = vpack.c.b16 %v7513, %v7509
    %v7646 = vpack.c.b16 %v7514, %v7510
    %v7647 = vpack.c.b16 %v7519, %v7515
    %v7648 = vpack.c.b16 %v7520, %v7516
    %v7649 = vpack.c.b16 %v7521, %v7517
    %v7650 = vpack.c.b16 %v7522, %v7518
    %v7651 = vpack.c.b16 %v7527, %v7523
    %v7652 = vpack.c.b16 %v7528, %v7524
    %v7653 = vpack.c.b16 %v7529, %v7525
    %v7654 = vpack.c.b16 %v7530, %v7526
    %v7655 = vpack.c.b16 %v7535, %v7531
    %v7656 = vpack.c.b16 %v7536, %v7532
    %v7657 = vpack.c.b16 %v7537, %v7533
    %v7658 = vpack.c.b16 %v7538, %v7534
    %v7659 = vpack.c.b16 %v7543, %v7539
    %v7660 = vpack.c.b16 %v7544, %v7540
    %v7661 = vpack.c.b16 %v7545, %v7541
    %v7662 = vpack.c.b16 %v7546, %v7542
    %v7663 = vpack.c.b16 %v7551, %v7547
    %v7664 = vpack.c.b16 %v7552, %v7548
    %v7665 = vpack.c.b16 %v7553, %v7549
    %v7666 = vpack.c.b16 %v7554, %v7550
    %v7667 = vpack.c.b16 %v7559, %v7555
    %v7668 = vpack.c.b16 %v7560, %v7556
    %v7669 = vpack.c.b16 %v7561, %v7557
    %v7670 = vpack.c.b16 %v7562, %v7558
    %v7671 = vpack.c.b16 %v7567, %v7563
    %v7672 = vpack.c.b16 %v7568, %v7564
    %v7673 = vpack.c.b16 %v7569, %v7565
    %v7674 = vpack.c.b16 %v7570, %v7566
    %v7675 = vpack.c.b16 %v7575, %v7571
    %v7676 = vpack.c.b16 %v7576, %v7572
    %v7677 = vpack.c.b16 %v7577, %v7573
    %v7678 = vpack.c.b16 %v7578, %v7574
    %v7679 = vpack.c.b16 %v7583, %v7579
    %v7680 = vpack.c.b16 %v7584, %v7580
    %v7681 = vpack.c.b16 %v7585, %v7581
    %v7682 = vpack.c.b16 %v7586, %v7582
    %v7683 = vpack.c.b16 %v7591, %v7587
    %v7684 = vpack.c.b16 %v7592, %v7588
    %v7685 = vpack.c.b16 %v7593, %v7589
    %v7686 = vpack.c.b16 %v7594, %v7590
    %v7687 = vpack.c.b16 %v7599, %v7595
    %v7688 = vpack.c.b16 %v7600, %v7596
    %v7689 = vpack.c.b16 %v7601, %v7597
    %v7690 = vpack.c.b16 %v7602, %v7598
    %v7691 = vpack.c.b16 %v7607, %v7603
    %v7692 = vpack.c.b16 %v7608, %v7604
    %v7693 = vpack.c.b16 %v7609, %v7605
    %v7694 = vpack.c.b16 %v7610, %v7606
    %v7695 = vpack.c.b16 %v7615, %v7611
    %v7696 = vpack.c.b16 %v7616, %v7612
    %v7697 = vpack.c.b16 %v7617, %v7613
    %v7698 = vpack.c.b16 %v7618, %v7614
    %v7780 = vsel %vm1267, %v7294, 0
    %v7783 = vsel %vm1267, %v7297, 0
    %7785 = vmatprep.subr.bf16.mxu0 %v7648
    %7786 = vmatpush1.bf16.msra.mxu0 %v7647
    %7787 = vmatprep.subr.bf16.mxu0 %v7644
    %7788 = vmatpush1.bf16.msra.mxu0 %v7643
    %7789 = vmatprep.subr.bf16.mxu0 %v7640
    %7790 = vmatpush1.bf16.msra.mxu0 %v7639
    %7791 = vmatprep.subr.bf16.mxu0 %v7636
    %7792 = vmatpush1.bf16.msra.mxu0 %v7635
    %7793 = vmatprep.subr.bf16.mxu0 %v7632
    %7794 = vmatpush1.bf16.msra.mxu0 %v7631
    %7795 = vmatprep.subr.bf16.mxu0 %v7628
    %7796 = vmatpush1.bf16.msra.mxu0 %v7627
    %7797 = vmatprep.subr.bf16.mxu0 %v7624
    %7798 = vmatpush1.bf16.msra.mxu0 %v7623
    %7799 = vmatprep.subr.bf16.mxu0 %v7620
    %7800 = vmatpush1.bf16.msra.mxu0 %v7619
    %7801 = vmatprep.subr.bf16.mxu0 %v7680
    %7802 = vmatpush2.bf16.msra.mxu0 %v7679
    %7803 = vmatprep.subr.bf16.mxu0 %v7676
    %7804 = vmatpush2.bf16.msra.mxu0 %v7675
    %7805 = vmatprep.subr.bf16.mxu0 %v7672
    %7806 = vmatpush2.bf16.msra.mxu0 %v7671
    %7807 = vmatprep.subr.bf16.mxu0 %v7668
    %7808 = vmatpush2.bf16.msra.mxu0 %v7667
    %7809 = vmatprep.subr.bf16.mxu0 %v7664
    %7810 = vmatpush2.bf16.msra.mxu0 %v7663
    %7811 = vmatprep.subr.bf16.mxu0 %v7660
    %7812 = vmatpush2.bf16.msra.mxu0 %v7659
    %7813 = vmatprep.subr.bf16.mxu0 %v7656
    %7814 = vmatpush2.bf16.msra.mxu0 %v7655
    %7815 = vmatprep.subr.bf16.mxu0 %v7652
    %7816 = vmatpush2.bf16.msra.mxu0 %v7651
    %7817 = vmatprep.mubr.bf16.mxu0 %v7293
    %7818 = vmatmul.mubr.bf16.gmra.mxu0 %v7292
    %v7819 = vpop.f32.mrf.mxu0
    %v7820 = vadd.f32 0.0, %v7819
    %v7821 = vpop.f32.mrf.mxu0
    %v7822 = vadd.f32 0.0, %v7821
    %v7823 = vpop.f32.mrf.mxu0
    %v7824 = vadd.f32 0.0, %v7823
    %v7825 = vpop.f32.mrf.mxu0
    %v7826 = vadd.f32 0.0, %v7825
    %7827 = vmatprep.mubr.bf16.mxu0 %v7296
    %7828 = vmatmul.mubr.bf16.gmra.mxu0 %v7295
    %v7829 = vpop.f32.mrf.mxu0
    %v7830 = vadd.f32 0.0, %v7829
    %v7831 = vpop.f32.mrf.mxu0
    %v7832 = vadd.f32 0.0, %v7831
    %v7833 = vpop.f32.mrf.mxu0
    %v7834 = vadd.f32 0.0, %v7833
    %v7835 = vpop.f32.mrf.mxu0
    %v7836 = vadd.f32 0.0, %v7835
    %7837 = vdwg.mxu0
    %7838 = vmatprep.subr.bf16.mxu0 0
    %7839 = vmatpush1.bf16.msra.mxu0 0
    %7840 = vmatprep.subr.bf16.mxu0 0
    %7841 = vmatpush1.bf16.msra.mxu0 0
    %7842 = vmatprep.subr.bf16.mxu0 0
    %7843 = vmatpush1.bf16.msra.mxu0 0
    %7844 = vmatprep.subr.bf16.mxu0 0
    %7845 = vmatpush1.bf16.msra.mxu0 0
    %7846 = vmatprep.subr.bf16.mxu0 %v7696
    %7847 = vmatpush1.bf16.msra.mxu0 %v7695
    %7848 = vmatprep.subr.bf16.mxu0 %v7692
    %7849 = vmatpush1.bf16.msra.mxu0 %v7691
    %7850 = vmatprep.subr.bf16.mxu0 %v7688
    %7851 = vmatpush1.bf16.msra.mxu0 %v7687
    %7852 = vmatprep.subr.bf16.mxu0 %v7684
    %7853 = vmatpush1.bf16.msra.mxu0 %v7683
    %7854 = vmatprep.subr.bf16.mxu0 0
    %7855 = vmatpush2.bf16.msra.mxu0 0
    %7856 = vmatprep.subr.bf16.mxu0 0
    %7857 = vmatpush2.bf16.msra.mxu0 0
    %7858 = vmatprep.subr.bf16.mxu0 0
    %7859 = vmatpush2.bf16.msra.mxu0 0
    %7860 = vmatprep.subr.bf16.mxu0 0
    %7861 = vmatpush2.bf16.msra.mxu0 0
    %7862 = vmatprep.subr.bf16.mxu0 0
    %7863 = vmatpush2.bf16.msra.mxu0 0
    %7864 = vmatprep.subr.bf16.mxu0 0
    %7865 = vmatpush2.bf16.msra.mxu0 0
    %7866 = vmatprep.subr.bf16.mxu0 0
    %7867 = vmatpush2.bf16.msra.mxu0 0
    %7868 = vmatprep.subr.bf16.mxu0 0
    %7869 = vmatpush2.bf16.msra.mxu0 0
    %7870 = vmatprep.mubr.bf16.mxu0 0
    %7871 = vmatmul.mubr.bf16.gmra.mxu0 %v7780
    %v7872 = vpop.f32.mrf.mxu0
    %v7873 = vadd.f32 %v7820, %v7872
    %v7874 = vpop.f32.mrf.mxu0
    %v7875 = vadd.f32 %v7822, %v7874
    %v7876 = vpop.f32.mrf.mxu0
    %v7877 = vadd.f32 %v7824, %v7876
    %v7878 = vpop.f32.mrf.mxu0
    %v7879 = vadd.f32 %v7826, %v7878
    %7880 = vmatprep.mubr.bf16.mxu0 0
    %7881 = vmatmul.mubr.bf16.gmra.mxu0 %v7783
    %v7882 = vpop.f32.mrf.mxu0
    %v7883 = vadd.f32 %v7830, %v7882
    %v7884 = vpop.f32.mrf.mxu0
    %v7885 = vadd.f32 %v7832, %v7884
    %v7886 = vpop.f32.mrf.mxu0
    %v7887 = vadd.f32 %v7834, %v7886
    %v7888 = vpop.f32.mrf.mxu0
    %v7889 = vadd.f32 %v7836, %v7888
    %7890 = vdwg.mxu0
    %7891 = vmatprep.subr.bf16.mxu0 %v7650
    %7892 = vmatpush1.bf16.msra.mxu0 %v7649
    %7893 = vmatprep.subr.bf16.mxu0 %v7646
    %7894 = vmatpush1.bf16.msra.mxu0 %v7645
    %7895 = vmatprep.subr.bf16.mxu0 %v7642
    %7896 = vmatpush1.bf16.msra.mxu0 %v7641
    %7897 = vmatprep.subr.bf16.mxu0 %v7638
    %7898 = vmatpush1.bf16.msra.mxu0 %v7637
    %7899 = vmatprep.subr.bf16.mxu0 %v7634
    %7900 = vmatpush1.bf16.msra.mxu0 %v7633
    %7901 = vmatprep.subr.bf16.mxu0 %v7630
    %7902 = vmatpush1.bf16.msra.mxu0 %v7629
    %7903 = vmatprep.subr.bf16.mxu0 %v7626
    %7904 = vmatpush1.bf16.msra.mxu0 %v7625
    %7905 = vmatprep.subr.bf16.mxu0 %v7622
    %7906 = vmatpush1.bf16.msra.mxu0 %v7621
    %7907 = vmatprep.subr.bf16.mxu0 %v7682
    %7908 = vmatpush2.bf16.msra.mxu0 %v7681
    %7909 = vmatprep.subr.bf16.mxu0 %v7678
    %7910 = vmatpush2.bf16.msra.mxu0 %v7677
    %7911 = vmatprep.subr.bf16.mxu0 %v7674
    %7912 = vmatpush2.bf16.msra.mxu0 %v7673
    %7913 = vmatprep.subr.bf16.mxu0 %v7670
    %7914 = vmatpush2.bf16.msra.mxu0 %v7669
    %7915 = vmatprep.subr.bf16.mxu0 %v7666
    %7916 = vmatpush2.bf16.msra.mxu0 %v7665
    %7917 = vmatprep.subr.bf16.mxu0 %v7662
    %7918 = vmatpush2.bf16.msra.mxu0 %v7661
    %7919 = vmatprep.subr.bf16.mxu0 %v7658
    %7920 = vmatpush2.bf16.msra.mxu0 %v7657
    %7921 = vmatprep.subr.bf16.mxu0 %v7654
    %7922 = vmatpush2.bf16.msra.mxu0 %v7653
    %7923 = vmatprep.mubr.bf16.mxu0 %v7293
    %7924 = vmatmul.mubr.bf16.gmra.mxu0 %v7292
    %v7925 = vpop.f32.mrf.mxu0
    %v7926 = vadd.f32 0.0, %v7925
    %v7927 = vpop.f32.mrf.mxu0
    %v7928 = vadd.f32 0.0, %v7927
    %v7929 = vpop.f32.mrf.mxu0
    %v7930 = vadd.f32 0.0, %v7929
    %v7931 = vpop.f32.mrf.mxu0
    %v7932 = vadd.f32 0.0, %v7931
    %7933 = vmatprep.mubr.bf16.mxu0 %v7296
    %7934 = vmatmul.mubr.bf16.gmra.mxu0 %v7295
    %v7935 = vpop.f32.mrf.mxu0
    %v7936 = vadd.f32 0.0, %v7935
    %v7937 = vpop.f32.mrf.mxu0
    %v7938 = vadd.f32 0.0, %v7937
    %v7939 = vpop.f32.mrf.mxu0
    %v7940 = vadd.f32 0.0, %v7939
    %v7941 = vpop.f32.mrf.mxu0
    %v7942 = vadd.f32 0.0, %v7941
    %7943 = vdwg.mxu0
    %7944 = vmatprep.subr.bf16.mxu0 0
    %7945 = vmatpush1.bf16.msra.mxu0 0
    %7946 = vmatprep.subr.bf16.mxu0 0
    %7947 = vmatpush1.bf16.msra.mxu0 0
    %7948 = vmatprep.subr.bf16.mxu0 0
    %7949 = vmatpush1.bf16.msra.mxu0 0
    %7950 = vmatprep.subr.bf16.mxu0 0
    %7951 = vmatpush1.bf16.msra.mxu0 0
    %7952 = vmatprep.subr.bf16.mxu0 %v7698
    %7953 = vmatpush1.bf16.msra.mxu0 %v7697
    %7954 = vmatprep.subr.bf16.mxu0 %v7694
    %7955 = vmatpush1.bf16.msra.mxu0 %v7693
    %7956 = vmatprep.subr.bf16.mxu0 %v7690
    %7957 = vmatpush1.bf16.msra.mxu0 %v7689
    %7958 = vmatprep.subr.bf16.mxu0 %v7686
    %7959 = vmatpush1.bf16.msra.mxu0 %v7685
    %7960 = vmatprep.subr.bf16.mxu0 0
    %7961 = vmatpush2.bf16.msra.mxu0 0
    %7962 = vmatprep.subr.bf16.mxu0 0
    %7963 = vmatpush2.bf16.msra.mxu0 0
    %7964 = vmatprep.subr.bf16.mxu0 0
    %7965 = vmatpush2.bf16.msra.mxu0 0
    %7966 = vmatprep.subr.bf16.mxu0 0
    %7967 = vmatpush2.bf16.msra.mxu0 0
    %7968 = vmatprep.subr.bf16.mxu0 0
    %7969 = vmatpush2.bf16.msra.mxu0 0
    %7970 = vmatprep.subr.bf16.mxu0 0
    %7971 = vmatpush2.bf16.msra.mxu0 0
    %7972 = vmatprep.subr.bf16.mxu0 0
    %7973 = vmatpush2.bf16.msra.mxu0 0
    %7974 = vmatprep.subr.bf16.mxu0 0
    %7975 = vmatpush2.bf16.msra.mxu0 0
    %7976 = vmatprep.mubr.bf16.mxu0 0
    %7977 = vmatmul.mubr.bf16.gmra.mxu0 %v7780
    %v7978 = vpop.f32.mrf.mxu0
    %v7979 = vadd.f32 %v7926, %v7978
    %v7980 = vpop.f32.mrf.mxu0
    %v7981 = vadd.f32 %v7928, %v7980
    %v7982 = vpop.f32.mrf.mxu0
    %v7983 = vadd.f32 %v7930, %v7982
    %v7984 = vpop.f32.mrf.mxu0
    %v7985 = vadd.f32 %v7932, %v7984
    %7986 = vmatprep.mubr.bf16.mxu0 0
    %7987 = vmatmul.mubr.bf16.gmra.mxu0 %v7783
    %v7988 = vpop.f32.mrf.mxu0
    %v7989 = vadd.f32 %v7936, %v7988
    %v7990 = vpop.f32.mrf.mxu0
    %v7991 = vadd.f32 %v7938, %v7990
    %v7992 = vpop.f32.mrf.mxu0
    %v7993 = vadd.f32 %v7940, %v7992
    %v7994 = vpop.f32.mrf.mxu0
    %v7995 = vadd.f32 %v7942, %v7994
    %7996 = vdwg.mxu0
    %v7997 = vadd.f32 %v7045, %v7873
    %v7998 = vadd.f32 %v7047, %v7875
    %v7999 = vadd.f32 %v7151, %v7979
    %v8000 = vadd.f32 %v7153, %v7981
    %v8001 = vadd.f32 %v7049, %v7877
    %v8002 = vadd.f32 %v7051, %v7879
    %v8003 = vadd.f32 %v7155, %v7983
    %v8004 = vadd.f32 %v7157, %v7985
    %v8005 = vadd.f32 %v7055, %v7883
    %v8006 = vadd.f32 %v7057, %v7885
    %v8007 = vadd.f32 %v7161, %v7989
    %v8008 = vadd.f32 %v7163, %v7991
    %v8009 = vadd.f32 %v7059, %v7887
    %v8010 = vadd.f32 %v7061, %v7889
    %v8011 = vadd.f32 %v7165, %v7993
    %v8012 = vadd.f32 %v7167, %v7995
    %s8013 = scalar_lea.vmem %s20, 48
    %v8014 = vld [vmem:[%s8013] sm:$0xf]
    %v8015 = vld [vmem:[%s8013 + $0x4] sm:$0xf]
    %v8016 = vld [vmem:[%s8013 + $0x8] sm:$0xf]
    %v8017 = vld [vmem:[%s8013 + $0xc] sm:$0x7]
    %v8022 = vunpack.c.l.b16 %v8014
    %v8023 = vunpack.c.l.b16 %v8015
    %v8024 = vunpack.c.l.b16 %v8016
    %v8025 = vunpack.c.l.b16 %v8017
    %v8026 = vpack.c.b16 %v8023, %v8022
    %v8027 = vpack.c.b16 %v8025, %v8024
    %v8029 = vsel %vm2656, %v8026, 0
    %v8032 = vsel %vm2656, %v8027, 0
    %8034 = vmatprep.subr.bf16.mxu0 0
    %8035 = vmatpush1.bf16.msra.mxu0 0
    %8036 = vmatprep.subr.bf16.mxu0 0
    %8037 = vmatpush1.bf16.msra.mxu0 0
    %8038 = vmatprep.subr.bf16.mxu0 0
    %8039 = vmatpush1.bf16.msra.mxu0 0
    %8040 = vmatprep.subr.bf16.mxu0 0
    %8041 = vmatpush1.bf16.msra.mxu0 0
    %8042 = vmatprep.subr.bf16.mxu0 0
    %8043 = vmatpush1.bf16.msra.mxu0 0
    %8044 = vmatprep.subr.bf16.mxu0 0
    %8045 = vmatpush1.bf16.msra.mxu0 0
    %8046 = vmatprep.subr.bf16.mxu0 0
    %8047 = vmatpush1.bf16.msra.mxu0 0
    %8048 = vmatprep.subr.bf16.mxu0 %v5530
    %8049 = vmatpush1.bf16.msra.mxu0 %v5527
    %8050 = vmatprep.subr.bf16.mxu0 0
    %8051 = vmatpush2.bf16.msra.mxu0 0
    %8052 = vmatprep.subr.bf16.mxu0 0
    %8053 = vmatpush2.bf16.msra.mxu0 0
    %8054 = vmatprep.subr.bf16.mxu0 0
    %8055 = vmatpush2.bf16.msra.mxu0 0
    %8056 = vmatprep.subr.bf16.mxu0 0
    %8057 = vmatpush2.bf16.msra.mxu0 0
    %8058 = vmatprep.subr.bf16.mxu0 0
    %8059 = vmatpush2.bf16.msra.mxu0 0
    %8060 = vmatprep.subr.bf16.mxu0 0
    %8061 = vmatpush2.bf16.msra.mxu0 0
    %8062 = vmatprep.subr.bf16.mxu0 0
    %8063 = vmatpush2.bf16.msra.mxu0 0
    %8064 = vmatprep.subr.bf16.mxu0 0
    %8065 = vmatpush2.bf16.msra.mxu0 0
    %8066 = vmatprep.mubr.bf16.mxu0 0
    %8067 = vmatmul.mubr.bf16.gmra.mxu0 %v8029
    %v8068 = vpop.f32.mrf.mxu0
    %v8069 = vadd.f32 0.0, %v8068
    %v8070 = vpop.f32.mrf.mxu0
    %v8071 = vadd.f32 0.0, %v8070
    %v8072 = vpop.f32.mrf.mxu0
    %v8073 = vadd.f32 0.0, %v8072
    %v8074 = vpop.f32.mrf.mxu0
    %v8075 = vadd.f32 0.0, %v8074
    %8076 = vmatprep.mubr.bf16.mxu0 0
    %8077 = vmatmul.mubr.bf16.gmra.mxu0 %v8032
    %v8078 = vpop.f32.mrf.mxu0
    %v8079 = vadd.f32 0.0, %v8078
    %v8080 = vpop.f32.mrf.mxu0
    %v8081 = vadd.f32 0.0, %v8080
    %v8082 = vpop.f32.mrf.mxu0
    %v8083 = vadd.f32 0.0, %v8082
    %v8084 = vpop.f32.mrf.mxu0
    %v8085 = vadd.f32 0.0, %v8084
    %8086 = vdwg.mxu0
    %8087 = vmatprep.subr.bf16.mxu0 0
    %8088 = vmatpush1.bf16.msra.mxu0 0
    %8089 = vmatprep.subr.bf16.mxu0 0
    %8090 = vmatpush1.bf16.msra.mxu0 0
    %8091 = vmatprep.subr.bf16.mxu0 0
    %8092 = vmatpush1.bf16.msra.mxu0 0
    %8093 = vmatprep.subr.bf16.mxu0 0
    %8094 = vmatpush1.bf16.msra.mxu0 0
    %8095 = vmatprep.subr.bf16.mxu0 0
    %8096 = vmatpush1.bf16.msra.mxu0 0
    %8097 = vmatprep.subr.bf16.mxu0 0
    %8098 = vmatpush1.bf16.msra.mxu0 0
    %8099 = vmatprep.subr.bf16.mxu0 0
    %8100 = vmatpush1.bf16.msra.mxu0 0
    %8101 = vmatprep.subr.bf16.mxu0 0
    %8102 = vmatpush1.bf16.msra.mxu0 %v5533
    %8103 = vmatprep.subr.bf16.mxu0 0
    %8104 = vmatpush2.bf16.msra.mxu0 0
    %8105 = vmatprep.subr.bf16.mxu0 0
    %8106 = vmatpush2.bf16.msra.mxu0 0
    %8107 = vmatprep.subr.bf16.mxu0 0
    %8108 = vmatpush2.bf16.msra.mxu0 0
    %8109 = vmatprep.subr.bf16.mxu0 0
    %8110 = vmatpush2.bf16.msra.mxu0 0
    %8111 = vmatprep.subr.bf16.mxu0 0
    %8112 = vmatpush2.bf16.msra.mxu0 0
    %8113 = vmatprep.subr.bf16.mxu0 0
    %8114 = vmatpush2.bf16.msra.mxu0 0
    %8115 = vmatprep.subr.bf16.mxu0 0
    %8116 = vmatpush2.bf16.msra.mxu0 0
    %8117 = vmatprep.subr.bf16.mxu0 0
    %8118 = vmatpush2.bf16.msra.mxu0 0
    %8119 = vmatprep.mubr.bf16.mxu0 0
    %8120 = vmatmul.mubr.bf16.gmra.mxu0 %v8029
    %v8121 = vpop.f32.mrf.mxu0
    %v8122 = vadd.f32 0.0, %v8121
    %v8123 = vpop.f32.mrf.mxu0
    %v8124 = vpop.f32.mrf.mxu0
    %v8125 = vadd.f32 0.0, %v8124
    %v8126 = vpop.f32.mrf.mxu0
    %8127 = vmatprep.mubr.bf16.mxu0 0
    %8128 = vmatmul.mubr.bf16.gmra.mxu0 %v8032
    %v8129 = vpop.f32.mrf.mxu0
    %v8130 = vadd.f32 0.0, %v8129
    %v8131 = vpop.f32.mrf.mxu0
    %v8132 = vpop.f32.mrf.mxu0
    %v8133 = vadd.f32 0.0, %v8132
    %v8134 = vpop.f32.mrf.mxu0
    %8135 = vdwg.mxu0
    %v8136 = vpack.c.bf16 %v8073, %v8069
    %v8137 = vpack.c.bf16 %v8075, %v8071
    %v8138 = vpack.c.bf16 %v8125, %v8122
    %v8139 = vpack.c.bf16 %v8083, %v8079
    %v8140 = vpack.c.bf16 %v8085, %v8081
    %v8141 = vpack.c.bf16 %v8133, %v8130
    %s8142 = scalar_lea.vmem %s21, 1920
    %v8143 = vld [vmem:[%s8142] sm:$0xff]
    %v8144 = vld [vmem:[%s8142 + $0x8] sm:$0xff]
    %v8145 = vld [vmem:[%s8142 + $0x10] sm:$0xff]
    %v8146 = vld [vmem:[%s8142 + $0x18] sm:$0xff]
    %v8147 = vld [vmem:[%s8142 + $0x20] sm:$0xff]
    %v8148 = vld [vmem:[%s8142 + $0x28] sm:$0xff]
    %v8149 = vld [vmem:[%s8142 + $0x30] sm:$0xff]
    %v8150 = vld [vmem:[%s8142 + $0x38] sm:$0xff]
    %v8151 = vld [vmem:[%s8142 + $0x40] sm:$0xff]
    %v8152 = vld [vmem:[%s8142 + $0x48] sm:$0xff]
    %v8153 = vld [vmem:[%s8142 + $0x50] sm:$0xff]
    %v8154 = vld [vmem:[%s8142 + $0x58] sm:$0xff]
    %v8155 = vld [vmem:[%s8142 + $0x60] sm:$0xff]
    %v8156 = vld [vmem:[%s8142 + $0x68] sm:$0xff]
    %v8157 = vld [vmem:[%s8142 + $0x70] sm:$0xff]
    %v8158 = vld [vmem:[%s8142 + $0x78] sm:$0xff]
    %v8159 = vld [vmem:[%s8142 + $0x80] sm:$0xff]
    %v8160 = vld [vmem:[%s8142 + $0x88] sm:$0xff]
    %v8161 = vld [vmem:[%s8142 + $0x90] sm:$0xff]
    %v8162 = vld [vmem:[%s8142 + $0x98] sm:$0xff]
    %v8163 = vld [vmem:[%s8142 + $0xa0] sm:$0xff]
    %v8164 = vld [vmem:[%s8142 + $0xa8] sm:$0xff]
    %v8165 = vld [vmem:[%s8142 + $0xb0] sm:$0xff]
    %v8166 = vld [vmem:[%s8142 + $0xb8] sm:$0xff]
    %v8167 = vld [vmem:[%s8142 + $0xc0] sm:$0xff]
    %v8168 = vld [vmem:[%s8142 + $0xc8] sm:$0xff]
    %v8169 = vld [vmem:[%s8142 + $0xd0] sm:$0xff]
    %v8170 = vld [vmem:[%s8142 + $0xd8] sm:$0xff]
    %v8171 = vld [vmem:[%s8142 + $0xe0] sm:$0xff]
    %v8172 = vld [vmem:[%s8142 + $0xe8] sm:$0xff]
    %v8173 = vld [vmem:[%s8142 + $0xf0] sm:$0xff]
    %v8174 = vld [vmem:[%s8142 + $0xf8] sm:$0xff]
    %v8175 = vld [vmem:[%s8142 + $0x100] sm:$0xff]
    %v8176 = vld [vmem:[%s8142 + $0x108] sm:$0xff]
    %v8177 = vld [vmem:[%s8142 + $0x110] sm:$0xff]
    %v8178 = vld [vmem:[%s8142 + $0x118] sm:$0xff]
    %v8179 = vld [vmem:[%s8142 + $0x120] sm:$0xff]
    %v8180 = vld [vmem:[%s8142 + $0x128] sm:$0xff]
    %v8181 = vld [vmem:[%s8142 + $0x130] sm:$0xff]
    %v8182 = vld [vmem:[%s8142 + $0x138] sm:$0xff]
    %v8183 = vld [vmem:[%s8142 + $0x140] sm:$0xff]
    %v8184 = vld [vmem:[%s8142 + $0x148] sm:$0xff]
    %v8185 = vld [vmem:[%s8142 + $0x150] sm:$0xff]
    %v8186 = vld [vmem:[%s8142 + $0x158] sm:$0xff]
    %v8187 = vld [vmem:[%s8142 + $0x160] sm:$0xff]
    %v8188 = vld [vmem:[%s8142 + $0x168] sm:$0xff]
    %v8189 = vld [vmem:[%s8142 + $0x170] sm:$0xff]
    %v8190 = vld [vmem:[%s8142 + $0x178] sm:$0xff]
    %v8191 = vld [vmem:[%s8142 + $0x180] sm:$0xff]
    %v8192 = vld [vmem:[%s8142 + $0x188] sm:$0xff]
    %v8193 = vld [vmem:[%s8142 + $0x190] sm:$0xff]
    %v8194 = vld [vmem:[%s8142 + $0x198] sm:$0xff]
    %v8195 = vld [vmem:[%s8142 + $0x1a0] sm:$0xff]
    %v8196 = vld [vmem:[%s8142 + $0x1a8] sm:$0xff]
    %v8197 = vld [vmem:[%s8142 + $0x1b0] sm:$0xff]
    %v8198 = vld [vmem:[%s8142 + $0x1b8] sm:$0xff]
    %v8199 = vld [vmem:[%s8142 + $0x1c0] sm:$0xff]
    %v8200 = vld [vmem:[%s8142 + $0x1c8] sm:$0xff]
    %v8201 = vld [vmem:[%s8142 + $0x1d0] sm:$0xff]
    %v8202 = vld [vmem:[%s8142 + $0x1d8] sm:$0xff]
    %v8203 = vld [vmem:[%s8142 + $0x1e0] sm:$0xff]
    %v8204 = vld [vmem:[%s8142 + $0x1e8] sm:$0xff]
    %v8205 = vld [vmem:[%s8142 + $0x1f0] sm:$0xff]
    %v8206 = vld [vmem:[%s8142 + $0x1f8] sm:$0xff]
    %v8207 = vld [vmem:[%s8142 + $0x200] sm:$0xff]
    %v8208 = vld [vmem:[%s8142 + $0x208] sm:$0xff]
    %v8209 = vld [vmem:[%s8142 + $0x210] sm:$0xff]
    %v8210 = vld [vmem:[%s8142 + $0x218] sm:$0xff]
    %v8211 = vld [vmem:[%s8142 + $0x220] sm:$0xff]
    %v8212 = vld [vmem:[%s8142 + $0x228] sm:$0xff]
    %v8213 = vld [vmem:[%s8142 + $0x230] sm:$0xff]
    %v8214 = vld [vmem:[%s8142 + $0x238] sm:$0xff]
    %v8215 = vld [vmem:[%s8142 + $0x240] sm:$0xff]
    %v8216 = vld [vmem:[%s8142 + $0x248] sm:$0xff]
    %v8217 = vld [vmem:[%s8142 + $0x250] sm:$0xff]
    %v8218 = vld [vmem:[%s8142 + $0x258] sm:$0xff]
    %v8219 = vld [vmem:[%s8142 + $0x260] sm:$0xff]
    %v8220 = vld [vmem:[%s8142 + $0x268] sm:$0xff]
    %v8221 = vld [vmem:[%s8142 + $0x270] sm:$0xff]
    %v8222 = vld [vmem:[%s8142 + $0x278] sm:$0xff]
    %v8303 = vunpack.c.l.b16 %v8143
    %v8304 = vunpack.c.h.b16 %v8143
    %v8305 = vunpack.c.l.b16 %v8144
    %v8306 = vunpack.c.h.b16 %v8144
    %v8307 = vunpack.c.l.b16 %v8145
    %v8308 = vunpack.c.h.b16 %v8145
    %v8309 = vunpack.c.l.b16 %v8146
    %v8310 = vunpack.c.h.b16 %v8146
    %v8311 = vunpack.c.l.b16 %v8147
    %v8312 = vunpack.c.h.b16 %v8147
    %v8313 = vunpack.c.l.b16 %v8148
    %v8314 = vunpack.c.h.b16 %v8148
    %v8315 = vunpack.c.l.b16 %v8149
    %v8316 = vunpack.c.h.b16 %v8149
    %v8317 = vunpack.c.l.b16 %v8150
    %v8318 = vunpack.c.h.b16 %v8150
    %v8319 = vunpack.c.l.b16 %v8151
    %v8320 = vunpack.c.h.b16 %v8151
    %v8321 = vunpack.c.l.b16 %v8152
    %v8322 = vunpack.c.h.b16 %v8152
    %v8323 = vunpack.c.l.b16 %v8153
    %v8324 = vunpack.c.h.b16 %v8153
    %v8325 = vunpack.c.l.b16 %v8154
    %v8326 = vunpack.c.h.b16 %v8154
    %v8327 = vunpack.c.l.b16 %v8155
    %v8328 = vunpack.c.h.b16 %v8155
    %v8329 = vunpack.c.l.b16 %v8156
    %v8330 = vunpack.c.h.b16 %v8156
    %v8331 = vunpack.c.l.b16 %v8157
    %v8332 = vunpack.c.h.b16 %v8157
    %v8333 = vunpack.c.l.b16 %v8158
    %v8334 = vunpack.c.h.b16 %v8158
    %v8335 = vunpack.c.l.b16 %v8159
    %v8336 = vunpack.c.h.b16 %v8159
    %v8337 = vunpack.c.l.b16 %v8160
    %v8338 = vunpack.c.h.b16 %v8160
    %v8339 = vunpack.c.l.b16 %v8161
    %v8340 = vunpack.c.h.b16 %v8161
    %v8341 = vunpack.c.l.b16 %v8162
    %v8342 = vunpack.c.h.b16 %v8162
    %v8343 = vunpack.c.l.b16 %v8163
    %v8344 = vunpack.c.h.b16 %v8163
    %v8345 = vunpack.c.l.b16 %v8164
    %v8346 = vunpack.c.h.b16 %v8164
    %v8347 = vunpack.c.l.b16 %v8165
    %v8348 = vunpack.c.h.b16 %v8165
    %v8349 = vunpack.c.l.b16 %v8166
    %v8350 = vunpack.c.h.b16 %v8166
    %v8351 = vunpack.c.l.b16 %v8167
    %v8352 = vunpack.c.h.b16 %v8167
    %v8353 = vunpack.c.l.b16 %v8168
    %v8354 = vunpack.c.h.b16 %v8168
    %v8355 = vunpack.c.l.b16 %v8169
    %v8356 = vunpack.c.h.b16 %v8169
    %v8357 = vunpack.c.l.b16 %v8170
    %v8358 = vunpack.c.h.b16 %v8170
    %v8359 = vunpack.c.l.b16 %v8171
    %v8360 = vunpack.c.h.b16 %v8171
    %v8361 = vunpack.c.l.b16 %v8172
    %v8362 = vunpack.c.h.b16 %v8172
    %v8363 = vunpack.c.l.b16 %v8173
    %v8364 = vunpack.c.h.b16 %v8173
    %v8365 = vunpack.c.l.b16 %v8174
    %v8366 = vunpack.c.h.b16 %v8174
    %v8367 = vunpack.c.l.b16 %v8175
    %v8368 = vunpack.c.h.b16 %v8175
    %v8369 = vunpack.c.l.b16 %v8176
    %v8370 = vunpack.c.h.b16 %v8176
    %v8371 = vunpack.c.l.b16 %v8177
    %v8372 = vunpack.c.h.b16 %v8177
    %v8373 = vunpack.c.l.b16 %v8178
    %v8374 = vunpack.c.h.b16 %v8178
    %v8375 = vunpack.c.l.b16 %v8179
    %v8376 = vunpack.c.h.b16 %v8179
    %v8377 = vunpack.c.l.b16 %v8180
    %v8378 = vunpack.c.h.b16 %v8180
    %v8379 = vunpack.c.l.b16 %v8181
    %v8380 = vunpack.c.h.b16 %v8181
    %v8381 = vunpack.c.l.b16 %v8182
    %v8382 = vunpack.c.h.b16 %v8182
    %v8383 = vunpack.c.l.b16 %v8183
    %v8384 = vunpack.c.h.b16 %v8183
    %v8385 = vunpack.c.l.b16 %v8184
    %v8386 = vunpack.c.h.b16 %v8184
    %v8387 = vunpack.c.l.b16 %v8185
    %v8388 = vunpack.c.h.b16 %v8185
    %v8389 = vunpack.c.l.b16 %v8186
    %v8390 = vunpack.c.h.b16 %v8186
    %v8391 = vunpack.c.l.b16 %v8187
    %v8392 = vunpack.c.h.b16 %v8187
    %v8393 = vunpack.c.l.b16 %v8188
    %v8394 = vunpack.c.h.b16 %v8188
    %v8395 = vunpack.c.l.b16 %v8189
    %v8396 = vunpack.c.h.b16 %v8189
    %v8397 = vunpack.c.l.b16 %v8190
    %v8398 = vunpack.c.h.b16 %v8190
    %v8399 = vunpack.c.l.b16 %v8191
    %v8400 = vunpack.c.h.b16 %v8191
    %v8401 = vunpack.c.l.b16 %v8192
    %v8402 = vunpack.c.h.b16 %v8192
    %v8403 = vunpack.c.l.b16 %v8193
    %v8404 = vunpack.c.h.b16 %v8193
    %v8405 = vunpack.c.l.b16 %v8194
    %v8406 = vunpack.c.h.b16 %v8194
    %v8407 = vunpack.c.l.b16 %v8195
    %v8408 = vunpack.c.h.b16 %v8195
    %v8409 = vunpack.c.l.b16 %v8196
    %v8410 = vunpack.c.h.b16 %v8196
    %v8411 = vunpack.c.l.b16 %v8197
    %v8412 = vunpack.c.h.b16 %v8197
    %v8413 = vunpack.c.l.b16 %v8198
    %v8414 = vunpack.c.h.b16 %v8198
    %v8415 = vunpack.c.l.b16 %v8199
    %v8416 = vunpack.c.h.b16 %v8199
    %v8417 = vunpack.c.l.b16 %v8200
    %v8418 = vunpack.c.h.b16 %v8200
    %v8419 = vunpack.c.l.b16 %v8201
    %v8420 = vunpack.c.h.b16 %v8201
    %v8421 = vunpack.c.l.b16 %v8202
    %v8422 = vunpack.c.h.b16 %v8202
    %v8423 = vunpack.c.l.b16 %v8203
    %v8424 = vunpack.c.h.b16 %v8203
    %v8425 = vunpack.c.l.b16 %v8204
    %v8426 = vunpack.c.h.b16 %v8204
    %v8427 = vunpack.c.l.b16 %v8205
    %v8428 = vunpack.c.h.b16 %v8205
    %v8429 = vunpack.c.l.b16 %v8206
    %v8430 = vunpack.c.h.b16 %v8206
    %v8431 = vunpack.c.l.b16 %v8207
    %v8432 = vunpack.c.h.b16 %v8207
    %v8433 = vunpack.c.l.b16 %v8208
    %v8434 = vunpack.c.h.b16 %v8208
    %v8435 = vunpack.c.l.b16 %v8209
    %v8436 = vunpack.c.h.b16 %v8209
    %v8437 = vunpack.c.l.b16 %v8210
    %v8438 = vunpack.c.h.b16 %v8210
    %v8439 = vunpack.c.l.b16 %v8211
    %v8440 = vunpack.c.h.b16 %v8211
    %v8441 = vunpack.c.l.b16 %v8212
    %v8442 = vunpack.c.h.b16 %v8212
    %v8443 = vunpack.c.l.b16 %v8213
    %v8444 = vunpack.c.h.b16 %v8213
    %v8445 = vunpack.c.l.b16 %v8214
    %v8446 = vunpack.c.h.b16 %v8214
    %v8447 = vunpack.c.l.b16 %v8215
    %v8448 = vunpack.c.h.b16 %v8215
    %v8449 = vunpack.c.l.b16 %v8216
    %v8450 = vunpack.c.h.b16 %v8216
    %v8451 = vunpack.c.l.b16 %v8217
    %v8452 = vunpack.c.h.b16 %v8217
    %v8453 = vunpack.c.l.b16 %v8218
    %v8454 = vunpack.c.h.b16 %v8218
    %v8455 = vunpack.c.l.b16 %v8219
    %v8456 = vunpack.c.h.b16 %v8219
    %v8457 = vunpack.c.l.b16 %v8220
    %v8458 = vunpack.c.h.b16 %v8220
    %v8459 = vunpack.c.l.b16 %v8221
    %v8460 = vunpack.c.h.b16 %v8221
    %v8461 = vunpack.c.l.b16 %v8222
    %v8462 = vunpack.c.h.b16 %v8222
    %v8463 = vpack.c.b16 %v8307, %v8303
    %v8464 = vpack.c.b16 %v8308, %v8304
    %v8465 = vpack.c.b16 %v8309, %v8305
    %v8466 = vpack.c.b16 %v8310, %v8306
    %v8467 = vpack.c.b16 %v8315, %v8311
    %v8468 = vpack.c.b16 %v8316, %v8312
    %v8469 = vpack.c.b16 %v8317, %v8313
    %v8470 = vpack.c.b16 %v8318, %v8314
    %v8471 = vpack.c.b16 %v8323, %v8319
    %v8472 = vpack.c.b16 %v8324, %v8320
    %v8473 = vpack.c.b16 %v8325, %v8321
    %v8474 = vpack.c.b16 %v8326, %v8322
    %v8475 = vpack.c.b16 %v8331, %v8327
    %v8476 = vpack.c.b16 %v8332, %v8328
    %v8477 = vpack.c.b16 %v8333, %v8329
    %v8478 = vpack.c.b16 %v8334, %v8330
    %v8479 = vpack.c.b16 %v8339, %v8335
    %v8480 = vpack.c.b16 %v8340, %v8336
    %v8481 = vpack.c.b16 %v8341, %v8337
    %v8482 = vpack.c.b16 %v8342, %v8338
    %v8483 = vpack.c.b16 %v8347, %v8343
    %v8484 = vpack.c.b16 %v8348, %v8344
    %v8485 = vpack.c.b16 %v8349, %v8345
    %v8486 = vpack.c.b16 %v8350, %v8346
    %v8487 = vpack.c.b16 %v8355, %v8351
    %v8488 = vpack.c.b16 %v8356, %v8352
    %v8489 = vpack.c.b16 %v8357, %v8353
    %v8490 = vpack.c.b16 %v8358, %v8354
    %v8491 = vpack.c.b16 %v8363, %v8359
    %v8492 = vpack.c.b16 %v8364, %v8360
    %v8493 = vpack.c.b16 %v8365, %v8361
    %v8494 = vpack.c.b16 %v8366, %v8362
    %v8495 = vpack.c.b16 %v8371, %v8367
    %v8496 = vpack.c.b16 %v8372, %v8368
    %v8497 = vpack.c.b16 %v8373, %v8369
    %v8498 = vpack.c.b16 %v8374, %v8370
    %v8499 = vpack.c.b16 %v8379, %v8375
    %v8500 = vpack.c.b16 %v8380, %v8376
    %v8501 = vpack.c.b16 %v8381, %v8377
    %v8502 = vpack.c.b16 %v8382, %v8378
    %v8503 = vpack.c.b16 %v8387, %v8383
    %v8504 = vpack.c.b16 %v8388, %v8384
    %v8505 = vpack.c.b16 %v8389, %v8385
    %v8506 = vpack.c.b16 %v8390, %v8386
    %v8507 = vpack.c.b16 %v8395, %v8391
    %v8508 = vpack.c.b16 %v8396, %v8392
    %v8509 = vpack.c.b16 %v8397, %v8393
    %v8510 = vpack.c.b16 %v8398, %v8394
    %v8511 = vpack.c.b16 %v8403, %v8399
    %v8512 = vpack.c.b16 %v8404, %v8400
    %v8513 = vpack.c.b16 %v8405, %v8401
    %v8514 = vpack.c.b16 %v8406, %v8402
    %v8515 = vpack.c.b16 %v8411, %v8407
    %v8516 = vpack.c.b16 %v8412, %v8408
    %v8517 = vpack.c.b16 %v8413, %v8409
    %v8518 = vpack.c.b16 %v8414, %v8410
    %v8519 = vpack.c.b16 %v8419, %v8415
    %v8520 = vpack.c.b16 %v8420, %v8416
    %v8521 = vpack.c.b16 %v8421, %v8417
    %v8522 = vpack.c.b16 %v8422, %v8418
    %v8523 = vpack.c.b16 %v8427, %v8423
    %v8524 = vpack.c.b16 %v8428, %v8424
    %v8525 = vpack.c.b16 %v8429, %v8425
    %v8526 = vpack.c.b16 %v8430, %v8426
    %v8527 = vpack.c.b16 %v8435, %v8431
    %v8528 = vpack.c.b16 %v8436, %v8432
    %v8529 = vpack.c.b16 %v8437, %v8433
    %v8530 = vpack.c.b16 %v8438, %v8434
    %v8531 = vpack.c.b16 %v8443, %v8439
    %v8532 = vpack.c.b16 %v8444, %v8440
    %v8533 = vpack.c.b16 %v8445, %v8441
    %v8534 = vpack.c.b16 %v8446, %v8442
    %v8535 = vpack.c.b16 %v8451, %v8447
    %v8536 = vpack.c.b16 %v8452, %v8448
    %v8537 = vpack.c.b16 %v8453, %v8449
    %v8538 = vpack.c.b16 %v8454, %v8450
    %v8539 = vpack.c.b16 %v8459, %v8455
    %v8540 = vpack.c.b16 %v8460, %v8456
    %v8541 = vpack.c.b16 %v8461, %v8457
    %v8542 = vpack.c.b16 %v8462, %v8458
    %v8624 = vsel %vm1267, %v8138, 0
    %v8627 = vsel %vm1267, %v8141, 0
    %8629 = vmatprep.subr.bf16.mxu0 %v8492
    %8630 = vmatpush1.bf16.msra.mxu0 %v8491
    %8631 = vmatprep.subr.bf16.mxu0 %v8488
    %8632 = vmatpush1.bf16.msra.mxu0 %v8487
    %8633 = vmatprep.subr.bf16.mxu0 %v8484
    %8634 = vmatpush1.bf16.msra.mxu0 %v8483
    %8635 = vmatprep.subr.bf16.mxu0 %v8480
    %8636 = vmatpush1.bf16.msra.mxu0 %v8479
    %8637 = vmatprep.subr.bf16.mxu0 %v8476
    %8638 = vmatpush1.bf16.msra.mxu0 %v8475
    %8639 = vmatprep.subr.bf16.mxu0 %v8472
    %8640 = vmatpush1.bf16.msra.mxu0 %v8471
    %8641 = vmatprep.subr.bf16.mxu0 %v8468
    %8642 = vmatpush1.bf16.msra.mxu0 %v8467
    %8643 = vmatprep.subr.bf16.mxu0 %v8464
    %8644 = vmatpush1.bf16.msra.mxu0 %v8463
    %8645 = vmatprep.subr.bf16.mxu0 %v8524
    %8646 = vmatpush2.bf16.msra.mxu0 %v8523
    %8647 = vmatprep.subr.bf16.mxu0 %v8520
    %8648 = vmatpush2.bf16.msra.mxu0 %v8519
    %8649 = vmatprep.subr.bf16.mxu0 %v8516
    %8650 = vmatpush2.bf16.msra.mxu0 %v8515
    %8651 = vmatprep.subr.bf16.mxu0 %v8512
    %8652 = vmatpush2.bf16.msra.mxu0 %v8511
    %8653 = vmatprep.subr.bf16.mxu0 %v8508
    %8654 = vmatpush2.bf16.msra.mxu0 %v8507
    %8655 = vmatprep.subr.bf16.mxu0 %v8504
    %8656 = vmatpush2.bf16.msra.mxu0 %v8503
    %8657 = vmatprep.subr.bf16.mxu0 %v8500
    %8658 = vmatpush2.bf16.msra.mxu0 %v8499
    %8659 = vmatprep.subr.bf16.mxu0 %v8496
    %8660 = vmatpush2.bf16.msra.mxu0 %v8495
    %8661 = vmatprep.mubr.bf16.mxu0 %v8137
    %8662 = vmatmul.mubr.bf16.gmra.mxu0 %v8136
    %v8663 = vpop.f32.mrf.mxu0
    %v8664 = vadd.f32 0.0, %v8663
    %v8665 = vpop.f32.mrf.mxu0
    %v8666 = vadd.f32 0.0, %v8665
    %v8667 = vpop.f32.mrf.mxu0
    %v8668 = vadd.f32 0.0, %v8667
    %v8669 = vpop.f32.mrf.mxu0
    %v8670 = vadd.f32 0.0, %v8669
    %8671 = vmatprep.mubr.bf16.mxu0 %v8140
    %8672 = vmatmul.mubr.bf16.gmra.mxu0 %v8139
    %v8673 = vpop.f32.mrf.mxu0
    %v8674 = vadd.f32 0.0, %v8673
    %v8675 = vpop.f32.mrf.mxu0
    %v8676 = vadd.f32 0.0, %v8675
    %v8677 = vpop.f32.mrf.mxu0
    %v8678 = vadd.f32 0.0, %v8677
    %v8679 = vpop.f32.mrf.mxu0
    %v8680 = vadd.f32 0.0, %v8679
    %8681 = vdwg.mxu0
    %8682 = vmatprep.subr.bf16.mxu0 0
    %8683 = vmatpush1.bf16.msra.mxu0 0
    %8684 = vmatprep.subr.bf16.mxu0 0
    %8685 = vmatpush1.bf16.msra.mxu0 0
    %8686 = vmatprep.subr.bf16.mxu0 0
    %8687 = vmatpush1.bf16.msra.mxu0 0
    %8688 = vmatprep.subr.bf16.mxu0 0
    %8689 = vmatpush1.bf16.msra.mxu0 0
    %8690 = vmatprep.subr.bf16.mxu0 %v8540
    %8691 = vmatpush1.bf16.msra.mxu0 %v8539
    %8692 = vmatprep.subr.bf16.mxu0 %v8536
    %8693 = vmatpush1.bf16.msra.mxu0 %v8535
    %8694 = vmatprep.subr.bf16.mxu0 %v8532
    %8695 = vmatpush1.bf16.msra.mxu0 %v8531
    %8696 = vmatprep.subr.bf16.mxu0 %v8528
    %8697 = vmatpush1.bf16.msra.mxu0 %v8527
    %8698 = vmatprep.subr.bf16.mxu0 0
    %8699 = vmatpush2.bf16.msra.mxu0 0
    %8700 = vmatprep.subr.bf16.mxu0 0
    %8701 = vmatpush2.bf16.msra.mxu0 0
    %8702 = vmatprep.subr.bf16.mxu0 0
    %8703 = vmatpush2.bf16.msra.mxu0 0
    %8704 = vmatprep.subr.bf16.mxu0 0
    %8705 = vmatpush2.bf16.msra.mxu0 0
    %8706 = vmatprep.subr.bf16.mxu0 0
    %8707 = vmatpush2.bf16.msra.mxu0 0
    %8708 = vmatprep.subr.bf16.mxu0 0
    %8709 = vmatpush2.bf16.msra.mxu0 0
    %8710 = vmatprep.subr.bf16.mxu0 0
    %8711 = vmatpush2.bf16.msra.mxu0 0
    %8712 = vmatprep.subr.bf16.mxu0 0
    %8713 = vmatpush2.bf16.msra.mxu0 0
    %8714 = vmatprep.mubr.bf16.mxu0 0
    %8715 = vmatmul.mubr.bf16.gmra.mxu0 %v8624
    %v8716 = vpop.f32.mrf.mxu0
    %v8717 = vadd.f32 %v8664, %v8716
    %v8718 = vpop.f32.mrf.mxu0
    %v8719 = vadd.f32 %v8666, %v8718
    %v8720 = vpop.f32.mrf.mxu0
    %v8721 = vadd.f32 %v8668, %v8720
    %v8722 = vpop.f32.mrf.mxu0
    %v8723 = vadd.f32 %v8670, %v8722
    %8724 = vmatprep.mubr.bf16.mxu0 0
    %8725 = vmatmul.mubr.bf16.gmra.mxu0 %v8627
    %v8726 = vpop.f32.mrf.mxu0
    %v8727 = vadd.f32 %v8674, %v8726
    %v8728 = vpop.f32.mrf.mxu0
    %v8729 = vadd.f32 %v8676, %v8728
    %v8730 = vpop.f32.mrf.mxu0
    %v8731 = vadd.f32 %v8678, %v8730
    %v8732 = vpop.f32.mrf.mxu0
    %v8733 = vadd.f32 %v8680, %v8732
    %8734 = vdwg.mxu0
    %8735 = vmatprep.subr.bf16.mxu0 %v8494
    %8736 = vmatpush1.bf16.msra.mxu0 %v8493
    %8737 = vmatprep.subr.bf16.mxu0 %v8490
    %8738 = vmatpush1.bf16.msra.mxu0 %v8489
    %8739 = vmatprep.subr.bf16.mxu0 %v8486
    %8740 = vmatpush1.bf16.msra.mxu0 %v8485
    %8741 = vmatprep.subr.bf16.mxu0 %v8482
    %8742 = vmatpush1.bf16.msra.mxu0 %v8481
    %8743 = vmatprep.subr.bf16.mxu0 %v8478
    %8744 = vmatpush1.bf16.msra.mxu0 %v8477
    %8745 = vmatprep.subr.bf16.mxu0 %v8474
    %8746 = vmatpush1.bf16.msra.mxu0 %v8473
    %8747 = vmatprep.subr.bf16.mxu0 %v8470
    %8748 = vmatpush1.bf16.msra.mxu0 %v8469
    %8749 = vmatprep.subr.bf16.mxu0 %v8466
    %8750 = vmatpush1.bf16.msra.mxu0 %v8465
    %8751 = vmatprep.subr.bf16.mxu0 %v8526
    %8752 = vmatpush2.bf16.msra.mxu0 %v8525
    %8753 = vmatprep.subr.bf16.mxu0 %v8522
    %8754 = vmatpush2.bf16.msra.mxu0 %v8521
    %8755 = vmatprep.subr.bf16.mxu0 %v8518
    %8756 = vmatpush2.bf16.msra.mxu0 %v8517
    %8757 = vmatprep.subr.bf16.mxu0 %v8514
    %8758 = vmatpush2.bf16.msra.mxu0 %v8513
    %8759 = vmatprep.subr.bf16.mxu0 %v8510
    %8760 = vmatpush2.bf16.msra.mxu0 %v8509
    %8761 = vmatprep.subr.bf16.mxu0 %v8506
    %8762 = vmatpush2.bf16.msra.mxu0 %v8505
    %8763 = vmatprep.subr.bf16.mxu0 %v8502
    %8764 = vmatpush2.bf16.msra.mxu0 %v8501
    %8765 = vmatprep.subr.bf16.mxu0 %v8498
    %8766 = vmatpush2.bf16.msra.mxu0 %v8497
    %8767 = vmatprep.mubr.bf16.mxu0 %v8137
    %8768 = vmatmul.mubr.bf16.gmra.mxu0 %v8136
    %v8769 = vpop.f32.mrf.mxu0
    %v8770 = vadd.f32 0.0, %v8769
    %v8771 = vpop.f32.mrf.mxu0
    %v8772 = vadd.f32 0.0, %v8771
    %v8773 = vpop.f32.mrf.mxu0
    %v8774 = vadd.f32 0.0, %v8773
    %v8775 = vpop.f32.mrf.mxu0
    %v8776 = vadd.f32 0.0, %v8775
    %8777 = vmatprep.mubr.bf16.mxu0 %v8140
    %8778 = vmatmul.mubr.bf16.gmra.mxu0 %v8139
    %v8779 = vpop.f32.mrf.mxu0
    %v8780 = vadd.f32 0.0, %v8779
    %v8781 = vpop.f32.mrf.mxu0
    %v8782 = vadd.f32 0.0, %v8781
    %v8783 = vpop.f32.mrf.mxu0
    %v8784 = vadd.f32 0.0, %v8783
    %v8785 = vpop.f32.mrf.mxu0
    %v8786 = vadd.f32 0.0, %v8785
    %8787 = vdwg.mxu0
    %8788 = vmatprep.subr.bf16.mxu0 0
    %8789 = vmatpush1.bf16.msra.mxu0 0
    %8790 = vmatprep.subr.bf16.mxu0 0
    %8791 = vmatpush1.bf16.msra.mxu0 0
    %8792 = vmatprep.subr.bf16.mxu0 0
    %8793 = vmatpush1.bf16.msra.mxu0 0
    %8794 = vmatprep.subr.bf16.mxu0 0
    %8795 = vmatpush1.bf16.msra.mxu0 0
    %8796 = vmatprep.subr.bf16.mxu0 %v8542
    %8797 = vmatpush1.bf16.msra.mxu0 %v8541
    %8798 = vmatprep.subr.bf16.mxu0 %v8538
    %8799 = vmatpush1.bf16.msra.mxu0 %v8537
    %8800 = vmatprep.subr.bf16.mxu0 %v8534
    %8801 = vmatpush1.bf16.msra.mxu0 %v8533
    %8802 = vmatprep.subr.bf16.mxu0 %v8530
    %8803 = vmatpush1.bf16.msra.mxu0 %v8529
    %8804 = vmatprep.subr.bf16.mxu0 0
    %8805 = vmatpush2.bf16.msra.mxu0 0
    %8806 = vmatprep.subr.bf16.mxu0 0
    %8807 = vmatpush2.bf16.msra.mxu0 0
    %8808 = vmatprep.subr.bf16.mxu0 0
    %8809 = vmatpush2.bf16.msra.mxu0 0
    %8810 = vmatprep.subr.bf16.mxu0 0
    %8811 = vmatpush2.bf16.msra.mxu0 0
    %8812 = vmatprep.subr.bf16.mxu0 0
    %8813 = vmatpush2.bf16.msra.mxu0 0
    %8814 = vmatprep.subr.bf16.mxu0 0
    %8815 = vmatpush2.bf16.msra.mxu0 0
    %8816 = vmatprep.subr.bf16.mxu0 0
    %8817 = vmatpush2.bf16.msra.mxu0 0
    %8818 = vmatprep.subr.bf16.mxu0 0
    %8819 = vmatpush2.bf16.msra.mxu0 0
    %8820 = vmatprep.mubr.bf16.mxu0 0
    %8821 = vmatmul.mubr.bf16.gmra.mxu0 %v8624
    %v8822 = vpop.f32.mrf.mxu0
    %v8823 = vadd.f32 %v8770, %v8822
    %v8824 = vpop.f32.mrf.mxu0
    %v8825 = vadd.f32 %v8772, %v8824
    %v8826 = vpop.f32.mrf.mxu0
    %v8827 = vadd.f32 %v8774, %v8826
    %v8828 = vpop.f32.mrf.mxu0
    %v8829 = vadd.f32 %v8776, %v8828
    %8830 = vmatprep.mubr.bf16.mxu0 0
    %8831 = vmatmul.mubr.bf16.gmra.mxu0 %v8627
    %v8832 = vpop.f32.mrf.mxu0
    %v8833 = vadd.f32 %v8780, %v8832
    %v8834 = vpop.f32.mrf.mxu0
    %v8835 = vadd.f32 %v8782, %v8834
    %v8836 = vpop.f32.mrf.mxu0
    %v8837 = vadd.f32 %v8784, %v8836
    %v8838 = vpop.f32.mrf.mxu0
    %v8839 = vadd.f32 %v8786, %v8838
    %8840 = vdwg.mxu0
    %v8841 = vadd.f32 %v7997, %v8717
    %v8842 = vadd.f32 %v7998, %v8719
    %v8843 = vadd.f32 %v7999, %v8823
    %v8844 = vadd.f32 %v8000, %v8825
    %v8845 = vadd.f32 %v8001, %v8721
    %v8846 = vadd.f32 %v8002, %v8723
    %v8847 = vadd.f32 %v8003, %v8827
    %v8848 = vadd.f32 %v8004, %v8829
    %v8849 = vadd.f32 %v8005, %v8727
    %v8850 = vadd.f32 %v8006, %v8729
    %v8851 = vadd.f32 %v8007, %v8833
    %v8852 = vadd.f32 %v8008, %v8835
    %v8853 = vadd.f32 %v8009, %v8731
    %v8854 = vadd.f32 %v8010, %v8733
    %v8855 = vadd.f32 %v8011, %v8837
    %v8856 = vadd.f32 %v8012, %v8839
    %s8857 = scalar_lea.vmem %s20, 64
    %v8858 = vld [vmem:[%s8857] sm:$0xf]
    %v8859 = vld [vmem:[%s8857 + $0x4] sm:$0xf]
    %v8860 = vld [vmem:[%s8857 + $0x8] sm:$0xf]
    %v8861 = vld [vmem:[%s8857 + $0xc] sm:$0x7]
    %v8866 = vunpack.c.l.b16 %v8858
    %v8867 = vunpack.c.l.b16 %v8859
    %v8868 = vunpack.c.l.b16 %v8860
    %v8869 = vunpack.c.l.b16 %v8861
    %v8870 = vpack.c.b16 %v8867, %v8866
    %v8871 = vpack.c.b16 %v8869, %v8868
    %v8873 = vsel %vm2656, %v8870, 0
    %v8876 = vsel %vm2656, %v8871, 0
    %8878 = vmatprep.subr.bf16.mxu0 0
    %8879 = vmatpush1.bf16.msra.mxu0 0
    %8880 = vmatprep.subr.bf16.mxu0 0
    %8881 = vmatpush1.bf16.msra.mxu0 0
    %8882 = vmatprep.subr.bf16.mxu0 0
    %8883 = vmatpush1.bf16.msra.mxu0 0
    %8884 = vmatprep.subr.bf16.mxu0 0
    %8885 = vmatpush1.bf16.msra.mxu0 0
    %8886 = vmatprep.subr.bf16.mxu0 0
    %8887 = vmatpush1.bf16.msra.mxu0 0
    %8888 = vmatprep.subr.bf16.mxu0 0
    %8889 = vmatpush1.bf16.msra.mxu0 0
    %8890 = vmatprep.subr.bf16.mxu0 0
    %8891 = vmatpush1.bf16.msra.mxu0 0
    %8892 = vmatprep.subr.bf16.mxu0 %v5530
    %8893 = vmatpush1.bf16.msra.mxu0 %v5527
    %8894 = vmatprep.subr.bf16.mxu0 0
    %8895 = vmatpush2.bf16.msra.mxu0 0
    %8896 = vmatprep.subr.bf16.mxu0 0
    %8897 = vmatpush2.bf16.msra.mxu0 0
    %8898 = vmatprep.subr.bf16.mxu0 0
    %8899 = vmatpush2.bf16.msra.mxu0 0
    %8900 = vmatprep.subr.bf16.mxu0 0
    %8901 = vmatpush2.bf16.msra.mxu0 0
    %8902 = vmatprep.subr.bf16.mxu0 0
    %8903 = vmatpush2.bf16.msra.mxu0 0
    %8904 = vmatprep.subr.bf16.mxu0 0
    %8905 = vmatpush2.bf16.msra.mxu0 0
    %8906 = vmatprep.subr.bf16.mxu0 0
    %8907 = vmatpush2.bf16.msra.mxu0 0
    %8908 = vmatprep.subr.bf16.mxu0 0
    %8909 = vmatpush2.bf16.msra.mxu0 0
    %8910 = vmatprep.mubr.bf16.mxu0 0
    %8911 = vmatmul.mubr.bf16.gmra.mxu0 %v8873
    %v8912 = vpop.f32.mrf.mxu0
    %v8913 = vadd.f32 0.0, %v8912
    %v8914 = vpop.f32.mrf.mxu0
    %v8915 = vadd.f32 0.0, %v8914
    %v8916 = vpop.f32.mrf.mxu0
    %v8917 = vadd.f32 0.0, %v8916
    %v8918 = vpop.f32.mrf.mxu0
    %v8919 = vadd.f32 0.0, %v8918
    %8920 = vmatprep.mubr.bf16.mxu0 0
    %8921 = vmatmul.mubr.bf16.gmra.mxu0 %v8876
    %v8922 = vpop.f32.mrf.mxu0
    %v8923 = vadd.f32 0.0, %v8922
    %v8924 = vpop.f32.mrf.mxu0
    %v8925 = vadd.f32 0.0, %v8924
    %v8926 = vpop.f32.mrf.mxu0
    %v8927 = vadd.f32 0.0, %v8926
    %v8928 = vpop.f32.mrf.mxu0
    %v8929 = vadd.f32 0.0, %v8928
    %8930 = vdwg.mxu0
    %8931 = vmatprep.subr.bf16.mxu0 0
    %8932 = vmatpush1.bf16.msra.mxu0 0
    %8933 = vmatprep.subr.bf16.mxu0 0
    %8934 = vmatpush1.bf16.msra.mxu0 0
    %8935 = vmatprep.subr.bf16.mxu0 0
    %8936 = vmatpush1.bf16.msra.mxu0 0
    %8937 = vmatprep.subr.bf16.mxu0 0
    %8938 = vmatpush1.bf16.msra.mxu0 0
    %8939 = vmatprep.subr.bf16.mxu0 0
    %8940 = vmatpush1.bf16.msra.mxu0 0
    %8941 = vmatprep.subr.bf16.mxu0 0
    %8942 = vmatpush1.bf16.msra.mxu0 0
    %8943 = vmatprep.subr.bf16.mxu0 0
    %8944 = vmatpush1.bf16.msra.mxu0 0
    %8945 = vmatprep.subr.bf16.mxu0 0
    %8946 = vmatpush1.bf16.msra.mxu0 %v5533
    %8947 = vmatprep.subr.bf16.mxu0 0
    %8948 = vmatpush2.bf16.msra.mxu0 0
    %8949 = vmatprep.subr.bf16.mxu0 0
    %8950 = vmatpush2.bf16.msra.mxu0 0
    %8951 = vmatprep.subr.bf16.mxu0 0
    %8952 = vmatpush2.bf16.msra.mxu0 0
    %8953 = vmatprep.subr.bf16.mxu0 0
    %8954 = vmatpush2.bf16.msra.mxu0 0
    %8955 = vmatprep.subr.bf16.mxu0 0
    %8956 = vmatpush2.bf16.msra.mxu0 0
    %8957 = vmatprep.subr.bf16.mxu0 0
    %8958 = vmatpush2.bf16.msra.mxu0 0
    %8959 = vmatprep.subr.bf16.mxu0 0
    %8960 = vmatpush2.bf16.msra.mxu0 0
    %8961 = vmatprep.subr.bf16.mxu0 0
    %8962 = vmatpush2.bf16.msra.mxu0 0
    %8963 = vmatprep.mubr.bf16.mxu0 0
    %8964 = vmatmul.mubr.bf16.gmra.mxu0 %v8873
    %v8965 = vpop.f32.mrf.mxu0
    %v8966 = vadd.f32 0.0, %v8965
    %v8967 = vpop.f32.mrf.mxu0
    %v8968 = vpop.f32.mrf.mxu0
    %v8969 = vadd.f32 0.0, %v8968
    %v8970 = vpop.f32.mrf.mxu0
    %8971 = vmatprep.mubr.bf16.mxu0 0
    %8972 = vmatmul.mubr.bf16.gmra.mxu0 %v8876
    %v8973 = vpop.f32.mrf.mxu0
    %v8974 = vadd.f32 0.0, %v8973
    %v8975 = vpop.f32.mrf.mxu0
    %v8976 = vpop.f32.mrf.mxu0
    %v8977 = vadd.f32 0.0, %v8976
    %v8978 = vpop.f32.mrf.mxu0
    %8979 = vdwg.mxu0
    %v8980 = vpack.c.bf16 %v8917, %v8913
    %v8981 = vpack.c.bf16 %v8919, %v8915
    %v8982 = vpack.c.bf16 %v8969, %v8966
    %v8983 = vpack.c.bf16 %v8927, %v8923
    %v8984 = vpack.c.bf16 %v8929, %v8925
    %v8985 = vpack.c.bf16 %v8977, %v8974
    %s8986 = scalar_lea.vmem %s21, 2560
    %v8987 = vld [vmem:[%s8986] sm:$0xff]
    %v8988 = vld [vmem:[%s8986 + $0x8] sm:$0xff]
    %v8989 = vld [vmem:[%s8986 + $0x10] sm:$0xff]
    %v8990 = vld [vmem:[%s8986 + $0x18] sm:$0xff]
    %v8991 = vld [vmem:[%s8986 + $0x20] sm:$0xff]
    %v8992 = vld [vmem:[%s8986 + $0x28] sm:$0xff]
    %v8993 = vld [vmem:[%s8986 + $0x30] sm:$0xff]
    %v8994 = vld [vmem:[%s8986 + $0x38] sm:$0xff]
    %v8995 = vld [vmem:[%s8986 + $0x40] sm:$0xff]
    %v8996 = vld [vmem:[%s8986 + $0x48] sm:$0xff]
    %v8997 = vld [vmem:[%s8986 + $0x50] sm:$0xff]
    %v8998 = vld [vmem:[%s8986 + $0x58] sm:$0xff]
    %v8999 = vld [vmem:[%s8986 + $0x60] sm:$0xff]
    %v9000 = vld [vmem:[%s8986 + $0x68] sm:$0xff]
    %v9001 = vld [vmem:[%s8986 + $0x70] sm:$0xff]
    %v9002 = vld [vmem:[%s8986 + $0x78] sm:$0xff]
    %v9003 = vld [vmem:[%s8986 + $0x80] sm:$0xff]
    %v9004 = vld [vmem:[%s8986 + $0x88] sm:$0xff]
    %v9005 = vld [vmem:[%s8986 + $0x90] sm:$0xff]
    %v9006 = vld [vmem:[%s8986 + $0x98] sm:$0xff]
    %v9007 = vld [vmem:[%s8986 + $0xa0] sm:$0xff]
    %v9008 = vld [vmem:[%s8986 + $0xa8] sm:$0xff]
    %v9009 = vld [vmem:[%s8986 + $0xb0] sm:$0xff]
    %v9010 = vld [vmem:[%s8986 + $0xb8] sm:$0xff]
    %v9011 = vld [vmem:[%s8986 + $0xc0] sm:$0xff]
    %v9012 = vld [vmem:[%s8986 + $0xc8] sm:$0xff]
    %v9013 = vld [vmem:[%s8986 + $0xd0] sm:$0xff]
    %v9014 = vld [vmem:[%s8986 + $0xd8] sm:$0xff]
    %v9015 = vld [vmem:[%s8986 + $0xe0] sm:$0xff]
    %v9016 = vld [vmem:[%s8986 + $0xe8] sm:$0xff]
    %v9017 = vld [vmem:[%s8986 + $0xf0] sm:$0xff]
    %v9018 = vld [vmem:[%s8986 + $0xf8] sm:$0xff]
    %v9019 = vld [vmem:[%s8986 + $0x100] sm:$0xff]
    %v9020 = vld [vmem:[%s8986 + $0x108] sm:$0xff]
    %v9021 = vld [vmem:[%s8986 + $0x110] sm:$0xff]
    %v9022 = vld [vmem:[%s8986 + $0x118] sm:$0xff]
    %v9023 = vld [vmem:[%s8986 + $0x120] sm:$0xff]
    %v9024 = vld [vmem:[%s8986 + $0x128] sm:$0xff]
    %v9025 = vld [vmem:[%s8986 + $0x130] sm:$0xff]
    %v9026 = vld [vmem:[%s8986 + $0x138] sm:$0xff]
    %v9027 = vld [vmem:[%s8986 + $0x140] sm:$0xff]
    %v9028 = vld [vmem:[%s8986 + $0x148] sm:$0xff]
    %v9029 = vld [vmem:[%s8986 + $0x150] sm:$0xff]
    %v9030 = vld [vmem:[%s8986 + $0x158] sm:$0xff]
    %v9031 = vld [vmem:[%s8986 + $0x160] sm:$0xff]
    %v9032 = vld [vmem:[%s8986 + $0x168] sm:$0xff]
    %v9033 = vld [vmem:[%s8986 + $0x170] sm:$0xff]
    %v9034 = vld [vmem:[%s8986 + $0x178] sm:$0xff]
    %v9035 = vld [vmem:[%s8986 + $0x180] sm:$0xff]
    %v9036 = vld [vmem:[%s8986 + $0x188] sm:$0xff]
    %v9037 = vld [vmem:[%s8986 + $0x190] sm:$0xff]
    %v9038 = vld [vmem:[%s8986 + $0x198] sm:$0xff]
    %v9039 = vld [vmem:[%s8986 + $0x1a0] sm:$0xff]
    %v9040 = vld [vmem:[%s8986 + $0x1a8] sm:$0xff]
    %v9041 = vld [vmem:[%s8986 + $0x1b0] sm:$0xff]
    %v9042 = vld [vmem:[%s8986 + $0x1b8] sm:$0xff]
    %v9043 = vld [vmem:[%s8986 + $0x1c0] sm:$0xff]
    %v9044 = vld [vmem:[%s8986 + $0x1c8] sm:$0xff]
    %v9045 = vld [vmem:[%s8986 + $0x1d0] sm:$0xff]
    %v9046 = vld [vmem:[%s8986 + $0x1d8] sm:$0xff]
    %v9047 = vld [vmem:[%s8986 + $0x1e0] sm:$0xff]
    %v9048 = vld [vmem:[%s8986 + $0x1e8] sm:$0xff]
    %v9049 = vld [vmem:[%s8986 + $0x1f0] sm:$0xff]
    %v9050 = vld [vmem:[%s8986 + $0x1f8] sm:$0xff]
    %v9051 = vld [vmem:[%s8986 + $0x200] sm:$0xff]
    %v9052 = vld [vmem:[%s8986 + $0x208] sm:$0xff]
    %v9053 = vld [vmem:[%s8986 + $0x210] sm:$0xff]
    %v9054 = vld [vmem:[%s8986 + $0x218] sm:$0xff]
    %v9055 = vld [vmem:[%s8986 + $0x220] sm:$0xff]
    %v9056 = vld [vmem:[%s8986 + $0x228] sm:$0xff]
    %v9057 = vld [vmem:[%s8986 + $0x230] sm:$0xff]
    %v9058 = vld [vmem:[%s8986 + $0x238] sm:$0xff]
    %v9059 = vld [vmem:[%s8986 + $0x240] sm:$0xff]
    %v9060 = vld [vmem:[%s8986 + $0x248] sm:$0xff]
    %v9061 = vld [vmem:[%s8986 + $0x250] sm:$0xff]
    %v9062 = vld [vmem:[%s8986 + $0x258] sm:$0xff]
    %v9063 = vld [vmem:[%s8986 + $0x260] sm:$0xff]
    %v9064 = vld [vmem:[%s8986 + $0x268] sm:$0xff]
    %v9065 = vld [vmem:[%s8986 + $0x270] sm:$0xff]
    %v9066 = vld [vmem:[%s8986 + $0x278] sm:$0xff]
    %v9147 = vunpack.c.l.b16 %v8987
    %v9148 = vunpack.c.h.b16 %v8987
    %v9149 = vunpack.c.l.b16 %v8988
    %v9150 = vunpack.c.h.b16 %v8988
    %v9151 = vunpack.c.l.b16 %v8989
    %v9152 = vunpack.c.h.b16 %v8989
    %v9153 = vunpack.c.l.b16 %v8990
    %v9154 = vunpack.c.h.b16 %v8990
    %v9155 = vunpack.c.l.b16 %v8991
    %v9156 = vunpack.c.h.b16 %v8991
    %v9157 = vunpack.c.l.b16 %v8992
    %v9158 = vunpack.c.h.b16 %v8992
    %v9159 = vunpack.c.l.b16 %v8993
    %v9160 = vunpack.c.h.b16 %v8993
    %v9161 = vunpack.c.l.b16 %v8994
    %v9162 = vunpack.c.h.b16 %v8994
    %v9163 = vunpack.c.l.b16 %v8995
    %v9164 = vunpack.c.h.b16 %v8995
    %v9165 = vunpack.c.l.b16 %v8996
    %v9166 = vunpack.c.h.b16 %v8996
    %v9167 = vunpack.c.l.b16 %v8997
    %v9168 = vunpack.c.h.b16 %v8997
    %v9169 = vunpack.c.l.b16 %v8998
    %v9170 = vunpack.c.h.b16 %v8998
    %v9171 = vunpack.c.l.b16 %v8999
    %v9172 = vunpack.c.h.b16 %v8999
    %v9173 = vunpack.c.l.b16 %v9000
    %v9174 = vunpack.c.h.b16 %v9000
    %v9175 = vunpack.c.l.b16 %v9001
    %v9176 = vunpack.c.h.b16 %v9001
    %v9177 = vunpack.c.l.b16 %v9002
    %v9178 = vunpack.c.h.b16 %v9002
    %v9179 = vunpack.c.l.b16 %v9003
    %v9180 = vunpack.c.h.b16 %v9003
    %v9181 = vunpack.c.l.b16 %v9004
    %v9182 = vunpack.c.h.b16 %v9004
    %v9183 = vunpack.c.l.b16 %v9005
    %v9184 = vunpack.c.h.b16 %v9005
    %v9185 = vunpack.c.l.b16 %v9006
    %v9186 = vunpack.c.h.b16 %v9006
    %v9187 = vunpack.c.l.b16 %v9007
    %v9188 = vunpack.c.h.b16 %v9007
    %v9189 = vunpack.c.l.b16 %v9008
    %v9190 = vunpack.c.h.b16 %v9008
    %v9191 = vunpack.c.l.b16 %v9009
    %v9192 = vunpack.c.h.b16 %v9009
    %v9193 = vunpack.c.l.b16 %v9010
    %v9194 = vunpack.c.h.b16 %v9010
    %v9195 = vunpack.c.l.b16 %v9011
    %v9196 = vunpack.c.h.b16 %v9011
    %v9197 = vunpack.c.l.b16 %v9012
    %v9198 = vunpack.c.h.b16 %v9012
    %v9199 = vunpack.c.l.b16 %v9013
    %v9200 = vunpack.c.h.b16 %v9013
    %v9201 = vunpack.c.l.b16 %v9014
    %v9202 = vunpack.c.h.b16 %v9014
    %v9203 = vunpack.c.l.b16 %v9015
    %v9204 = vunpack.c.h.b16 %v9015
    %v9205 = vunpack.c.l.b16 %v9016
    %v9206 = vunpack.c.h.b16 %v9016
    %v9207 = vunpack.c.l.b16 %v9017
    %v9208 = vunpack.c.h.b16 %v9017
    %v9209 = vunpack.c.l.b16 %v9018
    %v9210 = vunpack.c.h.b16 %v9018
    %v9211 = vunpack.c.l.b16 %v9019
    %v9212 = vunpack.c.h.b16 %v9019
    %v9213 = vunpack.c.l.b16 %v9020
    %v9214 = vunpack.c.h.b16 %v9020
    %v9215 = vunpack.c.l.b16 %v9021
    %v9216 = vunpack.c.h.b16 %v9021
    %v9217 = vunpack.c.l.b16 %v9022
    %v9218 = vunpack.c.h.b16 %v9022
    %v9219 = vunpack.c.l.b16 %v9023
    %v9220 = vunpack.c.h.b16 %v9023
    %v9221 = vunpack.c.l.b16 %v9024
    %v9222 = vunpack.c.h.b16 %v9024
    %v9223 = vunpack.c.l.b16 %v9025
    %v9224 = vunpack.c.h.b16 %v9025
    %v9225 = vunpack.c.l.b16 %v9026
    %v9226 = vunpack.c.h.b16 %v9026
    %v9227 = vunpack.c.l.b16 %v9027
    %v9228 = vunpack.c.h.b16 %v9027
    %v9229 = vunpack.c.l.b16 %v9028
    %v9230 = vunpack.c.h.b16 %v9028
    %v9231 = vunpack.c.l.b16 %v9029
    %v9232 = vunpack.c.h.b16 %v9029
    %v9233 = vunpack.c.l.b16 %v9030
    %v9234 = vunpack.c.h.b16 %v9030
    %v9235 = vunpack.c.l.b16 %v9031
    %v9236 = vunpack.c.h.b16 %v9031
    %v9237 = vunpack.c.l.b16 %v9032
    %v9238 = vunpack.c.h.b16 %v9032
    %v9239 = vunpack.c.l.b16 %v9033
    %v9240 = vunpack.c.h.b16 %v9033
    %v9241 = vunpack.c.l.b16 %v9034
    %v9242 = vunpack.c.h.b16 %v9034
    %v9243 = vunpack.c.l.b16 %v9035
    %v9244 = vunpack.c.h.b16 %v9035
    %v9245 = vunpack.c.l.b16 %v9036
    %v9246 = vunpack.c.h.b16 %v9036
    %v9247 = vunpack.c.l.b16 %v9037
    %v9248 = vunpack.c.h.b16 %v9037
    %v9249 = vunpack.c.l.b16 %v9038
    %v9250 = vunpack.c.h.b16 %v9038
    %v9251 = vunpack.c.l.b16 %v9039
    %v9252 = vunpack.c.h.b16 %v9039
    %v9253 = vunpack.c.l.b16 %v9040
    %v9254 = vunpack.c.h.b16 %v9040
    %v9255 = vunpack.c.l.b16 %v9041
    %v9256 = vunpack.c.h.b16 %v9041
    %v9257 = vunpack.c.l.b16 %v9042
    %v9258 = vunpack.c.h.b16 %v9042
    %v9259 = vunpack.c.l.b16 %v9043
    %v9260 = vunpack.c.h.b16 %v9043
    %v9261 = vunpack.c.l.b16 %v9044
    %v9262 = vunpack.c.h.b16 %v9044
    %v9263 = vunpack.c.l.b16 %v9045
    %v9264 = vunpack.c.h.b16 %v9045
    %v9265 = vunpack.c.l.b16 %v9046
    %v9266 = vunpack.c.h.b16 %v9046
    %v9267 = vunpack.c.l.b16 %v9047
    %v9268 = vunpack.c.h.b16 %v9047
    %v9269 = vunpack.c.l.b16 %v9048
    %v9270 = vunpack.c.h.b16 %v9048
    %v9271 = vunpack.c.l.b16 %v9049
    %v9272 = vunpack.c.h.b16 %v9049
    %v9273 = vunpack.c.l.b16 %v9050
    %v9274 = vunpack.c.h.b16 %v9050
    %v9275 = vunpack.c.l.b16 %v9051
    %v9276 = vunpack.c.h.b16 %v9051
    %v9277 = vunpack.c.l.b16 %v9052
    %v9278 = vunpack.c.h.b16 %v9052
    %v9279 = vunpack.c.l.b16 %v9053
    %v9280 = vunpack.c.h.b16 %v9053
    %v9281 = vunpack.c.l.b16 %v9054
    %v9282 = vunpack.c.h.b16 %v9054
    %v9283 = vunpack.c.l.b16 %v9055
    %v9284 = vunpack.c.h.b16 %v9055
    %v9285 = vunpack.c.l.b16 %v9056
    %v9286 = vunpack.c.h.b16 %v9056
    %v9287 = vunpack.c.l.b16 %v9057
    %v9288 = vunpack.c.h.b16 %v9057
    %v9289 = vunpack.c.l.b16 %v9058
    %v9290 = vunpack.c.h.b16 %v9058
    %v9291 = vunpack.c.l.b16 %v9059
    %v9292 = vunpack.c.h.b16 %v9059
    %v9293 = vunpack.c.l.b16 %v9060
    %v9294 = vunpack.c.h.b16 %v9060
    %v9295 = vunpack.c.l.b16 %v9061
    %v9296 = vunpack.c.h.b16 %v9061
    %v9297 = vunpack.c.l.b16 %v9062
    %v9298 = vunpack.c.h.b16 %v9062
    %v9299 = vunpack.c.l.b16 %v9063
    %v9300 = vunpack.c.h.b16 %v9063
    %v9301 = vunpack.c.l.b16 %v9064
    %v9302 = vunpack.c.h.b16 %v9064
    %v9303 = vunpack.c.l.b16 %v9065
    %v9304 = vunpack.c.h.b16 %v9065
    %v9305 = vunpack.c.l.b16 %v9066
    %v9306 = vunpack.c.h.b16 %v9066
    %v9307 = vpack.c.b16 %v9151, %v9147
    %v9308 = vpack.c.b16 %v9152, %v9148
    %v9309 = vpack.c.b16 %v9153, %v9149
    %v9310 = vpack.c.b16 %v9154, %v9150
    %v9311 = vpack.c.b16 %v9159, %v9155
    %v9312 = vpack.c.b16 %v9160, %v9156
    %v9313 = vpack.c.b16 %v9161, %v9157
    %v9314 = vpack.c.b16 %v9162, %v9158
    %v9315 = vpack.c.b16 %v9167, %v9163
    %v9316 = vpack.c.b16 %v9168, %v9164
    %v9317 = vpack.c.b16 %v9169, %v9165
    %v9318 = vpack.c.b16 %v9170, %v9166
    %v9319 = vpack.c.b16 %v9175, %v9171
    %v9320 = vpack.c.b16 %v9176, %v9172
    %v9321 = vpack.c.b16 %v9177, %v9173
    %v9322 = vpack.c.b16 %v9178, %v9174
    %v9323 = vpack.c.b16 %v9183, %v9179
    %v9324 = vpack.c.b16 %v9184, %v9180
    %v9325 = vpack.c.b16 %v9185, %v9181
    %v9326 = vpack.c.b16 %v9186, %v9182
    %v9327 = vpack.c.b16 %v9191, %v9187
    %v9328 = vpack.c.b16 %v9192, %v9188
    %v9329 = vpack.c.b16 %v9193, %v9189
    %v9330 = vpack.c.b16 %v9194, %v9190
    %v9331 = vpack.c.b16 %v9199, %v9195
    %v9332 = vpack.c.b16 %v9200, %v9196
    %v9333 = vpack.c.b16 %v9201, %v9197
    %v9334 = vpack.c.b16 %v9202, %v9198
    %v9335 = vpack.c.b16 %v9207, %v9203
    %v9336 = vpack.c.b16 %v9208, %v9204
    %v9337 = vpack.c.b16 %v9209, %v9205
    %v9338 = vpack.c.b16 %v9210, %v9206
    %v9339 = vpack.c.b16 %v9215, %v9211
    %v9340 = vpack.c.b16 %v9216, %v9212
    %v9341 = vpack.c.b16 %v9217, %v9213
    %v9342 = vpack.c.b16 %v9218, %v9214
    %v9343 = vpack.c.b16 %v9223, %v9219
    %v9344 = vpack.c.b16 %v9224, %v9220
    %v9345 = vpack.c.b16 %v9225, %v9221
    %v9346 = vpack.c.b16 %v9226, %v9222
    %v9347 = vpack.c.b16 %v9231, %v9227
    %v9348 = vpack.c.b16 %v9232, %v9228
    %v9349 = vpack.c.b16 %v9233, %v9229
    %v9350 = vpack.c.b16 %v9234, %v9230
    %v9351 = vpack.c.b16 %v9239, %v9235
    %v9352 = vpack.c.b16 %v9240, %v9236
    %v9353 = vpack.c.b16 %v9241, %v9237
    %v9354 = vpack.c.b16 %v9242, %v9238
    %v9355 = vpack.c.b16 %v9247, %v9243
    %v9356 = vpack.c.b16 %v9248, %v9244
    %v9357 = vpack.c.b16 %v9249, %v9245
    %v9358 = vpack.c.b16 %v9250, %v9246
    %v9359 = vpack.c.b16 %v9255, %v9251
    %v9360 = vpack.c.b16 %v9256, %v9252
    %v9361 = vpack.c.b16 %v9257, %v9253
    %v9362 = vpack.c.b16 %v9258, %v9254
    %v9363 = vpack.c.b16 %v9263, %v9259
    %v9364 = vpack.c.b16 %v9264, %v9260
    %v9365 = vpack.c.b16 %v9265, %v9261
    %v9366 = vpack.c.b16 %v9266, %v9262
    %v9367 = vpack.c.b16 %v9271, %v9267
    %v9368 = vpack.c.b16 %v9272, %v9268
    %v9369 = vpack.c.b16 %v9273, %v9269
    %v9370 = vpack.c.b16 %v9274, %v9270
    %v9371 = vpack.c.b16 %v9279, %v9275
    %v9372 = vpack.c.b16 %v9280, %v9276
    %v9373 = vpack.c.b16 %v9281, %v9277
    %v9374 = vpack.c.b16 %v9282, %v9278
    %v9375 = vpack.c.b16 %v9287, %v9283
    %v9376 = vpack.c.b16 %v9288, %v9284
    %v9377 = vpack.c.b16 %v9289, %v9285
    %v9378 = vpack.c.b16 %v9290, %v9286
    %v9379 = vpack.c.b16 %v9295, %v9291
    %v9380 = vpack.c.b16 %v9296, %v9292
    %v9381 = vpack.c.b16 %v9297, %v9293
    %v9382 = vpack.c.b16 %v9298, %v9294
    %v9383 = vpack.c.b16 %v9303, %v9299
    %v9384 = vpack.c.b16 %v9304, %v9300
    %v9385 = vpack.c.b16 %v9305, %v9301
    %v9386 = vpack.c.b16 %v9306, %v9302
    %v9468 = vsel %vm1267, %v8982, 0
    %v9471 = vsel %vm1267, %v8985, 0
    %9473 = vmatprep.subr.bf16.mxu0 %v9336
    %9474 = vmatpush1.bf16.msra.mxu0 %v9335
    %9475 = vmatprep.subr.bf16.mxu0 %v9332
    %9476 = vmatpush1.bf16.msra.mxu0 %v9331
    %9477 = vmatprep.subr.bf16.mxu0 %v9328
    %9478 = vmatpush1.bf16.msra.mxu0 %v9327
    %9479 = vmatprep.subr.bf16.mxu0 %v9324
    %9480 = vmatpush1.bf16.msra.mxu0 %v9323
    %9481 = vmatprep.subr.bf16.mxu0 %v9320
    %9482 = vmatpush1.bf16.msra.mxu0 %v9319
    %9483 = vmatprep.subr.bf16.mxu0 %v9316
    %9484 = vmatpush1.bf16.msra.mxu0 %v9315
    %9485 = vmatprep.subr.bf16.mxu0 %v9312
    %9486 = vmatpush1.bf16.msra.mxu0 %v9311
    %9487 = vmatprep.subr.bf16.mxu0 %v9308
    %9488 = vmatpush1.bf16.msra.mxu0 %v9307
    %9489 = vmatprep.subr.bf16.mxu0 %v9368
    %9490 = vmatpush2.bf16.msra.mxu0 %v9367
    %9491 = vmatprep.subr.bf16.mxu0 %v9364
    %9492 = vmatpush2.bf16.msra.mxu0 %v9363
    %9493 = vmatprep.subr.bf16.mxu0 %v9360
    %9494 = vmatpush2.bf16.msra.mxu0 %v9359
    %9495 = vmatprep.subr.bf16.mxu0 %v9356
    %9496 = vmatpush2.bf16.msra.mxu0 %v9355
    %9497 = vmatprep.subr.bf16.mxu0 %v9352
    %9498 = vmatpush2.bf16.msra.mxu0 %v9351
    %9499 = vmatprep.subr.bf16.mxu0 %v9348
    %9500 = vmatpush2.bf16.msra.mxu0 %v9347
    %9501 = vmatprep.subr.bf16.mxu0 %v9344
    %9502 = vmatpush2.bf16.msra.mxu0 %v9343
    %9503 = vmatprep.subr.bf16.mxu0 %v9340
    %9504 = vmatpush2.bf16.msra.mxu0 %v9339
    %9505 = vmatprep.mubr.bf16.mxu0 %v8981
    %9506 = vmatmul.mubr.bf16.gmra.mxu0 %v8980
    %v9507 = vpop.f32.mrf.mxu0
    %v9508 = vadd.f32 0.0, %v9507
    %v9509 = vpop.f32.mrf.mxu0
    %v9510 = vadd.f32 0.0, %v9509
    %v9511 = vpop.f32.mrf.mxu0
    %v9512 = vadd.f32 0.0, %v9511
    %v9513 = vpop.f32.mrf.mxu0
    %v9514 = vadd.f32 0.0, %v9513
    %9515 = vmatprep.mubr.bf16.mxu0 %v8984
    %9516 = vmatmul.mubr.bf16.gmra.mxu0 %v8983
    %v9517 = vpop.f32.mrf.mxu0
    %v9518 = vadd.f32 0.0, %v9517
    %v9519 = vpop.f32.mrf.mxu0
    %v9520 = vadd.f32 0.0, %v9519
    %v9521 = vpop.f32.mrf.mxu0
    %v9522 = vadd.f32 0.0, %v9521
    %v9523 = vpop.f32.mrf.mxu0
    %v9524 = vadd.f32 0.0, %v9523
    %9525 = vdwg.mxu0
    %9526 = vmatprep.subr.bf16.mxu0 0
    %9527 = vmatpush1.bf16.msra.mxu0 0
    %9528 = vmatprep.subr.bf16.mxu0 0
    %9529 = vmatpush1.bf16.msra.mxu0 0
    %9530 = vmatprep.subr.bf16.mxu0 0
    %9531 = vmatpush1.bf16.msra.mxu0 0
    %9532 = vmatprep.subr.bf16.mxu0 0
    %9533 = vmatpush1.bf16.msra.mxu0 0
    %9534 = vmatprep.subr.bf16.mxu0 %v9384
    %9535 = vmatpush1.bf16.msra.mxu0 %v9383
    %9536 = vmatprep.subr.bf16.mxu0 %v9380
    %9537 = vmatpush1.bf16.msra.mxu0 %v9379
    %9538 = vmatprep.subr.bf16.mxu0 %v9376
    %9539 = vmatpush1.bf16.msra.mxu0 %v9375
    %9540 = vmatprep.subr.bf16.mxu0 %v9372
    %9541 = vmatpush1.bf16.msra.mxu0 %v9371
    %9542 = vmatprep.subr.bf16.mxu0 0
    %9543 = vmatpush2.bf16.msra.mxu0 0
    %9544 = vmatprep.subr.bf16.mxu0 0
    %9545 = vmatpush2.bf16.msra.mxu0 0
    %9546 = vmatprep.subr.bf16.mxu0 0
    %9547 = vmatpush2.bf16.msra.mxu0 0
    %9548 = vmatprep.subr.bf16.mxu0 0
    %9549 = vmatpush2.bf16.msra.mxu0 0
    %9550 = vmatprep.subr.bf16.mxu0 0
    %9551 = vmatpush2.bf16.msra.mxu0 0
    %9552 = vmatprep.subr.bf16.mxu0 0
    %9553 = vmatpush2.bf16.msra.mxu0 0
    %9554 = vmatprep.subr.bf16.mxu0 0
    %9555 = vmatpush2.bf16.msra.mxu0 0
    %9556 = vmatprep.subr.bf16.mxu0 0
    %9557 = vmatpush2.bf16.msra.mxu0 0
    %9558 = vmatprep.mubr.bf16.mxu0 0
    %9559 = vmatmul.mubr.bf16.gmra.mxu0 %v9468
    %v9560 = vpop.f32.mrf.mxu0
    %v9561 = vadd.f32 %v9508, %v9560
    %v9562 = vpop.f32.mrf.mxu0
    %v9563 = vadd.f32 %v9510, %v9562
    %v9564 = vpop.f32.mrf.mxu0
    %v9565 = vadd.f32 %v9512, %v9564
    %v9566 = vpop.f32.mrf.mxu0
    %v9567 = vadd.f32 %v9514, %v9566
    %9568 = vmatprep.mubr.bf16.mxu0 0
    %9569 = vmatmul.mubr.bf16.gmra.mxu0 %v9471
    %v9570 = vpop.f32.mrf.mxu0
    %v9571 = vadd.f32 %v9518, %v9570
    %v9572 = vpop.f32.mrf.mxu0
    %v9573 = vadd.f32 %v9520, %v9572
    %v9574 = vpop.f32.mrf.mxu0
    %v9575 = vadd.f32 %v9522, %v9574
    %v9576 = vpop.f32.mrf.mxu0
    %v9577 = vadd.f32 %v9524, %v9576
    %9578 = vdwg.mxu0
    %9579 = vmatprep.subr.bf16.mxu0 %v9338
    %9580 = vmatpush1.bf16.msra.mxu0 %v9337
    %9581 = vmatprep.subr.bf16.mxu0 %v9334
    %9582 = vmatpush1.bf16.msra.mxu0 %v9333
    %9583 = vmatprep.subr.bf16.mxu0 %v9330
    %9584 = vmatpush1.bf16.msra.mxu0 %v9329
    %9585 = vmatprep.subr.bf16.mxu0 %v9326
    %9586 = vmatpush1.bf16.msra.mxu0 %v9325
    %9587 = vmatprep.subr.bf16.mxu0 %v9322
    %9588 = vmatpush1.bf16.msra.mxu0 %v9321
    %9589 = vmatprep.subr.bf16.mxu0 %v9318
    %9590 = vmatpush1.bf16.msra.mxu0 %v9317
    %9591 = vmatprep.subr.bf16.mxu0 %v9314
    %9592 = vmatpush1.bf16.msra.mxu0 %v9313
    %9593 = vmatprep.subr.bf16.mxu0 %v9310
    %9594 = vmatpush1.bf16.msra.mxu0 %v9309
    %9595 = vmatprep.subr.bf16.mxu0 %v9370
    %9596 = vmatpush2.bf16.msra.mxu0 %v9369
    %9597 = vmatprep.subr.bf16.mxu0 %v9366
    %9598 = vmatpush2.bf16.msra.mxu0 %v9365
    %9599 = vmatprep.subr.bf16.mxu0 %v9362
    %9600 = vmatpush2.bf16.msra.mxu0 %v9361
    %9601 = vmatprep.subr.bf16.mxu0 %v9358
    %9602 = vmatpush2.bf16.msra.mxu0 %v9357
    %9603 = vmatprep.subr.bf16.mxu0 %v9354
    %9604 = vmatpush2.bf16.msra.mxu0 %v9353
    %9605 = vmatprep.subr.bf16.mxu0 %v9350
    %9606 = vmatpush2.bf16.msra.mxu0 %v9349
    %9607 = vmatprep.subr.bf16.mxu0 %v9346
    %9608 = vmatpush2.bf16.msra.mxu0 %v9345
    %9609 = vmatprep.subr.bf16.mxu0 %v9342
    %9610 = vmatpush2.bf16.msra.mxu0 %v9341
    %9611 = vmatprep.mubr.bf16.mxu0 %v8981
    %9612 = vmatmul.mubr.bf16.gmra.mxu0 %v8980
    %v9613 = vpop.f32.mrf.mxu0
    %v9614 = vadd.f32 0.0, %v9613
    %v9615 = vpop.f32.mrf.mxu0
    %v9616 = vadd.f32 0.0, %v9615
    %v9617 = vpop.f32.mrf.mxu0
    %v9618 = vadd.f32 0.0, %v9617
    %v9619 = vpop.f32.mrf.mxu0
    %v9620 = vadd.f32 0.0, %v9619
    %9621 = vmatprep.mubr.bf16.mxu0 %v8984
    %9622 = vmatmul.mubr.bf16.gmra.mxu0 %v8983
    %v9623 = vpop.f32.mrf.mxu0
    %v9624 = vadd.f32 0.0, %v9623
    %v9625 = vpop.f32.mrf.mxu0
    %v9626 = vadd.f32 0.0, %v9625
    %v9627 = vpop.f32.mrf.mxu0
    %v9628 = vadd.f32 0.0, %v9627
    %v9629 = vpop.f32.mrf.mxu0
    %v9630 = vadd.f32 0.0, %v9629
    %9631 = vdwg.mxu0
    %9632 = vmatprep.subr.bf16.mxu0 0
    %9633 = vmatpush1.bf16.msra.mxu0 0
    %9634 = vmatprep.subr.bf16.mxu0 0
    %9635 = vmatpush1.bf16.msra.mxu0 0
    %9636 = vmatprep.subr.bf16.mxu0 0
    %9637 = vmatpush1.bf16.msra.mxu0 0
    %9638 = vmatprep.subr.bf16.mxu0 0
    %9639 = vmatpush1.bf16.msra.mxu0 0
    %9640 = vmatprep.subr.bf16.mxu0 %v9386
    %9641 = vmatpush1.bf16.msra.mxu0 %v9385
    %9642 = vmatprep.subr.bf16.mxu0 %v9382
    %9643 = vmatpush1.bf16.msra.mxu0 %v9381
    %9644 = vmatprep.subr.bf16.mxu0 %v9378
    %9645 = vmatpush1.bf16.msra.mxu0 %v9377
    %9646 = vmatprep.subr.bf16.mxu0 %v9374
    %9647 = vmatpush1.bf16.msra.mxu0 %v9373
    %9648 = vmatprep.subr.bf16.mxu0 0
    %9649 = vmatpush2.bf16.msra.mxu0 0
    %9650 = vmatprep.subr.bf16.mxu0 0
    %9651 = vmatpush2.bf16.msra.mxu0 0
    %9652 = vmatprep.subr.bf16.mxu0 0
    %9653 = vmatpush2.bf16.msra.mxu0 0
    %9654 = vmatprep.subr.bf16.mxu0 0
    %9655 = vmatpush2.bf16.msra.mxu0 0
    %9656 = vmatprep.subr.bf16.mxu0 0
    %9657 = vmatpush2.bf16.msra.mxu0 0
    %9658 = vmatprep.subr.bf16.mxu0 0
    %9659 = vmatpush2.bf16.msra.mxu0 0
    %9660 = vmatprep.subr.bf16.mxu0 0
    %9661 = vmatpush2.bf16.msra.mxu0 0
    %9662 = vmatprep.subr.bf16.mxu0 0
    %9663 = vmatpush2.bf16.msra.mxu0 0
    %9664 = vmatprep.mubr.bf16.mxu0 0
    %9665 = vmatmul.mubr.bf16.gmra.mxu0 %v9468
    %v9666 = vpop.f32.mrf.mxu0
    %v9667 = vadd.f32 %v9614, %v9666
    %v9668 = vpop.f32.mrf.mxu0
    %v9669 = vadd.f32 %v9616, %v9668
    %v9670 = vpop.f32.mrf.mxu0
    %v9671 = vadd.f32 %v9618, %v9670
    %v9672 = vpop.f32.mrf.mxu0
    %v9673 = vadd.f32 %v9620, %v9672
    %9674 = vmatprep.mubr.bf16.mxu0 0
    %9675 = vmatmul.mubr.bf16.gmra.mxu0 %v9471
    %v9676 = vpop.f32.mrf.mxu0
    %v9677 = vadd.f32 %v9624, %v9676
    %v9678 = vpop.f32.mrf.mxu0
    %v9679 = vadd.f32 %v9626, %v9678
    %v9680 = vpop.f32.mrf.mxu0
    %v9681 = vadd.f32 %v9628, %v9680
    %v9682 = vpop.f32.mrf.mxu0
    %v9683 = vadd.f32 %v9630, %v9682
    %9684 = vdwg.mxu0
    %v9685 = vadd.f32 %v8841, %v9561
    %v9686 = vadd.f32 %v8842, %v9563
    %v9687 = vadd.f32 %v8843, %v9667
    %v9688 = vadd.f32 %v8844, %v9669
    %v9689 = vadd.f32 %v8845, %v9565
    %v9690 = vadd.f32 %v8846, %v9567
    %v9691 = vadd.f32 %v8847, %v9671
    %v9692 = vadd.f32 %v8848, %v9673
    %v9693 = vadd.f32 %v8849, %v9571
    %v9694 = vadd.f32 %v8850, %v9573
    %v9695 = vadd.f32 %v8851, %v9677
    %v9696 = vadd.f32 %v8852, %v9679
    %v9697 = vadd.f32 %v8853, %v9575
    %v9698 = vadd.f32 %v8854, %v9577
    %v9699 = vadd.f32 %v8855, %v9681
    %v9700 = vadd.f32 %v8856, %v9683
    %v9701 = vld [vmem:[%s22] sm:$0xff]
    %v9702 = vld [vmem:[%s22 + $0x8] sm:$0xff]
    %v9703 = vld [vmem:[%s22 + $0x10] sm:$0xff]
    %v9704 = vld [vmem:[%s22 + $0x18] sm:$0xff]
    %v9705 = vld [vmem:[%s22 + $0x20] sm:$0xff]
    %v9706 = vld [vmem:[%s22 + $0x28] sm:$0xff]
    %v9707 = vld [vmem:[%s22 + $0x30] sm:$0xff]
    %v9708 = vld [vmem:[%s22 + $0x38] sm:$0xff]
    %v9709 = vld [vmem:[%s22 + $0x40] sm:$0xff]
    %v9710 = vld [vmem:[%s22 + $0x48] sm:$0xff]
    %v9711 = vld [vmem:[%s22 + $0x50] sm:$0xff]
    %v9712 = vld [vmem:[%s22 + $0x58] sm:$0xff]
    %v9713 = vld [vmem:[%s22 + $0x60] sm:$0x3f]
    %v9714 = vld [vmem:[%s22 + $0x68] sm:$0x3f]
    %v9715 = vld [vmem:[%s22 + $0x70] sm:$0x3f]
    %v9716 = vld [vmem:[%s22 + $0x78] sm:$0x3f]
    %v9717 = vadd.f32 %v9685, %v9701
    %v9718 = vadd.f32 %v9686, %v9702
    %v9719 = vadd.f32 %v9687, %v9703
    %v9720 = vadd.f32 %v9688, %v9704
    %v9721 = vadd.f32 %v9689, %v9705
    %v9722 = vadd.f32 %v9690, %v9706
    %v9723 = vadd.f32 %v9691, %v9707
    %v9724 = vadd.f32 %v9692, %v9708
    %v9725 = vadd.f32 %v9693, %v9709
    %v9726 = vadd.f32 %v9694, %v9710
    %v9727 = vadd.f32 %v9695, %v9711
    %v9728 = vadd.f32 %v9696, %v9712
    %v9729 = vadd.f32 %v9697, %v9713
    %v9730 = vadd.f32 %v9698, %v9714
    %v9731 = vadd.f32 %v9699, %v9715
    %v9732 = vadd.f32 %v9700, %v9716
    %v9733 = vmax.f32 %v9717, 0.0
    %v9734 = vmax.f32 %v9718, 0.0
    %v9735 = vmax.f32 %v9719, 0.0
    %v9736 = vmax.f32 %v9720, 0.0
    %v9737 = vmax.f32 %v9721, 0.0
    %v9738 = vmax.f32 %v9722, 0.0
    %v9739 = vmax.f32 %v9723, 0.0
    %v9740 = vmax.f32 %v9724, 0.0
    %v9741 = vmax.f32 %v9725, 0.0
    %v9742 = vmax.f32 %v9726, 0.0
    %v9743 = vmax.f32 %v9727, 0.0
    %v9744 = vmax.f32 %v9728, 0.0
    %v9745 = vmax.f32 %v9729, 0.0
    %v9746 = vmax.f32 %v9730, 0.0
    %v9747 = vmax.f32 %v9731, 0.0
    %v9748 = vmax.f32 %v9732, 0.0
    %v9749 = vpack.c.bf16 %v9737, %v9733
    %v9750 = vpack.c.bf16 %v9738, %v9734
    %v9751 = vpack.c.bf16 %v9739, %v9735
    %v9752 = vpack.c.bf16 %v9740, %v9736
    %v9753 = vpack.c.bf16 %v9745, %v9741
    %v9754 = vpack.c.bf16 %v9746, %v9742
    %v9755 = vpack.c.bf16 %v9747, %v9743
    %v9756 = vpack.c.bf16 %v9748, %v9744
    %v9757 = vld [vmem:[%s23] sm:$0xf]
    %v9758 = vld [vmem:[%s23 + $0x4] sm:$0xf]
    %v9759 = vld [vmem:[%s23 + $0x8] sm:$0xf]
    %v9760 = vld [vmem:[%s23 + $0xc] sm:$0xf]
    %v9761 = vld [vmem:[%s23 + $0x10] sm:$0xf]
    %v9762 = vld [vmem:[%s23 + $0x14] sm:$0xf]
    %v9763 = vld [vmem:[%s23 + $0x18] sm:$0xf]
    %v9771 = vunpack.c.l.b16 %v9757
    %v9772 = vunpack.c.l.b16 %v9758
    %v9773 = vunpack.c.l.b16 %v9759
    %v9774 = vunpack.c.l.b16 %v9760
    %v9775 = vunpack.c.l.b16 %v9761
    %v9776 = vunpack.c.l.b16 %v9762
    %v9777 = vunpack.c.l.b16 %v9763
    %v9778 = vpack.c.b16 %v9772, %v9771
    %v9779 = vpack.c.b16 %v9774, %v9773
    %v9780 = vpack.c.b16 %v9776, %v9775
    %v9781 = vpack.c.b16 %v9777, %v9777
    %vm9782 = vcmask 244736
    %v9784 = vsel %vm9782, %v9778, 0
    %v9787 = vsel %vm9782, %v9779, 0
    %v9790 = vsel %vm9782, %v9780, 0
    %v9793 = vsel %vm9782, %v9781, 0
    %vm9795 = vcmask 1046528
    %v9797 = vsel %vm9795, %v9753, 0
    %v9800 = vsel %vm9795, %v9754, 0
    %v9803 = vsel %vm9795, %v9755, 0
    %v9806 = vsel %vm9795, %v9756, 0
    %9808 = vmatprep.subr.bf16.mxu0 0
    %9809 = vmatpush1.bf16.msra.mxu0 0
    %9810 = vmatprep.subr.bf16.mxu0 0
    %9811 = vmatpush1.bf16.msra.mxu0 0
    %9812 = vmatprep.subr.bf16.mxu0 0
    %9813 = vmatpush1.bf16.msra.mxu0 0
    %9814 = vmatprep.subr.bf16.mxu0 0
    %9815 = vmatpush1.bf16.msra.mxu0 0
    %9816 = vmatprep.subr.bf16.mxu0 0
    %9817 = vmatpush1.bf16.msra.mxu0 0
    %9818 = vmatprep.subr.bf16.mxu0 0
    %9819 = vmatpush1.bf16.msra.mxu0 0
    %9820 = vmatprep.subr.bf16.mxu0 %v9800
    %9821 = vmatpush1.bf16.msra.mxu0 %v9797
    %9822 = vmatprep.subr.bf16.mxu0 %v9750
    %9823 = vmatpush1.bf16.msra.mxu0 %v9749
    %9824 = vmatprep.subr.bf16.mxu0 0
    %9825 = vmatpush2.bf16.msra.mxu0 0
    %9826 = vmatprep.subr.bf16.mxu0 0
    %9827 = vmatpush2.bf16.msra.mxu0 0
    %9828 = vmatprep.subr.bf16.mxu0 0
    %9829 = vmatpush2.bf16.msra.mxu0 0
    %9830 = vmatprep.subr.bf16.mxu0 0
    %9831 = vmatpush2.bf16.msra.mxu0 0
    %9832 = vmatprep.subr.bf16.mxu0 0
    %9833 = vmatpush2.bf16.msra.mxu0 0
    %9834 = vmatprep.subr.bf16.mxu0 0
    %9835 = vmatpush2.bf16.msra.mxu0 0
    %9836 = vmatprep.subr.bf16.mxu0 0
    %9837 = vmatpush2.bf16.msra.mxu0 0
    %9838 = vmatprep.subr.bf16.mxu0 0
    %9839 = vmatpush2.bf16.msra.mxu0 0
    %9840 = vmatprep.mubr.bf16.mxu0 0
    %9841 = vmatmul.mubr.bf16.gmra.mxu0 %v9784
    %v9842 = vpop.f32.mrf.mxu0
    %v9843 = vadd.f32 0.0, %v9842
    %v9844 = vpop.f32.mrf.mxu0
    %v9845 = vadd.f32 0.0, %v9844
    %v9846 = vpop.f32.mrf.mxu0
    %v9847 = vadd.f32 0.0, %v9846
    %v9848 = vpop.f32.mrf.mxu0
    %v9849 = vadd.f32 0.0, %v9848
    %9850 = vmatprep.mubr.bf16.mxu0 0
    %9851 = vmatmul.mubr.bf16.gmra.mxu0 %v9787
    %v9852 = vpop.f32.mrf.mxu0
    %v9853 = vadd.f32 0.0, %v9852
    %v9854 = vpop.f32.mrf.mxu0
    %v9855 = vadd.f32 0.0, %v9854
    %v9856 = vpop.f32.mrf.mxu0
    %v9857 = vadd.f32 0.0, %v9856
    %v9858 = vpop.f32.mrf.mxu0
    %v9859 = vadd.f32 0.0, %v9858
    %9860 = vmatprep.mubr.bf16.mxu0 0
    %9861 = vmatmul.mubr.bf16.gmra.mxu0 %v9790
    %v9862 = vpop.f32.mrf.mxu0
    %v9863 = vadd.f32 0.0, %v9862
    %v9864 = vpop.f32.mrf.mxu0
    %v9865 = vadd.f32 0.0, %v9864
    %v9866 = vpop.f32.mrf.mxu0
    %v9867 = vadd.f32 0.0, %v9866
    %v9868 = vpop.f32.mrf.mxu0
    %v9869 = vadd.f32 0.0, %v9868
    %9870 = vmatprep.mubr.bf16.mxu0 0
    %9871 = vmatmul.mubr.bf16.gmra.mxu0 %v9793
    %v9872 = vpop.f32.mrf.mxu0
    %v9873 = vadd.f32 0.0, %v9872
    %v9874 = vpop.f32.mrf.mxu0
    %v9875 = vadd.f32 0.0, %v9874
    %v9876 = vpop.f32.mrf.mxu0
    %v9877 = vpop.f32.mrf.mxu0
    %9878 = vdwg.mxu0
    %9879 = vmatprep.subr.bf16.mxu0 0
    %9880 = vmatpush1.bf16.msra.mxu0 0
    %9881 = vmatprep.subr.bf16.mxu0 0
    %9882 = vmatpush1.bf16.msra.mxu0 0
    %9883 = vmatprep.subr.bf16.mxu0 0
    %9884 = vmatpush1.bf16.msra.mxu0 0
    %9885 = vmatprep.subr.bf16.mxu0 0
    %9886 = vmatpush1.bf16.msra.mxu0 0
    %9887 = vmatprep.subr.bf16.mxu0 0
    %9888 = vmatpush1.bf16.msra.mxu0 0
    %9889 = vmatprep.subr.bf16.mxu0 0
    %9890 = vmatpush1.bf16.msra.mxu0 0
    %9891 = vmatprep.subr.bf16.mxu0 %v9806
    %9892 = vmatpush1.bf16.msra.mxu0 %v9803
    %9893 = vmatprep.subr.bf16.mxu0 %v9752
    %9894 = vmatpush1.bf16.msra.mxu0 %v9751
    %9895 = vmatprep.subr.bf16.mxu0 0
    %9896 = vmatpush2.bf16.msra.mxu0 0
    %9897 = vmatprep.subr.bf16.mxu0 0
    %9898 = vmatpush2.bf16.msra.mxu0 0
    %9899 = vmatprep.subr.bf16.mxu0 0
    %9900 = vmatpush2.bf16.msra.mxu0 0
    %9901 = vmatprep.subr.bf16.mxu0 0
    %9902 = vmatpush2.bf16.msra.mxu0 0
    %9903 = vmatprep.subr.bf16.mxu0 0
    %9904 = vmatpush2.bf16.msra.mxu0 0
    %9905 = vmatprep.subr.bf16.mxu0 0
    %9906 = vmatpush2.bf16.msra.mxu0 0
    %9907 = vmatprep.subr.bf16.mxu0 0
    %9908 = vmatpush2.bf16.msra.mxu0 0
    %9909 = vmatprep.subr.bf16.mxu0 0
    %9910 = vmatpush2.bf16.msra.mxu0 0
    %9911 = vmatprep.mubr.bf16.mxu0 0
    %9912 = vmatmul.mubr.bf16.gmra.mxu0 %v9784
    %v9913 = vpop.f32.mrf.mxu0
    %v9914 = vadd.f32 0.0, %v9913
    %v9915 = vpop.f32.mrf.mxu0
    %v9916 = vadd.f32 0.0, %v9915
    %v9917 = vpop.f32.mrf.mxu0
    %v9918 = vadd.f32 0.0, %v9917
    %v9919 = vpop.f32.mrf.mxu0
    %v9920 = vadd.f32 0.0, %v9919
    %9921 = vmatprep.mubr.bf16.mxu0 0
    %9922 = vmatmul.mubr.bf16.gmra.mxu0 %v9787
    %v9923 = vpop.f32.mrf.mxu0
    %v9924 = vadd.f32 0.0, %v9923
    %v9925 = vpop.f32.mrf.mxu0
    %v9926 = vadd.f32 0.0, %v9925
    %v9927 = vpop.f32.mrf.mxu0
    %v9928 = vadd.f32 0.0, %v9927
    %v9929 = vpop.f32.mrf.mxu0
    %v9930 = vadd.f32 0.0, %v9929
    %9931 = vmatprep.mubr.bf16.mxu0 0
    %9932 = vmatmul.mubr.bf16.gmra.mxu0 %v9790
    %v9933 = vpop.f32.mrf.mxu0
    %v9934 = vadd.f32 0.0, %v9933
    %v9935 = vpop.f32.mrf.mxu0
    %v9936 = vadd.f32 0.0, %v9935
    %v9937 = vpop.f32.mrf.mxu0
    %v9938 = vadd.f32 0.0, %v9937
    %v9939 = vpop.f32.mrf.mxu0
    %v9940 = vadd.f32 0.0, %v9939
    %9941 = vmatprep.mubr.bf16.mxu0 0
    %9942 = vmatmul.mubr.bf16.gmra.mxu0 %v9793
    %v9943 = vpop.f32.mrf.mxu0
    %v9944 = vadd.f32 0.0, %v9943
    %v9945 = vpop.f32.mrf.mxu0
    %v9946 = vadd.f32 0.0, %v9945
    %v9947 = vpop.f32.mrf.mxu0
    %v9948 = vpop.f32.mrf.mxu0
    %9949 = vdwg.mxu0
    %v9950 = vpack.c.bf16 %v9847, %v9843
    %v9951 = vpack.c.bf16 %v9849, %v9845
    %v9952 = vpack.c.bf16 %v9918, %v9914
    %v9953 = vpack.c.bf16 %v9920, %v9916
    %v9954 = vpack.c.bf16 %v9857, %v9853
    %v9955 = vpack.c.bf16 %v9859, %v9855
    %v9956 = vpack.c.bf16 %v9928, %v9924
    %v9957 = vpack.c.bf16 %v9930, %v9926
    %v9958 = vpack.c.bf16 %v9867, %v9863
    %v9959 = vpack.c.bf16 %v9869, %v9865
    %v9960 = vpack.c.bf16 %v9938, %v9934
    %v9961 = vpack.c.bf16 %v9940, %v9936
    %v9962 = vpack.c.bf16 %v9873, %v9873
    %v9963 = vpack.c.bf16 %v9875, %v9875
    %v9964 = vpack.c.bf16 %v9944, %v9944
    %v9965 = vpack.c.bf16 %v9946, %v9946
    %v9966 = vld [vmem:[%s24] sm:$0xf]
    %v9967 = vld [vmem:[%s24 + $0x4] sm:$0xf]
    %v9968 = vld [vmem:[%s24 + $0x8] sm:$0xf]
    %v9969 = vld [vmem:[%s24 + $0xc] sm:$0xf]
    %v9970 = vld [vmem:[%s24 + $0x10] sm:$0xf]
    %v9971 = vld [vmem:[%s24 + $0x14] sm:$0xf]
    %v9972 = vld [vmem:[%s24 + $0x18] sm:$0xf]
    %v9973 = vld [vmem:[%s24 + $0x1c] sm:$0xf]
    %v9974 = vld [vmem:[%s24 + $0x20] sm:$0xf]
    %v9975 = vld [vmem:[%s24 + $0x24] sm:$0xf]
    %v9976 = vld [vmem:[%s24 + $0x28] sm:$0xf]
    %v9977 = vld [vmem:[%s24 + $0x2c] sm:$0xf]
    %v9978 = vld [vmem:[%s24 + $0x30] sm:$0xf]
    %v9979 = vld [vmem:[%s24 + $0x34] sm:$0xf]
    %v9980 = vld [vmem:[%s24 + $0x38] sm:$0xf]
    %v9981 = vld [vmem:[%s24 + $0x3c] sm:$0xf]
    %v9982 = vld [vmem:[%s24 + $0x40] sm:$0xf]
    %v9983 = vld [vmem:[%s24 + $0x44] sm:$0xf]
    %v9984 = vld [vmem:[%s24 + $0x48] sm:$0xf]
    %v9985 = vld [vmem:[%s24 + $0x4c] sm:$0xf]
    %v9986 = vld [vmem:[%s24 + $0x50] sm:$0xf]
    %v9987 = vld [vmem:[%s24 + $0x54] sm:$0xf]
    %v9988 = vld [vmem:[%s24 + $0x58] sm:$0xf]
    %v9989 = vld [vmem:[%s24 + $0x5c] sm:$0xf]
    %v9990 = vld [vmem:[%s24 + $0x60] sm:$0xf]
    %v9991 = vld [vmem:[%s24 + $0x64] sm:$0xf]
    %v9992 = vld [vmem:[%s24 + $0x68] sm:$0xf]
    %v9993 = vld [vmem:[%s24 + $0x6c] sm:$0xf]
    %v9994 = vld [vmem:[%s24 + $0x70] sm:$0xf]
    %v9995 = vld [vmem:[%s24 + $0x74] sm:$0xf]
    %v9996 = vld [vmem:[%s24 + $0x78] sm:$0xf]
    %v9997 = vld [vmem:[%s24 + $0x7c] sm:$0xf]
    %v9998 = vld [vmem:[%s24 + $0x80] sm:$0xf]
    %v9999 = vld [vmem:[%s24 + $0x84] sm:$0xf]
    %v10000 = vld [vmem:[%s24 + $0x88] sm:$0xf]
    %v10001 = vld [vmem:[%s24 + $0x8c] sm:$0xf]
    %v10002 = vld [vmem:[%s24 + $0x90] sm:$0xf]
    %v10003 = vld [vmem:[%s24 + $0x94] sm:$0xf]
    %v10004 = vld [vmem:[%s24 + $0x98] sm:$0xf]
    %v10005 = vld [vmem:[%s24 + $0x9c] sm:$0xf]
    %v10006 = vld [vmem:[%s24 + $0xa0] sm:$0xf]
    %v10007 = vld [vmem:[%s24 + $0xa4] sm:$0xf]
    %v10008 = vld [vmem:[%s24 + $0xa8] sm:$0xf]
    %v10009 = vld [vmem:[%s24 + $0xac] sm:$0xf]
    %v10010 = vld [vmem:[%s24 + $0xb0] sm:$0xf]
    %v10011 = vld [vmem:[%s24 + $0xb4] sm:$0xf]
    %v10012 = vld [vmem:[%s24 + $0xb8] sm:$0xf]
    %v10013 = vld [vmem:[%s24 + $0xbc] sm:$0xf]
    %v10014 = vld [vmem:[%s24 + $0xc0] sm:$0xf]
    %v10015 = vld [vmem:[%s24 + $0xc4] sm:$0xf]
    %v10016 = vld [vmem:[%s24 + $0xc8] sm:$0xf]
    %v10017 = vld [vmem:[%s24 + $0xcc] sm:$0xf]
    %v10018 = vld [vmem:[%s24 + $0xd0] sm:$0xf]
    %v10019 = vld [vmem:[%s24 + $0xd4] sm:$0xf]
    %v10020 = vld [vmem:[%s24 + $0xd8] sm:$0xf]
    %v10021 = vld [vmem:[%s24 + $0xdc] sm:$0xf]
    %v10022 = vld [vmem:[%s24 + $0xe0] sm:$0xf]
    %v10023 = vld [vmem:[%s24 + $0xe4] sm:$0xf]
    %v10024 = vld [vmem:[%s24 + $0xe8] sm:$0xf]
    %v10025 = vld [vmem:[%s24 + $0xec] sm:$0xf]
    %s10026 = scalar_lea.vmem %s23, 28
    %v10027 = vld [vmem:[%s10026] sm:$0xf]
    %v10028 = vld [vmem:[%s10026 + $0x4] sm:$0xf]
    %v10029 = vld [vmem:[%s10026 + $0x8] sm:$0xf]
    %v10030 = vld [vmem:[%s10026 + $0xc] sm:$0xf]
    %v10031 = vld [vmem:[%s10026 + $0x10] sm:$0xf]
    %v10032 = vld [vmem:[%s10026 + $0x14] sm:$0xf]
    %v10033 = vld [vmem:[%s10026 + $0x18] sm:$0xf]
    %v10041 = vunpack.c.l.b16 %v10027
    %v10042 = vunpack.c.l.b16 %v10028
    %v10043 = vunpack.c.l.b16 %v10029
    %v10044 = vunpack.c.l.b16 %v10030
    %v10045 = vunpack.c.l.b16 %v10031
    %v10046 = vunpack.c.l.b16 %v10032
    %v10047 = vunpack.c.l.b16 %v10033
    %v10048 = vpack.c.b16 %v10042, %v10041
    %v10049 = vpack.c.b16 %v10044, %v10043
    %v10050 = vpack.c.b16 %v10046, %v10045
    %v10051 = vpack.c.b16 %v10047, %v10047
    %v10053 = vsel %vm9782, %v10048, 0
    %v10056 = vsel %vm9782, %v10049, 0
    %v10059 = vsel %vm9782, %v10050, 0
    %v10062 = vsel %vm9782, %v10051, 0
    %10064 = vmatprep.subr.bf16.mxu0 0
    %10065 = vmatpush1.bf16.msra.mxu0 0
    %10066 = vmatprep.subr.bf16.mxu0 0
    %10067 = vmatpush1.bf16.msra.mxu0 0
    %10068 = vmatprep.subr.bf16.mxu0 0
    %10069 = vmatpush1.bf16.msra.mxu0 0
    %10070 = vmatprep.subr.bf16.mxu0 0
    %10071 = vmatpush1.bf16.msra.mxu0 0
    %10072 = vmatprep.subr.bf16.mxu0 0
    %10073 = vmatpush1.bf16.msra.mxu0 0
    %10074 = vmatprep.subr.bf16.mxu0 0
    %10075 = vmatpush1.bf16.msra.mxu0 0
    %10076 = vmatprep.subr.bf16.mxu0 %v9800
    %10077 = vmatpush1.bf16.msra.mxu0 %v9797
    %10078 = vmatprep.subr.bf16.mxu0 %v9750
    %10079 = vmatpush1.bf16.msra.mxu0 %v9749
    %10080 = vmatprep.subr.bf16.mxu0 0
    %10081 = vmatpush2.bf16.msra.mxu0 0
    %10082 = vmatprep.subr.bf16.mxu0 0
    %10083 = vmatpush2.bf16.msra.mxu0 0
    %10084 = vmatprep.subr.bf16.mxu0 0
    %10085 = vmatpush2.bf16.msra.mxu0 0
    %10086 = vmatprep.subr.bf16.mxu0 0
    %10087 = vmatpush2.bf16.msra.mxu0 0
    %10088 = vmatprep.subr.bf16.mxu0 0
    %10089 = vmatpush2.bf16.msra.mxu0 0
    %10090 = vmatprep.subr.bf16.mxu0 0
    %10091 = vmatpush2.bf16.msra.mxu0 0
    %10092 = vmatprep.subr.bf16.mxu0 0
    %10093 = vmatpush2.bf16.msra.mxu0 0
    %10094 = vmatprep.subr.bf16.mxu0 0
    %10095 = vmatpush2.bf16.msra.mxu0 0
    %10096 = vmatprep.mubr.bf16.mxu0 0
    %10097 = vmatmul.mubr.bf16.gmra.mxu0 %v10053
    %v10098 = vpop.f32.mrf.mxu0
    %v10099 = vadd.f32 0.0, %v10098
    %v10100 = vpop.f32.mrf.mxu0
    %v10101 = vadd.f32 0.0, %v10100
    %v10102 = vpop.f32.mrf.mxu0
    %v10103 = vadd.f32 0.0, %v10102
    %v10104 = vpop.f32.mrf.mxu0
    %v10105 = vadd.f32 0.0, %v10104
    %10106 = vmatprep.mubr.bf16.mxu0 0
    %10107 = vmatmul.mubr.bf16.gmra.mxu0 %v10056
    %v10108 = vpop.f32.mrf.mxu0
    %v10109 = vadd.f32 0.0, %v10108
    %v10110 = vpop.f32.mrf.mxu0
    %v10111 = vadd.f32 0.0, %v10110
    %v10112 = vpop.f32.mrf.mxu0
    %v10113 = vadd.f32 0.0, %v10112
    %v10114 = vpop.f32.mrf.mxu0
    %v10115 = vadd.f32 0.0, %v10114
    %10116 = vmatprep.mubr.bf16.mxu0 0
    %10117 = vmatmul.mubr.bf16.gmra.mxu0 %v10059
    %v10118 = vpop.f32.mrf.mxu0
    %v10119 = vadd.f32 0.0, %v10118
    %v10120 = vpop.f32.mrf.mxu0
    %v10121 = vadd.f32 0.0, %v10120
    %v10122 = vpop.f32.mrf.mxu0
    %v10123 = vadd.f32 0.0, %v10122
    %v10124 = vpop.f32.mrf.mxu0
    %v10125 = vadd.f32 0.0, %v10124
    %10126 = vmatprep.mubr.bf16.mxu0 0
    %10127 = vmatmul.mubr.bf16.gmra.mxu0 %v10062
    %v10128 = vpop.f32.mrf.mxu0
    %v10129 = vadd.f32 0.0, %v10128
    %v10130 = vpop.f32.mrf.mxu0
    %v10131 = vadd.f32 0.0, %v10130
    %v10132 = vpop.f32.mrf.mxu0
    %v10133 = vpop.f32.mrf.mxu0
    %10134 = vdwg.mxu0
    %10135 = vmatprep.subr.bf16.mxu0 0
    %10136 = vmatpush1.bf16.msra.mxu0 0
    %10137 = vmatprep.subr.bf16.mxu0 0
    %10138 = vmatpush1.bf16.msra.mxu0 0
    %10139 = vmatprep.subr.bf16.mxu0 0
    %10140 = vmatpush1.bf16.msra.mxu0 0
    %10141 = vmatprep.subr.bf16.mxu0 0
    %10142 = vmatpush1.bf16.msra.mxu0 0
    %10143 = vmatprep.subr.bf16.mxu0 0
    %10144 = vmatpush1.bf16.msra.mxu0 0
    %10145 = vmatprep.subr.bf16.mxu0 0
    %10146 = vmatpush1.bf16.msra.mxu0 0
    %10147 = vmatprep.subr.bf16.mxu0 %v9806
    %10148 = vmatpush1.bf16.msra.mxu0 %v9803
    %10149 = vmatprep.subr.bf16.mxu0 %v9752
    %10150 = vmatpush1.bf16.msra.mxu0 %v9751
    %10151 = vmatprep.subr.bf16.mxu0 0
    %10152 = vmatpush2.bf16.msra.mxu0 0
    %10153 = vmatprep.subr.bf16.mxu0 0
    %10154 = vmatpush2.bf16.msra.mxu0 0
    %10155 = vmatprep.subr.bf16.mxu0 0
    %10156 = vmatpush2.bf16.msra.mxu0 0
    %10157 = vmatprep.subr.bf16.mxu0 0
    %10158 = vmatpush2.bf16.msra.mxu0 0
    %10159 = vmatprep.subr.bf16.mxu0 0
    %10160 = vmatpush2.bf16.msra.mxu0 0
    %10161 = vmatprep.subr.bf16.mxu0 0
    %10162 = vmatpush2.bf16.msra.mxu0 0
    %10163 = vmatprep.subr.bf16.mxu0 0
    %10164 = vmatpush2.bf16.msra.mxu0 0
    %10165 = vmatprep.subr.bf16.mxu0 0
    %10166 = vmatpush2.bf16.msra.mxu0 0
    %10167 = vmatprep.mubr.bf16.mxu0 0
    %10168 = vmatmul.mubr.bf16.gmra.mxu0 %v10053
    %v10169 = vpop.f32.mrf.mxu0
    %v10170 = vadd.f32 0.0, %v10169
    %v10171 = vpop.f32.mrf.mxu0
    %v10172 = vadd.f32 0.0, %v10171
    %v10173 = vpop.f32.mrf.mxu0
    %v10174 = vadd.f32 0.0, %v10173
    %v10175 = vpop.f32.mrf.mxu0
    %v10176 = vadd.f32 0.0, %v10175
    %10177 = vmatprep.mubr.bf16.mxu0 0
    %10178 = vmatmul.mubr.bf16.gmra.mxu0 %v10056
    %v10179 = vpop.f32.mrf.mxu0
    %v10180 = vadd.f32 0.0, %v10179
    %v10181 = vpop.f32.mrf.mxu0
    %v10182 = vadd.f32 0.0, %v10181
    %v10183 = vpop.f32.mrf.mxu0
    %v10184 = vadd.f32 0.0, %v10183
    %v10185 = vpop.f32.mrf.mxu0
    %v10186 = vadd.f32 0.0, %v10185
    %10187 = vmatprep.mubr.bf16.mxu0 0
    %10188 = vmatmul.mubr.bf16.gmra.mxu0 %v10059
    %v10189 = vpop.f32.mrf.mxu0
    %v10190 = vadd.f32 0.0, %v10189
    %v10191 = vpop.f32.mrf.mxu0
    %v10192 = vadd.f32 0.0, %v10191
    %v10193 = vpop.f32.mrf.mxu0
    %v10194 = vadd.f32 0.0, %v10193
    %v10195 = vpop.f32.mrf.mxu0
    %v10196 = vadd.f32 0.0, %v10195
    %10197 = vmatprep.mubr.bf16.mxu0 0
    %10198 = vmatmul.mubr.bf16.gmra.mxu0 %v10062
    %v10199 = vpop.f32.mrf.mxu0
    %v10200 = vadd.f32 0.0, %v10199
    %v10201 = vpop.f32.mrf.mxu0
    %v10202 = vadd.f32 0.0, %v10201
    %v10203 = vpop.f32.mrf.mxu0
    %v10204 = vpop.f32.mrf.mxu0
    %10205 = vdwg.mxu0
    %v10206 = vpack.c.bf16 %v10103, %v10099
    %v10207 = vpack.c.bf16 %v10105, %v10101
    %v10208 = vpack.c.bf16 %v10174, %v10170
    %v10209 = vpack.c.bf16 %v10176, %v10172
    %v10210 = vpack.c.bf16 %v10113, %v10109
    %v10211 = vpack.c.bf16 %v10115, %v10111
    %v10212 = vpack.c.bf16 %v10184, %v10180
    %v10213 = vpack.c.bf16 %v10186, %v10182
    %v10214 = vpack.c.bf16 %v10123, %v10119
    %v10215 = vpack.c.bf16 %v10125, %v10121
    %v10216 = vpack.c.bf16 %v10194, %v10190
    %v10217 = vpack.c.bf16 %v10196, %v10192
    %v10218 = vpack.c.bf16 %v10129, %v10129
    %v10219 = vpack.c.bf16 %v10131, %v10131
    %v10220 = vpack.c.bf16 %v10200, %v10200
    %v10221 = vpack.c.bf16 %v10202, %v10202
    %s10222 = scalar_lea.vmem %s24, 240
    %v10223 = vld [vmem:[%s10222] sm:$0xf]
    %v10224 = vld [vmem:[%s10222 + $0x4] sm:$0xf]
    %v10225 = vld [vmem:[%s10222 + $0x8] sm:$0xf]
    %v10226 = vld [vmem:[%s10222 + $0xc] sm:$0xf]
    %v10227 = vld [vmem:[%s10222 + $0x10] sm:$0xf]
    %v10228 = vld [vmem:[%s10222 + $0x14] sm:$0xf]
    %v10229 = vld [vmem:[%s10222 + $0x18] sm:$0xf]
    %v10230 = vld [vmem:[%s10222 + $0x1c] sm:$0xf]
    %v10231 = vld [vmem:[%s10222 + $0x20] sm:$0xf]
    %v10232 = vld [vmem:[%s10222 + $0x24] sm:$0xf]
    %v10233 = vld [vmem:[%s10222 + $0x28] sm:$0xf]
    %v10234 = vld [vmem:[%s10222 + $0x2c] sm:$0xf]
    %v10235 = vld [vmem:[%s10222 + $0x30] sm:$0xf]
    %v10236 = vld [vmem:[%s10222 + $0x34] sm:$0xf]
    %v10237 = vld [vmem:[%s10222 + $0x38] sm:$0xf]
    %v10238 = vld [vmem:[%s10222 + $0x3c] sm:$0xf]
    %v10239 = vld [vmem:[%s10222 + $0x40] sm:$0xf]
    %v10240 = vld [vmem:[%s10222 + $0x44] sm:$0xf]
    %v10241 = vld [vmem:[%s10222 + $0x48] sm:$0xf]
    %v10242 = vld [vmem:[%s10222 + $0x4c] sm:$0xf]
    %v10243 = vld [vmem:[%s10222 + $0x50] sm:$0xf]
    %v10244 = vld [vmem:[%s10222 + $0x54] sm:$0xf]
    %v10245 = vld [vmem:[%s10222 + $0x58] sm:$0xf]
    %v10246 = vld [vmem:[%s10222 + $0x5c] sm:$0xf]
    %v10247 = vld [vmem:[%s10222 + $0x60] sm:$0xf]
    %v10248 = vld [vmem:[%s10222 + $0x64] sm:$0xf]
    %v10249 = vld [vmem:[%s10222 + $0x68] sm:$0xf]
    %v10250 = vld [vmem:[%s10222 + $0x6c] sm:$0xf]
    %v10251 = vld [vmem:[%s10222 + $0x70] sm:$0xf]
    %v10252 = vld [vmem:[%s10222 + $0x74] sm:$0xf]
    %v10253 = vld [vmem:[%s10222 + $0x78] sm:$0xf]
    %v10254 = vld [vmem:[%s10222 + $0x7c] sm:$0xf]
    %v10255 = vld [vmem:[%s10222 + $0x80] sm:$0xf]
    %v10256 = vld [vmem:[%s10222 + $0x84] sm:$0xf]
    %v10257 = vld [vmem:[%s10222 + $0x88] sm:$0xf]
    %v10258 = vld [vmem:[%s10222 + $0x8c] sm:$0xf]
    %v10259 = vld [vmem:[%s10222 + $0x90] sm:$0xf]
    %v10260 = vld [vmem:[%s10222 + $0x94] sm:$0xf]
    %v10261 = vld [vmem:[%s10222 + $0x98] sm:$0xf]
    %v10262 = vld [vmem:[%s10222 + $0x9c] sm:$0xf]
    %v10263 = vld [vmem:[%s10222 + $0xa0] sm:$0xf]
    %v10264 = vld [vmem:[%s10222 + $0xa4] sm:$0xf]
    %v10265 = vld [vmem:[%s10222 + $0xa8] sm:$0xf]
    %v10266 = vld [vmem:[%s10222 + $0xac] sm:$0xf]
    %v10267 = vld [vmem:[%s10222 + $0xb0] sm:$0xf]
    %v10268 = vld [vmem:[%s10222 + $0xb4] sm:$0xf]
    %v10269 = vld [vmem:[%s10222 + $0xb8] sm:$0xf]
    %v10270 = vld [vmem:[%s10222 + $0xbc] sm:$0xf]
    %v10271 = vld [vmem:[%s10222 + $0xc0] sm:$0xf]
    %v10272 = vld [vmem:[%s10222 + $0xc4] sm:$0xf]
    %v10273 = vld [vmem:[%s10222 + $0xc8] sm:$0xf]
    %v10274 = vld [vmem:[%s10222 + $0xcc] sm:$0xf]
    %v10275 = vld [vmem:[%s10222 + $0xd0] sm:$0xf]
    %v10276 = vld [vmem:[%s10222 + $0xd4] sm:$0xf]
    %v10277 = vld [vmem:[%s10222 + $0xd8] sm:$0xf]
    %v10278 = vld [vmem:[%s10222 + $0xdc] sm:$0xf]
    %v10279 = vld [vmem:[%s10222 + $0xe0] sm:$0xf]
    %v10280 = vld [vmem:[%s10222 + $0xe4] sm:$0xf]
    %v10281 = vld [vmem:[%s10222 + $0xe8] sm:$0xf]
    %v10282 = vld [vmem:[%s10222 + $0xec] sm:$0xf]
    %v10343 = vunpack.c.l.b16 %v10223
    %v10344 = vunpack.c.l.b16 %v10224
    %v10345 = vunpack.c.l.b16 %v10225
    %v10346 = vunpack.c.l.b16 %v10226
    %v10347 = vunpack.c.l.b16 %v10227
    %v10348 = vunpack.c.l.b16 %v10228
    %v10349 = vunpack.c.l.b16 %v10229
    %v10350 = vunpack.c.l.b16 %v10230
    %v10351 = vunpack.c.l.b16 %v10231
    %v10352 = vunpack.c.l.b16 %v10232
    %v10353 = vunpack.c.l.b16 %v10233
    %v10354 = vunpack.c.l.b16 %v10234
    %v10355 = vunpack.c.l.b16 %v10235
    %v10356 = vunpack.c.l.b16 %v10236
    %v10357 = vunpack.c.l.b16 %v10237
    %v10358 = vunpack.c.l.b16 %v10238
    %v10359 = vunpack.c.l.b16 %v10239
    %v10360 = vunpack.c.l.b16 %v10240
    %v10361 = vunpack.c.l.b16 %v10241
    %v10362 = vunpack.c.l.b16 %v10242
    %v10363 = vunpack.c.l.b16 %v10243
    %v10364 = vunpack.c.l.b16 %v10244
    %v10365 = vunpack.c.l.b16 %v10245
    %v10366 = vunpack.c.l.b16 %v10246
    %v10367 = vunpack.c.l.b16 %v10247
    %v10368 = vunpack.c.l.b16 %v10248
    %v10369 = vunpack.c.l.b16 %v10249
    %v10370 = vunpack.c.l.b16 %v10250
    %v10371 = vunpack.c.l.b16 %v10251
    %v10372 = vunpack.c.l.b16 %v10252
    %v10373 = vunpack.c.l.b16 %v10253
    %v10374 = vunpack.c.l.b16 %v10254
    %v10375 = vunpack.c.l.b16 %v10255
    %v10376 = vunpack.c.l.b16 %v10256
    %v10377 = vunpack.c.l.b16 %v10257
    %v10378 = vunpack.c.l.b16 %v10258
    %v10379 = vunpack.c.l.b16 %v10259
    %v10380 = vunpack.c.l.b16 %v10260
    %v10381 = vunpack.c.l.b16 %v10261
    %v10382 = vunpack.c.l.b16 %v10262
    %v10383 = vunpack.c.l.b16 %v10263
    %v10384 = vunpack.c.l.b16 %v10264
    %v10385 = vunpack.c.l.b16 %v10265
    %v10386 = vunpack.c.l.b16 %v10266
    %v10387 = vunpack.c.l.b16 %v10267
    %v10388 = vunpack.c.l.b16 %v10268
    %v10389 = vunpack.c.l.b16 %v10269
    %v10390 = vunpack.c.l.b16 %v10270
    %v10391 = vunpack.c.l.b16 %v10271
    %v10392 = vunpack.c.l.b16 %v10272
    %v10393 = vunpack.c.l.b16 %v10273
    %v10394 = vunpack.c.l.b16 %v10274
    %v10395 = vunpack.c.l.b16 %v10275
    %v10396 = vunpack.c.l.b16 %v10276
    %v10397 = vunpack.c.l.b16 %v10277
    %v10398 = vunpack.c.l.b16 %v10278
    %v10399 = vunpack.c.l.b16 %v10279
    %v10400 = vunpack.c.l.b16 %v10280
    %v10401 = vunpack.c.l.b16 %v10281
    %v10402 = vunpack.c.l.b16 %v10282
    %v10403 = vpack.c.b16 %v10344, %v10343
    %v10404 = vpack.c.b16 %v10346, %v10345
    %v10405 = vpack.c.b16 %v10348, %v10347
    %v10406 = vpack.c.b16 %v10350, %v10349
    %v10407 = vpack.c.b16 %v10352, %v10351
    %v10408 = vpack.c.b16 %v10354, %v10353
    %v10409 = vpack.c.b16 %v10356, %v10355
    %v10410 = vpack.c.b16 %v10358, %v10357
    %v10411 = vpack.c.b16 %v10360, %v10359
    %v10412 = vpack.c.b16 %v10362, %v10361
    %v10413 = vpack.c.b16 %v10364, %v10363
    %v10414 = vpack.c.b16 %v10366, %v10365
    %v10415 = vpack.c.b16 %v10368, %v10367
    %v10416 = vpack.c.b16 %v10370, %v10369
    %v10417 = vpack.c.b16 %v10372, %v10371
    %v10418 = vpack.c.b16 %v10374, %v10373
    %v10419 = vpack.c.b16 %v10376, %v10375
    %v10420 = vpack.c.b16 %v10378, %v10377
    %v10421 = vpack.c.b16 %v10380, %v10379
    %v10422 = vpack.c.b16 %v10382, %v10381
    %v10423 = vpack.c.b16 %v10384, %v10383
    %v10424 = vpack.c.b16 %v10386, %v10385
    %v10425 = vpack.c.b16 %v10388, %v10387
    %v10426 = vpack.c.b16 %v10390, %v10389
    %v10427 = vpack.c.b16 %v10392, %v10391
    %v10428 = vpack.c.b16 %v10394, %v10393
    %v10429 = vpack.c.b16 %v10396, %v10395
    %v10430 = vpack.c.b16 %v10398, %v10397
    %v10431 = vpack.c.b16 %v10400, %v10399
    %v10432 = vpack.c.b16 %v10402, %v10401
    %vm10463 = vcmask 785408
    %v10465 = vsel %vm10463, %v10209, 0
    %v10468 = vsel %vm10463, %v10213, 0
    %v10471 = vsel %vm10463, %v10217, 0
    %v10474 = vsel %vm10463, %v10221, 0
    %10476 = vmatprep.subr.bf16.mxu0 0
    %10477 = vmatpush1.bf16.msra.mxu0 %v10410
    %10478 = vmatprep.subr.bf16.mxu0 0
    %10479 = vmatpush1.bf16.msra.mxu0 %v10409
    %10480 = vmatprep.subr.bf16.mxu0 0
    %10481 = vmatpush1.bf16.msra.mxu0 %v10408
    %10482 = vmatprep.subr.bf16.mxu0 0
    %10483 = vmatpush1.bf16.msra.mxu0 %v10407
    %10484 = vmatprep.subr.bf16.mxu0 0
    %10485 = vmatpush1.bf16.msra.mxu0 %v10406
    %10486 = vmatprep.subr.bf16.mxu0 0
    %10487 = vmatpush1.bf16.msra.mxu0 %v10405
    %10488 = vmatprep.subr.bf16.mxu0 0
    %10489 = vmatpush1.bf16.msra.mxu0 %v10404
    %10490 = vmatprep.subr.bf16.mxu0 0
    %10491 = vmatpush1.bf16.msra.mxu0 %v10403
    %10492 = vmatprep.subr.bf16.mxu0 0
    %10493 = vmatpush2.bf16.msra.mxu0 %v10418
    %10494 = vmatprep.subr.bf16.mxu0 0
    %10495 = vmatpush2.bf16.msra.mxu0 %v10417
    %10496 = vmatprep.subr.bf16.mxu0 0
    %10497 = vmatpush2.bf16.msra.mxu0 %v10416
    %10498 = vmatprep.subr.bf16.mxu0 0
    %10499 = vmatpush2.bf16.msra.mxu0 %v10415
    %10500 = vmatprep.subr.bf16.mxu0 0
    %10501 = vmatpush2.bf16.msra.mxu0 %v10414
    %10502 = vmatprep.subr.bf16.mxu0 0
    %10503 = vmatpush2.bf16.msra.mxu0 %v10413
    %10504 = vmatprep.subr.bf16.mxu0 0
    %10505 = vmatpush2.bf16.msra.mxu0 %v10412
    %10506 = vmatprep.subr.bf16.mxu0 0
    %10507 = vmatpush2.bf16.msra.mxu0 %v10411
    %10508 = vmatprep.mubr.bf16.mxu0 %v10207
    %10509 = vmatmul.mubr.bf16.gmra.mxu0 %v10206
    %v10510 = vpop.f32.mrf.mxu0
    %v10511 = vadd.f32 0.0, %v10510
    %v10512 = vpop.f32.mrf.mxu0
    %v10513 = vpop.f32.mrf.mxu0
    %v10514 = vadd.f32 0.0, %v10513
    %v10515 = vpop.f32.mrf.mxu0
    %10516 = vmatprep.mubr.bf16.mxu0 %v10211
    %10517 = vmatmul.mubr.bf16.gmra.mxu0 %v10210
    %v10518 = vpop.f32.mrf.mxu0
    %v10519 = vadd.f32 0.0, %v10518
    %v10520 = vpop.f32.mrf.mxu0
    %v10521 = vpop.f32.mrf.mxu0
    %v10522 = vadd.f32 0.0, %v10521
    %v10523 = vpop.f32.mrf.mxu0
    %10524 = vmatprep.mubr.bf16.mxu0 %v10215
    %10525 = vmatmul.mubr.bf16.gmra.mxu0 %v10214
    %v10526 = vpop.f32.mrf.mxu0
    %v10527 = vadd.f32 0.0, %v10526
    %v10528 = vpop.f32.mrf.mxu0
    %v10529 = vpop.f32.mrf.mxu0
    %v10530 = vadd.f32 0.0, %v10529
    %v10531 = vpop.f32.mrf.mxu0
    %10532 = vmatprep.mubr.bf16.mxu0 %v10219
    %10533 = vmatmul.mubr.bf16.gmra.mxu0 %v10218
    %v10534 = vpop.f32.mrf.mxu0
    %v10535 = vadd.f32 0.0, %v10534
    %v10536 = vpop.f32.mrf.mxu0
    %v10537 = vpop.f32.mrf.mxu0
    %v10538 = vpop.f32.mrf.mxu0
    %10539 = vdwg.mxu0
    %10540 = vmatprep.subr.bf16.mxu0 0
    %10541 = vmatpush1.bf16.msra.mxu0 %v10426
    %10542 = vmatprep.subr.bf16.mxu0 0
    %10543 = vmatpush1.bf16.msra.mxu0 %v10425
    %10544 = vmatprep.subr.bf16.mxu0 0
    %10545 = vmatpush1.bf16.msra.mxu0 %v10424
    %10546 = vmatprep.subr.bf16.mxu0 0
    %10547 = vmatpush1.bf16.msra.mxu0 %v10423
    %10548 = vmatprep.subr.bf16.mxu0 0
    %10549 = vmatpush1.bf16.msra.mxu0 %v10422
    %10550 = vmatprep.subr.bf16.mxu0 0
    %10551 = vmatpush1.bf16.msra.mxu0 %v10421
    %10552 = vmatprep.subr.bf16.mxu0 0
    %10553 = vmatpush1.bf16.msra.mxu0 %v10420
    %10554 = vmatprep.subr.bf16.mxu0 0
    %10555 = vmatpush1.bf16.msra.mxu0 %v10419
    %10556 = vmatprep.subr.bf16.mxu0 0
    %10557 = vmatpush2.bf16.msra.mxu0 0
    %10558 = vmatprep.subr.bf16.mxu0 0
    %10559 = vmatpush2.bf16.msra.mxu0 0
    %10560 = vmatprep.subr.bf16.mxu0 0
    %10561 = vmatpush2.bf16.msra.mxu0 %v10432
    %10562 = vmatprep.subr.bf16.mxu0 0
    %10563 = vmatpush2.bf16.msra.mxu0 %v10431
    %10564 = vmatprep.subr.bf16.mxu0 0
    %10565 = vmatpush2.bf16.msra.mxu0 %v10430
    %10566 = vmatprep.subr.bf16.mxu0 0
    %10567 = vmatpush2.bf16.msra.mxu0 %v10429
    %10568 = vmatprep.subr.bf16.mxu0 0
    %10569 = vmatpush2.bf16.msra.mxu0 %v10428
    %10570 = vmatprep.subr.bf16.mxu0 0
    %10571 = vmatpush2.bf16.msra.mxu0 %v10427
    %10572 = vmatprep.mubr.bf16.mxu0 %v10465
    %10573 = vmatmul.mubr.bf16.gmra.mxu0 %v10208
    %v10574 = vpop.f32.mrf.mxu0
    %v10575 = vadd.f32 %v10511, %v10574
    %v10576 = vpop.f32.mrf.mxu0
    %v10577 = vpop.f32.mrf.mxu0
    %v10578 = vadd.f32 %v10514, %v10577
    %v10579 = vpop.f32.mrf.mxu0
    %10580 = vmatprep.mubr.bf16.mxu0 %v10468
    %10581 = vmatmul.mubr.bf16.gmra.mxu0 %v10212
    %v10582 = vpop.f32.mrf.mxu0
    %v10583 = vadd.f32 %v10519, %v10582
    %v10584 = vpop.f32.mrf.mxu0
    %v10585 = vpop.f32.mrf.mxu0
    %v10586 = vadd.f32 %v10522, %v10585
    %v10587 = vpop.f32.mrf.mxu0
    %10588 = vmatprep.mubr.bf16.mxu0 %v10471
    %10589 = vmatmul.mubr.bf16.gmra.mxu0 %v10216
    %v10590 = vpop.f32.mrf.mxu0
    %v10591 = vadd.f32 %v10527, %v10590
    %v10592 = vpop.f32.mrf.mxu0
    %v10593 = vpop.f32.mrf.mxu0
    %v10594 = vadd.f32 %v10530, %v10593
    %v10595 = vpop.f32.mrf.mxu0
    %10596 = vmatprep.mubr.bf16.mxu0 %v10474
    %10597 = vmatmul.mubr.bf16.gmra.mxu0 %v10220
    %v10598 = vpop.f32.mrf.mxu0
    %v10599 = vadd.f32 %v10535, %v10598
    %v10600 = vpop.f32.mrf.mxu0
    %v10601 = vpop.f32.mrf.mxu0
    %v10602 = vpop.f32.mrf.mxu0
    %10603 = vdwg.mxu0
    %v10664 = vunpack.c.l.b16 %v9966
    %v10665 = vunpack.c.l.b16 %v9967
    %v10666 = vunpack.c.l.b16 %v9968
    %v10667 = vunpack.c.l.b16 %v9969
    %v10668 = vunpack.c.l.b16 %v9970
    %v10669 = vunpack.c.l.b16 %v9971
    %v10670 = vunpack.c.l.b16 %v9972
    %v10671 = vunpack.c.l.b16 %v9973
    %v10672 = vunpack.c.l.b16 %v9974
    %v10673 = vunpack.c.l.b16 %v9975
    %v10674 = vunpack.c.l.b16 %v9976
    %v10675 = vunpack.c.l.b16 %v9977
    %v10676 = vunpack.c.l.b16 %v9978
    %v10677 = vunpack.c.l.b16 %v9979
    %v10678 = vunpack.c.l.b16 %v9980
    %v10679 = vunpack.c.l.b16 %v9981
    %v10680 = vunpack.c.l.b16 %v9982
    %v10681 = vunpack.c.l.b16 %v9983
    %v10682 = vunpack.c.l.b16 %v9984
    %v10683 = vunpack.c.l.b16 %v9985
    %v10684 = vunpack.c.l.b16 %v9986
    %v10685 = vunpack.c.l.b16 %v9987
    %v10686 = vunpack.c.l.b16 %v9988
    %v10687 = vunpack.c.l.b16 %v9989
    %v10688 = vunpack.c.l.b16 %v9990
    %v10689 = vunpack.c.l.b16 %v9991
    %v10690 = vunpack.c.l.b16 %v9992
    %v10691 = vunpack.c.l.b16 %v9993
    %v10692 = vunpack.c.l.b16 %v9994
    %v10693 = vunpack.c.l.b16 %v9995
    %v10694 = vunpack.c.l.b16 %v9996
    %v10695 = vunpack.c.l.b16 %v9997
    %v10696 = vunpack.c.l.b16 %v9998
    %v10697 = vunpack.c.l.b16 %v9999
    %v10698 = vunpack.c.l.b16 %v10000
    %v10699 = vunpack.c.l.b16 %v10001
    %v10700 = vunpack.c.l.b16 %v10002
    %v10701 = vunpack.c.l.b16 %v10003
    %v10702 = vunpack.c.l.b16 %v10004
    %v10703 = vunpack.c.l.b16 %v10005
    %v10704 = vunpack.c.l.b16 %v10006
    %v10705 = vunpack.c.l.b16 %v10007
    %v10706 = vunpack.c.l.b16 %v10008
    %v10707 = vunpack.c.l.b16 %v10009
    %v10708 = vunpack.c.l.b16 %v10010
    %v10709 = vunpack.c.l.b16 %v10011
    %v10710 = vunpack.c.l.b16 %v10012
    %v10711 = vunpack.c.l.b16 %v10013
    %v10712 = vunpack.c.l.b16 %v10014
    %v10713 = vunpack.c.l.b16 %v10015
    %v10714 = vunpack.c.l.b16 %v10016
    %v10715 = vunpack.c.l.b16 %v10017
    %v10716 = vunpack.c.l.b16 %v10018
    %v10717 = vunpack.c.l.b16 %v10019
    %v10718 = vunpack.c.l.b16 %v10020
    %v10719 = vunpack.c.l.b16 %v10021
    %v10720 = vunpack.c.l.b16 %v10022
    %v10721 = vunpack.c.l.b16 %v10023
    %v10722 = vunpack.c.l.b16 %v10024
    %v10723 = vunpack.c.l.b16 %v10025
    %v10724 = vpack.c.b16 %v10665, %v10664
    %v10725 = vpack.c.b16 %v10667, %v10666
    %v10726 = vpack.c.b16 %v10669, %v10668
    %v10727 = vpack.c.b16 %v10671, %v10670
    %v10728 = vpack.c.b16 %v10673, %v10672
    %v10729 = vpack.c.b16 %v10675, %v10674
    %v10730 = vpack.c.b16 %v10677, %v10676
    %v10731 = vpack.c.b16 %v10679, %v10678
    %v10732 = vpack.c.b16 %v10681, %v10680
    %v10733 = vpack.c.b16 %v10683, %v10682
    %v10734 = vpack.c.b16 %v10685, %v10684
    %v10735 = vpack.c.b16 %v10687, %v10686
    %v10736 = vpack.c.b16 %v10689, %v10688
    %v10737 = vpack.c.b16 %v10691, %v10690
    %v10738 = vpack.c.b16 %v10693, %v10692
    %v10739 = vpack.c.b16 %v10695, %v10694
    %v10740 = vpack.c.b16 %v10697, %v10696
    %v10741 = vpack.c.b16 %v10699, %v10698
    %v10742 = vpack.c.b16 %v10701, %v10700
    %v10743 = vpack.c.b16 %v10703, %v10702
    %v10744 = vpack.c.b16 %v10705, %v10704
    %v10745 = vpack.c.b16 %v10707, %v10706
    %v10746 = vpack.c.b16 %v10709, %v10708
    %v10747 = vpack.c.b16 %v10711, %v10710
    %v10748 = vpack.c.b16 %v10713, %v10712
    %v10749 = vpack.c.b16 %v10715, %v10714
    %v10750 = vpack.c.b16 %v10717, %v10716
    %v10751 = vpack.c.b16 %v10719, %v10718
    %v10752 = vpack.c.b16 %v10721, %v10720
    %v10753 = vpack.c.b16 %v10723, %v10722
    %v10785 = vsel %vm10463, %v9953, 0
    %v10788 = vsel %vm10463, %v9957, 0
    %v10791 = vsel %vm10463, %v9961, 0
    %v10794 = vsel %vm10463, %v9965, 0
    %10796 = vmatprep.subr.bf16.mxu0 0
    %10797 = vmatpush1.bf16.msra.mxu0 %v10731
    %10798 = vmatprep.subr.bf16.mxu0 0
    %10799 = vmatpush1.bf16.msra.mxu0 %v10730
    %10800 = vmatprep.subr.bf16.mxu0 0
    %10801 = vmatpush1.bf16.msra.mxu0 %v10729
    %10802 = vmatprep.subr.bf16.mxu0 0
    %10803 = vmatpush1.bf16.msra.mxu0 %v10728
    %10804 = vmatprep.subr.bf16.mxu0 0
    %10805 = vmatpush1.bf16.msra.mxu0 %v10727
    %10806 = vmatprep.subr.bf16.mxu0 0
    %10807 = vmatpush1.bf16.msra.mxu0 %v10726
    %10808 = vmatprep.subr.bf16.mxu0 0
    %10809 = vmatpush1.bf16.msra.mxu0 %v10725
    %10810 = vmatprep.subr.bf16.mxu0 0
    %10811 = vmatpush1.bf16.msra.mxu0 %v10724
    %10812 = vmatprep.subr.bf16.mxu0 0
    %10813 = vmatpush2.bf16.msra.mxu0 %v10739
    %10814 = vmatprep.subr.bf16.mxu0 0
    %10815 = vmatpush2.bf16.msra.mxu0 %v10738
    %10816 = vmatprep.subr.bf16.mxu0 0
    %10817 = vmatpush2.bf16.msra.mxu0 %v10737
    %10818 = vmatprep.subr.bf16.mxu0 0
    %10819 = vmatpush2.bf16.msra.mxu0 %v10736
    %10820 = vmatprep.subr.bf16.mxu0 0
    %10821 = vmatpush2.bf16.msra.mxu0 %v10735
    %10822 = vmatprep.subr.bf16.mxu0 0
    %10823 = vmatpush2.bf16.msra.mxu0 %v10734
    %10824 = vmatprep.subr.bf16.mxu0 0
    %10825 = vmatpush2.bf16.msra.mxu0 %v10733
    %10826 = vmatprep.subr.bf16.mxu0 0
    %10827 = vmatpush2.bf16.msra.mxu0 %v10732
    %10828 = vmatprep.mubr.bf16.mxu0 %v9951
    %10829 = vmatmul.mubr.bf16.gmra.mxu0 %v9950
    %v10830 = vpop.f32.mrf.mxu0
    %v10831 = vadd.f32 %v10575, %v10830
    %v10832 = vpop.f32.mrf.mxu0
    %v10833 = vpop.f32.mrf.mxu0
    %v10834 = vadd.f32 %v10578, %v10833
    %v10835 = vpop.f32.mrf.mxu0
    %10836 = vmatprep.mubr.bf16.mxu0 %v9955
    %10837 = vmatmul.mubr.bf16.gmra.mxu0 %v9954
    %v10838 = vpop.f32.mrf.mxu0
    %v10839 = vadd.f32 %v10583, %v10838
    %v10840 = vpop.f32.mrf.mxu0
    %v10841 = vpop.f32.mrf.mxu0
    %v10842 = vadd.f32 %v10586, %v10841
    %v10843 = vpop.f32.mrf.mxu0
    %10844 = vmatprep.mubr.bf16.mxu0 %v9959
    %10845 = vmatmul.mubr.bf16.gmra.mxu0 %v9958
    %v10846 = vpop.f32.mrf.mxu0
    %v10847 = vadd.f32 %v10591, %v10846
    %v10848 = vpop.f32.mrf.mxu0
    %v10849 = vpop.f32.mrf.mxu0
    %v10850 = vadd.f32 %v10594, %v10849
    %v10851 = vpop.f32.mrf.mxu0
    %10852 = vmatprep.mubr.bf16.mxu0 %v9963
    %10853 = vmatmul.mubr.bf16.gmra.mxu0 %v9962
    %v10854 = vpop.f32.mrf.mxu0
    %v10855 = vadd.f32 %v10599, %v10854
    %v10856 = vpop.f32.mrf.mxu0
    %v10857 = vpop.f32.mrf.mxu0
    %v10858 = vpop.f32.mrf.mxu0
    %10859 = vdwg.mxu0
    %10860 = vmatprep.subr.bf16.mxu0 0
    %10861 = vmatpush1.bf16.msra.mxu0 %v10747
    %10862 = vmatprep.subr.bf16.mxu0 0
    %10863 = vmatpush1.bf16.msra.mxu0 %v10746
    %10864 = vmatprep.subr.bf16.mxu0 0
    %10865 = vmatpush1.bf16.msra.mxu0 %v10745
    %10866 = vmatprep.subr.bf16.mxu0 0
    %10867 = vmatpush1.bf16.msra.mxu0 %v10744
    %10868 = vmatprep.subr.bf16.mxu0 0
    %10869 = vmatpush1.bf16.msra.mxu0 %v10743
    %10870 = vmatprep.subr.bf16.mxu0 0
    %10871 = vmatpush1.bf16.msra.mxu0 %v10742
    %10872 = vmatprep.subr.bf16.mxu0 0
    %10873 = vmatpush1.bf16.msra.mxu0 %v10741
    %10874 = vmatprep.subr.bf16.mxu0 0
    %10875 = vmatpush1.bf16.msra.mxu0 %v10740
    %10876 = vmatprep.subr.bf16.mxu0 0
    %10877 = vmatpush2.bf16.msra.mxu0 0
    %10878 = vmatprep.subr.bf16.mxu0 0
    %10879 = vmatpush2.bf16.msra.mxu0 0
    %10880 = vmatprep.subr.bf16.mxu0 0
    %10881 = vmatpush2.bf16.msra.mxu0 %v10753
    %10882 = vmatprep.subr.bf16.mxu0 0
    %10883 = vmatpush2.bf16.msra.mxu0 %v10752
    %10884 = vmatprep.subr.bf16.mxu0 0
    %10885 = vmatpush2.bf16.msra.mxu0 %v10751
    %10886 = vmatprep.subr.bf16.mxu0 0
    %10887 = vmatpush2.bf16.msra.mxu0 %v10750
    %10888 = vmatprep.subr.bf16.mxu0 0
    %10889 = vmatpush2.bf16.msra.mxu0 %v10749
    %10890 = vmatprep.subr.bf16.mxu0 0
    %10891 = vmatpush2.bf16.msra.mxu0 %v10748
    %10892 = vmatprep.mubr.bf16.mxu0 %v10785
    %10893 = vmatmul.mubr.bf16.gmra.mxu0 %v9952
    %v10894 = vpop.f32.mrf.mxu0
    %v10895 = vadd.f32 %v10831, %v10894
    %v10896 = vpop.f32.mrf.mxu0
    %v10897 = vpop.f32.mrf.mxu0
    %v10898 = vadd.f32 %v10834, %v10897
    %v10899 = vpop.f32.mrf.mxu0
    %10900 = vmatprep.mubr.bf16.mxu0 %v10788
    %10901 = vmatmul.mubr.bf16.gmra.mxu0 %v9956
    %v10902 = vpop.f32.mrf.mxu0
    %v10903 = vadd.f32 %v10839, %v10902
    %v10904 = vpop.f32.mrf.mxu0
    %v10905 = vpop.f32.mrf.mxu0
    %v10906 = vadd.f32 %v10842, %v10905
    %v10907 = vpop.f32.mrf.mxu0
    %10908 = vmatprep.mubr.bf16.mxu0 %v10791
    %10909 = vmatmul.mubr.bf16.gmra.mxu0 %v9960
    %v10910 = vpop.f32.mrf.mxu0
    %v10911 = vadd.f32 %v10847, %v10910
    %v10912 = vpop.f32.mrf.mxu0
    %v10913 = vpop.f32.mrf.mxu0
    %v10914 = vadd.f32 %v10850, %v10913
    %v10915 = vpop.f32.mrf.mxu0
    %10916 = vmatprep.mubr.bf16.mxu0 %v10794
    %10917 = vmatmul.mubr.bf16.gmra.mxu0 %v9964
    %v10918 = vpop.f32.mrf.mxu0
    %v10919 = vadd.f32 %v10855, %v10918
    %v10920 = vpop.f32.mrf.mxu0
    %v10921 = vpop.f32.mrf.mxu0
    %v10922 = vpop.f32.mrf.mxu0
    %10923 = vdwg.mxu0
    %v10924 = vld [vmem:[%s25] sm:$0xff]
    %v10925 = vld [vmem:[%s25 + $0x8] sm:$0xff]
    %v10926 = vld [vmem:[%s25 + $0x10] sm:$0xff]
    %v10927 = vld [vmem:[%s25 + $0x18] sm:$0xff]
    %v10928 = vld [vmem:[%s25 + $0x20] sm:$0xff]
    %v10929 = vld [vmem:[%s25 + $0x28] sm:$0xff]
    %v10930 = vld [vmem:[%s25 + $0x30] sm:$0xff]
    %v10931 = vadd.f32 %v10895, %v10924
    %v10932 = vadd.f32 %v10898, %v10925
    %v10933 = vadd.f32 %v10903, %v10926
    %v10934 = vadd.f32 %v10906, %v10927
    %v10935 = vadd.f32 %v10911, %v10928
    %v10936 = vadd.f32 %v10914, %v10929
    %v10937 = vadd.f32 %v10919, %v10930
    %v10938 = vsub.f32 0.0, %v10931
    %v10939 = vsub.f32 0.0, %v10932
    %v10940 = vsub.f32 0.0, %v10933
    %v10941 = vsub.f32 0.0, %v10934
    %v10942 = vsub.f32 0.0, %v10935
    %v10943 = vsub.f32 0.0, %v10936
    %v10944 = vsub.f32 0.0, %v10937
    %v10945 = vmul.f32 %v10938, 1.442695
    %v10946 = vpow.pop %v10945
    %v10947 = vmul.f32 %v10939, 1.442695
    %v10948 = vpow.pop %v10947
    %v10949 = vmul.f32 %v10940, 1.442695
    %v10950 = vpow.pop %v10949
    %v10951 = vmul.f32 %v10941, 1.442695
    %v10952 = vpow.pop %v10951
    %v10953 = vmul.f32 %v10942, 1.442695
    %v10954 = vpow.pop %v10953
    %v10955 = vmul.f32 %v10943, 1.442695
    %v10956 = vpow.pop %v10955
    %v10957 = vmul.f32 %v10944, 1.442695
    %v10958 = vpow.pop %v10957
    %v10959 = vadd.f32 %v10946, 1.0
    %v10960 = vadd.f32 %v10948, 1.0
    %v10961 = vadd.f32 %v10950, 1.0
    %v10962 = vadd.f32 %v10952, 1.0
    %v10963 = vadd.f32 %v10954, 1.0
    %v10964 = vadd.f32 %v10956, 1.0
    %v10965 = vadd.f32 %v10958, 1.0
    %v10966 = vrcp.pop %v10959
    %v10967 = vrcp.pop %v10960
    %v10968 = vrcp.pop %v10961
    %v10969 = vrcp.pop %v10962
    %v10970 = vrcp.pop %v10963
    %v10971 = vrcp.pop %v10964
    %v10972 = vrcp.pop %v10965
    %v10973 = vmax.f32 %v10966, 0.0
    %v10974 = vmax.f32 %v10967, 0.0
    %v10975 = vmax.f32 %v10968, 0.0
    %v10976 = vmax.f32 %v10969, 0.0
    %v10977 = vmax.f32 %v10970, 0.0
    %v10978 = vmax.f32 %v10971, 0.0
    %v10979 = vmax.f32 %v10972, 0.0
    %v10980 = vmin.f32 %v10973, 1.0
    %v10981 = vmin.f32 %v10974, 1.0
    %v10982 = vmin.f32 %v10975, 1.0
    %v10983 = vmin.f32 %v10976, 1.0
    %v10984 = vmin.f32 %v10977, 1.0
    %v10985 = vmin.f32 %v10978, 1.0
    %v10986 = vmin.f32 %v10979, 1.0
    %10987 = vst.msk [vmem:[#allocation17] sm:$0xff] %vm398, %v10980
    %10988 = vst.msk [vmem:[#allocation17 + $0x8] sm:$0xff] %vm398, %v10981
    %10989 = vst.msk [vmem:[#allocation17 + $0x10] sm:$0xff] %vm398, %v10982
    %10990 = vst.msk [vmem:[#allocation17 + $0x18] sm:$0xff] %vm398, %v10983
    %10991 = vst.msk [vmem:[#allocation17 + $0x20] sm:$0xff] %vm398, %v10984
    %10992 = vst.msk [vmem:[#allocation17 + $0x28] sm:$0xff] %vm398, %v10985
    %10993 = vst.msk [vmem:[#allocation17 + $0x30] sm:$0xff] %vm398, %v10986
    // Predicated region
    $region142: #{autoencoder_forward.1} parent=1 // pred_check
      _
    $region143: #{autoencoder_forward.1} parent=1 // pred_check_branch
      %10995 = sbr.rel (0) target = $region145
    $region144: #{autoencoder_forward.1} parent=1 // pred_region
      %s10997 = ssub.s32 896, 896
      %10998 = vsyncadd [#allocation4], %s10997
      %s10999 = sshll.u32 [#allocation17], 4
      %s11000 = int_to_ptr.vmem [resolvable:$true] %s10999
      %11005 = dma.vmem_to_hbm [thread:$0]  %s11000, 896, %s26, [#allocation4], 128, 128, 8
    $region145: #{autoencoder_forward.1} parent=1 // pred_fallthru
      _
    // Predicated region
    $region146: #{autoencoder_forward.1} parent=1 // pred_check
      _
    $region147: #{autoencoder_forward.1} parent=1 // pred_check_branch
      %11007 = sbr.rel (0) target = $region149
    $region148: #{autoencoder_forward.1} parent=1 // pred_region
      %11008 = dma.done [#allocation4], 896
    $region149: #{autoencoder_forward.1} parent=1 // pred_fallthru
      _
    %11009 = vsyncpa [#allocation3], 1
    %11010 = vsyncpa [#allocation6], 1
    %11011 = vsyncpa [#allocation9], 1
    %11012 = vsyncpa [#allocation12], 1
    %11013 = vsyncpa [#allocation15], 1
    %11014 = vsyncpa [#allocation4], 1

</llo_original>
